<compile_context>
chip_gen: v6e
topology: v6e:2x2x1
jax: 0.10.0
libtpu: 0.0.40
codegen_flags: <defaults>
</compile_context>

<pallas_src>
import functools

import jax
import jax.numpy as jnp
from jax.experimental import pallas as pl
from jax.experimental.pallas import tpu as pltpu


def _round_up(x, m):
    return (x + m - 1) // m * m


def _pick_row_group(h, w, target_rows=256):
    """Largest divisor rg of H with rg*W <= target_rows (keeps the f32 acc
    at <= target_rows*128*4B = half the vreg file for Cpad = 128)."""
    rg = max(1, min(h, target_rows // max(w, 1)))
    while h % rg:
        rg -= 1
    return rg


# --------------------------------------------------------------------------
# Fused kernel: conv1+bn1+relu  ->  VMEM  ->  conv2+bn2+residual+relu
# --------------------------------------------------------------------------
def _basic_block_kernel(x_ref, w1_ref, w2_ref, shift_ref, o_ref,
                        xpad_ref, y1pad_ref, *, H, W, cpad, rg):
    # x_ref    : (H, W, Cpad)      bf16  input image (one batch element)
    # w1_ref   : (9, Cpad, Cpad)   bf16  conv1 taps, BN1 scale folded, tap = ky*3+kx
    # w2_ref   : (9, Cpad, Cpad)   bf16  conv2 taps, BN2 scale folded
    # shift_ref: (2, Cpad)         f32   [bn1 shift; bn2 shift]
    # o_ref    : (H*W, Cpad)       bf16  block output (lane-dense)
    # xpad_ref : (H+2, W+2, Cpad)  bf16  VMEM scratch: zero-haloed input
    # y1pad_ref: (H+2, W+2, Cpad)  bf16  VMEM scratch: zero-haloed intermediate
    n_groups = H // rg

    # Build the zero-haloed input entirely in VMEM (no XLA pad / extra HBM pass).
    xpad_ref[...] = jnp.zeros_like(xpad_ref)
    y1pad_ref[...] = jnp.zeros_like(y1pad_ref)
    xpad_ref[1:H + 1, 1:W + 1, :] = x_ref[...]

    def conv3x3(src_ref, w_ref, g):
        """3x3 conv for output rows [g*rg, (g+1)*rg): 9 shifted MXU matmuls."""
        r0 = g * rg
        acc = jnp.zeros((rg * W, cpad), jnp.float32)
        for ky in range(3):
            for kx in range(3):
                patch = src_ref[r0 + ky:r0 + ky + rg, kx:kx + W, :]
                acc += jnp.dot(patch.reshape(rg * W, cpad),
                               w_ref[ky * 3 + kx],
                               preferred_element_type=jnp.float32)
        return acc

    # ---- conv1 (scale folded) + shift + ReLU -> interior of y1pad (VMEM only) ----
    for g in range(n_groups):
        acc = conv3x3(xpad_ref, w1_ref, g)
        y1 = jnp.maximum(acc + shift_ref[0:1, :], 0.0)
        y1pad_ref[1 + g * rg:1 + (g + 1) * rg, 1:W + 1, :] = (
            y1.astype(jnp.bfloat16).reshape(rg, W, cpad))

    # ---- conv2 (scale folded) + shift + residual + ReLU -> output ----
    for g in range(n_groups):
        acc = conv3x3(y1pad_ref, w2_ref, g)
        res = x_ref[g * rg:(g + 1) * rg, :, :].reshape(rg * W, cpad)
        y2 = jnp.maximum(acc + shift_ref[1:2, :] + res.astype(jnp.float32), 0.0)
        o_ref[g * rg * W:(g + 1) * rg * W, :] = y2.astype(o_ref.dtype)


# --------------------------------------------------------------------------
# Parameter packing (layout-only glue, no per-step FLOPs)
# --------------------------------------------------------------------------
def pack_params(params, *, eps=1e-5):
    c_out, c_in = params["conv1_w"].shape[:2]
    assert c_out == c_in, "no-downsample BasicBlock requires inplanes == planes"
    cpad = _round_up(c_out, 128)

    def fold(w_oihw, gamma, beta, mean, var):
        scale = gamma / jnp.sqrt(var + eps)            # f32
        shift = beta - mean * scale
        # (Cout, Cin, kH, kW) -> (kH, kW, Cin, Cout) -> (9, Cin, Cout), tap = ky*3+kx
        w = jnp.transpose(w_oihw, (2, 3, 1, 0)).reshape(9, c_in, c_out)
        w = w * scale[None, None, :]                   # fold BN scale before bf16 cast
        w = jnp.pad(w, ((0, 0), (0, cpad - c_in), (0, cpad - c_out)))
        return (w.astype(jnp.bfloat16),
                jnp.pad(shift, (0, cpad - c_out)).astype(jnp.float32))

    w1, s1 = fold(params["conv1_w"], params["bn1_gamma"], params["bn1_beta"],
                  params["bn1_mean"], params["bn1_var"])
    w2, s2 = fold(params["conv2_w"], params["bn2_gamma"], params["bn2_beta"],
                  params["bn2_mean"], params["bn2_var"])
    return {"w1": w1, "w2": w2, "shifts": jnp.stack([s1, s2], axis=0)}


# --------------------------------------------------------------------------
# Chainable NHWC (channel-padded bf16) entry point — one pallas_call per block.
# --------------------------------------------------------------------------
def basic_block_nhwc(packed, x_nhwc, *, row_group_target=256):
    """x_nhwc: (B, H, W, Cpad) bf16, channel-padded to a multiple of 128.
    Returns (B, H, W, Cpad) bf16 (chainable between blocks, no relayout)."""
    B, H, W, cpad = x_nhwc.shape
    w1, w2, shifts = packed["w1"], packed["w2"], packed["shifts"]
    assert w1.shape == (9, cpad, cpad) and shifts.shape == (2, cpad)
    rg = _pick_row_group(H, W, row_group_target)

    kernel = functools.partial(_basic_block_kernel, H=H, W=W, cpad=cpad, rg=rg)

    # Resident VMEM: double-buffered in/out blocks + weights + the two padded
    # scratches; 2x headroom + 8 MiB for spills / compiler-internal scratch.
    resident = (2 * H * W * cpad * 2            # input block (bf16, 2 bufs)
                + 2 * H * W * cpad * 2          # output block
                + 2 * 2 * 9 * cpad * cpad * 2   # two weight tensors
                + 2 * 2 * cpad * 4              # BN shifts
                + 2 * (H + 2) * (W + 2) * cpad * 2)   # two padded VMEM scratches
    vmem_limit = int(min(max(2 * resident + (8 << 20), 32 << 20), 112 << 20))

    out = pl.pallas_call(
        kernel,
        out_shape=jax.ShapeDtypeStruct((B, H * W, cpad), jnp.bfloat16),
        grid_spec=pltpu.PrefetchScalarGridSpec(
            num_scalar_prefetch=0,
            grid=(B,),
            in_specs=[
                pl.BlockSpec((None, H, W, cpad), lambda b: (b, 0, 0, 0)),   # image
                pl.BlockSpec((9, cpad, cpad), lambda b: (0, 0, 0)),         # conv1 taps
                pl.BlockSpec((9, cpad, cpad), lambda b: (0, 0, 0)),         # conv2 taps
                pl.BlockSpec((2, cpad), lambda b: (0, 0)),                  # BN shifts
            ],
            out_specs=pl.BlockSpec((None, H * W, cpad), lambda b: (b, 0, 0)),
            scratch_shapes=[
                pltpu.VMEM((H + 2, W + 2, cpad), jnp.bfloat16),   # zero-haloed input
                pltpu.VMEM((H + 2, W + 2, cpad), jnp.bfloat16),   # zero-haloed y1
            ],
        ),
        compiler_params=pltpu.CompilerParams(
            dimension_semantics=("parallel",),
            vmem_limit_bytes=vmem_limit),
    )(x_nhwc, w1, w2, shifts)
    return out.reshape(B, H, W, cpad)


# --------------------------------------------------------------------------
# PyTorch-convention (NCHW f32) wrapper
# --------------------------------------------------------------------------
def basic_block_forward(params, x_nchw, *, eps=1e-5):
    B, C, H, W = x_nchw.shape
    assert params["conv1_w"].shape[0] == C, "inplanes must equal planes"
    packed = pack_params(params, eps=eps)
    cpad = packed["w1"].shape[-1]

    x = jnp.transpose(x_nchw, (0, 2, 3, 1)).astype(jnp.bfloat16)
    x = jnp.pad(x, ((0, 0), (0, 0), (0, 0), (0, cpad - C)))
    y = basic_block_nhwc(packed, x)
    y = y[..., :C]
    return jnp.transpose(y, (0, 3, 1, 2)).astype(jnp.float32)


# --------------------------------------------------------------------------
# Pure-JAX (XLA conv) reference, inference-mode BN, f32
# --------------------------------------------------------------------------
def _reference_forward(params, x_nchw, eps=1e-5):
    def conv(x, w):
        return jax.lax.conv_general_dilated(
            x, w, window_strides=(1, 1), padding="SAME",
            dimension_numbers=("NCHW", "OIHW", "NCHW"))

    def bn(y, g, b, m, v):
        scale = g / jnp.sqrt(v + eps)
        shift = b - m * scale
        return y * scale[None, :, None, None] + shift[None, :, None, None]

    out = conv(x_nchw, params["conv1_w"])
    out = jnp.maximum(bn(out, params["bn1_gamma"], params["bn1_beta"],
                         params["bn1_mean"], params["bn1_var"]), 0.0)
    out = conv(out, params["conv2_w"])
    out = bn(out, params["bn2_gamma"], params["bn2_beta"],
             params["bn2_mean"], params["bn2_var"])
    out = out + x_nchw
    return jnp.maximum(out, 0.0)


def init_params(key, planes):
    keys = jax.random.split(key, 10)
    fan_in = planes * 9
    std = (2.0 / fan_in) ** 0.5
    p = {
        "conv1_w": jax.random.normal(keys[0], (planes, planes, 3, 3), jnp.float32) * std,
        "conv2_w": jax.random.normal(keys[1], (planes, planes, 3, 3), jnp.float32) * std,
    }
    for i, name in enumerate(("bn1", "bn2")):
        k0 = 2 + 4 * i
        p[f"{name}_gamma"] = 1.0 + 0.1 * jax.random.normal(keys[k0 + 0], (planes,), jnp.float32)
        p[f"{name}_beta"] = 0.1 * jax.random.normal(keys[k0 + 1], (planes,), jnp.float32)
        p[f"{name}_mean"] = 0.1 * jax.random.normal(keys[k0 + 2], (planes,), jnp.float32)
        p[f"{name}_var"] = jax.random.uniform(keys[k0 + 3], (planes,), jnp.float32,
                                              minval=0.5, maxval=1.5)
    return p


if __name__ == "__main__":
    key = jax.random.PRNGKey(0)
    k_x, k_p = jax.random.split(key)

    B, C, H, W = 2, 32, 16, 16        # inplanes == planes (no downsample), stride=1
    x = jax.random.normal(k_x, (B, C, H, W), jnp.float32)
    params = init_params(k_p, planes=C)

    fwd = jax.jit(basic_block_forward)
    out = jax.block_until_ready(fwd(params, x))
    assert out.shape == (B, C, H, W), out.shape

    ref = jax.block_until_ready(_reference_forward(params, x))
    max_err = float(jnp.max(jnp.abs(out - ref)))
    # bf16 activations/weights vs. f32 reference across two chained 288-term
    # convolutions -> loose elementwise tolerance.
    assert jnp.allclose(out, ref, atol=1e-1, rtol=1e-1), max_err

    print("KERNEL_OK")
</pallas_src>

<mosaic_0001>
module attributes {stable_mosaic.version = 11 : i64} {
  func.func @_basic_block_kernel(%arg0: i32, %arg1: memref<1x16x16x128xbf16, #tpu.memory_space<vmem>>, %arg2: memref<9x128x128xbf16, #tpu.memory_space<vmem>>, %arg3: memref<9x128x128xbf16, #tpu.memory_space<vmem>>, %arg4: memref<2x128xf32, #tpu.memory_space<vmem>>, %arg5: memref<1x256x128xbf16, #tpu.memory_space<vmem>>, %arg6: memref<18x18x128xbf16, #tpu.memory_space<vmem>>, %arg7: memref<18x18x128xbf16, #tpu.memory_space<vmem>>) attributes {dimension_semantics = [#tpu.dimension_semantics<parallel>], iteration_bounds = array<i64: 2>, scalar_prefetch = 0 : i64, scratch_operands = 2 : i64, tpu.core_type = #tpu.core_type<tc>, window_params = [{transform_indices = @transform_0, window_bounds = array<i64: 1, 16, 16, 128>}, {pipeline_mode = #tpu.pipeline_mode<synchronous>, transform_indices = @transform_1, window_bounds = array<i64: 9, 128, 128>}, {pipeline_mode = #tpu.pipeline_mode<synchronous>, transform_indices = @transform_2, window_bounds = array<i64: 9, 128, 128>}, {pipeline_mode = #tpu.pipeline_mode<synchronous>, transform_indices = @transform_3, window_bounds = array<i64: 2, 128>}, {transform_indices = @transform_4, window_bounds = array<i64: 1, 256, 128>}]} {
    %cst = arith.constant 0.000000e+00 : bf16
    %0 = vector.broadcast %cst : bf16 to vector<18x18x128xbf16>
    %c0 = arith.constant 0 : index
    %c0_0 = arith.constant 0 : index
    %c0_1 = arith.constant 0 : index
    %1 = vector.load %arg6[%c0, %c0_0, %c0_1] : memref<18x18x128xbf16, #tpu.memory_space<vmem>>, vector<18x18x128xbf16>
    tpu.vector_store %arg6[%c0, %c0_0, %c0_1], %0 {strides = array<i32>} : memref<18x18x128xbf16, #tpu.memory_space<vmem>>, vector<18x18x128xbf16>,
    %cst_2 = arith.constant 0.000000e+00 : bf16
    %2 = vector.broadcast %cst_2 : bf16 to vector<18x18x128xbf16>
    %c0_3 = arith.constant 0 : index
    %c0_4 = arith.constant 0 : index
    %c0_5 = arith.constant 0 : index
    %3 = vector.load %arg7[%c0_3, %c0_4, %c0_5] : memref<18x18x128xbf16, #tpu.memory_space<vmem>>, vector<18x18x128xbf16>
    tpu.vector_store %arg7[%c0_3, %c0_4, %c0_5], %2 {strides = array<i32>} : memref<18x18x128xbf16, #tpu.memory_space<vmem>>, vector<18x18x128xbf16>,
    %c0_6 = arith.constant 0 : index
    %c0_7 = arith.constant 0 : index
    %c0_8 = arith.constant 0 : index
    %c0_9 = arith.constant 0 : index
    %4 = vector.load %arg1[%c0_6, %c0_7, %c0_8, %c0_9] : memref<1x16x16x128xbf16, #tpu.memory_space<vmem>>, vector<1x16x16x128xbf16>
    %5 = vector.shape_cast %4 : vector<1x16x16x128xbf16> to vector<16x16x128xbf16>
    %c1 = arith.constant 1 : index
    %c1_10 = arith.constant 1 : index
    %c0_11 = arith.constant 0 : index
    %6 = vector.load %arg6[%c1, %c1_10, %c0_11] : memref<18x18x128xbf16, #tpu.memory_space<vmem>>, vector<16x16x128xbf16>
    tpu.vector_store %arg6[%c1, %c1_10, %c0_11], %5 {strides = array<i32>} : memref<18x18x128xbf16, #tpu.memory_space<vmem>>, vector<16x16x128xbf16>,
    %cst_12 = arith.constant 0.000000e+00 : f32
    %7 = vector.broadcast %cst_12 : f32 to vector<256x128xf32>
    %c0_13 = arith.constant 0 : index
    %c0_14 = arith.constant 0 : index
    %c0_15 = arith.constant 0 : index
    %8 = vector.load %arg6[%c0_13, %c0_14, %c0_15] : memref<18x18x128xbf16, #tpu.memory_space<vmem>>, vector<16x16x128xbf16>
    %9 = vector.shape_cast %8 : vector<16x16x128xbf16> to vector<256x128xbf16>
    %c0_16 = arith.constant 0 : index
    %c0_17 = arith.constant 0 : index
    %c0_18 = arith.constant 0 : index
    %10 = vector.load %arg2[%c0_16, %c0_17, %c0_18] : memref<9x128x128xbf16, #tpu.memory_space<vmem>>, vector<1x128x128xbf16>
    %11 = vector.shape_cast %10 : vector<1x128x128xbf16> to vector<128x128xbf16>
    %cst_19 = arith.constant dense<0.000000e+00> : vector<256x128xf32>
    %12 = tpu.matmul %9, %11, %cst_19 {dimension_numbers = #tpu.dot_dimension_numbers<[1], [0], [0], [1], [0, 0, 1, 1], [], []>} : vector<256x128xbf16>, vector<128x128xbf16>, vector<256x128xf32> -> vector<256x128xf32>
    %13 = arith.addf %7, %12 : vector<256x128xf32>
    %c0_20 = arith.constant 0 : index
    %c1_21 = arith.constant 1 : index
    %c0_22 = arith.constant 0 : index
    %14 = vector.load %arg6[%c0_20, %c1_21, %c0_22] : memref<18x18x128xbf16, #tpu.memory_space<vmem>>, vector<16x16x128xbf16>
    %15 = vector.shape_cast %14 : vector<16x16x128xbf16> to vector<256x128xbf16>
    %c1_23 = arith.constant 1 : index
    %c0_24 = arith.constant 0 : index
    %c0_25 = arith.constant 0 : index
    %16 = vector.load %arg2[%c1_23, %c0_24, %c0_25] : memref<9x128x128xbf16, #tpu.memory_space<vmem>>, vector<1x128x128xbf16>
    %17 = vector.shape_cast %16 : vector<1x128x128xbf16> to vector<128x128xbf16>
    %cst_26 = arith.constant dense<0.000000e+00> : vector<256x128xf32>
    %18 = tpu.matmul %15, %17, %cst_26 {dimension_numbers = #tpu.dot_dimension_numbers<[1], [0], [0], [1], [0, 0, 1, 1], [], []>} : vector<256x128xbf16>, vector<128x128xbf16>, vector<256x128xf32> -> vector<256x128xf32>
    %19 = arith.addf %13, %18 : vector<256x128xf32>
    %c0_27 = arith.constant 0 : index
    %c2 = arith.constant 2 : index
    %c0_28 = arith.constant 0 : index
    %20 = vector.load %arg6[%c0_27, %c2, %c0_28] : memref<18x18x128xbf16, #tpu.memory_space<vmem>>, vector<16x16x128xbf16>
    %21 = vector.shape_cast %20 : vector<16x16x128xbf16> to vector<256x128xbf16>
    %c2_29 = arith.constant 2 : index
    %c0_30 = arith.constant 0 : index
    %c0_31 = arith.constant 0 : index
    %22 = vector.load %arg2[%c2_29, %c0_30, %c0_31] : memref<9x128x128xbf16, #tpu.memory_space<vmem>>, vector<1x128x128xbf16>
    %23 = vector.shape_cast %22 : vector<1x128x128xbf16> to vector<128x128xbf16>
    %cst_32 = arith.constant dense<0.000000e+00> : vector<256x128xf32>
    %24 = tpu.matmul %21, %23, %cst_32 {dimension_numbers = #tpu.dot_dimension_numbers<[1], [0], [0], [1], [0, 0, 1, 1], [], []>} : vector<256x128xbf16>, vector<128x128xbf16>, vector<256x128xf32> -> vector<256x128xf32>
    %25 = arith.addf %19, %24 : vector<256x128xf32>
    %c1_33 = arith.constant 1 : index
    %c0_34 = arith.constant 0 : index
    %c0_35 = arith.constant 0 : index
    %26 = vector.load %arg6[%c1_33, %c0_34, %c0_35] : memref<18x18x128xbf16, #tpu.memory_space<vmem>>, vector<16x16x128xbf16>
    %27 = vector.shape_cast %26 : vector<16x16x128xbf16> to vector<256x128xbf16>
    %c3 = arith.constant 3 : index
    %c0_36 = arith.constant 0 : index
    %c0_37 = arith.constant 0 : index
    %28 = vector.load %arg2[%c3, %c0_36, %c0_37] : memref<9x128x128xbf16, #tpu.memory_space<vmem>>, vector<1x128x128xbf16>
    %29 = vector.shape_cast %28 : vector<1x128x128xbf16> to vector<128x128xbf16>
    %cst_38 = arith.constant dense<0.000000e+00> : vector<256x128xf32>
    %30 = tpu.matmul %27, %29, %cst_38 {dimension_numbers = #tpu.dot_dimension_numbers<[1], [0], [0], [1], [0, 0, 1, 1], [], []>} : vector<256x128xbf16>, vector<128x128xbf16>, vector<256x128xf32> -> vector<256x128xf32>
    %31 = arith.addf %25, %30 : vector<256x128xf32>
    %c1_39 = arith.constant 1 : index
    %c1_40 = arith.constant 1 : index
    %c0_41 = arith.constant 0 : index
    %32 = vector.load %arg6[%c1_39, %c1_40, %c0_41] : memref<18x18x128xbf16, #tpu.memory_space<vmem>>, vector<16x16x128xbf16>
    %33 = vector.shape_cast %32 : vector<16x16x128xbf16> to vector<256x128xbf16>
    %c4 = arith.constant 4 : index
    %c0_42 = arith.constant 0 : index
    %c0_43 = arith.constant 0 : index
    %34 = vector.load %arg2[%c4, %c0_42, %c0_43] : memref<9x128x128xbf16, #tpu.memory_space<vmem>>, vector<1x128x128xbf16>
    %35 = vector.shape_cast %34 : vector<1x128x128xbf16> to vector<128x128xbf16>
    %cst_44 = arith.constant dense<0.000000e+00> : vector<256x128xf32>
    %36 = tpu.matmul %33, %35, %cst_44 {dimension_numbers = #tpu.dot_dimension_numbers<[1], [0], [0], [1], [0, 0, 1, 1], [], []>} : vector<256x128xbf16>, vector<128x128xbf16>, vector<256x128xf32> -> vector<256x128xf32>
    %37 = arith.addf %31, %36 : vector<256x128xf32>
    %c1_45 = arith.constant 1 : index
    %c2_46 = arith.constant 2 : index
    %c0_47 = arith.constant 0 : index
    %38 = vector.load %arg6[%c1_45, %c2_46, %c0_47] : memref<18x18x128xbf16, #tpu.memory_space<vmem>>, vector<16x16x128xbf16>
    %39 = vector.shape_cast %38 : vector<16x16x128xbf16> to vector<256x128xbf16>
    %c5 = arith.constant 5 : index
    %c0_48 = arith.constant 0 : index
    %c0_49 = arith.constant 0 : index
    %40 = vector.load %arg2[%c5, %c0_48, %c0_49] : memref<9x128x128xbf16, #tpu.memory_space<vmem>>, vector<1x128x128xbf16>
    %41 = vector.shape_cast %40 : vector<1x128x128xbf16> to vector<128x128xbf16>
    %cst_50 = arith.constant dense<0.000000e+00> : vector<256x128xf32>
    %42 = tpu.matmul %39, %41, %cst_50 {dimension_numbers = #tpu.dot_dimension_numbers<[1], [0], [0], [1], [0, 0, 1, 1], [], []>} : vector<256x128xbf16>, vector<128x128xbf16>, vector<256x128xf32> -> vector<256x128xf32>
    %43 = arith.addf %37, %42 : vector<256x128xf32>
    %c2_51 = arith.constant 2 : index
    %c0_52 = arith.constant 0 : index
    %c0_53 = arith.constant 0 : index
    %44 = vector.load %arg6[%c2_51, %c0_52, %c0_53] : memref<18x18x128xbf16, #tpu.memory_space<vmem>>, vector<16x16x128xbf16>
    %45 = vector.shape_cast %44 : vector<16x16x128xbf16> to vector<256x128xbf16>
    %c6 = arith.constant 6 : index
    %c0_54 = arith.constant 0 : index
    %c0_55 = arith.constant 0 : index
    %46 = vector.load %arg2[%c6, %c0_54, %c0_55] : memref<9x128x128xbf16, #tpu.memory_space<vmem>>, vector<1x128x128xbf16>
    %47 = vector.shape_cast %46 : vector<1x128x128xbf16> to vector<128x128xbf16>
    %cst_56 = arith.constant dense<0.000000e+00> : vector<256x128xf32>
    %48 = tpu.matmul %45, %47, %cst_56 {dimension_numbers = #tpu.dot_dimension_numbers<[1], [0], [0], [1], [0, 0, 1, 1], [], []>} : vector<256x128xbf16>, vector<128x128xbf16>, vector<256x128xf32> -> vector<256x128xf32>
    %49 = arith.addf %43, %48 : vector<256x128xf32>
    %c2_57 = arith.constant 2 : index
    %c1_58 = arith.constant 1 : index
    %c0_59 = arith.constant 0 : index
    %50 = vector.load %arg6[%c2_57, %c1_58, %c0_59] : memref<18x18x128xbf16, #tpu.memory_space<vmem>>, vector<16x16x128xbf16>
    %51 = vector.shape_cast %50 : vector<16x16x128xbf16> to vector<256x128xbf16>
    %c7 = arith.constant 7 : index
    %c0_60 = arith.constant 0 : index
    %c0_61 = arith.constant 0 : index
    %52 = vector.load %arg2[%c7, %c0_60, %c0_61] : memref<9x128x128xbf16, #tpu.memory_space<vmem>>, vector<1x128x128xbf16>
    %53 = vector.shape_cast %52 : vector<1x128x128xbf16> to vector<128x128xbf16>
    %cst_62 = arith.constant dense<0.000000e+00> : vector<256x128xf32>
    %54 = tpu.matmul %51, %53, %cst_62 {dimension_numbers = #tpu.dot_dimension_numbers<[1], [0], [0], [1], [0, 0, 1, 1], [], []>} : vector<256x128xbf16>, vector<128x128xbf16>, vector<256x128xf32> -> vector<256x128xf32>
    %55 = arith.addf %49, %54 : vector<256x128xf32>
    %c2_63 = arith.constant 2 : index
    %c2_64 = arith.constant 2 : index
    %c0_65 = arith.constant 0 : index
    %56 = vector.load %arg6[%c2_63, %c2_64, %c0_65] : memref<18x18x128xbf16, #tpu.memory_space<vmem>>, vector<16x16x128xbf16>
    %57 = vector.shape_cast %56 : vector<16x16x128xbf16> to vector<256x128xbf16>
    %c8 = arith.constant 8 : index
    %c0_66 = arith.constant 0 : index
    %c0_67 = arith.constant 0 : index
    %58 = vector.load %arg2[%c8, %c0_66, %c0_67] : memref<9x128x128xbf16, #tpu.memory_space<vmem>>, vector<1x128x128xbf16>
    %59 = vector.shape_cast %58 : vector<1x128x128xbf16> to vector<128x128xbf16>
    %cst_68 = arith.constant dense<0.000000e+00> : vector<256x128xf32>
    %60 = tpu.matmul %57, %59, %cst_68 {dimension_numbers = #tpu.dot_dimension_numbers<[1], [0], [0], [1], [0, 0, 1, 1], [], []>} : vector<256x128xbf16>, vector<128x128xbf16>, vector<256x128xf32> -> vector<256x128xf32>
    %61 = arith.addf %55, %60 : vector<256x128xf32>
    %c0_69 = arith.constant 0 : index
    %c0_70 = arith.constant 0 : index
    %62 = vector.load %arg4[%c0_69, %c0_70] : memref<2x128xf32, #tpu.memory_space<vmem>>, vector<1x128xf32>
    %63 = vector.broadcast %62 : vector<1x128xf32> to vector<256x128xf32>
    %64 = arith.addf %61, %63 : vector<256x128xf32>
    %cst_71 = arith.constant 0.000000e+00 : f32
    %65 = vector.broadcast %cst_71 : f32 to vector<256x128xf32>
    %66 = arith.maximumf %64, %65 : vector<256x128xf32>
    %67 = arith.truncf %66 : vector<256x128xf32> to vector<256x128xbf16>
    %68 = vector.shape_cast %67 : vector<256x128xbf16> to vector<16x16x128xbf16>
    %c1_72 = arith.constant 1 : index
    %c1_73 = arith.constant 1 : index
    %c0_74 = arith.constant 0 : index
    %69 = vector.load %arg7[%c1_72, %c1_73, %c0_74] : memref<18x18x128xbf16, #tpu.memory_space<vmem>>, vector<16x16x128xbf16>
    tpu.vector_store %arg7[%c1_72, %c1_73, %c0_74], %68 {strides = array<i32>} : memref<18x18x128xbf16, #tpu.memory_space<vmem>>, vector<16x16x128xbf16>,
    %cst_75 = arith.constant 0.000000e+00 : f32
    %70 = vector.broadcast %cst_75 : f32 to vector<256x128xf32>
    %c0_76 = arith.constant 0 : index
    %c0_77 = arith.constant 0 : index
    %c0_78 = arith.constant 0 : index
    %71 = vector.load %arg7[%c0_76, %c0_77, %c0_78] : memref<18x18x128xbf16, #tpu.memory_space<vmem>>, vector<16x16x128xbf16>
    %72 = vector.shape_cast %71 : vector<16x16x128xbf16> to vector<256x128xbf16>
    %c0_79 = arith.constant 0 : index
    %c0_80 = arith.constant 0 : index
    %c0_81 = arith.constant 0 : index
    %73 = vector.load %arg3[%c0_79, %c0_80, %c0_81] : memref<9x128x128xbf16, #tpu.memory_space<vmem>>, vector<1x128x128xbf16>
    %74 = vector.shape_cast %73 : vector<1x128x128xbf16> to vector<128x128xbf16>
    %cst_82 = arith.constant dense<0.000000e+00> : vector<256x128xf32>
    %75 = tpu.matmul %72, %74, %cst_82 {dimension_numbers = #tpu.dot_dimension_numbers<[1], [0], [0], [1], [0, 0, 1, 1], [], []>} : vector<256x128xbf16>, vector<128x128xbf16>, vector<256x128xf32> -> vector<256x128xf32>
    %76 = arith.addf %70, %75 : vector<256x128xf32>
    %c0_83 = arith.constant 0 : index
    %c1_84 = arith.constant 1 : index
    %c0_85 = arith.constant 0 : index
    %77 = vector.load %arg7[%c0_83, %c1_84, %c0_85] : memref<18x18x128xbf16, #tpu.memory_space<vmem>>, vector<16x16x128xbf16>
    %78 = vector.shape_cast %77 : vector<16x16x128xbf16> to vector<256x128xbf16>
    %c1_86 = arith.constant 1 : index
    %c0_87 = arith.constant 0 : index
    %c0_88 = arith.constant 0 : index
    %79 = vector.load %arg3[%c1_86, %c0_87, %c0_88] : memref<9x128x128xbf16, #tpu.memory_space<vmem>>, vector<1x128x128xbf16>
    %80 = vector.shape_cast %79 : vector<1x128x128xbf16> to vector<128x128xbf16>
    %cst_89 = arith.constant dense<0.000000e+00> : vector<256x128xf32>
    %81 = tpu.matmul %78, %80, %cst_89 {dimension_numbers = #tpu.dot_dimension_numbers<[1], [0], [0], [1], [0, 0, 1, 1], [], []>} : vector<256x128xbf16>, vector<128x128xbf16>, vector<256x128xf32> -> vector<256x128xf32>
    %82 = arith.addf %76, %81 : vector<256x128xf32>
    %c0_90 = arith.constant 0 : index
    %c2_91 = arith.constant 2 : index
    %c0_92 = arith.constant 0 : index
    %83 = vector.load %arg7[%c0_90, %c2_91, %c0_92] : memref<18x18x128xbf16, #tpu.memory_space<vmem>>, vector<16x16x128xbf16>
    %84 = vector.shape_cast %83 : vector<16x16x128xbf16> to vector<256x128xbf16>
    %c2_93 = arith.constant 2 : index
    %c0_94 = arith.constant 0 : index
    %c0_95 = arith.constant 0 : index
    %85 = vector.load %arg3[%c2_93, %c0_94, %c0_95] : memref<9x128x128xbf16, #tpu.memory_space<vmem>>, vector<1x128x128xbf16>
    %86 = vector.shape_cast %85 : vector<1x128x128xbf16> to vector<128x128xbf16>
    %cst_96 = arith.constant dense<0.000000e+00> : vector<256x128xf32>
    %87 = tpu.matmul %84, %86, %cst_96 {dimension_numbers = #tpu.dot_dimension_numbers<[1], [0], [0], [1], [0, 0, 1, 1], [], []>} : vector<256x128xbf16>, vector<128x128xbf16>, vector<256x128xf32> -> vector<256x128xf32>
    %88 = arith.addf %82, %87 : vector<256x128xf32>
    %c1_97 = arith.constant 1 : index
    %c0_98 = arith.constant 0 : index
    %c0_99 = arith.constant 0 : index
    %89 = vector.load %arg7[%c1_97, %c0_98, %c0_99] : memref<18x18x128xbf16, #tpu.memory_space<vmem>>, vector<16x16x128xbf16>
    %90 = vector.shape_cast %89 : vector<16x16x128xbf16> to vector<256x128xbf16>
    %c3_100 = arith.constant 3 : index
    %c0_101 = arith.constant 0 : index
    %c0_102 = arith.constant 0 : index
    %91 = vector.load %arg3[%c3_100, %c0_101, %c0_102] : memref<9x128x128xbf16, #tpu.memory_space<vmem>>, vector<1x128x128xbf16>
    %92 = vector.shape_cast %91 : vector<1x128x128xbf16> to vector<128x128xbf16>
    %cst_103 = arith.constant dense<0.000000e+00> : vector<256x128xf32>
    %93 = tpu.matmul %90, %92, %cst_103 {dimension_numbers = #tpu.dot_dimension_numbers<[1], [0], [0], [1], [0, 0, 1, 1], [], []>} : vector<256x128xbf16>, vector<128x128xbf16>, vector<256x128xf32> -> vector<256x128xf32>
    %94 = arith.addf %88, %93 : vector<256x128xf32>
    %c1_104 = arith.constant 1 : index
    %c1_105 = arith.constant 1 : index
    %c0_106 = arith.constant 0 : index
    %95 = vector.load %arg7[%c1_104, %c1_105, %c0_106] : memref<18x18x128xbf16, #tpu.memory_space<vmem>>, vector<16x16x128xbf16>
    %96 = vector.shape_cast %95 : vector<16x16x128xbf16> to vector<256x128xbf16>
    %c4_107 = arith.constant 4 : index
    %c0_108 = arith.constant 0 : index
    %c0_109 = arith.constant 0 : index
    %97 = vector.load %arg3[%c4_107, %c0_108, %c0_109] : memref<9x128x128xbf16, #tpu.memory_space<vmem>>, vector<1x128x128xbf16>
    %98 = vector.shape_cast %97 : vector<1x128x128xbf16> to vector<128x128xbf16>
    %cst_110 = arith.constant dense<0.000000e+00> : vector<256x128xf32>
    %99 = tpu.matmul %96, %98, %cst_110 {dimension_numbers = #tpu.dot_dimension_numbers<[1], [0], [0], [1], [0, 0, 1, 1], [], []>} : vector<256x128xbf16>, vector<128x128xbf16>, vector<256x128xf32> -> vector<256x128xf32>
    %100 = arith.addf %94, %99 : vector<256x128xf32>
    %c1_111 = arith.constant 1 : index
    %c2_112 = arith.constant 2 : index
    %c0_113 = arith.constant 0 : index
    %101 = vector.load %arg7[%c1_111, %c2_112, %c0_113] : memref<18x18x128xbf16, #tpu.memory_space<vmem>>, vector<16x16x128xbf16>
    %102 = vector.shape_cast %101 : vector<16x16x128xbf16> to vector<256x128xbf16>
    %c5_114 = arith.constant 5 : index
    %c0_115 = arith.constant 0 : index
    %c0_116 = arith.constant 0 : index
    %103 = vector.load %arg3[%c5_114, %c0_115, %c0_116] : memref<9x128x128xbf16, #tpu.memory_space<vmem>>, vector<1x128x128xbf16>
    %104 = vector.shape_cast %103 : vector<1x128x128xbf16> to vector<128x128xbf16>
    %cst_117 = arith.constant dense<0.000000e+00> : vector<256x128xf32>
    %105 = tpu.matmul %102, %104, %cst_117 {dimension_numbers = #tpu.dot_dimension_numbers<[1], [0], [0], [1], [0, 0, 1, 1], [], []>} : vector<256x128xbf16>, vector<128x128xbf16>, vector<256x128xf32> -> vector<256x128xf32>
    %106 = arith.addf %100, %105 : vector<256x128xf32>
    %c2_118 = arith.constant 2 : index
    %c0_119 = arith.constant 0 : index
    %c0_120 = arith.constant 0 : index
    %107 = vector.load %arg7[%c2_118, %c0_119, %c0_120] : memref<18x18x128xbf16, #tpu.memory_space<vmem>>, vector<16x16x128xbf16>
    %108 = vector.shape_cast %107 : vector<16x16x128xbf16> to vector<256x128xbf16>
    %c6_121 = arith.constant 6 : index
    %c0_122 = arith.constant 0 : index
    %c0_123 = arith.constant 0 : index
    %109 = vector.load %arg3[%c6_121, %c0_122, %c0_123] : memref<9x128x128xbf16, #tpu.memory_space<vmem>>, vector<1x128x128xbf16>
    %110 = vector.shape_cast %109 : vector<1x128x128xbf16> to vector<128x128xbf16>
    %cst_124 = arith.constant dense<0.000000e+00> : vector<256x128xf32>
    %111 = tpu.matmul %108, %110, %cst_124 {dimension_numbers = #tpu.dot_dimension_numbers<[1], [0], [0], [1], [0, 0, 1, 1], [], []>} : vector<256x128xbf16>, vector<128x128xbf16>, vector<256x128xf32> -> vector<256x128xf32>
    %112 = arith.addf %106, %111 : vector<256x128xf32>
    %c2_125 = arith.constant 2 : index
    %c1_126 = arith.constant 1 : index
    %c0_127 = arith.constant 0 : index
    %113 = vector.load %arg7[%c2_125, %c1_126, %c0_127] : memref<18x18x128xbf16, #tpu.memory_space<vmem>>, vector<16x16x128xbf16>
    %114 = vector.shape_cast %113 : vector<16x16x128xbf16> to vector<256x128xbf16>
    %c7_128 = arith.constant 7 : index
    %c0_129 = arith.constant 0 : index
    %c0_130 = arith.constant 0 : index
    %115 = vector.load %arg3[%c7_128, %c0_129, %c0_130] : memref<9x128x128xbf16, #tpu.memory_space<vmem>>, vector<1x128x128xbf16>
    %116 = vector.shape_cast %115 : vector<1x128x128xbf16> to vector<128x128xbf16>
    %cst_131 = arith.constant dense<0.000000e+00> : vector<256x128xf32>
    %117 = tpu.matmul %114, %116, %cst_131 {dimension_numbers = #tpu.dot_dimension_numbers<[1], [0], [0], [1], [0, 0, 1, 1], [], []>} : vector<256x128xbf16>, vector<128x128xbf16>, vector<256x128xf32> -> vector<256x128xf32>
    %118 = arith.addf %112, %117 : vector<256x128xf32>
    %c2_132 = arith.constant 2 : index
    %c2_133 = arith.constant 2 : index
    %c0_134 = arith.constant 0 : index
    %119 = vector.load %arg7[%c2_132, %c2_133, %c0_134] : memref<18x18x128xbf16, #tpu.memory_space<vmem>>, vector<16x16x128xbf16>
    %120 = vector.shape_cast %119 : vector<16x16x128xbf16> to vector<256x128xbf16>
    %c8_135 = arith.constant 8 : index
    %c0_136 = arith.constant 0 : index
    %c0_137 = arith.constant 0 : index
    %121 = vector.load %arg3[%c8_135, %c0_136, %c0_137] : memref<9x128x128xbf16, #tpu.memory_space<vmem>>, vector<1x128x128xbf16>
    %122 = vector.shape_cast %121 : vector<1x128x128xbf16> to vector<128x128xbf16>
    %cst_138 = arith.constant dense<0.000000e+00> : vector<256x128xf32>
    %123 = tpu.matmul %120, %122, %cst_138 {dimension_numbers = #tpu.dot_dimension_numbers<[1], [0], [0], [1], [0, 0, 1, 1], [], []>} : vector<256x128xbf16>, vector<128x128xbf16>, vector<256x128xf32> -> vector<256x128xf32>
    %124 = arith.addf %118, %123 : vector<256x128xf32>
    %c0_139 = arith.constant 0 : index
    %c0_140 = arith.constant 0 : index
    %c0_141 = arith.constant 0 : index
    %c0_142 = arith.constant 0 : index
    %125 = vector.load %arg1[%c0_139, %c0_140, %c0_141, %c0_142] : memref<1x16x16x128xbf16, #tpu.memory_space<vmem>>, vector<1x16x16x128xbf16>
    %126 = vector.shape_cast %125 : vector<1x16x16x128xbf16> to vector<16x16x128xbf16>
    %127 = vector.shape_cast %126 : vector<16x16x128xbf16> to vector<256x128xbf16>
    %c1_143 = arith.constant 1 : index
    %c0_144 = arith.constant 0 : index
    %128 = vector.load %arg4[%c1_143, %c0_144] : memref<2x128xf32, #tpu.memory_space<vmem>>, vector<1x128xf32>
    %129 = vector.broadcast %128 : vector<1x128xf32> to vector<256x128xf32>
    %130 = arith.addf %124, %129 : vector<256x128xf32>
    %131 = arith.extf %127 : vector<256x128xbf16> to vector<256x128xf32>
    %132 = arith.addf %130, %131 : vector<256x128xf32>
    %cst_145 = arith.constant 0.000000e+00 : f32
    %133 = vector.broadcast %cst_145 : f32 to vector<256x128xf32>
    %134 = arith.maximumf %132, %133 : vector<256x128xf32>
    %135 = arith.truncf %134 : vector<256x128xf32> to vector<256x128xbf16>
    %c0_146 = arith.constant 0 : index
    %c0_147 = arith.constant 0 : index
    %c0_148 = arith.constant 0 : index
    %136 = vector.load %arg5[%c0_146, %c0_147, %c0_148] : memref<1x256x128xbf16, #tpu.memory_space<vmem>>, vector<1x256x128xbf16>
    %137 = vector.shape_cast %136 : vector<1x256x128xbf16> to vector<256x128xbf16>
    %138 = vector.shape_cast %135 : vector<256x128xbf16> to vector<1x256x128xbf16>
    tpu.vector_store %arg5[%c0_146, %c0_147, %c0_148], %138 {strides = array<i32>} : memref<1x256x128xbf16, #tpu.memory_space<vmem>>, vector<1x256x128xbf16>,
    return
  }
  func.func @transform_0(%arg0: i32) -> (i32, i32, i32, i32) {
    %c0_i32 = arith.constant 0 : i32
    %c0_i32_0 = arith.constant 0 : i32
    %c0_i32_1 = arith.constant 0 : i32
    %c0_i32_2 = arith.constant 0 : i32
    return %arg0, %c0_i32, %c0_i32_0, %c0_i32_1 : i32, i32, i32, i32
  }
  func.func @transform_1(%arg0: i32) -> (i32, i32, i32) {
    %c0_i32 = arith.constant 0 : i32
    %c0_i32_0 = arith.constant 0 : i32
    %c0_i32_1 = arith.constant 0 : i32
    %c0_i32_2 = arith.constant 0 : i32
    return %c0_i32, %c0_i32_0, %c0_i32_1 : i32, i32, i32
  }
  func.func @transform_2(%arg0: i32) -> (i32, i32, i32) {
    %c0_i32 = arith.constant 0 : i32
    %c0_i32_0 = arith.constant 0 : i32
    %c0_i32_1 = arith.constant 0 : i32
    %c0_i32_2 = arith.constant 0 : i32
    return %c0_i32, %c0_i32_0, %c0_i32_1 : i32, i32, i32
  }
  func.func @transform_3(%arg0: i32) -> (i32, i32) {
    %c0_i32 = arith.constant 0 : i32
    %c0_i32_0 = arith.constant 0 : i32
    %c0_i32_1 = arith.constant 0 : i32
    return %c0_i32, %c0_i32_0 : i32, i32
  }
  func.func @transform_4(%arg0: i32) -> (i32, i32, i32) {
    %c0_i32 = arith.constant 0 : i32
    %c0_i32_0 = arith.constant 0 : i32
    %c0_i32_1 = arith.constant 0 : i32
    return %arg0, %c0_i32, %c0_i32_0 : i32, i32, i32
  }
}

</mosaic_0001>

<llo_original>
// kernel: basic_block_forward.1
$region0: #{basic_block_forward.1}
  #allocation0 [shape = 'u32[]', space=smem, size = 0x4, offset = 0x4, fixed_abs, tag = 'smem constant byte address 0x4 - core index']
  #allocation1 [shape = 'u32[144,128]{1,0:T(1,128)}', space=vmem, size = 0x12000, scoped, tag = 'internal scratch']
  #allocation2 [shape = 'bf16[18,18,128]{2,1,0:T(8,128)(2,1)}', space=vmem, size = 0x1b000, scoped, tag = 'scratch operand']
  #allocation3 [shape = 'bf16[18,18,128]{2,1,0:T(8,128)(2,1)}', space=vmem, size = 0x1b000, scoped, tag = 'scratch operand']
  %s0 = inlined_call_operand.vmem [shape: bf16[2,16,16,128], index: 0, kind: input, shape index: {}]
  %s1 = inlined_call_operand.vmem [shape: bf16[9,128,128], index: 1, kind: input, shape index: {}]
  %s2 = inlined_call_operand.vmem [shape: bf16[9,128,128], index: 2, kind: input, shape index: {}]
  %s3 = inlined_call_operand.vmem [shape: f32[2,128], index: 3, kind: input, shape index: {}]
  %s4 = inlined_call_operand.vmem [shape: bf16[2,256,128], index: 4, kind: output, shape index: {}]
  %s5 = sld [smem:[#allocation0]]
  $region49: #{basic_block_forward.1} parent=0
    _
  %s7 = ssub.s32 1, %s5
  %s8 = scalar_select 0, %s7, %s5
  loop: start=0, step=1, limit=4
  $region2: #{basic_block_forward.1} parent=0 // loop_pre_header
    _
  $region3: #{basic_block_forward.1} parent=0 // loop_header
    %s10 = sphi 0, %s14
    %p11 = scmp.ge.s32.totalorder %s10, 4
    %s20 = sphi 0, %s22
    %s23 = sphi 0, %s20
    %s24 = sphi 0, %s23
    %s40 = sphi 0, %s24
    %s44 = sphi 0, %s44
    %s46 = sphi 0, %s44
    %s47 = sphi 0, %s46
    %s61 = sphi 0, %s47
    %s65 = sphi 0, %s65
    %s67 = sphi 0, %s65
    %s68 = sphi 0, %s67
    %s82 = sphi 0, %s68
    %s86 = sphi 0, %s86
    %s88 = sphi 0, %s86
    %s89 = sphi 0, %s88
    %s103 = sphi 0, %s89
    %s109 = sphi 0, %s111
    %s112 = sphi 0, %s109
    %s113 = sphi 0, %s112
    %s129 = sphi 0, %s113
  $region4: #{basic_block_forward.1} parent=0 // loop_header_branch
    %13 = sbr.rel (%p11) target = $region8
  $region5: #{basic_block_forward.1} parent=0 // loop_body
    %s15 = ssub.s32 %s10, 1
    %s16 = ssub.s32 %s10, 2
    %s17 = sadd.s32 %s10, 1
    %s18 = ssub.s32 %s10, %s17
    %p19 = scmp.eq.s32.totalorder %s18, 0
    %s21 = sadd.s32 %s20, 1
    %s22 = scalar_select %p19, %s20, %s21
    %p25 = pneg %p19
    %p26 = scmp.eq.s32.totalorder %s10, 1
    %p27 = por %p25, %p26
    %p28 = scmp.ne.s32.totalorder %s20, %s23
    %p29 = scmp.eq.s32.totalorder %s10, 0
    %p30 = por %p28, %p29
    %p31 = scmp.ne.s32.totalorder %s20, %s23
    %p32 = scmp.eq.s32.totalorder %s15, 1
    %p33 = por %p31, %p32
    %p34 = scmp.ne.s32.totalorder %s23, %s24
    %p35 = scmp.eq.s32.totalorder %s15, 0
    %p36 = por %p34, %p35
    %p37 = scmp.ne.s32.totalorder %s23, %s24
    %p38 = scmp.eq.s32.totalorder %s16, 1
    %p39 = por %p37, %p38
    %p41 = scmp.ne.s32.totalorder %s24, %s40
    %p42 = scmp.eq.s32.totalorder %s16, 0
    %p43 = por %p41, %p42
    %s45 = sadd.s32 %s44, 1
    %p48 = scmp.eq.s32.totalorder %s10, 1
    %p49 = scmp.ne.s32.totalorder %s44, %s46
    %p50 = scmp.eq.s32.totalorder %s10, 0
    %p51 = por %p49, %p50
    %p52 = scmp.ne.s32.totalorder %s44, %s46
    %p53 = scmp.eq.s32.totalorder %s15, 1
    %p54 = por %p52, %p53
    %p55 = scmp.ne.s32.totalorder %s46, %s47
    %p56 = scmp.eq.s32.totalorder %s15, 0
    %p57 = por %p55, %p56
    %p58 = scmp.ne.s32.totalorder %s46, %s47
    %p59 = scmp.eq.s32.totalorder %s16, 1
    %p60 = por %p58, %p59
    %p62 = scmp.ne.s32.totalorder %s47, %s61
    %p63 = scmp.eq.s32.totalorder %s16, 0
    %p64 = por %p62, %p63
    %s66 = sadd.s32 %s65, 1
    %p69 = scmp.eq.s32.totalorder %s10, 1
    %p70 = scmp.ne.s32.totalorder %s65, %s67
    %p71 = scmp.eq.s32.totalorder %s10, 0
    %p72 = por %p70, %p71
    %p73 = scmp.ne.s32.totalorder %s65, %s67
    %p74 = scmp.eq.s32.totalorder %s15, 1
    %p75 = por %p73, %p74
    %p76 = scmp.ne.s32.totalorder %s67, %s68
    %p77 = scmp.eq.s32.totalorder %s15, 0
    %p78 = por %p76, %p77
    %p79 = scmp.ne.s32.totalorder %s67, %s68
    %p80 = scmp.eq.s32.totalorder %s16, 1
    %p81 = por %p79, %p80
    %p83 = scmp.ne.s32.totalorder %s68, %s82
    %p84 = scmp.eq.s32.totalorder %s16, 0
    %p85 = por %p83, %p84
    %s87 = sadd.s32 %s86, 1
    %p90 = scmp.eq.s32.totalorder %s10, 1
    %p91 = scmp.ne.s32.totalorder %s86, %s88
    %p92 = scmp.eq.s32.totalorder %s10, 0
    %p93 = por %p91, %p92
    %p94 = scmp.ne.s32.totalorder %s86, %s88
    %p95 = scmp.eq.s32.totalorder %s15, 1
    %p96 = por %p94, %p95
    %p97 = scmp.ne.s32.totalorder %s88, %s89
    %p98 = scmp.eq.s32.totalorder %s15, 0
    %p99 = por %p97, %p98
    %p100 = scmp.ne.s32.totalorder %s88, %s89
    %p101 = scmp.eq.s32.totalorder %s16, 1
    %p102 = por %p100, %p101
    %p104 = scmp.ne.s32.totalorder %s89, %s103
    %p105 = scmp.eq.s32.totalorder %s16, 0
    %p106 = por %p104, %p105
    %s107 = ssub.s32 %s10, %s17
    %p108 = scmp.eq.s32.totalorder %s107, 0
    %s110 = sadd.s32 %s109, 1
    %s111 = scalar_select %p108, %s109, %s110
    %p114 = pneg %p108
    %p115 = scmp.eq.s32.totalorder %s10, 1
    %p116 = por %p114, %p115
    %p117 = scmp.ne.s32.totalorder %s109, %s112
    %p118 = scmp.eq.s32.totalorder %s10, 0
    %p119 = por %p117, %p118
    %p120 = scmp.ne.s32.totalorder %s109, %s112
    %p121 = scmp.eq.s32.totalorder %s15, 1
    %p122 = por %p120, %p121
    %p123 = scmp.ne.s32.totalorder %s112, %s113
    %p124 = scmp.eq.s32.totalorder %s15, 0
    %p125 = por %p123, %p124
    %p126 = scmp.ne.s32.totalorder %s112, %s113
    %p127 = scmp.eq.s32.totalorder %s16, 1
    %p128 = por %p126, %p127
    %p130 = scmp.ne.s32.totalorder %s113, %s129
    %p131 = scmp.eq.s32.totalorder %s16, 0
    %p132 = por %p130, %p131
    %p133 = scmp.le.s32.totalorder 1, %s10
    %p134 = scmp.lt.s32.totalorder %s10, 3
    %p135 = pnand %p133, %p134
    %p136 = pneg %p135
    // Predicated region
    $region9: #{basic_block_forward.1} parent=5 // pred_check
      _
    $region10: #{basic_block_forward.1} parent=5 // pred_check_branch
      %138 = sbr.rel (%p135) target = $region12
    $region11: #{basic_block_forward.1} parent=5 // pred_region
      %s139 = ssub.s32 %s10, 1
      // Predicated region
      $region13: #{basic_block_forward.1} parent=11 // pred_check
        %p140 = pneg %p57
      $region14: #{basic_block_forward.1} parent=11 // pred_check_branch
        %142 = sbr.rel (%p140) target = $region16
      $region15: #{basic_block_forward.1} parent=11 // pred_region
        _
      $region16: #{basic_block_forward.1} parent=11 // pred_fallthru
        _
      // Predicated region
      $region17: #{basic_block_forward.1} parent=11 // pred_check
        %p143 = pneg %p78
      $region18: #{basic_block_forward.1} parent=11 // pred_check_branch
        %145 = sbr.rel (%p143) target = $region20
      $region19: #{basic_block_forward.1} parent=11 // pred_region
        _
      $region20: #{basic_block_forward.1} parent=11 // pred_fallthru
        _
      // Predicated region
      $region21: #{basic_block_forward.1} parent=11 // pred_check
        %p146 = pneg %p99
      $region22: #{basic_block_forward.1} parent=11 // pred_check_branch
        %148 = sbr.rel (%p146) target = $region24
      $region23: #{basic_block_forward.1} parent=11 // pred_region
        _
      $region24: #{basic_block_forward.1} parent=11 // pred_fallthru
        _
    $region12: #{basic_block_forward.1} parent=5 // pred_fallthru
      _
    %p149 = scmp.lt.s32.totalorder %s10, 2
    // Predicated region
    $region25: #{basic_block_forward.1} parent=5 // pred_check
      %p150 = pneg %p149
    $region26: #{basic_block_forward.1} parent=5 // pred_check_branch
      %152 = sbr.rel (%p150) target = $region28
    $region27: #{basic_block_forward.1} parent=5 // pred_region
      // Predicated region
      $region29: #{basic_block_forward.1} parent=27 // pred_check
        %p153 = pneg %p30
      $region30: #{basic_block_forward.1} parent=27 // pred_check_branch
        %155 = sbr.rel (%p153) target = $region32
      $region31: #{basic_block_forward.1} parent=27 // pred_region
        %p156 = scmp.lt.s32.totalorder %s10, 1
        %s157 = scalar_select %p156, %s10, 1
        %s158 = smul.addr %s157, 32
        %s159 = smul.addr %s158, 4
        %s160 = scalar_lea.vmem %s0, %s159
      $region32: #{basic_block_forward.1} parent=27 // pred_fallthru
        _
    $region28: #{basic_block_forward.1} parent=5 // pred_fallthru
      _
    %p161 = scmp.le.s32.totalorder 1, %s10
    %p162 = scmp.lt.s32.totalorder %s10, 3
    %p163 = pnand %p161, %p162
    %p164 = pneg %p163
    // Predicated region
    $region33: #{basic_block_forward.1} parent=5 // pred_check
      _
    $region34: #{basic_block_forward.1} parent=5 // pred_check_branch
      %166 = sbr.rel (%p163) target = $region36
    $region35: #{basic_block_forward.1} parent=5 // pred_region
      %s167 = ssub.s32 %s10, 1
      %p168 = scmp.lt.s32.totalorder %s15, 1
      %s169 = scalar_select %p168, %s15, 1
      %s170 = smul.addr %s169, 32
      %s171 = smul.addr %s170, 4
      %s172 = scalar_lea.vmem %s0, %s171
      %p173 = pneg %p36
      %p174 = pneg %p33
      %p175 = pneg %p57
      %p176 = pneg %p54
      %p177 = pneg %p78
      %p178 = pneg %p75
      %p179 = pneg %p99
      %p180 = pneg %p96
      %p181 = pneg %p125
      %p182 = pneg %p122
      %p183 = scmp.lt.s32.totalorder %s15, 1
      %s184 = scalar_select %p183, %s15, 1
      %s185 = smul.addr %s184, 32
      %s186 = smul.addr %s185, 4
      %s187 = scalar_lea.vmem %s4, %s186
      %p188 = scmp.lt.s32.totalorder %s15, 1
      %s189 = scalar_select %p188, %s15, 1
      %s190 = smul.addr %s189, 32
      %s191 = smul.addr %s190, 4
      %s192 = scalar_lea.vmem %s0, %s191
      %p193 = scmp.lt.s32.totalorder %s15, 1
      %s194 = scalar_select %p193, %s15, 1
      %s195 = smul.addr %s194, 32
      %s196 = smul.addr %s195, 4
      %s197 = scalar_lea.vmem %s4, %s196
      %199 = vst [vmem:[#allocation2] sm:$0xf] 0
      %200 = vst [vmem:[#allocation2 + $0x4] sm:$0xf] 0
      %201 = vst [vmem:[#allocation2 + $0x8] sm:$0x1] 0
      %202 = vst [vmem:[#allocation2 + $0xc] sm:$0xf] 0
      %203 = vst [vmem:[#allocation2 + $0x10] sm:$0xf] 0
      %204 = vst [vmem:[#allocation2 + $0x14] sm:$0x1] 0
      %205 = vst [vmem:[#allocation2 + $0x18] sm:$0xf] 0
      %206 = vst [vmem:[#allocation2 + $0x1c] sm:$0xf] 0
      %207 = vst [vmem:[#allocation2 + $0x20] sm:$0x1] 0
      %208 = vst [vmem:[#allocation2 + $0x24] sm:$0xf] 0
      %209 = vst [vmem:[#allocation2 + $0x28] sm:$0xf] 0
      %210 = vst [vmem:[#allocation2 + $0x2c] sm:$0x1] 0
      %211 = vst [vmem:[#allocation2 + $0x30] sm:$0xf] 0
      %212 = vst [vmem:[#allocation2 + $0x34] sm:$0xf] 0
      %213 = vst [vmem:[#allocation2 + $0x38] sm:$0x1] 0
      %214 = vst [vmem:[#allocation2 + $0x3c] sm:$0xf] 0
      %215 = vst [vmem:[#allocation2 + $0x40] sm:$0xf] 0
      %216 = vst [vmem:[#allocation2 + $0x44] sm:$0x1] 0
      %217 = vst [vmem:[#allocation2 + $0x48] sm:$0xf] 0
      %218 = vst [vmem:[#allocation2 + $0x4c] sm:$0xf] 0
      %219 = vst [vmem:[#allocation2 + $0x50] sm:$0x1] 0
      %220 = vst [vmem:[#allocation2 + $0x54] sm:$0xf] 0
      %221 = vst [vmem:[#allocation2 + $0x58] sm:$0xf] 0
      %222 = vst [vmem:[#allocation2 + $0x5c] sm:$0x1] 0
      %223 = vst [vmem:[#allocation2 + $0x60] sm:$0xf] 0
      %224 = vst [vmem:[#allocation2 + $0x64] sm:$0xf] 0
      %225 = vst [vmem:[#allocation2 + $0x68] sm:$0x1] 0
      %226 = vst [vmem:[#allocation2 + $0x6c] sm:$0xf] 0
      %227 = vst [vmem:[#allocation2 + $0x70] sm:$0xf] 0
      %228 = vst [vmem:[#allocation2 + $0x74] sm:$0x1] 0
      %229 = vst [vmem:[#allocation2 + $0x78] sm:$0xf] 0
      %230 = vst [vmem:[#allocation2 + $0x7c] sm:$0xf] 0
      %231 = vst [vmem:[#allocation2 + $0x80] sm:$0x1] 0
      %232 = vst [vmem:[#allocation2 + $0x84] sm:$0xf] 0
      %233 = vst [vmem:[#allocation2 + $0x88] sm:$0xf] 0
      %234 = vst [vmem:[#allocation2 + $0x8c] sm:$0x1] 0
      %235 = vst [vmem:[#allocation2 + $0x90] sm:$0xf] 0
      %236 = vst [vmem:[#allocation2 + $0x94] sm:$0xf] 0
      %237 = vst [vmem:[#allocation2 + $0x98] sm:$0x1] 0
      %238 = vst [vmem:[#allocation2 + $0x9c] sm:$0xf] 0
      %239 = vst [vmem:[#allocation2 + $0xa0] sm:$0xf] 0
      %240 = vst [vmem:[#allocation2 + $0xa4] sm:$0x1] 0
      %241 = vst [vmem:[#allocation2 + $0xa8] sm:$0xf] 0
      %242 = vst [vmem:[#allocation2 + $0xac] sm:$0xf] 0
      %243 = vst [vmem:[#allocation2 + $0xb0] sm:$0x1] 0
      %244 = vst [vmem:[#allocation2 + $0xb4] sm:$0xf] 0
      %245 = vst [vmem:[#allocation2 + $0xb8] sm:$0xf] 0
      %246 = vst [vmem:[#allocation2 + $0xbc] sm:$0x1] 0
      %247 = vst [vmem:[#allocation2 + $0xc0] sm:$0xf] 0
      %248 = vst [vmem:[#allocation2 + $0xc4] sm:$0xf] 0
      %249 = vst [vmem:[#allocation2 + $0xc8] sm:$0x1] 0
      %250 = vst [vmem:[#allocation2 + $0xcc] sm:$0xf] 0
      %251 = vst [vmem:[#allocation2 + $0xd0] sm:$0xf] 0
      %252 = vst [vmem:[#allocation2 + $0xd4] sm:$0x1] 0
      %253 = vst [vmem:[#allocation3] sm:$0xf] 0
      %254 = vst [vmem:[#allocation3 + $0x4] sm:$0xf] 0
      %255 = vst [vmem:[#allocation3 + $0x8] sm:$0x1] 0
      %256 = vst [vmem:[#allocation3 + $0xc] sm:$0xf] 0
      %257 = vst [vmem:[#allocation3 + $0x10] sm:$0xf] 0
      %258 = vst [vmem:[#allocation3 + $0x14] sm:$0x1] 0
      %259 = vst [vmem:[#allocation3 + $0x18] sm:$0xf] 0
      %260 = vst [vmem:[#allocation3 + $0x1c] sm:$0xf] 0
      %261 = vst [vmem:[#allocation3 + $0x20] sm:$0x1] 0
      %262 = vst [vmem:[#allocation3 + $0x24] sm:$0xf] 0
      %263 = vst [vmem:[#allocation3 + $0x28] sm:$0xf] 0
      %264 = vst [vmem:[#allocation3 + $0x2c] sm:$0x1] 0
      %265 = vst [vmem:[#allocation3 + $0x30] sm:$0xf] 0
      %266 = vst [vmem:[#allocation3 + $0x34] sm:$0xf] 0
      %267 = vst [vmem:[#allocation3 + $0x38] sm:$0x1] 0
      %268 = vst [vmem:[#allocation3 + $0x3c] sm:$0xf] 0
      %269 = vst [vmem:[#allocation3 + $0x40] sm:$0xf] 0
      %270 = vst [vmem:[#allocation3 + $0x44] sm:$0x1] 0
      %271 = vst [vmem:[#allocation3 + $0x48] sm:$0xf] 0
      %272 = vst [vmem:[#allocation3 + $0x4c] sm:$0xf] 0
      %273 = vst [vmem:[#allocation3 + $0x50] sm:$0x1] 0
      %274 = vst [vmem:[#allocation3 + $0x54] sm:$0xf] 0
      %275 = vst [vmem:[#allocation3 + $0x58] sm:$0xf] 0
      %276 = vst [vmem:[#allocation3 + $0x5c] sm:$0x1] 0
      %277 = vst [vmem:[#allocation3 + $0x60] sm:$0xf] 0
      %278 = vst [vmem:[#allocation3 + $0x64] sm:$0xf] 0
      %279 = vst [vmem:[#allocation3 + $0x68] sm:$0x1] 0
      %280 = vst [vmem:[#allocation3 + $0x6c] sm:$0xf] 0
      %281 = vst [vmem:[#allocation3 + $0x70] sm:$0xf] 0
      %282 = vst [vmem:[#allocation3 + $0x74] sm:$0x1] 0
      %283 = vst [vmem:[#allocation3 + $0x78] sm:$0xf] 0
      %284 = vst [vmem:[#allocation3 + $0x7c] sm:$0xf] 0
      %285 = vst [vmem:[#allocation3 + $0x80] sm:$0x1] 0
      %286 = vst [vmem:[#allocation3 + $0x84] sm:$0xf] 0
      %287 = vst [vmem:[#allocation3 + $0x88] sm:$0xf] 0
      %288 = vst [vmem:[#allocation3 + $0x8c] sm:$0x1] 0
      %289 = vst [vmem:[#allocation3 + $0x90] sm:$0xf] 0
      %290 = vst [vmem:[#allocation3 + $0x94] sm:$0xf] 0
      %291 = vst [vmem:[#allocation3 + $0x98] sm:$0x1] 0
      %292 = vst [vmem:[#allocation3 + $0x9c] sm:$0xf] 0
      %293 = vst [vmem:[#allocation3 + $0xa0] sm:$0xf] 0
      %294 = vst [vmem:[#allocation3 + $0xa4] sm:$0x1] 0
      %295 = vst [vmem:[#allocation3 + $0xa8] sm:$0xf] 0
      %296 = vst [vmem:[#allocation3 + $0xac] sm:$0xf] 0
      %297 = vst [vmem:[#allocation3 + $0xb0] sm:$0x1] 0
      %298 = vst [vmem:[#allocation3 + $0xb4] sm:$0xf] 0
      %299 = vst [vmem:[#allocation3 + $0xb8] sm:$0xf] 0
      %300 = vst [vmem:[#allocation3 + $0xbc] sm:$0x1] 0
      %301 = vst [vmem:[#allocation3 + $0xc0] sm:$0xf] 0
      %302 = vst [vmem:[#allocation3 + $0xc4] sm:$0xf] 0
      %303 = vst [vmem:[#allocation3 + $0xc8] sm:$0x1] 0
      %304 = vst [vmem:[#allocation3 + $0xcc] sm:$0xf] 0
      %305 = vst [vmem:[#allocation3 + $0xd0] sm:$0xf] 0
      %306 = vst [vmem:[#allocation3 + $0xd4] sm:$0x1] 0
      %v307 = vld [vmem:[%s192] sm:$0xf]
      %v308 = vld [vmem:[%s192 + $0x4] sm:$0xf]
      %v309 = vld [vmem:[%s192 + $0x8] sm:$0xf]
      %v310 = vld [vmem:[%s192 + $0xc] sm:$0xf]
      %v311 = vld [vmem:[%s192 + $0x10] sm:$0xf]
      %v312 = vld [vmem:[%s192 + $0x14] sm:$0xf]
      %v313 = vld [vmem:[%s192 + $0x18] sm:$0xf]
      %v314 = vld [vmem:[%s192 + $0x1c] sm:$0xf]
      %v315 = vld [vmem:[%s192 + $0x20] sm:$0xf]
      %v316 = vld [vmem:[%s192 + $0x24] sm:$0xf]
      %v317 = vld [vmem:[%s192 + $0x28] sm:$0xf]
      %v318 = vld [vmem:[%s192 + $0x2c] sm:$0xf]
      %v319 = vld [vmem:[%s192 + $0x30] sm:$0xf]
      %v320 = vld [vmem:[%s192 + $0x34] sm:$0xf]
      %v321 = vld [vmem:[%s192 + $0x38] sm:$0xf]
      %v322 = vld [vmem:[%s192 + $0x3c] sm:$0xf]
      %v323 = vld [vmem:[%s192 + $0x40] sm:$0xf]
      %v324 = vld [vmem:[%s192 + $0x44] sm:$0xf]
      %v325 = vld [vmem:[%s192 + $0x48] sm:$0xf]
      %v326 = vld [vmem:[%s192 + $0x4c] sm:$0xf]
      %v327 = vld [vmem:[%s192 + $0x50] sm:$0xf]
      %v328 = vld [vmem:[%s192 + $0x54] sm:$0xf]
      %v329 = vld [vmem:[%s192 + $0x58] sm:$0xf]
      %v330 = vld [vmem:[%s192 + $0x5c] sm:$0xf]
      %v331 = vld [vmem:[%s192 + $0x60] sm:$0xf]
      %v332 = vld [vmem:[%s192 + $0x64] sm:$0xf]
      %v333 = vld [vmem:[%s192 + $0x68] sm:$0xf]
      %v334 = vld [vmem:[%s192 + $0x6c] sm:$0xf]
      %v335 = vld [vmem:[%s192 + $0x70] sm:$0xf]
      %v336 = vld [vmem:[%s192 + $0x74] sm:$0xf]
      %v337 = vld [vmem:[%s192 + $0x78] sm:$0xf]
      %v338 = vld [vmem:[%s192 + $0x7c] sm:$0xf]
      %vm339 = vsmask.f32 256
      %vm340 = vsmask.f32 4368
      %vm341 = vmor %vm339, %vm340
      %v343 = vshrl.u32 %v307, 16
      %v345 = vrot.slane %v343, 7
      %v346 = vshll.u32 %v307, 16
      %v348 = vor.u32 %v345, %v346
      %v349 = vrot.slane %v345, 4
      %v351 = vshrl.u32 %v308, 16
      %v353 = vrot.slane %v351, 7
      %v354 = vshll.u32 %v308, 16
      %v356 = vor.u32 %v353, %v354
      %v357 = vsel %vm341, %v349, %v356
      %v358 = vrot.slane %v353, 4
      %v360 = vshrl.u32 %v309, 16
      %v362 = vrot.slane %v360, 7
      %v363 = vshll.u32 %v309, 16
      %v365 = vor.u32 %v362, %v363
      %v366 = vrot.slane %v362, 4
      %v368 = vshrl.u32 %v310, 16
      %v370 = vrot.slane %v368, 7
      %v371 = vshll.u32 %v310, 16
      %v373 = vor.u32 %v370, %v371
      %v374 = vsel %vm341, %v366, %v373
      %v375 = vrot.slane %v370, 4
      %v377 = vshrl.u32 %v311, 16
      %v379 = vrot.slane %v377, 7
      %v380 = vshll.u32 %v311, 16
      %v382 = vor.u32 %v379, %v380
      %v383 = vrot.slane %v379, 4
      %v385 = vshrl.u32 %v312, 16
      %v387 = vrot.slane %v385, 7
      %v388 = vshll.u32 %v312, 16
      %v390 = vor.u32 %v387, %v388
      %v391 = vsel %vm341, %v383, %v390
      %v392 = vrot.slane %v387, 4
      %v394 = vshrl.u32 %v313, 16
      %v396 = vrot.slane %v394, 7
      %v397 = vshll.u32 %v313, 16
      %v399 = vor.u32 %v396, %v397
      %v400 = vrot.slane %v396, 4
      %v402 = vshrl.u32 %v314, 16
      %v404 = vrot.slane %v402, 7
      %v405 = vshll.u32 %v314, 16
      %v407 = vor.u32 %v404, %v405
      %v408 = vsel %vm341, %v400, %v407
      %v409 = vrot.slane %v404, 4
      %v411 = vshrl.u32 %v315, 16
      %v413 = vrot.slane %v411, 7
      %v414 = vshll.u32 %v315, 16
      %v416 = vor.u32 %v413, %v414
      %v417 = vrot.slane %v413, 4
      %v419 = vshrl.u32 %v316, 16
      %v421 = vrot.slane %v419, 7
      %v422 = vshll.u32 %v316, 16
      %v424 = vor.u32 %v421, %v422
      %v425 = vsel %vm341, %v417, %v424
      %v426 = vrot.slane %v421, 4
      %v428 = vshrl.u32 %v317, 16
      %v430 = vrot.slane %v428, 7
      %v431 = vshll.u32 %v317, 16
      %v433 = vor.u32 %v430, %v431
      %v434 = vrot.slane %v430, 4
      %v436 = vshrl.u32 %v318, 16
      %v438 = vrot.slane %v436, 7
      %v439 = vshll.u32 %v318, 16
      %v441 = vor.u32 %v438, %v439
      %v442 = vsel %vm341, %v434, %v441
      %v443 = vrot.slane %v438, 4
      %v445 = vshrl.u32 %v319, 16
      %v447 = vrot.slane %v445, 7
      %v448 = vshll.u32 %v319, 16
      %v450 = vor.u32 %v447, %v448
      %v451 = vrot.slane %v447, 4
      %v453 = vshrl.u32 %v320, 16
      %v455 = vrot.slane %v453, 7
      %v456 = vshll.u32 %v320, 16
      %v458 = vor.u32 %v455, %v456
      %v459 = vsel %vm341, %v451, %v458
      %v460 = vrot.slane %v455, 4
      %v462 = vshrl.u32 %v321, 16
      %v464 = vrot.slane %v462, 7
      %v465 = vshll.u32 %v321, 16
      %v467 = vor.u32 %v464, %v465
      %v468 = vrot.slane %v464, 4
      %v470 = vshrl.u32 %v322, 16
      %v472 = vrot.slane %v470, 7
      %v473 = vshll.u32 %v322, 16
      %v475 = vor.u32 %v472, %v473
      %v476 = vsel %vm341, %v468, %v475
      %v477 = vrot.slane %v472, 4
      %v479 = vshrl.u32 %v323, 16
      %v481 = vrot.slane %v479, 7
      %v482 = vshll.u32 %v323, 16
      %v484 = vor.u32 %v481, %v482
      %v485 = vrot.slane %v481, 4
      %v487 = vshrl.u32 %v324, 16
      %v489 = vrot.slane %v487, 7
      %v490 = vshll.u32 %v324, 16
      %v492 = vor.u32 %v489, %v490
      %v493 = vsel %vm341, %v485, %v492
      %v494 = vrot.slane %v489, 4
      %v496 = vshrl.u32 %v325, 16
      %v498 = vrot.slane %v496, 7
      %v499 = vshll.u32 %v325, 16
      %v501 = vor.u32 %v498, %v499
      %v502 = vrot.slane %v498, 4
      %v504 = vshrl.u32 %v326, 16
      %v506 = vrot.slane %v504, 7
      %v507 = vshll.u32 %v326, 16
      %v509 = vor.u32 %v506, %v507
      %v510 = vsel %vm341, %v502, %v509
      %v511 = vrot.slane %v506, 4
      %v513 = vshrl.u32 %v327, 16
      %v515 = vrot.slane %v513, 7
      %v516 = vshll.u32 %v327, 16
      %v518 = vor.u32 %v515, %v516
      %v519 = vrot.slane %v515, 4
      %v521 = vshrl.u32 %v328, 16
      %v523 = vrot.slane %v521, 7
      %v524 = vshll.u32 %v328, 16
      %v526 = vor.u32 %v523, %v524
      %v527 = vsel %vm341, %v519, %v526
      %v528 = vrot.slane %v523, 4
      %v530 = vshrl.u32 %v329, 16
      %v532 = vrot.slane %v530, 7
      %v533 = vshll.u32 %v329, 16
      %v535 = vor.u32 %v532, %v533
      %v536 = vrot.slane %v532, 4
      %v538 = vshrl.u32 %v330, 16
      %v540 = vrot.slane %v538, 7
      %v541 = vshll.u32 %v330, 16
      %v543 = vor.u32 %v540, %v541
      %v544 = vsel %vm341, %v536, %v543
      %v545 = vrot.slane %v540, 4
      %v547 = vshrl.u32 %v331, 16
      %v549 = vrot.slane %v547, 7
      %v550 = vshll.u32 %v331, 16
      %v552 = vor.u32 %v549, %v550
      %v553 = vrot.slane %v549, 4
      %v555 = vshrl.u32 %v332, 16
      %v557 = vrot.slane %v555, 7
      %v558 = vshll.u32 %v332, 16
      %v560 = vor.u32 %v557, %v558
      %v561 = vsel %vm341, %v553, %v560
      %v562 = vrot.slane %v557, 4
      %v564 = vshrl.u32 %v333, 16
      %v566 = vrot.slane %v564, 7
      %v567 = vshll.u32 %v333, 16
      %v569 = vor.u32 %v566, %v567
      %v570 = vrot.slane %v566, 4
      %v572 = vshrl.u32 %v334, 16
      %v574 = vrot.slane %v572, 7
      %v575 = vshll.u32 %v334, 16
      %v577 = vor.u32 %v574, %v575
      %v578 = vsel %vm341, %v570, %v577
      %v579 = vrot.slane %v574, 4
      %v581 = vshrl.u32 %v335, 16
      %v583 = vrot.slane %v581, 7
      %v584 = vshll.u32 %v335, 16
      %v586 = vor.u32 %v583, %v584
      %v587 = vrot.slane %v583, 4
      %v589 = vshrl.u32 %v336, 16
      %v591 = vrot.slane %v589, 7
      %v592 = vshll.u32 %v336, 16
      %v594 = vor.u32 %v591, %v592
      %v595 = vsel %vm341, %v587, %v594
      %v596 = vrot.slane %v591, 4
      %v598 = vshrl.u32 %v337, 16
      %v600 = vrot.slane %v598, 7
      %v601 = vshll.u32 %v337, 16
      %v603 = vor.u32 %v600, %v601
      %v604 = vrot.slane %v600, 4
      %v606 = vshrl.u32 %v338, 16
      %v608 = vrot.slane %v606, 7
      %v609 = vshll.u32 %v338, 16
      %v611 = vor.u32 %v608, %v609
      %v612 = vsel %vm341, %v604, %v611
      %v613 = vrot.slane %v608, 4
      %s662 = scalar_lea.vmem [#allocation2], 12
      %vm663 = vcmask 1043456
      %vm664 = vsmask.f32 7938
      %vm665 = vmand %vm663, %vm664
      %v666 = vld [vmem:[%s662] sm:$0xf]
      %v667 = vsel %vm665, %v348, %v666
      %668 = vst [vmem:[%s662] sm:$0xf] %v667
      %669 = vst [vmem:[%s662 + $0x4] sm:$0xf] %v357
      %vm670 = vcmask 1040384
      %vm671 = vmand %vm670, %vm339
      %v672 = vld [vmem:[%s662 + $0x8] sm:$0x1]
      %v673 = vsel %vm671, %v358, %v672
      %674 = vst [vmem:[%s662 + $0x8] sm:$0x1] %v673
      %v675 = vld [vmem:[%s662 + $0xc] sm:$0xf]
      %v676 = vsel %vm665, %v365, %v675
      %677 = vst [vmem:[%s662 + $0xc] sm:$0xf] %v676
      %678 = vst [vmem:[%s662 + $0x10] sm:$0xf] %v374
      %v679 = vld [vmem:[%s662 + $0x14] sm:$0x1]
      %v680 = vsel %vm671, %v375, %v679
      %681 = vst [vmem:[%s662 + $0x14] sm:$0x1] %v680
      %v682 = vld [vmem:[%s662 + $0x18] sm:$0xf]
      %v683 = vsel %vm665, %v382, %v682
      %684 = vst [vmem:[%s662 + $0x18] sm:$0xf] %v683
      %685 = vst [vmem:[%s662 + $0x1c] sm:$0xf] %v391
      %v686 = vld [vmem:[%s662 + $0x20] sm:$0x1]
      %v687 = vsel %vm671, %v392, %v686
      %688 = vst [vmem:[%s662 + $0x20] sm:$0x1] %v687
      %v689 = vld [vmem:[%s662 + $0x24] sm:$0xf]
      %v690 = vsel %vm665, %v399, %v689
      %691 = vst [vmem:[%s662 + $0x24] sm:$0xf] %v690
      %692 = vst [vmem:[%s662 + $0x28] sm:$0xf] %v408
      %v693 = vld [vmem:[%s662 + $0x2c] sm:$0x1]
      %v694 = vsel %vm671, %v409, %v693
      %695 = vst [vmem:[%s662 + $0x2c] sm:$0x1] %v694
      %v696 = vld [vmem:[%s662 + $0x30] sm:$0xf]
      %v697 = vsel %vm665, %v416, %v696
      %698 = vst [vmem:[%s662 + $0x30] sm:$0xf] %v697
      %699 = vst [vmem:[%s662 + $0x34] sm:$0xf] %v425
      %v700 = vld [vmem:[%s662 + $0x38] sm:$0x1]
      %v701 = vsel %vm671, %v426, %v700
      %702 = vst [vmem:[%s662 + $0x38] sm:$0x1] %v701
      %v703 = vld [vmem:[%s662 + $0x3c] sm:$0xf]
      %v704 = vsel %vm665, %v433, %v703
      %705 = vst [vmem:[%s662 + $0x3c] sm:$0xf] %v704
      %706 = vst [vmem:[%s662 + $0x40] sm:$0xf] %v442
      %v707 = vld [vmem:[%s662 + $0x44] sm:$0x1]
      %v708 = vsel %vm671, %v443, %v707
      %709 = vst [vmem:[%s662 + $0x44] sm:$0x1] %v708
      %v710 = vld [vmem:[%s662 + $0x48] sm:$0xf]
      %v711 = vsel %vm665, %v450, %v710
      %712 = vst [vmem:[%s662 + $0x48] sm:$0xf] %v711
      %713 = vst [vmem:[%s662 + $0x4c] sm:$0xf] %v459
      %v714 = vld [vmem:[%s662 + $0x50] sm:$0x1]
      %v715 = vsel %vm671, %v460, %v714
      %716 = vst [vmem:[%s662 + $0x50] sm:$0x1] %v715
      %v717 = vld [vmem:[%s662 + $0x54] sm:$0xf]
      %v718 = vsel %vm665, %v467, %v717
      %719 = vst [vmem:[%s662 + $0x54] sm:$0xf] %v718
      %720 = vst [vmem:[%s662 + $0x58] sm:$0xf] %v476
      %v721 = vld [vmem:[%s662 + $0x5c] sm:$0x1]
      %v722 = vsel %vm671, %v477, %v721
      %723 = vst [vmem:[%s662 + $0x5c] sm:$0x1] %v722
      %v724 = vld [vmem:[%s662 + $0x60] sm:$0xf]
      %v725 = vsel %vm665, %v484, %v724
      %726 = vst [vmem:[%s662 + $0x60] sm:$0xf] %v725
      %727 = vst [vmem:[%s662 + $0x64] sm:$0xf] %v493
      %v728 = vld [vmem:[%s662 + $0x68] sm:$0x1]
      %v729 = vsel %vm671, %v494, %v728
      %730 = vst [vmem:[%s662 + $0x68] sm:$0x1] %v729
      %v731 = vld [vmem:[%s662 + $0x6c] sm:$0xf]
      %v732 = vsel %vm665, %v501, %v731
      %733 = vst [vmem:[%s662 + $0x6c] sm:$0xf] %v732
      %734 = vst [vmem:[%s662 + $0x70] sm:$0xf] %v510
      %v735 = vld [vmem:[%s662 + $0x74] sm:$0x1]
      %v736 = vsel %vm671, %v511, %v735
      %737 = vst [vmem:[%s662 + $0x74] sm:$0x1] %v736
      %v738 = vld [vmem:[%s662 + $0x78] sm:$0xf]
      %v739 = vsel %vm665, %v518, %v738
      %740 = vst [vmem:[%s662 + $0x78] sm:$0xf] %v739
      %741 = vst [vmem:[%s662 + $0x7c] sm:$0xf] %v527
      %v742 = vld [vmem:[%s662 + $0x80] sm:$0x1]
      %v743 = vsel %vm671, %v528, %v742
      %744 = vst [vmem:[%s662 + $0x80] sm:$0x1] %v743
      %v745 = vld [vmem:[%s662 + $0x84] sm:$0xf]
      %v746 = vsel %vm665, %v535, %v745
      %747 = vst [vmem:[%s662 + $0x84] sm:$0xf] %v746
      %748 = vst [vmem:[%s662 + $0x88] sm:$0xf] %v544
      %v749 = vld [vmem:[%s662 + $0x8c] sm:$0x1]
      %v750 = vsel %vm671, %v545, %v749
      %751 = vst [vmem:[%s662 + $0x8c] sm:$0x1] %v750
      %v752 = vld [vmem:[%s662 + $0x90] sm:$0xf]
      %v753 = vsel %vm665, %v552, %v752
      %754 = vst [vmem:[%s662 + $0x90] sm:$0xf] %v753
      %755 = vst [vmem:[%s662 + $0x94] sm:$0xf] %v561
      %v756 = vld [vmem:[%s662 + $0x98] sm:$0x1]
      %v757 = vsel %vm671, %v562, %v756
      %758 = vst [vmem:[%s662 + $0x98] sm:$0x1] %v757
      %v759 = vld [vmem:[%s662 + $0x9c] sm:$0xf]
      %v760 = vsel %vm665, %v569, %v759
      %761 = vst [vmem:[%s662 + $0x9c] sm:$0xf] %v760
      %762 = vst [vmem:[%s662 + $0xa0] sm:$0xf] %v578
      %v763 = vld [vmem:[%s662 + $0xa4] sm:$0x1]
      %v764 = vsel %vm671, %v579, %v763
      %765 = vst [vmem:[%s662 + $0xa4] sm:$0x1] %v764
      %v766 = vld [vmem:[%s662 + $0xa8] sm:$0xf]
      %v767 = vsel %vm665, %v586, %v766
      %768 = vst [vmem:[%s662 + $0xa8] sm:$0xf] %v767
      %769 = vst [vmem:[%s662 + $0xac] sm:$0xf] %v595
      %v770 = vld [vmem:[%s662 + $0xb0] sm:$0x1]
      %v771 = vsel %vm671, %v596, %v770
      %772 = vst [vmem:[%s662 + $0xb0] sm:$0x1] %v771
      %v773 = vld [vmem:[%s662 + $0xb4] sm:$0xf]
      %v774 = vsel %vm665, %v603, %v773
      %775 = vst [vmem:[%s662 + $0xb4] sm:$0xf] %v774
      %776 = vst [vmem:[%s662 + $0xb8] sm:$0xf] %v612
      %v777 = vld [vmem:[%s662 + $0xbc] sm:$0x1]
      %v778 = vsel %vm671, %v613, %v777
      %779 = vst [vmem:[%s662 + $0xbc] sm:$0x1] %v778
      %v780 = vld [vmem:[#allocation2] sm:$0xf]
      %v781 = vld [vmem:[#allocation2 + $0x4] sm:$0xf]
      %v782 = vld [vmem:[#allocation2 + $0xc] sm:$0xf]
      %v783 = vld [vmem:[#allocation2 + $0x10] sm:$0xf]
      %v784 = vld [vmem:[#allocation2 + $0x18] sm:$0xf]
      %v785 = vld [vmem:[#allocation2 + $0x1c] sm:$0xf]
      %v786 = vld [vmem:[#allocation2 + $0x24] sm:$0xf]
      %v787 = vld [vmem:[#allocation2 + $0x28] sm:$0xf]
      %v788 = vld [vmem:[#allocation2 + $0x30] sm:$0xf]
      %v789 = vld [vmem:[#allocation2 + $0x34] sm:$0xf]
      %v790 = vld [vmem:[#allocation2 + $0x3c] sm:$0xf]
      %v791 = vld [vmem:[#allocation2 + $0x40] sm:$0xf]
      %v792 = vld [vmem:[#allocation2 + $0x48] sm:$0xf]
      %v793 = vld [vmem:[#allocation2 + $0x4c] sm:$0xf]
      %v794 = vld [vmem:[#allocation2 + $0x54] sm:$0xf]
      %v795 = vld [vmem:[#allocation2 + $0x58] sm:$0xf]
      %v796 = vld [vmem:[#allocation2 + $0x60] sm:$0xf]
      %v797 = vld [vmem:[#allocation2 + $0x64] sm:$0xf]
      %v798 = vld [vmem:[#allocation2 + $0x6c] sm:$0xf]
      %v799 = vld [vmem:[#allocation2 + $0x70] sm:$0xf]
      %v800 = vld [vmem:[#allocation2 + $0x78] sm:$0xf]
      %v801 = vld [vmem:[#allocation2 + $0x7c] sm:$0xf]
      %v802 = vld [vmem:[#allocation2 + $0x84] sm:$0xf]
      %v803 = vld [vmem:[#allocation2 + $0x88] sm:$0xf]
      %v804 = vld [vmem:[#allocation2 + $0x90] sm:$0xf]
      %v805 = vld [vmem:[#allocation2 + $0x94] sm:$0xf]
      %v806 = vld [vmem:[#allocation2 + $0x9c] sm:$0xf]
      %v807 = vld [vmem:[#allocation2 + $0xa0] sm:$0xf]
      %v808 = vld [vmem:[#allocation2 + $0xa8] sm:$0xf]
      %v809 = vld [vmem:[#allocation2 + $0xac] sm:$0xf]
      %v810 = vld [vmem:[#allocation2 + $0xb4] sm:$0xf]
      %v811 = vld [vmem:[#allocation2 + $0xb8] sm:$0xf]
      %v812 = vld [vmem:[%s1] sm:$0xf]
      %v813 = vld [vmem:[%s1 + $0x4] sm:$0xf]
      %v814 = vld [vmem:[%s1 + $0x8] sm:$0xf]
      %v815 = vld [vmem:[%s1 + $0xc] sm:$0xf]
      %v816 = vld [vmem:[%s1 + $0x10] sm:$0xf]
      %v817 = vld [vmem:[%s1 + $0x14] sm:$0xf]
      %v818 = vld [vmem:[%s1 + $0x18] sm:$0xf]
      %v819 = vld [vmem:[%s1 + $0x1c] sm:$0xf]
      %v820 = vld [vmem:[%s1 + $0x20] sm:$0xf]
      %v821 = vld [vmem:[%s1 + $0x24] sm:$0xf]
      %v822 = vld [vmem:[%s1 + $0x28] sm:$0xf]
      %v823 = vld [vmem:[%s1 + $0x2c] sm:$0xf]
      %v824 = vld [vmem:[%s1 + $0x30] sm:$0xf]
      %v825 = vld [vmem:[%s1 + $0x34] sm:$0xf]
      %v826 = vld [vmem:[%s1 + $0x38] sm:$0xf]
      %v827 = vld [vmem:[%s1 + $0x3c] sm:$0xf]
      %v828 = vld [vmem:[#allocation2 + $0x8] sm:$0x1]
      %v829 = vld [vmem:[#allocation2 + $0x14] sm:$0x1]
      %v830 = vld [vmem:[#allocation2 + $0x20] sm:$0x1]
      %v831 = vld [vmem:[#allocation2 + $0x2c] sm:$0x1]
      %v832 = vld [vmem:[#allocation2 + $0x38] sm:$0x1]
      %v833 = vld [vmem:[#allocation2 + $0x44] sm:$0x1]
      %v834 = vld [vmem:[#allocation2 + $0x50] sm:$0x1]
      %v835 = vld [vmem:[#allocation2 + $0x5c] sm:$0x1]
      %v836 = vld [vmem:[#allocation2 + $0x68] sm:$0x1]
      %v837 = vld [vmem:[#allocation2 + $0x74] sm:$0x1]
      %v838 = vld [vmem:[#allocation2 + $0x80] sm:$0x1]
      %v839 = vld [vmem:[#allocation2 + $0x8c] sm:$0x1]
      %v840 = vld [vmem:[#allocation2 + $0x98] sm:$0x1]
      %v841 = vld [vmem:[#allocation2 + $0xa4] sm:$0x1]
      %v842 = vld [vmem:[#allocation2 + $0xb0] sm:$0x1]
      %v843 = vld [vmem:[#allocation2 + $0xbc] sm:$0x1]
      %vm844 = vsmask.f32 3328
      %vm845 = vsmask.f32 7440
      %vm846 = vmor %vm844, %vm845
      %v848 = vshrl.u32 %v780, 16
      %v850 = vrot.slane %v848, 4
      %v851 = vshll.u32 %v780, 16
      %v853 = vrot.slane %v851, 5
      %v854 = vor.u32 %v850, %v853
      %v855 = vrot.slane %v854, 4
      %v857 = vshll.u32 %v781, 16
      %v859 = vrot.slane %v857, 5
      %v860 = vsel %vm846, %v855, %v859
      %v861 = vshrl.u32 %v781, 16
      %v863 = vrot.slane %v861, 4
      %v864 = vor.u32 %v863, %v859
      %v865 = vrot.slane %v864, 4
      %v867 = vshll.u32 %v828, 16
      %v869 = vrot.slane %v867, 5
      %v870 = vsel %vm846, %v865, %v869
      %v872 = vshrl.u32 %v782, 16
      %v874 = vrot.slane %v872, 4
      %v875 = vshll.u32 %v782, 16
      %v877 = vrot.slane %v875, 5
      %v878 = vor.u32 %v874, %v877
      %v879 = vrot.slane %v878, 4
      %v881 = vshll.u32 %v783, 16
      %v883 = vrot.slane %v881, 5
      %v884 = vsel %vm846, %v879, %v883
      %v885 = vshrl.u32 %v783, 16
      %v887 = vrot.slane %v885, 4
      %v888 = vor.u32 %v887, %v883
      %v889 = vrot.slane %v888, 4
      %v891 = vshll.u32 %v829, 16
      %v893 = vrot.slane %v891, 5
      %v894 = vsel %vm846, %v889, %v893
      %v896 = vshrl.u32 %v784, 16
      %v898 = vrot.slane %v896, 4
      %v899 = vshll.u32 %v784, 16
      %v901 = vrot.slane %v899, 5
      %v902 = vor.u32 %v898, %v901
      %v903 = vrot.slane %v902, 4
      %v905 = vshll.u32 %v785, 16
      %v907 = vrot.slane %v905, 5
      %v908 = vsel %vm846, %v903, %v907
      %v909 = vshrl.u32 %v785, 16
      %v911 = vrot.slane %v909, 4
      %v912 = vor.u32 %v911, %v907
      %v913 = vrot.slane %v912, 4
      %v915 = vshll.u32 %v830, 16
      %v917 = vrot.slane %v915, 5
      %v918 = vsel %vm846, %v913, %v917
      %v920 = vshrl.u32 %v786, 16
      %v922 = vrot.slane %v920, 4
      %v923 = vshll.u32 %v786, 16
      %v925 = vrot.slane %v923, 5
      %v926 = vor.u32 %v922, %v925
      %v927 = vrot.slane %v926, 4
      %v929 = vshll.u32 %v787, 16
      %v931 = vrot.slane %v929, 5
      %v932 = vsel %vm846, %v927, %v931
      %v933 = vshrl.u32 %v787, 16
      %v935 = vrot.slane %v933, 4
      %v936 = vor.u32 %v935, %v931
      %v937 = vrot.slane %v936, 4
      %v939 = vshll.u32 %v831, 16
      %v941 = vrot.slane %v939, 5
      %v942 = vsel %vm846, %v937, %v941
      %v944 = vshrl.u32 %v788, 16
      %v946 = vrot.slane %v944, 4
      %v947 = vshll.u32 %v788, 16
      %v949 = vrot.slane %v947, 5
      %v950 = vor.u32 %v946, %v949
      %v951 = vrot.slane %v950, 4
      %v953 = vshll.u32 %v789, 16
      %v955 = vrot.slane %v953, 5
      %v956 = vsel %vm846, %v951, %v955
      %v957 = vshrl.u32 %v789, 16
      %v959 = vrot.slane %v957, 4
      %v960 = vor.u32 %v959, %v955
      %v961 = vrot.slane %v960, 4
      %v963 = vshll.u32 %v832, 16
      %v965 = vrot.slane %v963, 5
      %v966 = vsel %vm846, %v961, %v965
      %v968 = vshrl.u32 %v790, 16
      %v970 = vrot.slane %v968, 4
      %v971 = vshll.u32 %v790, 16
      %v973 = vrot.slane %v971, 5
      %v974 = vor.u32 %v970, %v973
      %v975 = vrot.slane %v974, 4
      %v977 = vshll.u32 %v791, 16
      %v979 = vrot.slane %v977, 5
      %v980 = vsel %vm846, %v975, %v979
      %v981 = vshrl.u32 %v791, 16
      %v983 = vrot.slane %v981, 4
      %v984 = vor.u32 %v983, %v979
      %v985 = vrot.slane %v984, 4
      %v987 = vshll.u32 %v833, 16
      %v989 = vrot.slane %v987, 5
      %v990 = vsel %vm846, %v985, %v989
      %v992 = vshrl.u32 %v792, 16
      %v994 = vrot.slane %v992, 4
      %v995 = vshll.u32 %v792, 16
      %v997 = vrot.slane %v995, 5
      %v998 = vor.u32 %v994, %v997
      %v999 = vrot.slane %v998, 4
      %v1001 = vshll.u32 %v793, 16
      %v1003 = vrot.slane %v1001, 5
      %v1004 = vsel %vm846, %v999, %v1003
      %v1005 = vshrl.u32 %v793, 16
      %v1007 = vrot.slane %v1005, 4
      %v1008 = vor.u32 %v1007, %v1003
      %v1009 = vrot.slane %v1008, 4
      %v1011 = vshll.u32 %v834, 16
      %v1013 = vrot.slane %v1011, 5
      %v1014 = vsel %vm846, %v1009, %v1013
      %v1016 = vshrl.u32 %v794, 16
      %v1018 = vrot.slane %v1016, 4
      %v1019 = vshll.u32 %v794, 16
      %v1021 = vrot.slane %v1019, 5
      %v1022 = vor.u32 %v1018, %v1021
      %v1023 = vrot.slane %v1022, 4
      %v1025 = vshll.u32 %v795, 16
      %v1027 = vrot.slane %v1025, 5
      %v1028 = vsel %vm846, %v1023, %v1027
      %v1029 = vshrl.u32 %v795, 16
      %v1031 = vrot.slane %v1029, 4
      %v1032 = vor.u32 %v1031, %v1027
      %v1033 = vrot.slane %v1032, 4
      %v1035 = vshll.u32 %v835, 16
      %v1037 = vrot.slane %v1035, 5
      %v1038 = vsel %vm846, %v1033, %v1037
      %v1040 = vshrl.u32 %v796, 16
      %v1042 = vrot.slane %v1040, 4
      %v1043 = vshll.u32 %v796, 16
      %v1045 = vrot.slane %v1043, 5
      %v1046 = vor.u32 %v1042, %v1045
      %v1047 = vrot.slane %v1046, 4
      %v1049 = vshll.u32 %v797, 16
      %v1051 = vrot.slane %v1049, 5
      %v1052 = vsel %vm846, %v1047, %v1051
      %v1053 = vshrl.u32 %v797, 16
      %v1055 = vrot.slane %v1053, 4
      %v1056 = vor.u32 %v1055, %v1051
      %v1057 = vrot.slane %v1056, 4
      %v1059 = vshll.u32 %v836, 16
      %v1061 = vrot.slane %v1059, 5
      %v1062 = vsel %vm846, %v1057, %v1061
      %v1064 = vshrl.u32 %v798, 16
      %v1066 = vrot.slane %v1064, 4
      %v1067 = vshll.u32 %v798, 16
      %v1069 = vrot.slane %v1067, 5
      %v1070 = vor.u32 %v1066, %v1069
      %v1071 = vrot.slane %v1070, 4
      %v1073 = vshll.u32 %v799, 16
      %v1075 = vrot.slane %v1073, 5
      %v1076 = vsel %vm846, %v1071, %v1075
      %v1077 = vshrl.u32 %v799, 16
      %v1079 = vrot.slane %v1077, 4
      %v1080 = vor.u32 %v1079, %v1075
      %v1081 = vrot.slane %v1080, 4
      %v1083 = vshll.u32 %v837, 16
      %v1085 = vrot.slane %v1083, 5
      %v1086 = vsel %vm846, %v1081, %v1085
      %v1088 = vshrl.u32 %v800, 16
      %v1090 = vrot.slane %v1088, 4
      %v1091 = vshll.u32 %v800, 16
      %v1093 = vrot.slane %v1091, 5
      %v1094 = vor.u32 %v1090, %v1093
      %v1095 = vrot.slane %v1094, 4
      %v1097 = vshll.u32 %v801, 16
      %v1099 = vrot.slane %v1097, 5
      %v1100 = vsel %vm846, %v1095, %v1099
      %v1101 = vshrl.u32 %v801, 16
      %v1103 = vrot.slane %v1101, 4
      %v1104 = vor.u32 %v1103, %v1099
      %v1105 = vrot.slane %v1104, 4
      %v1107 = vshll.u32 %v838, 16
      %v1109 = vrot.slane %v1107, 5
      %v1110 = vsel %vm846, %v1105, %v1109
      %v1112 = vshrl.u32 %v802, 16
      %v1114 = vrot.slane %v1112, 4
      %v1115 = vshll.u32 %v802, 16
      %v1117 = vrot.slane %v1115, 5
      %v1118 = vor.u32 %v1114, %v1117
      %v1119 = vrot.slane %v1118, 4
      %v1121 = vshll.u32 %v803, 16
      %v1123 = vrot.slane %v1121, 5
      %v1124 = vsel %vm846, %v1119, %v1123
      %v1125 = vshrl.u32 %v803, 16
      %v1127 = vrot.slane %v1125, 4
      %v1128 = vor.u32 %v1127, %v1123
      %v1129 = vrot.slane %v1128, 4
      %v1131 = vshll.u32 %v839, 16
      %v1133 = vrot.slane %v1131, 5
      %v1134 = vsel %vm846, %v1129, %v1133
      %v1136 = vshrl.u32 %v804, 16
      %v1138 = vrot.slane %v1136, 4
      %v1139 = vshll.u32 %v804, 16
      %v1141 = vrot.slane %v1139, 5
      %v1142 = vor.u32 %v1138, %v1141
      %v1143 = vrot.slane %v1142, 4
      %v1145 = vshll.u32 %v805, 16
      %v1147 = vrot.slane %v1145, 5
      %v1148 = vsel %vm846, %v1143, %v1147
      %v1149 = vshrl.u32 %v805, 16
      %v1151 = vrot.slane %v1149, 4
      %v1152 = vor.u32 %v1151, %v1147
      %v1153 = vrot.slane %v1152, 4
      %v1155 = vshll.u32 %v840, 16
      %v1157 = vrot.slane %v1155, 5
      %v1158 = vsel %vm846, %v1153, %v1157
      %v1160 = vshrl.u32 %v806, 16
      %v1162 = vrot.slane %v1160, 4
      %v1163 = vshll.u32 %v806, 16
      %v1165 = vrot.slane %v1163, 5
      %v1166 = vor.u32 %v1162, %v1165
      %v1167 = vrot.slane %v1166, 4
      %v1169 = vshll.u32 %v807, 16
      %v1171 = vrot.slane %v1169, 5
      %v1172 = vsel %vm846, %v1167, %v1171
      %v1173 = vshrl.u32 %v807, 16
      %v1175 = vrot.slane %v1173, 4
      %v1176 = vor.u32 %v1175, %v1171
      %v1177 = vrot.slane %v1176, 4
      %v1179 = vshll.u32 %v841, 16
      %v1181 = vrot.slane %v1179, 5
      %v1182 = vsel %vm846, %v1177, %v1181
      %v1184 = vshrl.u32 %v808, 16
      %v1186 = vrot.slane %v1184, 4
      %v1187 = vshll.u32 %v808, 16
      %v1189 = vrot.slane %v1187, 5
      %v1190 = vor.u32 %v1186, %v1189
      %v1191 = vrot.slane %v1190, 4
      %v1193 = vshll.u32 %v809, 16
      %v1195 = vrot.slane %v1193, 5
      %v1196 = vsel %vm846, %v1191, %v1195
      %v1197 = vshrl.u32 %v809, 16
      %v1199 = vrot.slane %v1197, 4
      %v1200 = vor.u32 %v1199, %v1195
      %v1201 = vrot.slane %v1200, 4
      %v1203 = vshll.u32 %v842, 16
      %v1205 = vrot.slane %v1203, 5
      %v1206 = vsel %vm846, %v1201, %v1205
      %v1208 = vshrl.u32 %v810, 16
      %v1210 = vrot.slane %v1208, 4
      %v1211 = vshll.u32 %v810, 16
      %v1213 = vrot.slane %v1211, 5
      %v1214 = vor.u32 %v1210, %v1213
      %v1215 = vrot.slane %v1214, 4
      %v1217 = vshll.u32 %v811, 16
      %v1219 = vrot.slane %v1217, 5
      %v1220 = vsel %vm846, %v1215, %v1219
      %v1221 = vshrl.u32 %v811, 16
      %v1223 = vrot.slane %v1221, 4
      %v1224 = vor.u32 %v1223, %v1219
      %v1225 = vrot.slane %v1224, 4
      %v1227 = vshll.u32 %v843, 16
      %v1229 = vrot.slane %v1227, 5
      %v1230 = vsel %vm846, %v1225, %v1229
      %s1231 = scalar_lea.vmem %s1, 64
      %v1232 = vld [vmem:[%s1231] sm:$0xf]
      %v1233 = vld [vmem:[%s1231 + $0x4] sm:$0xf]
      %v1234 = vld [vmem:[%s1231 + $0x8] sm:$0xf]
      %v1235 = vld [vmem:[%s1231 + $0xc] sm:$0xf]
      %v1236 = vld [vmem:[%s1231 + $0x10] sm:$0xf]
      %v1237 = vld [vmem:[%s1231 + $0x14] sm:$0xf]
      %v1238 = vld [vmem:[%s1231 + $0x18] sm:$0xf]
      %v1239 = vld [vmem:[%s1231 + $0x1c] sm:$0xf]
      %v1240 = vld [vmem:[%s1231 + $0x20] sm:$0xf]
      %v1241 = vld [vmem:[%s1231 + $0x24] sm:$0xf]
      %v1242 = vld [vmem:[%s1231 + $0x28] sm:$0xf]
      %v1243 = vld [vmem:[%s1231 + $0x2c] sm:$0xf]
      %v1244 = vld [vmem:[%s1231 + $0x30] sm:$0xf]
      %v1245 = vld [vmem:[%s1231 + $0x34] sm:$0xf]
      %v1246 = vld [vmem:[%s1231 + $0x38] sm:$0xf]
      %v1247 = vld [vmem:[%s1231 + $0x3c] sm:$0xf]
      %v1248 = vunpack.c.l.b16 %v860
      %v1249 = vunpack.c.l.b16 %v870
      %v1250 = vunpack.c.l.b16 %v884
      %v1251 = vunpack.c.l.b16 %v894
      %v1252 = vunpack.c.l.b16 %v908
      %v1253 = vunpack.c.l.b16 %v918
      %v1254 = vunpack.c.l.b16 %v932
      %v1255 = vunpack.c.l.b16 %v942
      %v1256 = vunpack.c.l.b16 %v956
      %v1257 = vunpack.c.l.b16 %v966
      %v1258 = vunpack.c.l.b16 %v980
      %v1259 = vunpack.c.l.b16 %v990
      %v1260 = vunpack.c.l.b16 %v1004
      %v1261 = vunpack.c.l.b16 %v1014
      %v1262 = vunpack.c.l.b16 %v1028
      %v1263 = vunpack.c.l.b16 %v1038
      %v1264 = vunpack.c.l.b16 %v1052
      %v1265 = vunpack.c.l.b16 %v1062
      %v1266 = vunpack.c.l.b16 %v1076
      %v1267 = vunpack.c.l.b16 %v1086
      %v1268 = vunpack.c.l.b16 %v1100
      %v1269 = vunpack.c.l.b16 %v1110
      %v1270 = vunpack.c.l.b16 %v1124
      %v1271 = vunpack.c.l.b16 %v1134
      %v1272 = vunpack.c.l.b16 %v1148
      %v1273 = vunpack.c.l.b16 %v1158
      %v1274 = vunpack.c.l.b16 %v1172
      %v1275 = vunpack.c.l.b16 %v1182
      %v1276 = vunpack.c.l.b16 %v1196
      %v1277 = vunpack.c.l.b16 %v1206
      %v1278 = vunpack.c.l.b16 %v1220
      %v1279 = vunpack.c.l.b16 %v1230
      %v1280 = vpack.c.b16 %v1249, %v1248
      %v1281 = vpack.c.b16 %v1251, %v1250
      %v1282 = vpack.c.b16 %v1253, %v1252
      %v1283 = vpack.c.b16 %v1255, %v1254
      %v1284 = vpack.c.b16 %v1257, %v1256
      %v1285 = vpack.c.b16 %v1259, %v1258
      %v1286 = vpack.c.b16 %v1261, %v1260
      %v1287 = vpack.c.b16 %v1263, %v1262
      %v1288 = vpack.c.b16 %v1265, %v1264
      %v1289 = vpack.c.b16 %v1267, %v1266
      %v1290 = vpack.c.b16 %v1269, %v1268
      %v1291 = vpack.c.b16 %v1271, %v1270
      %v1292 = vpack.c.b16 %v1273, %v1272
      %v1293 = vpack.c.b16 %v1275, %v1274
      %v1294 = vpack.c.b16 %v1277, %v1276
      %v1295 = vpack.c.b16 %v1279, %v1278
      %v1328 = vunpack.c.l.b16 %v1232
      %v1329 = vunpack.c.l.b16 %v1233
      %v1330 = vunpack.c.l.b16 %v1234
      %v1331 = vunpack.c.l.b16 %v1235
      %v1332 = vunpack.c.l.b16 %v1236
      %v1333 = vunpack.c.l.b16 %v1237
      %v1334 = vunpack.c.l.b16 %v1238
      %v1335 = vunpack.c.l.b16 %v1239
      %v1336 = vunpack.c.l.b16 %v1240
      %v1337 = vunpack.c.l.b16 %v1241
      %v1338 = vunpack.c.l.b16 %v1242
      %v1339 = vunpack.c.l.b16 %v1243
      %v1340 = vunpack.c.l.b16 %v1244
      %v1341 = vunpack.c.l.b16 %v1245
      %v1342 = vunpack.c.l.b16 %v1246
      %v1343 = vunpack.c.l.b16 %v1247
      %v1344 = vpack.c.b16 %v1329, %v1328
      %v1345 = vpack.c.b16 %v1331, %v1330
      %v1346 = vpack.c.b16 %v1333, %v1332
      %v1347 = vpack.c.b16 %v1335, %v1334
      %v1348 = vpack.c.b16 %v1337, %v1336
      %v1349 = vpack.c.b16 %v1339, %v1338
      %v1350 = vpack.c.b16 %v1341, %v1340
      %v1351 = vpack.c.b16 %v1343, %v1342
      %1360 = vmatprep.subr.bf16.mxu0 0
      %1361 = vmatpush1.bf16.msra.mxu0 %v1351
      %1362 = vmatprep.subr.bf16.mxu0 0
      %1363 = vmatpush1.bf16.msra.mxu0 %v1350
      %1364 = vmatprep.subr.bf16.mxu0 0
      %1365 = vmatpush1.bf16.msra.mxu0 %v1349
      %1366 = vmatprep.subr.bf16.mxu0 0
      %1367 = vmatpush1.bf16.msra.mxu0 %v1348
      %1368 = vmatprep.subr.bf16.mxu0 0
      %1369 = vmatpush1.bf16.msra.mxu0 %v1347
      %1370 = vmatprep.subr.bf16.mxu0 0
      %1371 = vmatpush1.bf16.msra.mxu0 %v1346
      %1372 = vmatprep.subr.bf16.mxu0 0
      %1373 = vmatpush1.bf16.msra.mxu0 %v1345
      %1374 = vmatprep.subr.bf16.mxu0 0
      %1375 = vmatpush1.bf16.msra.mxu0 %v1344
      %1376 = vmatprep.subr.bf16.mxu0 0
      %1377 = vmatpush2.bf16.msra.mxu0 0
      %1378 = vmatprep.subr.bf16.mxu0 0
      %1379 = vmatpush2.bf16.msra.mxu0 0
      %1380 = vmatprep.subr.bf16.mxu0 0
      %1381 = vmatpush2.bf16.msra.mxu0 0
      %1382 = vmatprep.subr.bf16.mxu0 0
      %1383 = vmatpush2.bf16.msra.mxu0 0
      %1384 = vmatprep.subr.bf16.mxu0 0
      %1385 = vmatpush2.bf16.msra.mxu0 0
      %1386 = vmatprep.subr.bf16.mxu0 0
      %1387 = vmatpush2.bf16.msra.mxu0 0
      %1388 = vmatprep.subr.bf16.mxu0 0
      %1389 = vmatpush2.bf16.msra.mxu0 0
      %1390 = vmatprep.subr.bf16.mxu0 0
      %1391 = vmatpush2.bf16.msra.mxu0 0
      %1392 = vmatprep.mubr.bf16.mxu0 0
      %1393 = vmatmul.mubr.bf16.gmra.mxu0 %v1280
      %v1394 = vpop.f32.mrf.mxu0
      %v1395 = vadd.f32 0.0, %v1394
      %v1396 = vpop.f32.mrf.mxu0
      %v1397 = vpop.f32.mrf.mxu0
      %v1398 = vadd.f32 0.0, %v1397
      %v1399 = vpop.f32.mrf.mxu0
      %1400 = vmatprep.mubr.bf16.mxu0 0
      %1401 = vmatmul.mubr.bf16.gmra.mxu0 %v1281
      %v1402 = vpop.f32.mrf.mxu0
      %v1403 = vadd.f32 0.0, %v1402
      %v1404 = vpop.f32.mrf.mxu0
      %v1405 = vpop.f32.mrf.mxu0
      %v1406 = vadd.f32 0.0, %v1405
      %v1407 = vpop.f32.mrf.mxu0
      %1408 = vmatprep.mubr.bf16.mxu0 0
      %1409 = vmatmul.mubr.bf16.gmra.mxu0 %v1282
      %v1410 = vpop.f32.mrf.mxu0
      %v1411 = vadd.f32 0.0, %v1410
      %v1412 = vpop.f32.mrf.mxu0
      %v1413 = vpop.f32.mrf.mxu0
      %v1414 = vadd.f32 0.0, %v1413
      %v1415 = vpop.f32.mrf.mxu0
      %1416 = vmatprep.mubr.bf16.mxu0 0
      %1417 = vmatmul.mubr.bf16.gmra.mxu0 %v1283
      %v1418 = vpop.f32.mrf.mxu0
      %v1419 = vadd.f32 0.0, %v1418
      %v1420 = vpop.f32.mrf.mxu0
      %v1421 = vpop.f32.mrf.mxu0
      %v1422 = vadd.f32 0.0, %v1421
      %v1423 = vpop.f32.mrf.mxu0
      %1424 = vmatprep.mubr.bf16.mxu0 0
      %1425 = vmatmul.mubr.bf16.gmra.mxu0 %v1284
      %v1426 = vpop.f32.mrf.mxu0
      %v1427 = vadd.f32 0.0, %v1426
      %v1428 = vpop.f32.mrf.mxu0
      %v1429 = vpop.f32.mrf.mxu0
      %v1430 = vadd.f32 0.0, %v1429
      %v1431 = vpop.f32.mrf.mxu0
      %1432 = vmatprep.mubr.bf16.mxu0 0
      %1433 = vmatmul.mubr.bf16.gmra.mxu0 %v1285
      %v1434 = vpop.f32.mrf.mxu0
      %v1435 = vadd.f32 0.0, %v1434
      %v1436 = vpop.f32.mrf.mxu0
      %v1437 = vpop.f32.mrf.mxu0
      %v1438 = vadd.f32 0.0, %v1437
      %v1439 = vpop.f32.mrf.mxu0
      %1440 = vmatprep.mubr.bf16.mxu0 0
      %1441 = vmatmul.mubr.bf16.gmra.mxu0 %v1286
      %v1442 = vpop.f32.mrf.mxu0
      %v1443 = vadd.f32 0.0, %v1442
      %v1444 = vpop.f32.mrf.mxu0
      %v1445 = vpop.f32.mrf.mxu0
      %v1446 = vadd.f32 0.0, %v1445
      %v1447 = vpop.f32.mrf.mxu0
      %1448 = vmatprep.mubr.bf16.mxu0 0
      %1449 = vmatmul.mubr.bf16.gmra.mxu0 %v1287
      %v1450 = vpop.f32.mrf.mxu0
      %v1451 = vadd.f32 0.0, %v1450
      %v1452 = vpop.f32.mrf.mxu0
      %v1453 = vpop.f32.mrf.mxu0
      %v1454 = vadd.f32 0.0, %v1453
      %v1455 = vpop.f32.mrf.mxu0
      %1456 = vmatprep.mubr.bf16.mxu0 0
      %1457 = vmatmul.mubr.bf16.gmra.mxu0 %v1288
      %v1458 = vpop.f32.mrf.mxu0
      %v1459 = vadd.f32 0.0, %v1458
      %v1460 = vpop.f32.mrf.mxu0
      %v1461 = vpop.f32.mrf.mxu0
      %v1462 = vadd.f32 0.0, %v1461
      %v1463 = vpop.f32.mrf.mxu0
      %1464 = vmatprep.mubr.bf16.mxu0 0
      %1465 = vmatmul.mubr.bf16.gmra.mxu0 %v1289
      %v1466 = vpop.f32.mrf.mxu0
      %v1467 = vadd.f32 0.0, %v1466
      %v1468 = vpop.f32.mrf.mxu0
      %v1469 = vpop.f32.mrf.mxu0
      %v1470 = vadd.f32 0.0, %v1469
      %v1471 = vpop.f32.mrf.mxu0
      %1472 = vmatprep.mubr.bf16.mxu0 0
      %1473 = vmatmul.mubr.bf16.gmra.mxu0 %v1290
      %v1474 = vpop.f32.mrf.mxu0
      %v1475 = vadd.f32 0.0, %v1474
      %v1476 = vpop.f32.mrf.mxu0
      %v1477 = vpop.f32.mrf.mxu0
      %v1478 = vadd.f32 0.0, %v1477
      %v1479 = vpop.f32.mrf.mxu0
      %1480 = vmatprep.mubr.bf16.mxu0 0
      %1481 = vmatmul.mubr.bf16.gmra.mxu0 %v1291
      %v1482 = vpop.f32.mrf.mxu0
      %v1483 = vadd.f32 0.0, %v1482
      %v1484 = vpop.f32.mrf.mxu0
      %v1485 = vpop.f32.mrf.mxu0
      %v1486 = vadd.f32 0.0, %v1485
      %v1487 = vpop.f32.mrf.mxu0
      %1488 = vmatprep.mubr.bf16.mxu0 0
      %1489 = vmatmul.mubr.bf16.gmra.mxu0 %v1292
      %v1490 = vpop.f32.mrf.mxu0
      %v1491 = vadd.f32 0.0, %v1490
      %v1492 = vpop.f32.mrf.mxu0
      %v1493 = vpop.f32.mrf.mxu0
      %v1494 = vadd.f32 0.0, %v1493
      %v1495 = vpop.f32.mrf.mxu0
      %1496 = vmatprep.mubr.bf16.mxu0 0
      %1497 = vmatmul.mubr.bf16.gmra.mxu0 %v1293
      %v1498 = vpop.f32.mrf.mxu0
      %v1499 = vadd.f32 0.0, %v1498
      %v1500 = vpop.f32.mrf.mxu0
      %v1501 = vpop.f32.mrf.mxu0
      %v1502 = vadd.f32 0.0, %v1501
      %v1503 = vpop.f32.mrf.mxu0
      %1504 = vmatprep.mubr.bf16.mxu0 0
      %1505 = vmatmul.mubr.bf16.gmra.mxu0 %v1294
      %v1506 = vpop.f32.mrf.mxu0
      %v1507 = vadd.f32 0.0, %v1506
      %v1508 = vpop.f32.mrf.mxu0
      %v1509 = vpop.f32.mrf.mxu0
      %v1510 = vadd.f32 0.0, %v1509
      %v1511 = vpop.f32.mrf.mxu0
      %1512 = vmatprep.mubr.bf16.mxu0 0
      %1513 = vmatmul.mubr.bf16.gmra.mxu0 %v1295
      %v1514 = vpop.f32.mrf.mxu0
      %v1515 = vadd.f32 0.0, %v1514
      %v1516 = vpop.f32.mrf.mxu0
      %v1517 = vpop.f32.mrf.mxu0
      %v1518 = vadd.f32 0.0, %v1517
      %v1519 = vpop.f32.mrf.mxu0
      %1520 = vdwg.mxu0
      %v1553 = vunpack.c.l.b16 %v780
      %v1554 = vunpack.c.l.b16 %v781
      %v1555 = vunpack.c.l.b16 %v782
      %v1556 = vunpack.c.l.b16 %v783
      %v1557 = vunpack.c.l.b16 %v784
      %v1558 = vunpack.c.l.b16 %v785
      %v1559 = vunpack.c.l.b16 %v786
      %v1560 = vunpack.c.l.b16 %v787
      %v1561 = vunpack.c.l.b16 %v788
      %v1562 = vunpack.c.l.b16 %v789
      %v1563 = vunpack.c.l.b16 %v790
      %v1564 = vunpack.c.l.b16 %v791
      %v1565 = vunpack.c.l.b16 %v792
      %v1566 = vunpack.c.l.b16 %v793
      %v1567 = vunpack.c.l.b16 %v794
      %v1568 = vunpack.c.l.b16 %v795
      %v1569 = vunpack.c.l.b16 %v796
      %v1570 = vunpack.c.l.b16 %v797
      %v1571 = vunpack.c.l.b16 %v798
      %v1572 = vunpack.c.l.b16 %v799
      %v1573 = vunpack.c.l.b16 %v800
      %v1574 = vunpack.c.l.b16 %v801
      %v1575 = vunpack.c.l.b16 %v802
      %v1576 = vunpack.c.l.b16 %v803
      %v1577 = vunpack.c.l.b16 %v804
      %v1578 = vunpack.c.l.b16 %v805
      %v1579 = vunpack.c.l.b16 %v806
      %v1580 = vunpack.c.l.b16 %v807
      %v1581 = vunpack.c.l.b16 %v808
      %v1582 = vunpack.c.l.b16 %v809
      %v1583 = vunpack.c.l.b16 %v810
      %v1584 = vunpack.c.l.b16 %v811
      %v1585 = vpack.c.b16 %v1554, %v1553
      %v1586 = vpack.c.b16 %v1556, %v1555
      %v1587 = vpack.c.b16 %v1558, %v1557
      %v1588 = vpack.c.b16 %v1560, %v1559
      %v1589 = vpack.c.b16 %v1562, %v1561
      %v1590 = vpack.c.b16 %v1564, %v1563
      %v1591 = vpack.c.b16 %v1566, %v1565
      %v1592 = vpack.c.b16 %v1568, %v1567
      %v1593 = vpack.c.b16 %v1570, %v1569
      %v1594 = vpack.c.b16 %v1572, %v1571
      %v1595 = vpack.c.b16 %v1574, %v1573
      %v1596 = vpack.c.b16 %v1576, %v1575
      %v1597 = vpack.c.b16 %v1578, %v1577
      %v1598 = vpack.c.b16 %v1580, %v1579
      %v1599 = vpack.c.b16 %v1582, %v1581
      %v1600 = vpack.c.b16 %v1584, %v1583
      %v1633 = vunpack.c.l.b16 %v812
      %v1634 = vunpack.c.l.b16 %v813
      %v1635 = vunpack.c.l.b16 %v814
      %v1636 = vunpack.c.l.b16 %v815
      %v1637 = vunpack.c.l.b16 %v816
      %v1638 = vunpack.c.l.b16 %v817
      %v1639 = vunpack.c.l.b16 %v818
      %v1640 = vunpack.c.l.b16 %v819
      %v1641 = vunpack.c.l.b16 %v820
      %v1642 = vunpack.c.l.b16 %v821
      %v1643 = vunpack.c.l.b16 %v822
      %v1644 = vunpack.c.l.b16 %v823
      %v1645 = vunpack.c.l.b16 %v824
      %v1646 = vunpack.c.l.b16 %v825
      %v1647 = vunpack.c.l.b16 %v826
      %v1648 = vunpack.c.l.b16 %v827
      %v1649 = vpack.c.b16 %v1634, %v1633
      %v1650 = vpack.c.b16 %v1636, %v1635
      %v1651 = vpack.c.b16 %v1638, %v1637
      %v1652 = vpack.c.b16 %v1640, %v1639
      %v1653 = vpack.c.b16 %v1642, %v1641
      %v1654 = vpack.c.b16 %v1644, %v1643
      %v1655 = vpack.c.b16 %v1646, %v1645
      %v1656 = vpack.c.b16 %v1648, %v1647
      %1665 = vmatprep.subr.bf16.mxu0 0
      %1666 = vmatpush1.bf16.msra.mxu0 %v1656
      %1667 = vmatprep.subr.bf16.mxu0 0
      %1668 = vmatpush1.bf16.msra.mxu0 %v1655
      %1669 = vmatprep.subr.bf16.mxu0 0
      %1670 = vmatpush1.bf16.msra.mxu0 %v1654
      %1671 = vmatprep.subr.bf16.mxu0 0
      %1672 = vmatpush1.bf16.msra.mxu0 %v1653
      %1673 = vmatprep.subr.bf16.mxu0 0
      %1674 = vmatpush1.bf16.msra.mxu0 %v1652
      %1675 = vmatprep.subr.bf16.mxu0 0
      %1676 = vmatpush1.bf16.msra.mxu0 %v1651
      %1677 = vmatprep.subr.bf16.mxu0 0
      %1678 = vmatpush1.bf16.msra.mxu0 %v1650
      %1679 = vmatprep.subr.bf16.mxu0 0
      %1680 = vmatpush1.bf16.msra.mxu0 %v1649
      %1681 = vmatprep.subr.bf16.mxu0 0
      %1682 = vmatpush2.bf16.msra.mxu0 0
      %1683 = vmatprep.subr.bf16.mxu0 0
      %1684 = vmatpush2.bf16.msra.mxu0 0
      %1685 = vmatprep.subr.bf16.mxu0 0
      %1686 = vmatpush2.bf16.msra.mxu0 0
      %1687 = vmatprep.subr.bf16.mxu0 0
      %1688 = vmatpush2.bf16.msra.mxu0 0
      %1689 = vmatprep.subr.bf16.mxu0 0
      %1690 = vmatpush2.bf16.msra.mxu0 0
      %1691 = vmatprep.subr.bf16.mxu0 0
      %1692 = vmatpush2.bf16.msra.mxu0 0
      %1693 = vmatprep.subr.bf16.mxu0 0
      %1694 = vmatpush2.bf16.msra.mxu0 0
      %1695 = vmatprep.subr.bf16.mxu0 0
      %1696 = vmatpush2.bf16.msra.mxu0 0
      %1697 = vmatprep.mubr.bf16.mxu0 0
      %1698 = vmatmul.mubr.bf16.gmra.mxu0 %v1585
      %v1699 = vpop.f32.mrf.mxu0
      %v1700 = vadd.f32 %v1395, %v1699
      %v1701 = vpop.f32.mrf.mxu0
      %v1702 = vpop.f32.mrf.mxu0
      %v1703 = vadd.f32 %v1398, %v1702
      %v1704 = vpop.f32.mrf.mxu0
      %1705 = vmatprep.mubr.bf16.mxu0 0
      %1706 = vmatmul.mubr.bf16.gmra.mxu0 %v1586
      %v1707 = vpop.f32.mrf.mxu0
      %v1708 = vadd.f32 %v1403, %v1707
      %v1709 = vpop.f32.mrf.mxu0
      %v1710 = vpop.f32.mrf.mxu0
      %v1711 = vadd.f32 %v1406, %v1710
      %v1712 = vpop.f32.mrf.mxu0
      %1713 = vmatprep.mubr.bf16.mxu0 0
      %1714 = vmatmul.mubr.bf16.gmra.mxu0 %v1587
      %v1715 = vpop.f32.mrf.mxu0
      %v1716 = vadd.f32 %v1411, %v1715
      %v1717 = vpop.f32.mrf.mxu0
      %v1718 = vpop.f32.mrf.mxu0
      %v1719 = vadd.f32 %v1414, %v1718
      %v1720 = vpop.f32.mrf.mxu0
      %1721 = vmatprep.mubr.bf16.mxu0 0
      %1722 = vmatmul.mubr.bf16.gmra.mxu0 %v1588
      %v1723 = vpop.f32.mrf.mxu0
      %v1724 = vadd.f32 %v1419, %v1723
      %v1725 = vpop.f32.mrf.mxu0
      %v1726 = vpop.f32.mrf.mxu0
      %v1727 = vadd.f32 %v1422, %v1726
      %v1728 = vpop.f32.mrf.mxu0
      %1729 = vmatprep.mubr.bf16.mxu0 0
      %1730 = vmatmul.mubr.bf16.gmra.mxu0 %v1589
      %v1731 = vpop.f32.mrf.mxu0
      %v1732 = vadd.f32 %v1427, %v1731
      %v1733 = vpop.f32.mrf.mxu0
      %v1734 = vpop.f32.mrf.mxu0
      %v1735 = vadd.f32 %v1430, %v1734
      %v1736 = vpop.f32.mrf.mxu0
      %1737 = vmatprep.mubr.bf16.mxu0 0
      %1738 = vmatmul.mubr.bf16.gmra.mxu0 %v1590
      %v1739 = vpop.f32.mrf.mxu0
      %v1740 = vadd.f32 %v1435, %v1739
      %v1741 = vpop.f32.mrf.mxu0
      %v1742 = vpop.f32.mrf.mxu0
      %v1743 = vadd.f32 %v1438, %v1742
      %v1744 = vpop.f32.mrf.mxu0
      %1745 = vmatprep.mubr.bf16.mxu0 0
      %1746 = vmatmul.mubr.bf16.gmra.mxu0 %v1591
      %v1747 = vpop.f32.mrf.mxu0
      %v1748 = vadd.f32 %v1443, %v1747
      %v1749 = vpop.f32.mrf.mxu0
      %v1750 = vpop.f32.mrf.mxu0
      %v1751 = vadd.f32 %v1446, %v1750
      %v1752 = vpop.f32.mrf.mxu0
      %1753 = vmatprep.mubr.bf16.mxu0 0
      %1754 = vmatmul.mubr.bf16.gmra.mxu0 %v1592
      %v1755 = vpop.f32.mrf.mxu0
      %v1756 = vadd.f32 %v1451, %v1755
      %v1757 = vpop.f32.mrf.mxu0
      %v1758 = vpop.f32.mrf.mxu0
      %v1759 = vadd.f32 %v1454, %v1758
      %v1760 = vpop.f32.mrf.mxu0
      %1761 = vmatprep.mubr.bf16.mxu0 0
      %1762 = vmatmul.mubr.bf16.gmra.mxu0 %v1593
      %v1763 = vpop.f32.mrf.mxu0
      %v1764 = vadd.f32 %v1459, %v1763
      %v1765 = vpop.f32.mrf.mxu0
      %v1766 = vpop.f32.mrf.mxu0
      %v1767 = vadd.f32 %v1462, %v1766
      %v1768 = vpop.f32.mrf.mxu0
      %1769 = vmatprep.mubr.bf16.mxu0 0
      %1770 = vmatmul.mubr.bf16.gmra.mxu0 %v1594
      %v1771 = vpop.f32.mrf.mxu0
      %v1772 = vadd.f32 %v1467, %v1771
      %v1773 = vpop.f32.mrf.mxu0
      %v1774 = vpop.f32.mrf.mxu0
      %v1775 = vadd.f32 %v1470, %v1774
      %v1776 = vpop.f32.mrf.mxu0
      %1777 = vmatprep.mubr.bf16.mxu0 0
      %1778 = vmatmul.mubr.bf16.gmra.mxu0 %v1595
      %v1779 = vpop.f32.mrf.mxu0
      %v1780 = vadd.f32 %v1475, %v1779
      %v1781 = vpop.f32.mrf.mxu0
      %v1782 = vpop.f32.mrf.mxu0
      %v1783 = vadd.f32 %v1478, %v1782
      %v1784 = vpop.f32.mrf.mxu0
      %1785 = vmatprep.mubr.bf16.mxu0 0
      %1786 = vmatmul.mubr.bf16.gmra.mxu0 %v1596
      %v1787 = vpop.f32.mrf.mxu0
      %v1788 = vadd.f32 %v1483, %v1787
      %v1789 = vpop.f32.mrf.mxu0
      %v1790 = vpop.f32.mrf.mxu0
      %v1791 = vadd.f32 %v1486, %v1790
      %v1792 = vpop.f32.mrf.mxu0
      %1793 = vmatprep.mubr.bf16.mxu0 0
      %1794 = vmatmul.mubr.bf16.gmra.mxu0 %v1597
      %v1795 = vpop.f32.mrf.mxu0
      %v1796 = vadd.f32 %v1491, %v1795
      %v1797 = vpop.f32.mrf.mxu0
      %v1798 = vpop.f32.mrf.mxu0
      %v1799 = vadd.f32 %v1494, %v1798
      %v1800 = vpop.f32.mrf.mxu0
      %1801 = vmatprep.mubr.bf16.mxu0 0
      %1802 = vmatmul.mubr.bf16.gmra.mxu0 %v1598
      %v1803 = vpop.f32.mrf.mxu0
      %v1804 = vadd.f32 %v1499, %v1803
      %v1805 = vpop.f32.mrf.mxu0
      %v1806 = vpop.f32.mrf.mxu0
      %v1807 = vadd.f32 %v1502, %v1806
      %v1808 = vpop.f32.mrf.mxu0
      %1809 = vmatprep.mubr.bf16.mxu0 0
      %1810 = vmatmul.mubr.bf16.gmra.mxu0 %v1599
      %v1811 = vpop.f32.mrf.mxu0
      %v1812 = vadd.f32 %v1507, %v1811
      %v1813 = vpop.f32.mrf.mxu0
      %v1814 = vpop.f32.mrf.mxu0
      %v1815 = vadd.f32 %v1510, %v1814
      %v1816 = vpop.f32.mrf.mxu0
      %1817 = vmatprep.mubr.bf16.mxu0 0
      %1818 = vmatmul.mubr.bf16.gmra.mxu0 %v1600
      %v1819 = vpop.f32.mrf.mxu0
      %v1820 = vadd.f32 %v1515, %v1819
      %v1821 = vpop.f32.mrf.mxu0
      %v1822 = vpop.f32.mrf.mxu0
      %v1823 = vadd.f32 %v1518, %v1822
      %v1824 = vpop.f32.mrf.mxu0
      %1825 = vdwg.mxu0
      %v1826 = vld [vmem:[#allocation2] sm:$0xe]
      %v1827 = vld [vmem:[#allocation2 + $0xc] sm:$0xe]
      %v1828 = vld [vmem:[#allocation2 + $0x18] sm:$0xe]
      %v1829 = vld [vmem:[#allocation2 + $0x24] sm:$0xe]
      %v1830 = vld [vmem:[#allocation2 + $0x30] sm:$0xe]
      %v1831 = vld [vmem:[#allocation2 + $0x3c] sm:$0xe]
      %v1832 = vld [vmem:[#allocation2 + $0x48] sm:$0xe]
      %v1833 = vld [vmem:[#allocation2 + $0x54] sm:$0xe]
      %v1834 = vld [vmem:[#allocation2 + $0x60] sm:$0xe]
      %v1835 = vld [vmem:[#allocation2 + $0x6c] sm:$0xe]
      %v1836 = vld [vmem:[#allocation2 + $0x78] sm:$0xe]
      %v1837 = vld [vmem:[#allocation2 + $0x84] sm:$0xe]
      %v1838 = vld [vmem:[#allocation2 + $0x90] sm:$0xe]
      %v1839 = vld [vmem:[#allocation2 + $0x9c] sm:$0xe]
      %v1840 = vld [vmem:[#allocation2 + $0xa8] sm:$0xe]
      %v1841 = vld [vmem:[#allocation2 + $0xb4] sm:$0xe]
      %vm1874 = vcmask 1042432
      %vm1875 = vcmask 1046532
      %vm1876 = vmor %vm1874, %vm1875
      %v1877 = vrot.slane %v1826, 5
      %v1878 = vrot.slane %v1877, 4
      %v1879 = vrot.slane %v781, 5
      %v1880 = vsel %vm1876, %v1878, %v1879
      %v1881 = vrot.slane %v1879, 4
      %v1882 = vrot.slane %v828, 5
      %v1883 = vsel %vm1876, %v1881, %v1882
      %v1884 = vrot.slane %v1827, 5
      %v1885 = vrot.slane %v1884, 4
      %v1886 = vrot.slane %v783, 5
      %v1887 = vsel %vm1876, %v1885, %v1886
      %v1888 = vrot.slane %v1886, 4
      %v1889 = vrot.slane %v829, 5
      %v1890 = vsel %vm1876, %v1888, %v1889
      %v1891 = vrot.slane %v1828, 5
      %v1892 = vrot.slane %v1891, 4
      %v1893 = vrot.slane %v785, 5
      %v1894 = vsel %vm1876, %v1892, %v1893
      %v1895 = vrot.slane %v1893, 4
      %v1896 = vrot.slane %v830, 5
      %v1897 = vsel %vm1876, %v1895, %v1896
      %v1898 = vrot.slane %v1829, 5
      %v1899 = vrot.slane %v1898, 4
      %v1900 = vrot.slane %v787, 5
      %v1901 = vsel %vm1876, %v1899, %v1900
      %v1902 = vrot.slane %v1900, 4
      %v1903 = vrot.slane %v831, 5
      %v1904 = vsel %vm1876, %v1902, %v1903
      %v1905 = vrot.slane %v1830, 5
      %v1906 = vrot.slane %v1905, 4
      %v1907 = vrot.slane %v789, 5
      %v1908 = vsel %vm1876, %v1906, %v1907
      %v1909 = vrot.slane %v1907, 4
      %v1910 = vrot.slane %v832, 5
      %v1911 = vsel %vm1876, %v1909, %v1910
      %v1912 = vrot.slane %v1831, 5
      %v1913 = vrot.slane %v1912, 4
      %v1914 = vrot.slane %v791, 5
      %v1915 = vsel %vm1876, %v1913, %v1914
      %v1916 = vrot.slane %v1914, 4
      %v1917 = vrot.slane %v833, 5
      %v1918 = vsel %vm1876, %v1916, %v1917
      %v1919 = vrot.slane %v1832, 5
      %v1920 = vrot.slane %v1919, 4
      %v1921 = vrot.slane %v793, 5
      %v1922 = vsel %vm1876, %v1920, %v1921
      %v1923 = vrot.slane %v1921, 4
      %v1924 = vrot.slane %v834, 5
      %v1925 = vsel %vm1876, %v1923, %v1924
      %v1926 = vrot.slane %v1833, 5
      %v1927 = vrot.slane %v1926, 4
      %v1928 = vrot.slane %v795, 5
      %v1929 = vsel %vm1876, %v1927, %v1928
      %v1930 = vrot.slane %v1928, 4
      %v1931 = vrot.slane %v835, 5
      %v1932 = vsel %vm1876, %v1930, %v1931
      %v1933 = vrot.slane %v1834, 5
      %v1934 = vrot.slane %v1933, 4
      %v1935 = vrot.slane %v797, 5
      %v1936 = vsel %vm1876, %v1934, %v1935
      %v1937 = vrot.slane %v1935, 4
      %v1938 = vrot.slane %v836, 5
      %v1939 = vsel %vm1876, %v1937, %v1938
      %v1940 = vrot.slane %v1835, 5
      %v1941 = vrot.slane %v1940, 4
      %v1942 = vrot.slane %v799, 5
      %v1943 = vsel %vm1876, %v1941, %v1942
      %v1944 = vrot.slane %v1942, 4
      %v1945 = vrot.slane %v837, 5
      %v1946 = vsel %vm1876, %v1944, %v1945
      %v1947 = vrot.slane %v1836, 5
      %v1948 = vrot.slane %v1947, 4
      %v1949 = vrot.slane %v801, 5
      %v1950 = vsel %vm1876, %v1948, %v1949
      %v1951 = vrot.slane %v1949, 4
      %v1952 = vrot.slane %v838, 5
      %v1953 = vsel %vm1876, %v1951, %v1952
      %v1954 = vrot.slane %v1837, 5
      %v1955 = vrot.slane %v1954, 4
      %v1956 = vrot.slane %v803, 5
      %v1957 = vsel %vm1876, %v1955, %v1956
      %v1958 = vrot.slane %v1956, 4
      %v1959 = vrot.slane %v839, 5
      %v1960 = vsel %vm1876, %v1958, %v1959
      %v1961 = vrot.slane %v1838, 5
      %v1962 = vrot.slane %v1961, 4
      %v1963 = vrot.slane %v805, 5
      %v1964 = vsel %vm1876, %v1962, %v1963
      %v1965 = vrot.slane %v1963, 4
      %v1966 = vrot.slane %v840, 5
      %v1967 = vsel %vm1876, %v1965, %v1966
      %v1968 = vrot.slane %v1839, 5
      %v1969 = vrot.slane %v1968, 4
      %v1970 = vrot.slane %v807, 5
      %v1971 = vsel %vm1876, %v1969, %v1970
      %v1972 = vrot.slane %v1970, 4
      %v1973 = vrot.slane %v841, 5
      %v1974 = vsel %vm1876, %v1972, %v1973
      %v1975 = vrot.slane %v1840, 5
      %v1976 = vrot.slane %v1975, 4
      %v1977 = vrot.slane %v809, 5
      %v1978 = vsel %vm1876, %v1976, %v1977
      %v1979 = vrot.slane %v1977, 4
      %v1980 = vrot.slane %v842, 5
      %v1981 = vsel %vm1876, %v1979, %v1980
      %v1982 = vrot.slane %v1841, 5
      %v1983 = vrot.slane %v1982, 4
      %v1984 = vrot.slane %v811, 5
      %v1985 = vsel %vm1876, %v1983, %v1984
      %v1986 = vrot.slane %v1984, 4
      %v1987 = vrot.slane %v843, 5
      %v1988 = vsel %vm1876, %v1986, %v1987
      %s1989 = scalar_lea.vmem %s1, 128
      %v1990 = vld [vmem:[%s1989] sm:$0xf]
      %v1991 = vld [vmem:[%s1989 + $0x4] sm:$0xf]
      %v1992 = vld [vmem:[%s1989 + $0x8] sm:$0xf]
      %v1993 = vld [vmem:[%s1989 + $0xc] sm:$0xf]
      %v1994 = vld [vmem:[%s1989 + $0x10] sm:$0xf]
      %v1995 = vld [vmem:[%s1989 + $0x14] sm:$0xf]
      %v1996 = vld [vmem:[%s1989 + $0x18] sm:$0xf]
      %v1997 = vld [vmem:[%s1989 + $0x1c] sm:$0xf]
      %v1998 = vld [vmem:[%s1989 + $0x20] sm:$0xf]
      %v1999 = vld [vmem:[%s1989 + $0x24] sm:$0xf]
      %v2000 = vld [vmem:[%s1989 + $0x28] sm:$0xf]
      %v2001 = vld [vmem:[%s1989 + $0x2c] sm:$0xf]
      %v2002 = vld [vmem:[%s1989 + $0x30] sm:$0xf]
      %v2003 = vld [vmem:[%s1989 + $0x34] sm:$0xf]
      %v2004 = vld [vmem:[%s1989 + $0x38] sm:$0xf]
      %v2005 = vld [vmem:[%s1989 + $0x3c] sm:$0xf]
      %v2006 = vunpack.c.l.b16 %v1880
      %v2007 = vunpack.c.l.b16 %v1883
      %v2008 = vunpack.c.l.b16 %v1887
      %v2009 = vunpack.c.l.b16 %v1890
      %v2010 = vunpack.c.l.b16 %v1894
      %v2011 = vunpack.c.l.b16 %v1897
      %v2012 = vunpack.c.l.b16 %v1901
      %v2013 = vunpack.c.l.b16 %v1904
      %v2014 = vunpack.c.l.b16 %v1908
      %v2015 = vunpack.c.l.b16 %v1911
      %v2016 = vunpack.c.l.b16 %v1915
      %v2017 = vunpack.c.l.b16 %v1918
      %v2018 = vunpack.c.l.b16 %v1922
      %v2019 = vunpack.c.l.b16 %v1925
      %v2020 = vunpack.c.l.b16 %v1929
      %v2021 = vunpack.c.l.b16 %v1932
      %v2022 = vunpack.c.l.b16 %v1936
      %v2023 = vunpack.c.l.b16 %v1939
      %v2024 = vunpack.c.l.b16 %v1943
      %v2025 = vunpack.c.l.b16 %v1946
      %v2026 = vunpack.c.l.b16 %v1950
      %v2027 = vunpack.c.l.b16 %v1953
      %v2028 = vunpack.c.l.b16 %v1957
      %v2029 = vunpack.c.l.b16 %v1960
      %v2030 = vunpack.c.l.b16 %v1964
      %v2031 = vunpack.c.l.b16 %v1967
      %v2032 = vunpack.c.l.b16 %v1971
      %v2033 = vunpack.c.l.b16 %v1974
      %v2034 = vunpack.c.l.b16 %v1978
      %v2035 = vunpack.c.l.b16 %v1981
      %v2036 = vunpack.c.l.b16 %v1985
      %v2037 = vunpack.c.l.b16 %v1988
      %v2038 = vpack.c.b16 %v2007, %v2006
      %v2039 = vpack.c.b16 %v2009, %v2008
      %v2040 = vpack.c.b16 %v2011, %v2010
      %v2041 = vpack.c.b16 %v2013, %v2012
      %v2042 = vpack.c.b16 %v2015, %v2014
      %v2043 = vpack.c.b16 %v2017, %v2016
      %v2044 = vpack.c.b16 %v2019, %v2018
      %v2045 = vpack.c.b16 %v2021, %v2020
      %v2046 = vpack.c.b16 %v2023, %v2022
      %v2047 = vpack.c.b16 %v2025, %v2024
      %v2048 = vpack.c.b16 %v2027, %v2026
      %v2049 = vpack.c.b16 %v2029, %v2028
      %v2050 = vpack.c.b16 %v2031, %v2030
      %v2051 = vpack.c.b16 %v2033, %v2032
      %v2052 = vpack.c.b16 %v2035, %v2034
      %v2053 = vpack.c.b16 %v2037, %v2036
      %v2086 = vunpack.c.l.b16 %v1990
      %v2087 = vunpack.c.l.b16 %v1991
      %v2088 = vunpack.c.l.b16 %v1992
      %v2089 = vunpack.c.l.b16 %v1993
      %v2090 = vunpack.c.l.b16 %v1994
      %v2091 = vunpack.c.l.b16 %v1995
      %v2092 = vunpack.c.l.b16 %v1996
      %v2093 = vunpack.c.l.b16 %v1997
      %v2094 = vunpack.c.l.b16 %v1998
      %v2095 = vunpack.c.l.b16 %v1999
      %v2096 = vunpack.c.l.b16 %v2000
      %v2097 = vunpack.c.l.b16 %v2001
      %v2098 = vunpack.c.l.b16 %v2002
      %v2099 = vunpack.c.l.b16 %v2003
      %v2100 = vunpack.c.l.b16 %v2004
      %v2101 = vunpack.c.l.b16 %v2005
      %v2102 = vpack.c.b16 %v2087, %v2086
      %v2103 = vpack.c.b16 %v2089, %v2088
      %v2104 = vpack.c.b16 %v2091, %v2090
      %v2105 = vpack.c.b16 %v2093, %v2092
      %v2106 = vpack.c.b16 %v2095, %v2094
      %v2107 = vpack.c.b16 %v2097, %v2096
      %v2108 = vpack.c.b16 %v2099, %v2098
      %v2109 = vpack.c.b16 %v2101, %v2100
      %2118 = vmatprep.subr.bf16.mxu0 0
      %2119 = vmatpush1.bf16.msra.mxu0 %v2109
      %2120 = vmatprep.subr.bf16.mxu0 0
      %2121 = vmatpush1.bf16.msra.mxu0 %v2108
      %2122 = vmatprep.subr.bf16.mxu0 0
      %2123 = vmatpush1.bf16.msra.mxu0 %v2107
      %2124 = vmatprep.subr.bf16.mxu0 0
      %2125 = vmatpush1.bf16.msra.mxu0 %v2106
      %2126 = vmatprep.subr.bf16.mxu0 0
      %2127 = vmatpush1.bf16.msra.mxu0 %v2105
      %2128 = vmatprep.subr.bf16.mxu0 0
      %2129 = vmatpush1.bf16.msra.mxu0 %v2104
      %2130 = vmatprep.subr.bf16.mxu0 0
      %2131 = vmatpush1.bf16.msra.mxu0 %v2103
      %2132 = vmatprep.subr.bf16.mxu0 0
      %2133 = vmatpush1.bf16.msra.mxu0 %v2102
      %2134 = vmatprep.subr.bf16.mxu0 0
      %2135 = vmatpush2.bf16.msra.mxu0 0
      %2136 = vmatprep.subr.bf16.mxu0 0
      %2137 = vmatpush2.bf16.msra.mxu0 0
      %2138 = vmatprep.subr.bf16.mxu0 0
      %2139 = vmatpush2.bf16.msra.mxu0 0
      %2140 = vmatprep.subr.bf16.mxu0 0
      %2141 = vmatpush2.bf16.msra.mxu0 0
      %2142 = vmatprep.subr.bf16.mxu0 0
      %2143 = vmatpush2.bf16.msra.mxu0 0
      %2144 = vmatprep.subr.bf16.mxu0 0
      %2145 = vmatpush2.bf16.msra.mxu0 0
      %2146 = vmatprep.subr.bf16.mxu0 0
      %2147 = vmatpush2.bf16.msra.mxu0 0
      %2148 = vmatprep.subr.bf16.mxu0 0
      %2149 = vmatpush2.bf16.msra.mxu0 0
      %2150 = vmatprep.mubr.bf16.mxu0 0
      %2151 = vmatmul.mubr.bf16.gmra.mxu0 %v2038
      %v2152 = vpop.f32.mrf.mxu0
      %v2153 = vadd.f32 0.0, %v2152
      %v2154 = vpop.f32.mrf.mxu0
      %v2155 = vpop.f32.mrf.mxu0
      %v2156 = vadd.f32 0.0, %v2155
      %v2157 = vpop.f32.mrf.mxu0
      %2158 = vmatprep.mubr.bf16.mxu0 0
      %2159 = vmatmul.mubr.bf16.gmra.mxu0 %v2039
      %v2160 = vpop.f32.mrf.mxu0
      %v2161 = vadd.f32 0.0, %v2160
      %v2162 = vpop.f32.mrf.mxu0
      %v2163 = vpop.f32.mrf.mxu0
      %v2164 = vadd.f32 0.0, %v2163
      %v2165 = vpop.f32.mrf.mxu0
      %2166 = vmatprep.mubr.bf16.mxu0 0
      %2167 = vmatmul.mubr.bf16.gmra.mxu0 %v2040
      %v2168 = vpop.f32.mrf.mxu0
      %v2169 = vadd.f32 0.0, %v2168
      %v2170 = vpop.f32.mrf.mxu0
      %v2171 = vpop.f32.mrf.mxu0
      %v2172 = vadd.f32 0.0, %v2171
      %v2173 = vpop.f32.mrf.mxu0
      %2174 = vmatprep.mubr.bf16.mxu0 0
      %2175 = vmatmul.mubr.bf16.gmra.mxu0 %v2041
      %v2176 = vpop.f32.mrf.mxu0
      %v2177 = vadd.f32 0.0, %v2176
      %v2178 = vpop.f32.mrf.mxu0
      %v2179 = vpop.f32.mrf.mxu0
      %v2180 = vadd.f32 0.0, %v2179
      %v2181 = vpop.f32.mrf.mxu0
      %2182 = vmatprep.mubr.bf16.mxu0 0
      %2183 = vmatmul.mubr.bf16.gmra.mxu0 %v2042
      %v2184 = vpop.f32.mrf.mxu0
      %v2185 = vadd.f32 0.0, %v2184
      %v2186 = vpop.f32.mrf.mxu0
      %v2187 = vpop.f32.mrf.mxu0
      %v2188 = vadd.f32 0.0, %v2187
      %v2189 = vpop.f32.mrf.mxu0
      %2190 = vmatprep.mubr.bf16.mxu0 0
      %2191 = vmatmul.mubr.bf16.gmra.mxu0 %v2043
      %v2192 = vpop.f32.mrf.mxu0
      %v2193 = vadd.f32 0.0, %v2192
      %v2194 = vpop.f32.mrf.mxu0
      %v2195 = vpop.f32.mrf.mxu0
      %v2196 = vadd.f32 0.0, %v2195
      %v2197 = vpop.f32.mrf.mxu0
      %2198 = vmatprep.mubr.bf16.mxu0 0
      %2199 = vmatmul.mubr.bf16.gmra.mxu0 %v2044
      %v2200 = vpop.f32.mrf.mxu0
      %v2201 = vadd.f32 0.0, %v2200
      %v2202 = vpop.f32.mrf.mxu0
      %v2203 = vpop.f32.mrf.mxu0
      %v2204 = vadd.f32 0.0, %v2203
      %v2205 = vpop.f32.mrf.mxu0
      %2206 = vmatprep.mubr.bf16.mxu0 0
      %2207 = vmatmul.mubr.bf16.gmra.mxu0 %v2045
      %v2208 = vpop.f32.mrf.mxu0
      %v2209 = vadd.f32 0.0, %v2208
      %v2210 = vpop.f32.mrf.mxu0
      %v2211 = vpop.f32.mrf.mxu0
      %v2212 = vadd.f32 0.0, %v2211
      %v2213 = vpop.f32.mrf.mxu0
      %2214 = vmatprep.mubr.bf16.mxu0 0
      %2215 = vmatmul.mubr.bf16.gmra.mxu0 %v2046
      %v2216 = vpop.f32.mrf.mxu0
      %v2217 = vadd.f32 0.0, %v2216
      %v2218 = vpop.f32.mrf.mxu0
      %v2219 = vpop.f32.mrf.mxu0
      %v2220 = vadd.f32 0.0, %v2219
      %v2221 = vpop.f32.mrf.mxu0
      %2222 = vmatprep.mubr.bf16.mxu0 0
      %2223 = vmatmul.mubr.bf16.gmra.mxu0 %v2047
      %v2224 = vpop.f32.mrf.mxu0
      %v2225 = vadd.f32 0.0, %v2224
      %v2226 = vpop.f32.mrf.mxu0
      %v2227 = vpop.f32.mrf.mxu0
      %v2228 = vadd.f32 0.0, %v2227
      %v2229 = vpop.f32.mrf.mxu0
      %2230 = vmatprep.mubr.bf16.mxu0 0
      %2231 = vmatmul.mubr.bf16.gmra.mxu0 %v2048
      %v2232 = vpop.f32.mrf.mxu0
      %v2233 = vadd.f32 0.0, %v2232
      %v2234 = vpop.f32.mrf.mxu0
      %v2235 = vpop.f32.mrf.mxu0
      %v2236 = vadd.f32 0.0, %v2235
      %v2237 = vpop.f32.mrf.mxu0
      %2238 = vmatprep.mubr.bf16.mxu0 0
      %2239 = vmatmul.mubr.bf16.gmra.mxu0 %v2049
      %v2240 = vpop.f32.mrf.mxu0
      %v2241 = vadd.f32 0.0, %v2240
      %v2242 = vpop.f32.mrf.mxu0
      %v2243 = vpop.f32.mrf.mxu0
      %v2244 = vadd.f32 0.0, %v2243
      %v2245 = vpop.f32.mrf.mxu0
      %2246 = vmatprep.mubr.bf16.mxu0 0
      %2247 = vmatmul.mubr.bf16.gmra.mxu0 %v2050
      %v2248 = vpop.f32.mrf.mxu0
      %v2249 = vadd.f32 0.0, %v2248
      %v2250 = vpop.f32.mrf.mxu0
      %v2251 = vpop.f32.mrf.mxu0
      %v2252 = vadd.f32 0.0, %v2251
      %v2253 = vpop.f32.mrf.mxu0
      %2254 = vmatprep.mubr.bf16.mxu0 0
      %2255 = vmatmul.mubr.bf16.gmra.mxu0 %v2051
      %v2256 = vpop.f32.mrf.mxu0
      %v2257 = vadd.f32 0.0, %v2256
      %v2258 = vpop.f32.mrf.mxu0
      %v2259 = vpop.f32.mrf.mxu0
      %v2260 = vadd.f32 0.0, %v2259
      %v2261 = vpop.f32.mrf.mxu0
      %2262 = vmatprep.mubr.bf16.mxu0 0
      %2263 = vmatmul.mubr.bf16.gmra.mxu0 %v2052
      %v2264 = vpop.f32.mrf.mxu0
      %v2265 = vadd.f32 0.0, %v2264
      %v2266 = vpop.f32.mrf.mxu0
      %v2267 = vpop.f32.mrf.mxu0
      %v2268 = vadd.f32 0.0, %v2267
      %v2269 = vpop.f32.mrf.mxu0
      %2270 = vmatprep.mubr.bf16.mxu0 0
      %2271 = vmatmul.mubr.bf16.gmra.mxu0 %v2053
      %v2272 = vpop.f32.mrf.mxu0
      %v2273 = vadd.f32 0.0, %v2272
      %v2274 = vpop.f32.mrf.mxu0
      %v2275 = vpop.f32.mrf.mxu0
      %v2276 = vadd.f32 0.0, %v2275
      %v2277 = vpop.f32.mrf.mxu0
      %2278 = vdwg.mxu0
      %v2279 = vadd.f32 %v1700, %v2153
      %v2280 = vadd.f32 %v1703, %v2156
      %v2281 = vadd.f32 %v1708, %v2161
      %v2282 = vadd.f32 %v1711, %v2164
      %v2283 = vadd.f32 %v1716, %v2169
      %v2284 = vadd.f32 %v1719, %v2172
      %v2285 = vadd.f32 %v1724, %v2177
      %v2286 = vadd.f32 %v1727, %v2180
      %v2287 = vadd.f32 %v1732, %v2185
      %v2288 = vadd.f32 %v1735, %v2188
      %v2289 = vadd.f32 %v1740, %v2193
      %v2290 = vadd.f32 %v1743, %v2196
      %v2291 = vadd.f32 %v1748, %v2201
      %v2292 = vadd.f32 %v1751, %v2204
      %v2293 = vadd.f32 %v1756, %v2209
      %v2294 = vadd.f32 %v1759, %v2212
      %v2295 = vadd.f32 %v1764, %v2217
      %v2296 = vadd.f32 %v1767, %v2220
      %v2297 = vadd.f32 %v1772, %v2225
      %v2298 = vadd.f32 %v1775, %v2228
      %v2299 = vadd.f32 %v1780, %v2233
      %v2300 = vadd.f32 %v1783, %v2236
      %v2301 = vadd.f32 %v1788, %v2241
      %v2302 = vadd.f32 %v1791, %v2244
      %v2303 = vadd.f32 %v1796, %v2249
      %v2304 = vadd.f32 %v1799, %v2252
      %v2305 = vadd.f32 %v1804, %v2257
      %v2306 = vadd.f32 %v1807, %v2260
      %v2307 = vadd.f32 %v1812, %v2265
      %v2308 = vadd.f32 %v1815, %v2268
      %v2309 = vadd.f32 %v1820, %v2273
      %v2310 = vadd.f32 %v1823, %v2276
      %v2311 = vld [vmem:[%s662] sm:$0xf]
      %v2312 = vld [vmem:[%s662 + $0x4] sm:$0xf]
      %v2313 = vld [vmem:[%s662 + $0xc] sm:$0xf]
      %v2314 = vld [vmem:[%s662 + $0x10] sm:$0xf]
      %v2315 = vld [vmem:[%s662 + $0x18] sm:$0xf]
      %v2316 = vld [vmem:[%s662 + $0x1c] sm:$0xf]
      %v2317 = vld [vmem:[%s662 + $0x24] sm:$0xf]
      %v2318 = vld [vmem:[%s662 + $0x28] sm:$0xf]
      %v2319 = vld [vmem:[%s662 + $0x30] sm:$0xf]
      %v2320 = vld [vmem:[%s662 + $0x34] sm:$0xf]
      %v2321 = vld [vmem:[%s662 + $0x3c] sm:$0xf]
      %v2322 = vld [vmem:[%s662 + $0x40] sm:$0xf]
      %v2323 = vld [vmem:[%s662 + $0x48] sm:$0xf]
      %v2324 = vld [vmem:[%s662 + $0x4c] sm:$0xf]
      %v2325 = vld [vmem:[%s662 + $0x54] sm:$0xf]
      %v2326 = vld [vmem:[%s662 + $0x58] sm:$0xf]
      %v2327 = vld [vmem:[%s662 + $0x60] sm:$0xf]
      %v2328 = vld [vmem:[%s662 + $0x64] sm:$0xf]
      %v2329 = vld [vmem:[%s662 + $0x6c] sm:$0xf]
      %v2330 = vld [vmem:[%s662 + $0x70] sm:$0xf]
      %v2331 = vld [vmem:[%s662 + $0x78] sm:$0xf]
      %v2332 = vld [vmem:[%s662 + $0x7c] sm:$0xf]
      %v2333 = vld [vmem:[%s662 + $0x84] sm:$0xf]
      %v2334 = vld [vmem:[%s662 + $0x88] sm:$0xf]
      %v2335 = vld [vmem:[%s662 + $0x90] sm:$0xf]
      %v2336 = vld [vmem:[%s662 + $0x94] sm:$0xf]
      %v2337 = vld [vmem:[%s662 + $0x9c] sm:$0xf]
      %v2338 = vld [vmem:[%s662 + $0xa0] sm:$0xf]
      %v2339 = vld [vmem:[%s662 + $0xa8] sm:$0xf]
      %v2340 = vld [vmem:[%s662 + $0xac] sm:$0xf]
      %v2341 = vld [vmem:[%s662 + $0xb4] sm:$0xf]
      %v2342 = vld [vmem:[%s662 + $0xb8] sm:$0xf]
      %s2343 = scalar_lea.vmem %s1, 192
      %v2344 = vld [vmem:[%s2343] sm:$0xf]
      %v2345 = vld [vmem:[%s2343 + $0x4] sm:$0xf]
      %v2346 = vld [vmem:[%s2343 + $0x8] sm:$0xf]
      %v2347 = vld [vmem:[%s2343 + $0xc] sm:$0xf]
      %v2348 = vld [vmem:[%s2343 + $0x10] sm:$0xf]
      %v2349 = vld [vmem:[%s2343 + $0x14] sm:$0xf]
      %v2350 = vld [vmem:[%s2343 + $0x18] sm:$0xf]
      %v2351 = vld [vmem:[%s2343 + $0x1c] sm:$0xf]
      %v2352 = vld [vmem:[%s2343 + $0x20] sm:$0xf]
      %v2353 = vld [vmem:[%s2343 + $0x24] sm:$0xf]
      %v2354 = vld [vmem:[%s2343 + $0x28] sm:$0xf]
      %v2355 = vld [vmem:[%s2343 + $0x2c] sm:$0xf]
      %v2356 = vld [vmem:[%s2343 + $0x30] sm:$0xf]
      %v2357 = vld [vmem:[%s2343 + $0x34] sm:$0xf]
      %v2358 = vld [vmem:[%s2343 + $0x38] sm:$0xf]
      %v2359 = vld [vmem:[%s2343 + $0x3c] sm:$0xf]
      %v2392 = vunpack.c.l.b16 %v2311
      %v2393 = vunpack.c.l.b16 %v2312
      %v2394 = vunpack.c.l.b16 %v2313
      %v2395 = vunpack.c.l.b16 %v2314
      %v2396 = vunpack.c.l.b16 %v2315
      %v2397 = vunpack.c.l.b16 %v2316
      %v2398 = vunpack.c.l.b16 %v2317
      %v2399 = vunpack.c.l.b16 %v2318
      %v2400 = vunpack.c.l.b16 %v2319
      %v2401 = vunpack.c.l.b16 %v2320
      %v2402 = vunpack.c.l.b16 %v2321
      %v2403 = vunpack.c.l.b16 %v2322
      %v2404 = vunpack.c.l.b16 %v2323
      %v2405 = vunpack.c.l.b16 %v2324
      %v2406 = vunpack.c.l.b16 %v2325
      %v2407 = vunpack.c.l.b16 %v2326
      %v2408 = vunpack.c.l.b16 %v2327
      %v2409 = vunpack.c.l.b16 %v2328
      %v2410 = vunpack.c.l.b16 %v2329
      %v2411 = vunpack.c.l.b16 %v2330
      %v2412 = vunpack.c.l.b16 %v2331
      %v2413 = vunpack.c.l.b16 %v2332
      %v2414 = vunpack.c.l.b16 %v2333
      %v2415 = vunpack.c.l.b16 %v2334
      %v2416 = vunpack.c.l.b16 %v2335
      %v2417 = vunpack.c.l.b16 %v2336
      %v2418 = vunpack.c.l.b16 %v2337
      %v2419 = vunpack.c.l.b16 %v2338
      %v2420 = vunpack.c.l.b16 %v2339
      %v2421 = vunpack.c.l.b16 %v2340
      %v2422 = vunpack.c.l.b16 %v2341
      %v2423 = vunpack.c.l.b16 %v2342
      %v2424 = vpack.c.b16 %v2393, %v2392
      %v2425 = vpack.c.b16 %v2395, %v2394
      %v2426 = vpack.c.b16 %v2397, %v2396
      %v2427 = vpack.c.b16 %v2399, %v2398
      %v2428 = vpack.c.b16 %v2401, %v2400
      %v2429 = vpack.c.b16 %v2403, %v2402
      %v2430 = vpack.c.b16 %v2405, %v2404
      %v2431 = vpack.c.b16 %v2407, %v2406
      %v2432 = vpack.c.b16 %v2409, %v2408
      %v2433 = vpack.c.b16 %v2411, %v2410
      %v2434 = vpack.c.b16 %v2413, %v2412
      %v2435 = vpack.c.b16 %v2415, %v2414
      %v2436 = vpack.c.b16 %v2417, %v2416
      %v2437 = vpack.c.b16 %v2419, %v2418
      %v2438 = vpack.c.b16 %v2421, %v2420
      %v2439 = vpack.c.b16 %v2423, %v2422
      %v2472 = vunpack.c.l.b16 %v2344
      %v2473 = vunpack.c.l.b16 %v2345
      %v2474 = vunpack.c.l.b16 %v2346
      %v2475 = vunpack.c.l.b16 %v2347
      %v2476 = vunpack.c.l.b16 %v2348
      %v2477 = vunpack.c.l.b16 %v2349
      %v2478 = vunpack.c.l.b16 %v2350
      %v2479 = vunpack.c.l.b16 %v2351
      %v2480 = vunpack.c.l.b16 %v2352
      %v2481 = vunpack.c.l.b16 %v2353
      %v2482 = vunpack.c.l.b16 %v2354
      %v2483 = vunpack.c.l.b16 %v2355
      %v2484 = vunpack.c.l.b16 %v2356
      %v2485 = vunpack.c.l.b16 %v2357
      %v2486 = vunpack.c.l.b16 %v2358
      %v2487 = vunpack.c.l.b16 %v2359
      %v2488 = vpack.c.b16 %v2473, %v2472
      %v2489 = vpack.c.b16 %v2475, %v2474
      %v2490 = vpack.c.b16 %v2477, %v2476
      %v2491 = vpack.c.b16 %v2479, %v2478
      %v2492 = vpack.c.b16 %v2481, %v2480
      %v2493 = vpack.c.b16 %v2483, %v2482
      %v2494 = vpack.c.b16 %v2485, %v2484
      %v2495 = vpack.c.b16 %v2487, %v2486
      %2504 = vmatprep.subr.bf16.mxu0 0
      %2505 = vmatpush1.bf16.msra.mxu0 %v2495
      %2506 = vmatprep.subr.bf16.mxu0 0
      %2507 = vmatpush1.bf16.msra.mxu0 %v2494
      %2508 = vmatprep.subr.bf16.mxu0 0
      %2509 = vmatpush1.bf16.msra.mxu0 %v2493
      %2510 = vmatprep.subr.bf16.mxu0 0
      %2511 = vmatpush1.bf16.msra.mxu0 %v2492
      %2512 = vmatprep.subr.bf16.mxu0 0
      %2513 = vmatpush1.bf16.msra.mxu0 %v2491
      %2514 = vmatprep.subr.bf16.mxu0 0
      %2515 = vmatpush1.bf16.msra.mxu0 %v2490
      %2516 = vmatprep.subr.bf16.mxu0 0
      %2517 = vmatpush1.bf16.msra.mxu0 %v2489
      %2518 = vmatprep.subr.bf16.mxu0 0
      %2519 = vmatpush1.bf16.msra.mxu0 %v2488
      %2520 = vmatprep.subr.bf16.mxu0 0
      %2521 = vmatpush2.bf16.msra.mxu0 0
      %2522 = vmatprep.subr.bf16.mxu0 0
      %2523 = vmatpush2.bf16.msra.mxu0 0
      %2524 = vmatprep.subr.bf16.mxu0 0
      %2525 = vmatpush2.bf16.msra.mxu0 0
      %2526 = vmatprep.subr.bf16.mxu0 0
      %2527 = vmatpush2.bf16.msra.mxu0 0
      %2528 = vmatprep.subr.bf16.mxu0 0
      %2529 = vmatpush2.bf16.msra.mxu0 0
      %2530 = vmatprep.subr.bf16.mxu0 0
      %2531 = vmatpush2.bf16.msra.mxu0 0
      %2532 = vmatprep.subr.bf16.mxu0 0
      %2533 = vmatpush2.bf16.msra.mxu0 0
      %2534 = vmatprep.subr.bf16.mxu0 0
      %2535 = vmatpush2.bf16.msra.mxu0 0
      %2536 = vmatprep.mubr.bf16.mxu0 0
      %2537 = vmatmul.mubr.bf16.gmra.mxu0 %v2424
      %v2538 = vpop.f32.mrf.mxu0
      %v2539 = vadd.f32 0.0, %v2538
      %v2540 = vpop.f32.mrf.mxu0
      %v2541 = vpop.f32.mrf.mxu0
      %v2542 = vadd.f32 0.0, %v2541
      %v2543 = vpop.f32.mrf.mxu0
      %2544 = vmatprep.mubr.bf16.mxu0 0
      %2545 = vmatmul.mubr.bf16.gmra.mxu0 %v2425
      %v2546 = vpop.f32.mrf.mxu0
      %v2547 = vadd.f32 0.0, %v2546
      %v2548 = vpop.f32.mrf.mxu0
      %v2549 = vpop.f32.mrf.mxu0
      %v2550 = vadd.f32 0.0, %v2549
      %v2551 = vpop.f32.mrf.mxu0
      %2552 = vmatprep.mubr.bf16.mxu0 0
      %2553 = vmatmul.mubr.bf16.gmra.mxu0 %v2426
      %v2554 = vpop.f32.mrf.mxu0
      %v2555 = vadd.f32 0.0, %v2554
      %v2556 = vpop.f32.mrf.mxu0
      %v2557 = vpop.f32.mrf.mxu0
      %v2558 = vadd.f32 0.0, %v2557
      %v2559 = vpop.f32.mrf.mxu0
      %2560 = vmatprep.mubr.bf16.mxu0 0
      %2561 = vmatmul.mubr.bf16.gmra.mxu0 %v2427
      %v2562 = vpop.f32.mrf.mxu0
      %v2563 = vadd.f32 0.0, %v2562
      %v2564 = vpop.f32.mrf.mxu0
      %v2565 = vpop.f32.mrf.mxu0
      %v2566 = vadd.f32 0.0, %v2565
      %v2567 = vpop.f32.mrf.mxu0
      %2568 = vmatprep.mubr.bf16.mxu0 0
      %2569 = vmatmul.mubr.bf16.gmra.mxu0 %v2428
      %v2570 = vpop.f32.mrf.mxu0
      %v2571 = vadd.f32 0.0, %v2570
      %v2572 = vpop.f32.mrf.mxu0
      %v2573 = vpop.f32.mrf.mxu0
      %v2574 = vadd.f32 0.0, %v2573
      %v2575 = vpop.f32.mrf.mxu0
      %2576 = vmatprep.mubr.bf16.mxu0 0
      %2577 = vmatmul.mubr.bf16.gmra.mxu0 %v2429
      %v2578 = vpop.f32.mrf.mxu0
      %v2579 = vadd.f32 0.0, %v2578
      %v2580 = vpop.f32.mrf.mxu0
      %v2581 = vpop.f32.mrf.mxu0
      %v2582 = vadd.f32 0.0, %v2581
      %v2583 = vpop.f32.mrf.mxu0
      %2584 = vmatprep.mubr.bf16.mxu0 0
      %2585 = vmatmul.mubr.bf16.gmra.mxu0 %v2430
      %v2586 = vpop.f32.mrf.mxu0
      %v2587 = vadd.f32 0.0, %v2586
      %v2588 = vpop.f32.mrf.mxu0
      %v2589 = vpop.f32.mrf.mxu0
      %v2590 = vadd.f32 0.0, %v2589
      %v2591 = vpop.f32.mrf.mxu0
      %2592 = vmatprep.mubr.bf16.mxu0 0
      %2593 = vmatmul.mubr.bf16.gmra.mxu0 %v2431
      %v2594 = vpop.f32.mrf.mxu0
      %v2595 = vadd.f32 0.0, %v2594
      %v2596 = vpop.f32.mrf.mxu0
      %v2597 = vpop.f32.mrf.mxu0
      %v2598 = vadd.f32 0.0, %v2597
      %v2599 = vpop.f32.mrf.mxu0
      %2600 = vmatprep.mubr.bf16.mxu0 0
      %2601 = vmatmul.mubr.bf16.gmra.mxu0 %v2432
      %v2602 = vpop.f32.mrf.mxu0
      %v2603 = vadd.f32 0.0, %v2602
      %v2604 = vpop.f32.mrf.mxu0
      %v2605 = vpop.f32.mrf.mxu0
      %v2606 = vadd.f32 0.0, %v2605
      %v2607 = vpop.f32.mrf.mxu0
      %2608 = vmatprep.mubr.bf16.mxu0 0
      %2609 = vmatmul.mubr.bf16.gmra.mxu0 %v2433
      %v2610 = vpop.f32.mrf.mxu0
      %v2611 = vadd.f32 0.0, %v2610
      %v2612 = vpop.f32.mrf.mxu0
      %v2613 = vpop.f32.mrf.mxu0
      %v2614 = vadd.f32 0.0, %v2613
      %v2615 = vpop.f32.mrf.mxu0
      %2616 = vmatprep.mubr.bf16.mxu0 0
      %2617 = vmatmul.mubr.bf16.gmra.mxu0 %v2434
      %v2618 = vpop.f32.mrf.mxu0
      %v2619 = vadd.f32 0.0, %v2618
      %v2620 = vpop.f32.mrf.mxu0
      %v2621 = vpop.f32.mrf.mxu0
      %v2622 = vadd.f32 0.0, %v2621
      %v2623 = vpop.f32.mrf.mxu0
      %2624 = vmatprep.mubr.bf16.mxu0 0
      %2625 = vmatmul.mubr.bf16.gmra.mxu0 %v2435
      %v2626 = vpop.f32.mrf.mxu0
      %v2627 = vadd.f32 0.0, %v2626
      %v2628 = vpop.f32.mrf.mxu0
      %v2629 = vpop.f32.mrf.mxu0
      %v2630 = vadd.f32 0.0, %v2629
      %v2631 = vpop.f32.mrf.mxu0
      %2632 = vmatprep.mubr.bf16.mxu0 0
      %2633 = vmatmul.mubr.bf16.gmra.mxu0 %v2436
      %v2634 = vpop.f32.mrf.mxu0
      %v2635 = vadd.f32 0.0, %v2634
      %v2636 = vpop.f32.mrf.mxu0
      %v2637 = vpop.f32.mrf.mxu0
      %v2638 = vadd.f32 0.0, %v2637
      %v2639 = vpop.f32.mrf.mxu0
      %2640 = vmatprep.mubr.bf16.mxu0 0
      %2641 = vmatmul.mubr.bf16.gmra.mxu0 %v2437
      %v2642 = vpop.f32.mrf.mxu0
      %v2643 = vadd.f32 0.0, %v2642
      %v2644 = vpop.f32.mrf.mxu0
      %v2645 = vpop.f32.mrf.mxu0
      %v2646 = vadd.f32 0.0, %v2645
      %v2647 = vpop.f32.mrf.mxu0
      %2648 = vmatprep.mubr.bf16.mxu0 0
      %2649 = vmatmul.mubr.bf16.gmra.mxu0 %v2438
      %v2650 = vpop.f32.mrf.mxu0
      %v2651 = vadd.f32 0.0, %v2650
      %v2652 = vpop.f32.mrf.mxu0
      %v2653 = vpop.f32.mrf.mxu0
      %v2654 = vadd.f32 0.0, %v2653
      %v2655 = vpop.f32.mrf.mxu0
      %2656 = vmatprep.mubr.bf16.mxu0 0
      %2657 = vmatmul.mubr.bf16.gmra.mxu0 %v2439
      %v2658 = vpop.f32.mrf.mxu0
      %v2659 = vadd.f32 0.0, %v2658
      %v2660 = vpop.f32.mrf.mxu0
      %v2661 = vpop.f32.mrf.mxu0
      %v2662 = vadd.f32 0.0, %v2661
      %v2663 = vpop.f32.mrf.mxu0
      %2664 = vdwg.mxu0
      %v2665 = vadd.f32 %v2279, %v2539
      %v2666 = vadd.f32 %v2280, %v2542
      %v2667 = vadd.f32 %v2281, %v2547
      %v2668 = vadd.f32 %v2282, %v2550
      %v2669 = vadd.f32 %v2283, %v2555
      %v2670 = vadd.f32 %v2284, %v2558
      %v2671 = vadd.f32 %v2285, %v2563
      %v2672 = vadd.f32 %v2286, %v2566
      %v2673 = vadd.f32 %v2287, %v2571
      %v2674 = vadd.f32 %v2288, %v2574
      %v2675 = vadd.f32 %v2289, %v2579
      %v2676 = vadd.f32 %v2290, %v2582
      %v2677 = vadd.f32 %v2291, %v2587
      %v2678 = vadd.f32 %v2292, %v2590
      %v2679 = vadd.f32 %v2293, %v2595
      %v2680 = vadd.f32 %v2294, %v2598
      %v2681 = vadd.f32 %v2295, %v2603
      %v2682 = vadd.f32 %v2296, %v2606
      %v2683 = vadd.f32 %v2297, %v2611
      %v2684 = vadd.f32 %v2298, %v2614
      %v2685 = vadd.f32 %v2299, %v2619
      %v2686 = vadd.f32 %v2300, %v2622
      %v2687 = vadd.f32 %v2301, %v2627
      %v2688 = vadd.f32 %v2302, %v2630
      %v2689 = vadd.f32 %v2303, %v2635
      %v2690 = vadd.f32 %v2304, %v2638
      %v2691 = vadd.f32 %v2305, %v2643
      %v2692 = vadd.f32 %v2306, %v2646
      %v2693 = vadd.f32 %v2307, %v2651
      %v2694 = vadd.f32 %v2308, %v2654
      %v2695 = vadd.f32 %v2309, %v2659
      %v2696 = vadd.f32 %v2310, %v2662
      %v2697 = vld [vmem:[%s662] sm:$0xf]
      %v2698 = vld [vmem:[%s662 + $0x4] sm:$0xf]
      %v2699 = vld [vmem:[%s662 + $0x8] sm:$0x1]
      %v2700 = vld [vmem:[%s662 + $0xc] sm:$0xf]
      %v2701 = vld [vmem:[%s662 + $0x10] sm:$0xf]
      %v2702 = vld [vmem:[%s662 + $0x14] sm:$0x1]
      %v2703 = vld [vmem:[%s662 + $0x18] sm:$0xf]
      %v2704 = vld [vmem:[%s662 + $0x1c] sm:$0xf]
      %v2705 = vld [vmem:[%s662 + $0x20] sm:$0x1]
      %v2706 = vld [vmem:[%s662 + $0x24] sm:$0xf]
      %v2707 = vld [vmem:[%s662 + $0x28] sm:$0xf]
      %v2708 = vld [vmem:[%s662 + $0x2c] sm:$0x1]
      %v2709 = vld [vmem:[%s662 + $0x30] sm:$0xf]
      %v2710 = vld [vmem:[%s662 + $0x34] sm:$0xf]
      %v2711 = vld [vmem:[%s662 + $0x38] sm:$0x1]
      %v2712 = vld [vmem:[%s662 + $0x3c] sm:$0xf]
      %v2713 = vld [vmem:[%s662 + $0x40] sm:$0xf]
      %v2714 = vld [vmem:[%s662 + $0x44] sm:$0x1]
      %v2715 = vld [vmem:[%s662 + $0x48] sm:$0xf]
      %v2716 = vld [vmem:[%s662 + $0x4c] sm:$0xf]
      %v2717 = vld [vmem:[%s662 + $0x50] sm:$0x1]
      %v2718 = vld [vmem:[%s662 + $0x54] sm:$0xf]
      %v2719 = vld [vmem:[%s662 + $0x58] sm:$0xf]
      %v2720 = vld [vmem:[%s662 + $0x5c] sm:$0x1]
      %v2721 = vld [vmem:[%s662 + $0x60] sm:$0xf]
      %v2722 = vld [vmem:[%s662 + $0x64] sm:$0xf]
      %v2723 = vld [vmem:[%s662 + $0x68] sm:$0x1]
      %v2724 = vld [vmem:[%s662 + $0x6c] sm:$0xf]
      %v2725 = vld [vmem:[%s662 + $0x70] sm:$0xf]
      %v2726 = vld [vmem:[%s662 + $0x74] sm:$0x1]
      %v2727 = vld [vmem:[%s662 + $0x78] sm:$0xf]
      %v2728 = vld [vmem:[%s662 + $0x7c] sm:$0xf]
      %v2729 = vld [vmem:[%s662 + $0x80] sm:$0x1]
      %v2730 = vld [vmem:[%s662 + $0x84] sm:$0xf]
      %v2731 = vld [vmem:[%s662 + $0x88] sm:$0xf]
      %v2732 = vld [vmem:[%s662 + $0x8c] sm:$0x1]
      %v2733 = vld [vmem:[%s662 + $0x90] sm:$0xf]
      %v2734 = vld [vmem:[%s662 + $0x94] sm:$0xf]
      %v2735 = vld [vmem:[%s662 + $0x98] sm:$0x1]
      %v2736 = vld [vmem:[%s662 + $0x9c] sm:$0xf]
      %v2737 = vld [vmem:[%s662 + $0xa0] sm:$0xf]
      %v2738 = vld [vmem:[%s662 + $0xa4] sm:$0x1]
      %v2739 = vld [vmem:[%s662 + $0xa8] sm:$0xf]
      %v2740 = vld [vmem:[%s662 + $0xac] sm:$0xf]
      %v2741 = vld [vmem:[%s662 + $0xb0] sm:$0x1]
      %v2742 = vld [vmem:[%s662 + $0xb4] sm:$0xf]
      %v2743 = vld [vmem:[%s662 + $0xb8] sm:$0xf]
      %v2744 = vld [vmem:[%s662 + $0xbc] sm:$0x1]
      %v2746 = vshrl.u32 %v2697, 16
      %v2748 = vrot.slane %v2746, 4
      %v2749 = vshll.u32 %v2697, 16
      %v2751 = vrot.slane %v2749, 5
      %v2752 = vor.u32 %v2748, %v2751
      %v2753 = vrot.slane %v2752, 4
      %v2755 = vshll.u32 %v2698, 16
      %v2757 = vrot.slane %v2755, 5
      %v2758 = vsel %vm846, %v2753, %v2757
      %v2759 = vshrl.u32 %v2698, 16
      %v2761 = vrot.slane %v2759, 4
      %v2762 = vor.u32 %v2761, %v2757
      %v2763 = vrot.slane %v2762, 4
      %v2765 = vshll.u32 %v2699, 16
      %v2767 = vrot.slane %v2765, 5
      %v2768 = vsel %vm846, %v2763, %v2767
      %v2770 = vshrl.u32 %v2700, 16
      %v2772 = vrot.slane %v2770, 4
      %v2773 = vshll.u32 %v2700, 16
      %v2775 = vrot.slane %v2773, 5
      %v2776 = vor.u32 %v2772, %v2775
      %v2777 = vrot.slane %v2776, 4
      %v2779 = vshll.u32 %v2701, 16
      %v2781 = vrot.slane %v2779, 5
      %v2782 = vsel %vm846, %v2777, %v2781
      %v2783 = vshrl.u32 %v2701, 16
      %v2785 = vrot.slane %v2783, 4
      %v2786 = vor.u32 %v2785, %v2781
      %v2787 = vrot.slane %v2786, 4
      %v2789 = vshll.u32 %v2702, 16
      %v2791 = vrot.slane %v2789, 5
      %v2792 = vsel %vm846, %v2787, %v2791
      %v2794 = vshrl.u32 %v2703, 16
      %v2796 = vrot.slane %v2794, 4
      %v2797 = vshll.u32 %v2703, 16
      %v2799 = vrot.slane %v2797, 5
      %v2800 = vor.u32 %v2796, %v2799
      %v2801 = vrot.slane %v2800, 4
      %v2803 = vshll.u32 %v2704, 16
      %v2805 = vrot.slane %v2803, 5
      %v2806 = vsel %vm846, %v2801, %v2805
      %v2807 = vshrl.u32 %v2704, 16
      %v2809 = vrot.slane %v2807, 4
      %v2810 = vor.u32 %v2809, %v2805
      %v2811 = vrot.slane %v2810, 4
      %v2813 = vshll.u32 %v2705, 16
      %v2815 = vrot.slane %v2813, 5
      %v2816 = vsel %vm846, %v2811, %v2815
      %v2818 = vshrl.u32 %v2706, 16
      %v2820 = vrot.slane %v2818, 4
      %v2821 = vshll.u32 %v2706, 16
      %v2823 = vrot.slane %v2821, 5
      %v2824 = vor.u32 %v2820, %v2823
      %v2825 = vrot.slane %v2824, 4
      %v2827 = vshll.u32 %v2707, 16
      %v2829 = vrot.slane %v2827, 5
      %v2830 = vsel %vm846, %v2825, %v2829
      %v2831 = vshrl.u32 %v2707, 16
      %v2833 = vrot.slane %v2831, 4
      %v2834 = vor.u32 %v2833, %v2829
      %v2835 = vrot.slane %v2834, 4
      %v2837 = vshll.u32 %v2708, 16
      %v2839 = vrot.slane %v2837, 5
      %v2840 = vsel %vm846, %v2835, %v2839
      %v2842 = vshrl.u32 %v2709, 16
      %v2844 = vrot.slane %v2842, 4
      %v2845 = vshll.u32 %v2709, 16
      %v2847 = vrot.slane %v2845, 5
      %v2848 = vor.u32 %v2844, %v2847
      %v2849 = vrot.slane %v2848, 4
      %v2851 = vshll.u32 %v2710, 16
      %v2853 = vrot.slane %v2851, 5
      %v2854 = vsel %vm846, %v2849, %v2853
      %v2855 = vshrl.u32 %v2710, 16
      %v2857 = vrot.slane %v2855, 4
      %v2858 = vor.u32 %v2857, %v2853
      %v2859 = vrot.slane %v2858, 4
      %v2861 = vshll.u32 %v2711, 16
      %v2863 = vrot.slane %v2861, 5
      %v2864 = vsel %vm846, %v2859, %v2863
      %v2866 = vshrl.u32 %v2712, 16
      %v2868 = vrot.slane %v2866, 4
      %v2869 = vshll.u32 %v2712, 16
      %v2871 = vrot.slane %v2869, 5
      %v2872 = vor.u32 %v2868, %v2871
      %v2873 = vrot.slane %v2872, 4
      %v2875 = vshll.u32 %v2713, 16
      %v2877 = vrot.slane %v2875, 5
      %v2878 = vsel %vm846, %v2873, %v2877
      %v2879 = vshrl.u32 %v2713, 16
      %v2881 = vrot.slane %v2879, 4
      %v2882 = vor.u32 %v2881, %v2877
      %v2883 = vrot.slane %v2882, 4
      %v2885 = vshll.u32 %v2714, 16
      %v2887 = vrot.slane %v2885, 5
      %v2888 = vsel %vm846, %v2883, %v2887
      %v2890 = vshrl.u32 %v2715, 16
      %v2892 = vrot.slane %v2890, 4
      %v2893 = vshll.u32 %v2715, 16
      %v2895 = vrot.slane %v2893, 5
      %v2896 = vor.u32 %v2892, %v2895
      %v2897 = vrot.slane %v2896, 4
      %v2899 = vshll.u32 %v2716, 16
      %v2901 = vrot.slane %v2899, 5
      %v2902 = vsel %vm846, %v2897, %v2901
      %v2903 = vshrl.u32 %v2716, 16
      %v2905 = vrot.slane %v2903, 4
      %v2906 = vor.u32 %v2905, %v2901
      %v2907 = vrot.slane %v2906, 4
      %v2909 = vshll.u32 %v2717, 16
      %v2911 = vrot.slane %v2909, 5
      %v2912 = vsel %vm846, %v2907, %v2911
      %v2914 = vshrl.u32 %v2718, 16
      %v2916 = vrot.slane %v2914, 4
      %v2917 = vshll.u32 %v2718, 16
      %v2919 = vrot.slane %v2917, 5
      %v2920 = vor.u32 %v2916, %v2919
      %v2921 = vrot.slane %v2920, 4
      %v2923 = vshll.u32 %v2719, 16
      %v2925 = vrot.slane %v2923, 5
      %v2926 = vsel %vm846, %v2921, %v2925
      %v2927 = vshrl.u32 %v2719, 16
      %v2929 = vrot.slane %v2927, 4
      %v2930 = vor.u32 %v2929, %v2925
      %v2931 = vrot.slane %v2930, 4
      %v2933 = vshll.u32 %v2720, 16
      %v2935 = vrot.slane %v2933, 5
      %v2936 = vsel %vm846, %v2931, %v2935
      %v2938 = vshrl.u32 %v2721, 16
      %v2940 = vrot.slane %v2938, 4
      %v2941 = vshll.u32 %v2721, 16
      %v2943 = vrot.slane %v2941, 5
      %v2944 = vor.u32 %v2940, %v2943
      %v2945 = vrot.slane %v2944, 4
      %v2947 = vshll.u32 %v2722, 16
      %v2949 = vrot.slane %v2947, 5
      %v2950 = vsel %vm846, %v2945, %v2949
      %v2951 = vshrl.u32 %v2722, 16
      %v2953 = vrot.slane %v2951, 4
      %v2954 = vor.u32 %v2953, %v2949
      %v2955 = vrot.slane %v2954, 4
      %v2957 = vshll.u32 %v2723, 16
      %v2959 = vrot.slane %v2957, 5
      %v2960 = vsel %vm846, %v2955, %v2959
      %v2962 = vshrl.u32 %v2724, 16
      %v2964 = vrot.slane %v2962, 4
      %v2965 = vshll.u32 %v2724, 16
      %v2967 = vrot.slane %v2965, 5
      %v2968 = vor.u32 %v2964, %v2967
      %v2969 = vrot.slane %v2968, 4
      %v2971 = vshll.u32 %v2725, 16
      %v2973 = vrot.slane %v2971, 5
      %v2974 = vsel %vm846, %v2969, %v2973
      %v2975 = vshrl.u32 %v2725, 16
      %v2977 = vrot.slane %v2975, 4
      %v2978 = vor.u32 %v2977, %v2973
      %v2979 = vrot.slane %v2978, 4
      %v2981 = vshll.u32 %v2726, 16
      %v2983 = vrot.slane %v2981, 5
      %v2984 = vsel %vm846, %v2979, %v2983
      %v2986 = vshrl.u32 %v2727, 16
      %v2988 = vrot.slane %v2986, 4
      %v2989 = vshll.u32 %v2727, 16
      %v2991 = vrot.slane %v2989, 5
      %v2992 = vor.u32 %v2988, %v2991
      %v2993 = vrot.slane %v2992, 4
      %v2995 = vshll.u32 %v2728, 16
      %v2997 = vrot.slane %v2995, 5
      %v2998 = vsel %vm846, %v2993, %v2997
      %v2999 = vshrl.u32 %v2728, 16
      %v3001 = vrot.slane %v2999, 4
      %v3002 = vor.u32 %v3001, %v2997
      %v3003 = vrot.slane %v3002, 4
      %v3005 = vshll.u32 %v2729, 16
      %v3007 = vrot.slane %v3005, 5
      %v3008 = vsel %vm846, %v3003, %v3007
      %v3010 = vshrl.u32 %v2730, 16
      %v3012 = vrot.slane %v3010, 4
      %v3013 = vshll.u32 %v2730, 16
      %v3015 = vrot.slane %v3013, 5
      %v3016 = vor.u32 %v3012, %v3015
      %v3017 = vrot.slane %v3016, 4
      %v3019 = vshll.u32 %v2731, 16
      %v3021 = vrot.slane %v3019, 5
      %v3022 = vsel %vm846, %v3017, %v3021
      %v3023 = vshrl.u32 %v2731, 16
      %v3025 = vrot.slane %v3023, 4
      %v3026 = vor.u32 %v3025, %v3021
      %v3027 = vrot.slane %v3026, 4
      %v3029 = vshll.u32 %v2732, 16
      %v3031 = vrot.slane %v3029, 5
      %v3032 = vsel %vm846, %v3027, %v3031
      %v3034 = vshrl.u32 %v2733, 16
      %v3036 = vrot.slane %v3034, 4
      %v3037 = vshll.u32 %v2733, 16
      %v3039 = vrot.slane %v3037, 5
      %v3040 = vor.u32 %v3036, %v3039
      %v3041 = vrot.slane %v3040, 4
      %v3043 = vshll.u32 %v2734, 16
      %v3045 = vrot.slane %v3043, 5
      %v3046 = vsel %vm846, %v3041, %v3045
      %v3047 = vshrl.u32 %v2734, 16
      %v3049 = vrot.slane %v3047, 4
      %v3050 = vor.u32 %v3049, %v3045
      %v3051 = vrot.slane %v3050, 4
      %v3053 = vshll.u32 %v2735, 16
      %v3055 = vrot.slane %v3053, 5
      %v3056 = vsel %vm846, %v3051, %v3055
      %v3058 = vshrl.u32 %v2736, 16
      %v3060 = vrot.slane %v3058, 4
      %v3061 = vshll.u32 %v2736, 16
      %v3063 = vrot.slane %v3061, 5
      %v3064 = vor.u32 %v3060, %v3063
      %v3065 = vrot.slane %v3064, 4
      %v3067 = vshll.u32 %v2737, 16
      %v3069 = vrot.slane %v3067, 5
      %v3070 = vsel %vm846, %v3065, %v3069
      %v3071 = vshrl.u32 %v2737, 16
      %v3073 = vrot.slane %v3071, 4
      %v3074 = vor.u32 %v3073, %v3069
      %v3075 = vrot.slane %v3074, 4
      %v3077 = vshll.u32 %v2738, 16
      %v3079 = vrot.slane %v3077, 5
      %v3080 = vsel %vm846, %v3075, %v3079
      %v3082 = vshrl.u32 %v2739, 16
      %v3084 = vrot.slane %v3082, 4
      %v3085 = vshll.u32 %v2739, 16
      %v3087 = vrot.slane %v3085, 5
      %v3088 = vor.u32 %v3084, %v3087
      %v3089 = vrot.slane %v3088, 4
      %v3091 = vshll.u32 %v2740, 16
      %v3093 = vrot.slane %v3091, 5
      %v3094 = vsel %vm846, %v3089, %v3093
      %v3095 = vshrl.u32 %v2740, 16
      %v3097 = vrot.slane %v3095, 4
      %v3098 = vor.u32 %v3097, %v3093
      %v3099 = vrot.slane %v3098, 4
      %v3101 = vshll.u32 %v2741, 16
      %v3103 = vrot.slane %v3101, 5
      %v3104 = vsel %vm846, %v3099, %v3103
      %v3106 = vshrl.u32 %v2742, 16
      %v3108 = vrot.slane %v3106, 4
      %v3109 = vshll.u32 %v2742, 16
      %v3111 = vrot.slane %v3109, 5
      %v3112 = vor.u32 %v3108, %v3111
      %v3113 = vrot.slane %v3112, 4
      %v3115 = vshll.u32 %v2743, 16
      %v3117 = vrot.slane %v3115, 5
      %v3118 = vsel %vm846, %v3113, %v3117
      %v3119 = vshrl.u32 %v2743, 16
      %v3121 = vrot.slane %v3119, 4
      %v3122 = vor.u32 %v3121, %v3117
      %v3123 = vrot.slane %v3122, 4
      %v3125 = vshll.u32 %v2744, 16
      %v3127 = vrot.slane %v3125, 5
      %v3128 = vsel %vm846, %v3123, %v3127
      %s3129 = scalar_lea.vmem %s1, 256
      %v3130 = vld [vmem:[%s3129] sm:$0xf]
      %v3131 = vld [vmem:[%s3129 + $0x4] sm:$0xf]
      %v3132 = vld [vmem:[%s3129 + $0x8] sm:$0xf]
      %v3133 = vld [vmem:[%s3129 + $0xc] sm:$0xf]
      %v3134 = vld [vmem:[%s3129 + $0x10] sm:$0xf]
      %v3135 = vld [vmem:[%s3129 + $0x14] sm:$0xf]
      %v3136 = vld [vmem:[%s3129 + $0x18] sm:$0xf]
      %v3137 = vld [vmem:[%s3129 + $0x1c] sm:$0xf]
      %v3138 = vld [vmem:[%s3129 + $0x20] sm:$0xf]
      %v3139 = vld [vmem:[%s3129 + $0x24] sm:$0xf]
      %v3140 = vld [vmem:[%s3129 + $0x28] sm:$0xf]
      %v3141 = vld [vmem:[%s3129 + $0x2c] sm:$0xf]
      %v3142 = vld [vmem:[%s3129 + $0x30] sm:$0xf]
      %v3143 = vld [vmem:[%s3129 + $0x34] sm:$0xf]
      %v3144 = vld [vmem:[%s3129 + $0x38] sm:$0xf]
      %v3145 = vld [vmem:[%s3129 + $0x3c] sm:$0xf]
      %v3146 = vunpack.c.l.b16 %v2758
      %v3147 = vunpack.c.l.b16 %v2768
      %v3148 = vunpack.c.l.b16 %v2782
      %v3149 = vunpack.c.l.b16 %v2792
      %v3150 = vunpack.c.l.b16 %v2806
      %v3151 = vunpack.c.l.b16 %v2816
      %v3152 = vunpack.c.l.b16 %v2830
      %v3153 = vunpack.c.l.b16 %v2840
      %v3154 = vunpack.c.l.b16 %v2854
      %v3155 = vunpack.c.l.b16 %v2864
      %v3156 = vunpack.c.l.b16 %v2878
      %v3157 = vunpack.c.l.b16 %v2888
      %v3158 = vunpack.c.l.b16 %v2902
      %v3159 = vunpack.c.l.b16 %v2912
      %v3160 = vunpack.c.l.b16 %v2926
      %v3161 = vunpack.c.l.b16 %v2936
      %v3162 = vunpack.c.l.b16 %v2950
      %v3163 = vunpack.c.l.b16 %v2960
      %v3164 = vunpack.c.l.b16 %v2974
      %v3165 = vunpack.c.l.b16 %v2984
      %v3166 = vunpack.c.l.b16 %v2998
      %v3167 = vunpack.c.l.b16 %v3008
      %v3168 = vunpack.c.l.b16 %v3022
      %v3169 = vunpack.c.l.b16 %v3032
      %v3170 = vunpack.c.l.b16 %v3046
      %v3171 = vunpack.c.l.b16 %v3056
      %v3172 = vunpack.c.l.b16 %v3070
      %v3173 = vunpack.c.l.b16 %v3080
      %v3174 = vunpack.c.l.b16 %v3094
      %v3175 = vunpack.c.l.b16 %v3104
      %v3176 = vunpack.c.l.b16 %v3118
      %v3177 = vunpack.c.l.b16 %v3128
      %v3178 = vpack.c.b16 %v3147, %v3146
      %v3179 = vpack.c.b16 %v3149, %v3148
      %v3180 = vpack.c.b16 %v3151, %v3150
      %v3181 = vpack.c.b16 %v3153, %v3152
      %v3182 = vpack.c.b16 %v3155, %v3154
      %v3183 = vpack.c.b16 %v3157, %v3156
      %v3184 = vpack.c.b16 %v3159, %v3158
      %v3185 = vpack.c.b16 %v3161, %v3160
      %v3186 = vpack.c.b16 %v3163, %v3162
      %v3187 = vpack.c.b16 %v3165, %v3164
      %v3188 = vpack.c.b16 %v3167, %v3166
      %v3189 = vpack.c.b16 %v3169, %v3168
      %v3190 = vpack.c.b16 %v3171, %v3170
      %v3191 = vpack.c.b16 %v3173, %v3172
      %v3192 = vpack.c.b16 %v3175, %v3174
      %v3193 = vpack.c.b16 %v3177, %v3176
      %v3226 = vunpack.c.l.b16 %v3130
      %v3227 = vunpack.c.l.b16 %v3131
      %v3228 = vunpack.c.l.b16 %v3132
      %v3229 = vunpack.c.l.b16 %v3133
      %v3230 = vunpack.c.l.b16 %v3134
      %v3231 = vunpack.c.l.b16 %v3135
      %v3232 = vunpack.c.l.b16 %v3136
      %v3233 = vunpack.c.l.b16 %v3137
      %v3234 = vunpack.c.l.b16 %v3138
      %v3235 = vunpack.c.l.b16 %v3139
      %v3236 = vunpack.c.l.b16 %v3140
      %v3237 = vunpack.c.l.b16 %v3141
      %v3238 = vunpack.c.l.b16 %v3142
      %v3239 = vunpack.c.l.b16 %v3143
      %v3240 = vunpack.c.l.b16 %v3144
      %v3241 = vunpack.c.l.b16 %v3145
      %v3242 = vpack.c.b16 %v3227, %v3226
      %v3243 = vpack.c.b16 %v3229, %v3228
      %v3244 = vpack.c.b16 %v3231, %v3230
      %v3245 = vpack.c.b16 %v3233, %v3232
      %v3246 = vpack.c.b16 %v3235, %v3234
      %v3247 = vpack.c.b16 %v3237, %v3236
      %v3248 = vpack.c.b16 %v3239, %v3238
      %v3249 = vpack.c.b16 %v3241, %v3240
      %3258 = vmatprep.subr.bf16.mxu0 0
      %3259 = vmatpush1.bf16.msra.mxu0 %v3249
      %3260 = vmatprep.subr.bf16.mxu0 0
      %3261 = vmatpush1.bf16.msra.mxu0 %v3248
      %3262 = vmatprep.subr.bf16.mxu0 0
      %3263 = vmatpush1.bf16.msra.mxu0 %v3247
      %3264 = vmatprep.subr.bf16.mxu0 0
      %3265 = vmatpush1.bf16.msra.mxu0 %v3246
      %3266 = vmatprep.subr.bf16.mxu0 0
      %3267 = vmatpush1.bf16.msra.mxu0 %v3245
      %3268 = vmatprep.subr.bf16.mxu0 0
      %3269 = vmatpush1.bf16.msra.mxu0 %v3244
      %3270 = vmatprep.subr.bf16.mxu0 0
      %3271 = vmatpush1.bf16.msra.mxu0 %v3243
      %3272 = vmatprep.subr.bf16.mxu0 0
      %3273 = vmatpush1.bf16.msra.mxu0 %v3242
      %3274 = vmatprep.subr.bf16.mxu0 0
      %3275 = vmatpush2.bf16.msra.mxu0 0
      %3276 = vmatprep.subr.bf16.mxu0 0
      %3277 = vmatpush2.bf16.msra.mxu0 0
      %3278 = vmatprep.subr.bf16.mxu0 0
      %3279 = vmatpush2.bf16.msra.mxu0 0
      %3280 = vmatprep.subr.bf16.mxu0 0
      %3281 = vmatpush2.bf16.msra.mxu0 0
      %3282 = vmatprep.subr.bf16.mxu0 0
      %3283 = vmatpush2.bf16.msra.mxu0 0
      %3284 = vmatprep.subr.bf16.mxu0 0
      %3285 = vmatpush2.bf16.msra.mxu0 0
      %3286 = vmatprep.subr.bf16.mxu0 0
      %3287 = vmatpush2.bf16.msra.mxu0 0
      %3288 = vmatprep.subr.bf16.mxu0 0
      %3289 = vmatpush2.bf16.msra.mxu0 0
      %3290 = vmatprep.mubr.bf16.mxu0 0
      %3291 = vmatmul.mubr.bf16.gmra.mxu0 %v3178
      %v3292 = vpop.f32.mrf.mxu0
      %v3293 = vadd.f32 0.0, %v3292
      %v3294 = vpop.f32.mrf.mxu0
      %v3295 = vpop.f32.mrf.mxu0
      %v3296 = vadd.f32 0.0, %v3295
      %v3297 = vpop.f32.mrf.mxu0
      %3298 = vmatprep.mubr.bf16.mxu0 0
      %3299 = vmatmul.mubr.bf16.gmra.mxu0 %v3179
      %v3300 = vpop.f32.mrf.mxu0
      %v3301 = vadd.f32 0.0, %v3300
      %v3302 = vpop.f32.mrf.mxu0
      %v3303 = vpop.f32.mrf.mxu0
      %v3304 = vadd.f32 0.0, %v3303
      %v3305 = vpop.f32.mrf.mxu0
      %3306 = vmatprep.mubr.bf16.mxu0 0
      %3307 = vmatmul.mubr.bf16.gmra.mxu0 %v3180
      %v3308 = vpop.f32.mrf.mxu0
      %v3309 = vadd.f32 0.0, %v3308
      %v3310 = vpop.f32.mrf.mxu0
      %v3311 = vpop.f32.mrf.mxu0
      %v3312 = vadd.f32 0.0, %v3311
      %v3313 = vpop.f32.mrf.mxu0
      %3314 = vmatprep.mubr.bf16.mxu0 0
      %3315 = vmatmul.mubr.bf16.gmra.mxu0 %v3181
      %v3316 = vpop.f32.mrf.mxu0
      %v3317 = vadd.f32 0.0, %v3316
      %v3318 = vpop.f32.mrf.mxu0
      %v3319 = vpop.f32.mrf.mxu0
      %v3320 = vadd.f32 0.0, %v3319
      %v3321 = vpop.f32.mrf.mxu0
      %3322 = vmatprep.mubr.bf16.mxu0 0
      %3323 = vmatmul.mubr.bf16.gmra.mxu0 %v3182
      %v3324 = vpop.f32.mrf.mxu0
      %v3325 = vadd.f32 0.0, %v3324
      %v3326 = vpop.f32.mrf.mxu0
      %v3327 = vpop.f32.mrf.mxu0
      %v3328 = vadd.f32 0.0, %v3327
      %v3329 = vpop.f32.mrf.mxu0
      %3330 = vmatprep.mubr.bf16.mxu0 0
      %3331 = vmatmul.mubr.bf16.gmra.mxu0 %v3183
      %v3332 = vpop.f32.mrf.mxu0
      %v3333 = vadd.f32 0.0, %v3332
      %v3334 = vpop.f32.mrf.mxu0
      %v3335 = vpop.f32.mrf.mxu0
      %v3336 = vadd.f32 0.0, %v3335
      %v3337 = vpop.f32.mrf.mxu0
      %3338 = vmatprep.mubr.bf16.mxu0 0
      %3339 = vmatmul.mubr.bf16.gmra.mxu0 %v3184
      %v3340 = vpop.f32.mrf.mxu0
      %v3341 = vadd.f32 0.0, %v3340
      %v3342 = vpop.f32.mrf.mxu0
      %v3343 = vpop.f32.mrf.mxu0
      %v3344 = vadd.f32 0.0, %v3343
      %v3345 = vpop.f32.mrf.mxu0
      %3346 = vmatprep.mubr.bf16.mxu0 0
      %3347 = vmatmul.mubr.bf16.gmra.mxu0 %v3185
      %v3348 = vpop.f32.mrf.mxu0
      %v3349 = vadd.f32 0.0, %v3348
      %v3350 = vpop.f32.mrf.mxu0
      %v3351 = vpop.f32.mrf.mxu0
      %v3352 = vadd.f32 0.0, %v3351
      %v3353 = vpop.f32.mrf.mxu0
      %3354 = vmatprep.mubr.bf16.mxu0 0
      %3355 = vmatmul.mubr.bf16.gmra.mxu0 %v3186
      %v3356 = vpop.f32.mrf.mxu0
      %v3357 = vadd.f32 0.0, %v3356
      %v3358 = vpop.f32.mrf.mxu0
      %v3359 = vpop.f32.mrf.mxu0
      %v3360 = vadd.f32 0.0, %v3359
      %v3361 = vpop.f32.mrf.mxu0
      %3362 = vmatprep.mubr.bf16.mxu0 0
      %3363 = vmatmul.mubr.bf16.gmra.mxu0 %v3187
      %v3364 = vpop.f32.mrf.mxu0
      %v3365 = vadd.f32 0.0, %v3364
      %v3366 = vpop.f32.mrf.mxu0
      %v3367 = vpop.f32.mrf.mxu0
      %v3368 = vadd.f32 0.0, %v3367
      %v3369 = vpop.f32.mrf.mxu0
      %3370 = vmatprep.mubr.bf16.mxu0 0
      %3371 = vmatmul.mubr.bf16.gmra.mxu0 %v3188
      %v3372 = vpop.f32.mrf.mxu0
      %v3373 = vadd.f32 0.0, %v3372
      %v3374 = vpop.f32.mrf.mxu0
      %v3375 = vpop.f32.mrf.mxu0
      %v3376 = vadd.f32 0.0, %v3375
      %v3377 = vpop.f32.mrf.mxu0
      %3378 = vmatprep.mubr.bf16.mxu0 0
      %3379 = vmatmul.mubr.bf16.gmra.mxu0 %v3189
      %v3380 = vpop.f32.mrf.mxu0
      %v3381 = vadd.f32 0.0, %v3380
      %v3382 = vpop.f32.mrf.mxu0
      %v3383 = vpop.f32.mrf.mxu0
      %v3384 = vadd.f32 0.0, %v3383
      %v3385 = vpop.f32.mrf.mxu0
      %3386 = vmatprep.mubr.bf16.mxu0 0
      %3387 = vmatmul.mubr.bf16.gmra.mxu0 %v3190
      %v3388 = vpop.f32.mrf.mxu0
      %v3389 = vadd.f32 0.0, %v3388
      %v3390 = vpop.f32.mrf.mxu0
      %v3391 = vpop.f32.mrf.mxu0
      %v3392 = vadd.f32 0.0, %v3391
      %v3393 = vpop.f32.mrf.mxu0
      %3394 = vmatprep.mubr.bf16.mxu0 0
      %3395 = vmatmul.mubr.bf16.gmra.mxu0 %v3191
      %v3396 = vpop.f32.mrf.mxu0
      %v3397 = vadd.f32 0.0, %v3396
      %v3398 = vpop.f32.mrf.mxu0
      %v3399 = vpop.f32.mrf.mxu0
      %v3400 = vadd.f32 0.0, %v3399
      %v3401 = vpop.f32.mrf.mxu0
      %3402 = vmatprep.mubr.bf16.mxu0 0
      %3403 = vmatmul.mubr.bf16.gmra.mxu0 %v3192
      %v3404 = vpop.f32.mrf.mxu0
      %v3405 = vadd.f32 0.0, %v3404
      %v3406 = vpop.f32.mrf.mxu0
      %v3407 = vpop.f32.mrf.mxu0
      %v3408 = vadd.f32 0.0, %v3407
      %v3409 = vpop.f32.mrf.mxu0
      %3410 = vmatprep.mubr.bf16.mxu0 0
      %3411 = vmatmul.mubr.bf16.gmra.mxu0 %v3193
      %v3412 = vpop.f32.mrf.mxu0
      %v3413 = vadd.f32 0.0, %v3412
      %v3414 = vpop.f32.mrf.mxu0
      %v3415 = vpop.f32.mrf.mxu0
      %v3416 = vadd.f32 0.0, %v3415
      %v3417 = vpop.f32.mrf.mxu0
      %3418 = vdwg.mxu0
      %v3419 = vadd.f32 %v2665, %v3293
      %v3420 = vadd.f32 %v2666, %v3296
      %v3421 = vadd.f32 %v2667, %v3301
      %v3422 = vadd.f32 %v2668, %v3304
      %v3423 = vadd.f32 %v2669, %v3309
      %v3424 = vadd.f32 %v2670, %v3312
      %v3425 = vadd.f32 %v2671, %v3317
      %v3426 = vadd.f32 %v2672, %v3320
      %v3427 = vadd.f32 %v2673, %v3325
      %v3428 = vadd.f32 %v2674, %v3328
      %v3429 = vadd.f32 %v2675, %v3333
      %v3430 = vadd.f32 %v2676, %v3336
      %v3431 = vadd.f32 %v2677, %v3341
      %v3432 = vadd.f32 %v2678, %v3344
      %v3433 = vadd.f32 %v2679, %v3349
      %v3434 = vadd.f32 %v2680, %v3352
      %v3435 = vadd.f32 %v2681, %v3357
      %v3436 = vadd.f32 %v2682, %v3360
      %v3437 = vadd.f32 %v2683, %v3365
      %v3438 = vadd.f32 %v2684, %v3368
      %v3439 = vadd.f32 %v2685, %v3373
      %v3440 = vadd.f32 %v2686, %v3376
      %v3441 = vadd.f32 %v2687, %v3381
      %v3442 = vadd.f32 %v2688, %v3384
      %v3443 = vadd.f32 %v2689, %v3389
      %v3444 = vadd.f32 %v2690, %v3392
      %v3445 = vadd.f32 %v2691, %v3397
      %v3446 = vadd.f32 %v2692, %v3400
      %v3447 = vadd.f32 %v2693, %v3405
      %v3448 = vadd.f32 %v2694, %v3408
      %v3449 = vadd.f32 %v2695, %v3413
      %v3450 = vadd.f32 %v2696, %v3416
      %v3451 = vld [vmem:[%s662] sm:$0xe]
      %v3452 = vld [vmem:[%s662 + $0xc] sm:$0xe]
      %v3453 = vld [vmem:[%s662 + $0x18] sm:$0xe]
      %v3454 = vld [vmem:[%s662 + $0x24] sm:$0xe]
      %v3455 = vld [vmem:[%s662 + $0x30] sm:$0xe]
      %v3456 = vld [vmem:[%s662 + $0x3c] sm:$0xe]
      %v3457 = vld [vmem:[%s662 + $0x48] sm:$0xe]
      %v3458 = vld [vmem:[%s662 + $0x54] sm:$0xe]
      %v3459 = vld [vmem:[%s662 + $0x60] sm:$0xe]
      %v3460 = vld [vmem:[%s662 + $0x6c] sm:$0xe]
      %v3461 = vld [vmem:[%s662 + $0x78] sm:$0xe]
      %v3462 = vld [vmem:[%s662 + $0x84] sm:$0xe]
      %v3463 = vld [vmem:[%s662 + $0x90] sm:$0xe]
      %v3464 = vld [vmem:[%s662 + $0x9c] sm:$0xe]
      %v3465 = vld [vmem:[%s662 + $0xa8] sm:$0xe]
      %v3466 = vld [vmem:[%s662 + $0xb4] sm:$0xe]
      %v3515 = vrot.slane %v3451, 5
      %v3516 = vrot.slane %v3515, 4
      %v3517 = vrot.slane %v2698, 5
      %v3518 = vsel %vm1876, %v3516, %v3517
      %v3519 = vrot.slane %v3517, 4
      %v3520 = vrot.slane %v2699, 5
      %v3521 = vsel %vm1876, %v3519, %v3520
      %v3522 = vrot.slane %v3452, 5
      %v3523 = vrot.slane %v3522, 4
      %v3524 = vrot.slane %v2701, 5
      %v3525 = vsel %vm1876, %v3523, %v3524
      %v3526 = vrot.slane %v3524, 4
      %v3527 = vrot.slane %v2702, 5
      %v3528 = vsel %vm1876, %v3526, %v3527
      %v3529 = vrot.slane %v3453, 5
      %v3530 = vrot.slane %v3529, 4
      %v3531 = vrot.slane %v2704, 5
      %v3532 = vsel %vm1876, %v3530, %v3531
      %v3533 = vrot.slane %v3531, 4
      %v3534 = vrot.slane %v2705, 5
      %v3535 = vsel %vm1876, %v3533, %v3534
      %v3536 = vrot.slane %v3454, 5
      %v3537 = vrot.slane %v3536, 4
      %v3538 = vrot.slane %v2707, 5
      %v3539 = vsel %vm1876, %v3537, %v3538
      %v3540 = vrot.slane %v3538, 4
      %v3541 = vrot.slane %v2708, 5
      %v3542 = vsel %vm1876, %v3540, %v3541
      %v3543 = vrot.slane %v3455, 5
      %v3544 = vrot.slane %v3543, 4
      %v3545 = vrot.slane %v2710, 5
      %v3546 = vsel %vm1876, %v3544, %v3545
      %v3547 = vrot.slane %v3545, 4
      %v3548 = vrot.slane %v2711, 5
      %v3549 = vsel %vm1876, %v3547, %v3548
      %v3550 = vrot.slane %v3456, 5
      %v3551 = vrot.slane %v3550, 4
      %v3552 = vrot.slane %v2713, 5
      %v3553 = vsel %vm1876, %v3551, %v3552
      %v3554 = vrot.slane %v3552, 4
      %v3555 = vrot.slane %v2714, 5
      %v3556 = vsel %vm1876, %v3554, %v3555
      %v3557 = vrot.slane %v3457, 5
      %v3558 = vrot.slane %v3557, 4
      %v3559 = vrot.slane %v2716, 5
      %v3560 = vsel %vm1876, %v3558, %v3559
      %v3561 = vrot.slane %v3559, 4
      %v3562 = vrot.slane %v2717, 5
      %v3563 = vsel %vm1876, %v3561, %v3562
      %v3564 = vrot.slane %v3458, 5
      %v3565 = vrot.slane %v3564, 4
      %v3566 = vrot.slane %v2719, 5
      %v3567 = vsel %vm1876, %v3565, %v3566
      %v3568 = vrot.slane %v3566, 4
      %v3569 = vrot.slane %v2720, 5
      %v3570 = vsel %vm1876, %v3568, %v3569
      %v3571 = vrot.slane %v3459, 5
      %v3572 = vrot.slane %v3571, 4
      %v3573 = vrot.slane %v2722, 5
      %v3574 = vsel %vm1876, %v3572, %v3573
      %v3575 = vrot.slane %v3573, 4
      %v3576 = vrot.slane %v2723, 5
      %v3577 = vsel %vm1876, %v3575, %v3576
      %v3578 = vrot.slane %v3460, 5
      %v3579 = vrot.slane %v3578, 4
      %v3580 = vrot.slane %v2725, 5
      %v3581 = vsel %vm1876, %v3579, %v3580
      %v3582 = vrot.slane %v3580, 4
      %v3583 = vrot.slane %v2726, 5
      %v3584 = vsel %vm1876, %v3582, %v3583
      %v3585 = vrot.slane %v3461, 5
      %v3586 = vrot.slane %v3585, 4
      %v3587 = vrot.slane %v2728, 5
      %v3588 = vsel %vm1876, %v3586, %v3587
      %v3589 = vrot.slane %v3587, 4
      %v3590 = vrot.slane %v2729, 5
      %v3591 = vsel %vm1876, %v3589, %v3590
      %v3592 = vrot.slane %v3462, 5
      %v3593 = vrot.slane %v3592, 4
      %v3594 = vrot.slane %v2731, 5
      %v3595 = vsel %vm1876, %v3593, %v3594
      %v3596 = vrot.slane %v3594, 4
      %v3597 = vrot.slane %v2732, 5
      %v3598 = vsel %vm1876, %v3596, %v3597
      %v3599 = vrot.slane %v3463, 5
      %v3600 = vrot.slane %v3599, 4
      %v3601 = vrot.slane %v2734, 5
      %v3602 = vsel %vm1876, %v3600, %v3601
      %v3603 = vrot.slane %v3601, 4
      %v3604 = vrot.slane %v2735, 5
      %v3605 = vsel %vm1876, %v3603, %v3604
      %v3606 = vrot.slane %v3464, 5
      %v3607 = vrot.slane %v3606, 4
      %v3608 = vrot.slane %v2737, 5
      %v3609 = vsel %vm1876, %v3607, %v3608
      %v3610 = vrot.slane %v3608, 4
      %v3611 = vrot.slane %v2738, 5
      %v3612 = vsel %vm1876, %v3610, %v3611
      %v3613 = vrot.slane %v3465, 5
      %v3614 = vrot.slane %v3613, 4
      %v3615 = vrot.slane %v2740, 5
      %v3616 = vsel %vm1876, %v3614, %v3615
      %v3617 = vrot.slane %v3615, 4
      %v3618 = vrot.slane %v2741, 5
      %v3619 = vsel %vm1876, %v3617, %v3618
      %v3620 = vrot.slane %v3466, 5
      %v3621 = vrot.slane %v3620, 4
      %v3622 = vrot.slane %v2743, 5
      %v3623 = vsel %vm1876, %v3621, %v3622
      %v3624 = vrot.slane %v3622, 4
      %v3625 = vrot.slane %v2744, 5
      %v3626 = vsel %vm1876, %v3624, %v3625
      %s3627 = scalar_lea.vmem %s1, 320
      %v3628 = vld [vmem:[%s3627] sm:$0xf]
      %v3629 = vld [vmem:[%s3627 + $0x4] sm:$0xf]
      %v3630 = vld [vmem:[%s3627 + $0x8] sm:$0xf]
      %v3631 = vld [vmem:[%s3627 + $0xc] sm:$0xf]
      %v3632 = vld [vmem:[%s3627 + $0x10] sm:$0xf]
      %v3633 = vld [vmem:[%s3627 + $0x14] sm:$0xf]
      %v3634 = vld [vmem:[%s3627 + $0x18] sm:$0xf]
      %v3635 = vld [vmem:[%s3627 + $0x1c] sm:$0xf]
      %v3636 = vld [vmem:[%s3627 + $0x20] sm:$0xf]
      %v3637 = vld [vmem:[%s3627 + $0x24] sm:$0xf]
      %v3638 = vld [vmem:[%s3627 + $0x28] sm:$0xf]
      %v3639 = vld [vmem:[%s3627 + $0x2c] sm:$0xf]
      %v3640 = vld [vmem:[%s3627 + $0x30] sm:$0xf]
      %v3641 = vld [vmem:[%s3627 + $0x34] sm:$0xf]
      %v3642 = vld [vmem:[%s3627 + $0x38] sm:$0xf]
      %v3643 = vld [vmem:[%s3627 + $0x3c] sm:$0xf]
      %v3644 = vunpack.c.l.b16 %v3518
      %v3645 = vunpack.c.l.b16 %v3521
      %v3646 = vunpack.c.l.b16 %v3525
      %v3647 = vunpack.c.l.b16 %v3528
      %v3648 = vunpack.c.l.b16 %v3532
      %v3649 = vunpack.c.l.b16 %v3535
      %v3650 = vunpack.c.l.b16 %v3539
      %v3651 = vunpack.c.l.b16 %v3542
      %v3652 = vunpack.c.l.b16 %v3546
      %v3653 = vunpack.c.l.b16 %v3549
      %v3654 = vunpack.c.l.b16 %v3553
      %v3655 = vunpack.c.l.b16 %v3556
      %v3656 = vunpack.c.l.b16 %v3560
      %v3657 = vunpack.c.l.b16 %v3563
      %v3658 = vunpack.c.l.b16 %v3567
      %v3659 = vunpack.c.l.b16 %v3570
      %v3660 = vunpack.c.l.b16 %v3574
      %v3661 = vunpack.c.l.b16 %v3577
      %v3662 = vunpack.c.l.b16 %v3581
      %v3663 = vunpack.c.l.b16 %v3584
      %v3664 = vunpack.c.l.b16 %v3588
      %v3665 = vunpack.c.l.b16 %v3591
      %v3666 = vunpack.c.l.b16 %v3595
      %v3667 = vunpack.c.l.b16 %v3598
      %v3668 = vunpack.c.l.b16 %v3602
      %v3669 = vunpack.c.l.b16 %v3605
      %v3670 = vunpack.c.l.b16 %v3609
      %v3671 = vunpack.c.l.b16 %v3612
      %v3672 = vunpack.c.l.b16 %v3616
      %v3673 = vunpack.c.l.b16 %v3619
      %v3674 = vunpack.c.l.b16 %v3623
      %v3675 = vunpack.c.l.b16 %v3626
      %v3676 = vpack.c.b16 %v3645, %v3644
      %v3677 = vpack.c.b16 %v3647, %v3646
      %v3678 = vpack.c.b16 %v3649, %v3648
      %v3679 = vpack.c.b16 %v3651, %v3650
      %v3680 = vpack.c.b16 %v3653, %v3652
      %v3681 = vpack.c.b16 %v3655, %v3654
      %v3682 = vpack.c.b16 %v3657, %v3656
      %v3683 = vpack.c.b16 %v3659, %v3658
      %v3684 = vpack.c.b16 %v3661, %v3660
      %v3685 = vpack.c.b16 %v3663, %v3662
      %v3686 = vpack.c.b16 %v3665, %v3664
      %v3687 = vpack.c.b16 %v3667, %v3666
      %v3688 = vpack.c.b16 %v3669, %v3668
      %v3689 = vpack.c.b16 %v3671, %v3670
      %v3690 = vpack.c.b16 %v3673, %v3672
      %v3691 = vpack.c.b16 %v3675, %v3674
      %v3724 = vunpack.c.l.b16 %v3628
      %v3725 = vunpack.c.l.b16 %v3629
      %v3726 = vunpack.c.l.b16 %v3630
      %v3727 = vunpack.c.l.b16 %v3631
      %v3728 = vunpack.c.l.b16 %v3632
      %v3729 = vunpack.c.l.b16 %v3633
      %v3730 = vunpack.c.l.b16 %v3634
      %v3731 = vunpack.c.l.b16 %v3635
      %v3732 = vunpack.c.l.b16 %v3636
      %v3733 = vunpack.c.l.b16 %v3637
      %v3734 = vunpack.c.l.b16 %v3638
      %v3735 = vunpack.c.l.b16 %v3639
      %v3736 = vunpack.c.l.b16 %v3640
      %v3737 = vunpack.c.l.b16 %v3641
      %v3738 = vunpack.c.l.b16 %v3642
      %v3739 = vunpack.c.l.b16 %v3643
      %v3740 = vpack.c.b16 %v3725, %v3724
      %v3741 = vpack.c.b16 %v3727, %v3726
      %v3742 = vpack.c.b16 %v3729, %v3728
      %v3743 = vpack.c.b16 %v3731, %v3730
      %v3744 = vpack.c.b16 %v3733, %v3732
      %v3745 = vpack.c.b16 %v3735, %v3734
      %v3746 = vpack.c.b16 %v3737, %v3736
      %v3747 = vpack.c.b16 %v3739, %v3738
      %3756 = vmatprep.subr.bf16.mxu0 0
      %3757 = vmatpush1.bf16.msra.mxu0 %v3747
      %3758 = vmatprep.subr.bf16.mxu0 0
      %3759 = vmatpush1.bf16.msra.mxu0 %v3746
      %3760 = vmatprep.subr.bf16.mxu0 0
      %3761 = vmatpush1.bf16.msra.mxu0 %v3745
      %3762 = vmatprep.subr.bf16.mxu0 0
      %3763 = vmatpush1.bf16.msra.mxu0 %v3744
      %3764 = vmatprep.subr.bf16.mxu0 0
      %3765 = vmatpush1.bf16.msra.mxu0 %v3743
      %3766 = vmatprep.subr.bf16.mxu0 0
      %3767 = vmatpush1.bf16.msra.mxu0 %v3742
      %3768 = vmatprep.subr.bf16.mxu0 0
      %3769 = vmatpush1.bf16.msra.mxu0 %v3741
      %3770 = vmatprep.subr.bf16.mxu0 0
      %3771 = vmatpush1.bf16.msra.mxu0 %v3740
      %3772 = vmatprep.subr.bf16.mxu0 0
      %3773 = vmatpush2.bf16.msra.mxu0 0
      %3774 = vmatprep.subr.bf16.mxu0 0
      %3775 = vmatpush2.bf16.msra.mxu0 0
      %3776 = vmatprep.subr.bf16.mxu0 0
      %3777 = vmatpush2.bf16.msra.mxu0 0
      %3778 = vmatprep.subr.bf16.mxu0 0
      %3779 = vmatpush2.bf16.msra.mxu0 0
      %3780 = vmatprep.subr.bf16.mxu0 0
      %3781 = vmatpush2.bf16.msra.mxu0 0
      %3782 = vmatprep.subr.bf16.mxu0 0
      %3783 = vmatpush2.bf16.msra.mxu0 0
      %3784 = vmatprep.subr.bf16.mxu0 0
      %3785 = vmatpush2.bf16.msra.mxu0 0
      %3786 = vmatprep.subr.bf16.mxu0 0
      %3787 = vmatpush2.bf16.msra.mxu0 0
      %3788 = vmatprep.mubr.bf16.mxu0 0
      %3789 = vmatmul.mubr.bf16.gmra.mxu0 %v3676
      %v3790 = vpop.f32.mrf.mxu0
      %v3791 = vadd.f32 0.0, %v3790
      %v3792 = vpop.f32.mrf.mxu0
      %v3793 = vpop.f32.mrf.mxu0
      %v3794 = vadd.f32 0.0, %v3793
      %v3795 = vpop.f32.mrf.mxu0
      %3796 = vmatprep.mubr.bf16.mxu0 0
      %3797 = vmatmul.mubr.bf16.gmra.mxu0 %v3677
      %v3798 = vpop.f32.mrf.mxu0
      %v3799 = vadd.f32 0.0, %v3798
      %v3800 = vpop.f32.mrf.mxu0
      %v3801 = vpop.f32.mrf.mxu0
      %v3802 = vadd.f32 0.0, %v3801
      %v3803 = vpop.f32.mrf.mxu0
      %3804 = vmatprep.mubr.bf16.mxu0 0
      %3805 = vmatmul.mubr.bf16.gmra.mxu0 %v3678
      %v3806 = vpop.f32.mrf.mxu0
      %v3807 = vadd.f32 0.0, %v3806
      %v3808 = vpop.f32.mrf.mxu0
      %v3809 = vpop.f32.mrf.mxu0
      %v3810 = vadd.f32 0.0, %v3809
      %v3811 = vpop.f32.mrf.mxu0
      %3812 = vmatprep.mubr.bf16.mxu0 0
      %3813 = vmatmul.mubr.bf16.gmra.mxu0 %v3679
      %v3814 = vpop.f32.mrf.mxu0
      %v3815 = vadd.f32 0.0, %v3814
      %v3816 = vpop.f32.mrf.mxu0
      %v3817 = vpop.f32.mrf.mxu0
      %v3818 = vadd.f32 0.0, %v3817
      %v3819 = vpop.f32.mrf.mxu0
      %3820 = vmatprep.mubr.bf16.mxu0 0
      %3821 = vmatmul.mubr.bf16.gmra.mxu0 %v3680
      %v3822 = vpop.f32.mrf.mxu0
      %v3823 = vadd.f32 0.0, %v3822
      %v3824 = vpop.f32.mrf.mxu0
      %v3825 = vpop.f32.mrf.mxu0
      %v3826 = vadd.f32 0.0, %v3825
      %v3827 = vpop.f32.mrf.mxu0
      %3828 = vmatprep.mubr.bf16.mxu0 0
      %3829 = vmatmul.mubr.bf16.gmra.mxu0 %v3681
      %v3830 = vpop.f32.mrf.mxu0
      %v3831 = vadd.f32 0.0, %v3830
      %v3832 = vpop.f32.mrf.mxu0
      %v3833 = vpop.f32.mrf.mxu0
      %v3834 = vadd.f32 0.0, %v3833
      %v3835 = vpop.f32.mrf.mxu0
      %3836 = vmatprep.mubr.bf16.mxu0 0
      %3837 = vmatmul.mubr.bf16.gmra.mxu0 %v3682
      %v3838 = vpop.f32.mrf.mxu0
      %v3839 = vadd.f32 0.0, %v3838
      %v3840 = vpop.f32.mrf.mxu0
      %v3841 = vpop.f32.mrf.mxu0
      %v3842 = vadd.f32 0.0, %v3841
      %v3843 = vpop.f32.mrf.mxu0
      %3844 = vmatprep.mubr.bf16.mxu0 0
      %3845 = vmatmul.mubr.bf16.gmra.mxu0 %v3683
      %v3846 = vpop.f32.mrf.mxu0
      %v3847 = vadd.f32 0.0, %v3846
      %v3848 = vpop.f32.mrf.mxu0
      %v3849 = vpop.f32.mrf.mxu0
      %v3850 = vadd.f32 0.0, %v3849
      %v3851 = vpop.f32.mrf.mxu0
      %3852 = vmatprep.mubr.bf16.mxu0 0
      %3853 = vmatmul.mubr.bf16.gmra.mxu0 %v3684
      %v3854 = vpop.f32.mrf.mxu0
      %v3855 = vadd.f32 0.0, %v3854
      %v3856 = vpop.f32.mrf.mxu0
      %v3857 = vpop.f32.mrf.mxu0
      %v3858 = vadd.f32 0.0, %v3857
      %v3859 = vpop.f32.mrf.mxu0
      %3860 = vmatprep.mubr.bf16.mxu0 0
      %3861 = vmatmul.mubr.bf16.gmra.mxu0 %v3685
      %v3862 = vpop.f32.mrf.mxu0
      %v3863 = vadd.f32 0.0, %v3862
      %v3864 = vpop.f32.mrf.mxu0
      %v3865 = vpop.f32.mrf.mxu0
      %v3866 = vadd.f32 0.0, %v3865
      %v3867 = vpop.f32.mrf.mxu0
      %3868 = vmatprep.mubr.bf16.mxu0 0
      %3869 = vmatmul.mubr.bf16.gmra.mxu0 %v3686
      %v3870 = vpop.f32.mrf.mxu0
      %v3871 = vadd.f32 0.0, %v3870
      %v3872 = vpop.f32.mrf.mxu0
      %v3873 = vpop.f32.mrf.mxu0
      %v3874 = vadd.f32 0.0, %v3873
      %v3875 = vpop.f32.mrf.mxu0
      %3876 = vmatprep.mubr.bf16.mxu0 0
      %3877 = vmatmul.mubr.bf16.gmra.mxu0 %v3687
      %v3878 = vpop.f32.mrf.mxu0
      %v3879 = vadd.f32 0.0, %v3878
      %v3880 = vpop.f32.mrf.mxu0
      %v3881 = vpop.f32.mrf.mxu0
      %v3882 = vadd.f32 0.0, %v3881
      %v3883 = vpop.f32.mrf.mxu0
      %3884 = vmatprep.mubr.bf16.mxu0 0
      %3885 = vmatmul.mubr.bf16.gmra.mxu0 %v3688
      %v3886 = vpop.f32.mrf.mxu0
      %v3887 = vadd.f32 0.0, %v3886
      %v3888 = vpop.f32.mrf.mxu0
      %v3889 = vpop.f32.mrf.mxu0
      %v3890 = vadd.f32 0.0, %v3889
      %v3891 = vpop.f32.mrf.mxu0
      %3892 = vmatprep.mubr.bf16.mxu0 0
      %3893 = vmatmul.mubr.bf16.gmra.mxu0 %v3689
      %v3894 = vpop.f32.mrf.mxu0
      %v3895 = vadd.f32 0.0, %v3894
      %v3896 = vpop.f32.mrf.mxu0
      %v3897 = vpop.f32.mrf.mxu0
      %v3898 = vadd.f32 0.0, %v3897
      %v3899 = vpop.f32.mrf.mxu0
      %3900 = vmatprep.mubr.bf16.mxu0 0
      %3901 = vmatmul.mubr.bf16.gmra.mxu0 %v3690
      %v3902 = vpop.f32.mrf.mxu0
      %v3903 = vadd.f32 0.0, %v3902
      %v3904 = vpop.f32.mrf.mxu0
      %v3905 = vpop.f32.mrf.mxu0
      %v3906 = vadd.f32 0.0, %v3905
      %v3907 = vpop.f32.mrf.mxu0
      %3908 = vmatprep.mubr.bf16.mxu0 0
      %3909 = vmatmul.mubr.bf16.gmra.mxu0 %v3691
      %v3910 = vpop.f32.mrf.mxu0
      %v3911 = vadd.f32 0.0, %v3910
      %v3912 = vpop.f32.mrf.mxu0
      %v3913 = vpop.f32.mrf.mxu0
      %v3914 = vadd.f32 0.0, %v3913
      %v3915 = vpop.f32.mrf.mxu0
      %3916 = vdwg.mxu0
      %v3917 = vadd.f32 %v3419, %v3791
      %v3918 = vadd.f32 %v3420, %v3794
      %v3919 = vadd.f32 %v3421, %v3799
      %v3920 = vadd.f32 %v3422, %v3802
      %v3921 = vadd.f32 %v3423, %v3807
      %v3922 = vadd.f32 %v3424, %v3810
      %v3923 = vadd.f32 %v3425, %v3815
      %v3924 = vadd.f32 %v3426, %v3818
      %v3925 = vadd.f32 %v3427, %v3823
      %v3926 = vadd.f32 %v3428, %v3826
      %v3927 = vadd.f32 %v3429, %v3831
      %v3928 = vadd.f32 %v3430, %v3834
      %v3929 = vadd.f32 %v3431, %v3839
      %v3930 = vadd.f32 %v3432, %v3842
      %v3931 = vadd.f32 %v3433, %v3847
      %v3932 = vadd.f32 %v3434, %v3850
      %v3933 = vadd.f32 %v3435, %v3855
      %v3934 = vadd.f32 %v3436, %v3858
      %v3935 = vadd.f32 %v3437, %v3863
      %v3936 = vadd.f32 %v3438, %v3866
      %v3937 = vadd.f32 %v3439, %v3871
      %v3938 = vadd.f32 %v3440, %v3874
      %v3939 = vadd.f32 %v3441, %v3879
      %v3940 = vadd.f32 %v3442, %v3882
      %v3941 = vadd.f32 %v3443, %v3887
      %v3942 = vadd.f32 %v3444, %v3890
      %v3943 = vadd.f32 %v3445, %v3895
      %v3944 = vadd.f32 %v3446, %v3898
      %v3945 = vadd.f32 %v3447, %v3903
      %v3946 = vadd.f32 %v3448, %v3906
      %v3947 = vadd.f32 %v3449, %v3911
      %v3948 = vadd.f32 %v3450, %v3914
      %s3949 = scalar_lea.vmem [#allocation2], 24
      %v3950 = vld [vmem:[%s3949] sm:$0xf]
      %v3951 = vld [vmem:[%s3949 + $0x4] sm:$0xf]
      %v3952 = vld [vmem:[%s3949 + $0xc] sm:$0xf]
      %v3953 = vld [vmem:[%s3949 + $0x10] sm:$0xf]
      %v3954 = vld [vmem:[%s3949 + $0x18] sm:$0xf]
      %v3955 = vld [vmem:[%s3949 + $0x1c] sm:$0xf]
      %v3956 = vld [vmem:[%s3949 + $0x24] sm:$0xf]
      %v3957 = vld [vmem:[%s3949 + $0x28] sm:$0xf]
      %v3958 = vld [vmem:[%s3949 + $0x30] sm:$0xf]
      %v3959 = vld [vmem:[%s3949 + $0x34] sm:$0xf]
      %v3960 = vld [vmem:[%s3949 + $0x3c] sm:$0xf]
      %v3961 = vld [vmem:[%s3949 + $0x40] sm:$0xf]
      %v3962 = vld [vmem:[%s3949 + $0x48] sm:$0xf]
      %v3963 = vld [vmem:[%s3949 + $0x4c] sm:$0xf]
      %v3964 = vld [vmem:[%s3949 + $0x54] sm:$0xf]
      %v3965 = vld [vmem:[%s3949 + $0x58] sm:$0xf]
      %v3966 = vld [vmem:[%s3949 + $0x60] sm:$0xf]
      %v3967 = vld [vmem:[%s3949 + $0x64] sm:$0xf]
      %v3968 = vld [vmem:[%s3949 + $0x6c] sm:$0xf]
      %v3969 = vld [vmem:[%s3949 + $0x70] sm:$0xf]
      %v3970 = vld [vmem:[%s3949 + $0x78] sm:$0xf]
      %v3971 = vld [vmem:[%s3949 + $0x7c] sm:$0xf]
      %v3972 = vld [vmem:[%s3949 + $0x84] sm:$0xf]
      %v3973 = vld [vmem:[%s3949 + $0x88] sm:$0xf]
      %v3974 = vld [vmem:[%s3949 + $0x90] sm:$0xf]
      %v3975 = vld [vmem:[%s3949 + $0x94] sm:$0xf]
      %v3976 = vld [vmem:[%s3949 + $0x9c] sm:$0xf]
      %v3977 = vld [vmem:[%s3949 + $0xa0] sm:$0xf]
      %v3978 = vld [vmem:[%s3949 + $0xa8] sm:$0xf]
      %v3979 = vld [vmem:[%s3949 + $0xac] sm:$0xf]
      %v3980 = vld [vmem:[%s3949 + $0xb4] sm:$0xf]
      %v3981 = vld [vmem:[%s3949 + $0xb8] sm:$0xf]
      %s3982 = scalar_lea.vmem %s1, 384
      %v3983 = vld [vmem:[%s3982] sm:$0xf]
      %v3984 = vld [vmem:[%s3982 + $0x4] sm:$0xf]
      %v3985 = vld [vmem:[%s3982 + $0x8] sm:$0xf]
      %v3986 = vld [vmem:[%s3982 + $0xc] sm:$0xf]
      %v3987 = vld [vmem:[%s3982 + $0x10] sm:$0xf]
      %v3988 = vld [vmem:[%s3982 + $0x14] sm:$0xf]
      %v3989 = vld [vmem:[%s3982 + $0x18] sm:$0xf]
      %v3990 = vld [vmem:[%s3982 + $0x1c] sm:$0xf]
      %v3991 = vld [vmem:[%s3982 + $0x20] sm:$0xf]
      %v3992 = vld [vmem:[%s3982 + $0x24] sm:$0xf]
      %v3993 = vld [vmem:[%s3982 + $0x28] sm:$0xf]
      %v3994 = vld [vmem:[%s3982 + $0x2c] sm:$0xf]
      %v3995 = vld [vmem:[%s3982 + $0x30] sm:$0xf]
      %v3996 = vld [vmem:[%s3982 + $0x34] sm:$0xf]
      %v3997 = vld [vmem:[%s3982 + $0x38] sm:$0xf]
      %v3998 = vld [vmem:[%s3982 + $0x3c] sm:$0xf]
      %v4031 = vunpack.c.l.b16 %v3950
      %v4032 = vunpack.c.l.b16 %v3951
      %v4033 = vunpack.c.l.b16 %v3952
      %v4034 = vunpack.c.l.b16 %v3953
      %v4035 = vunpack.c.l.b16 %v3954
      %v4036 = vunpack.c.l.b16 %v3955
      %v4037 = vunpack.c.l.b16 %v3956
      %v4038 = vunpack.c.l.b16 %v3957
      %v4039 = vunpack.c.l.b16 %v3958
      %v4040 = vunpack.c.l.b16 %v3959
      %v4041 = vunpack.c.l.b16 %v3960
      %v4042 = vunpack.c.l.b16 %v3961
      %v4043 = vunpack.c.l.b16 %v3962
      %v4044 = vunpack.c.l.b16 %v3963
      %v4045 = vunpack.c.l.b16 %v3964
      %v4046 = vunpack.c.l.b16 %v3965
      %v4047 = vunpack.c.l.b16 %v3966
      %v4048 = vunpack.c.l.b16 %v3967
      %v4049 = vunpack.c.l.b16 %v3968
      %v4050 = vunpack.c.l.b16 %v3969
      %v4051 = vunpack.c.l.b16 %v3970
      %v4052 = vunpack.c.l.b16 %v3971
      %v4053 = vunpack.c.l.b16 %v3972
      %v4054 = vunpack.c.l.b16 %v3973
      %v4055 = vunpack.c.l.b16 %v3974
      %v4056 = vunpack.c.l.b16 %v3975
      %v4057 = vunpack.c.l.b16 %v3976
      %v4058 = vunpack.c.l.b16 %v3977
      %v4059 = vunpack.c.l.b16 %v3978
      %v4060 = vunpack.c.l.b16 %v3979
      %v4061 = vunpack.c.l.b16 %v3980
      %v4062 = vunpack.c.l.b16 %v3981
      %v4063 = vpack.c.b16 %v4032, %v4031
      %v4064 = vpack.c.b16 %v4034, %v4033
      %v4065 = vpack.c.b16 %v4036, %v4035
      %v4066 = vpack.c.b16 %v4038, %v4037
      %v4067 = vpack.c.b16 %v4040, %v4039
      %v4068 = vpack.c.b16 %v4042, %v4041
      %v4069 = vpack.c.b16 %v4044, %v4043
      %v4070 = vpack.c.b16 %v4046, %v4045
      %v4071 = vpack.c.b16 %v4048, %v4047
      %v4072 = vpack.c.b16 %v4050, %v4049
      %v4073 = vpack.c.b16 %v4052, %v4051
      %v4074 = vpack.c.b16 %v4054, %v4053
      %v4075 = vpack.c.b16 %v4056, %v4055
      %v4076 = vpack.c.b16 %v4058, %v4057
      %v4077 = vpack.c.b16 %v4060, %v4059
      %v4078 = vpack.c.b16 %v4062, %v4061
      %v4111 = vunpack.c.l.b16 %v3983
      %v4112 = vunpack.c.l.b16 %v3984
      %v4113 = vunpack.c.l.b16 %v3985
      %v4114 = vunpack.c.l.b16 %v3986
      %v4115 = vunpack.c.l.b16 %v3987
      %v4116 = vunpack.c.l.b16 %v3988
      %v4117 = vunpack.c.l.b16 %v3989
      %v4118 = vunpack.c.l.b16 %v3990
      %v4119 = vunpack.c.l.b16 %v3991
      %v4120 = vunpack.c.l.b16 %v3992
      %v4121 = vunpack.c.l.b16 %v3993
      %v4122 = vunpack.c.l.b16 %v3994
      %v4123 = vunpack.c.l.b16 %v3995
      %v4124 = vunpack.c.l.b16 %v3996
      %v4125 = vunpack.c.l.b16 %v3997
      %v4126 = vunpack.c.l.b16 %v3998
      %v4127 = vpack.c.b16 %v4112, %v4111
      %v4128 = vpack.c.b16 %v4114, %v4113
      %v4129 = vpack.c.b16 %v4116, %v4115
      %v4130 = vpack.c.b16 %v4118, %v4117
      %v4131 = vpack.c.b16 %v4120, %v4119
      %v4132 = vpack.c.b16 %v4122, %v4121
      %v4133 = vpack.c.b16 %v4124, %v4123
      %v4134 = vpack.c.b16 %v4126, %v4125
      %4143 = vmatprep.subr.bf16.mxu0 0
      %4144 = vmatpush1.bf16.msra.mxu0 %v4134
      %4145 = vmatprep.subr.bf16.mxu0 0
      %4146 = vmatpush1.bf16.msra.mxu0 %v4133
      %4147 = vmatprep.subr.bf16.mxu0 0
      %4148 = vmatpush1.bf16.msra.mxu0 %v4132
      %4149 = vmatprep.subr.bf16.mxu0 0
      %4150 = vmatpush1.bf16.msra.mxu0 %v4131
      %4151 = vmatprep.subr.bf16.mxu0 0
      %4152 = vmatpush1.bf16.msra.mxu0 %v4130
      %4153 = vmatprep.subr.bf16.mxu0 0
      %4154 = vmatpush1.bf16.msra.mxu0 %v4129
      %4155 = vmatprep.subr.bf16.mxu0 0
      %4156 = vmatpush1.bf16.msra.mxu0 %v4128
      %4157 = vmatprep.subr.bf16.mxu0 0
      %4158 = vmatpush1.bf16.msra.mxu0 %v4127
      %4159 = vmatprep.subr.bf16.mxu0 0
      %4160 = vmatpush2.bf16.msra.mxu0 0
      %4161 = vmatprep.subr.bf16.mxu0 0
      %4162 = vmatpush2.bf16.msra.mxu0 0
      %4163 = vmatprep.subr.bf16.mxu0 0
      %4164 = vmatpush2.bf16.msra.mxu0 0
      %4165 = vmatprep.subr.bf16.mxu0 0
      %4166 = vmatpush2.bf16.msra.mxu0 0
      %4167 = vmatprep.subr.bf16.mxu0 0
      %4168 = vmatpush2.bf16.msra.mxu0 0
      %4169 = vmatprep.subr.bf16.mxu0 0
      %4170 = vmatpush2.bf16.msra.mxu0 0
      %4171 = vmatprep.subr.bf16.mxu0 0
      %4172 = vmatpush2.bf16.msra.mxu0 0
      %4173 = vmatprep.subr.bf16.mxu0 0
      %4174 = vmatpush2.bf16.msra.mxu0 0
      %4175 = vmatprep.mubr.bf16.mxu0 0
      %4176 = vmatmul.mubr.bf16.gmra.mxu0 %v4063
      %v4177 = vpop.f32.mrf.mxu0
      %v4178 = vadd.f32 0.0, %v4177
      %v4179 = vpop.f32.mrf.mxu0
      %v4180 = vpop.f32.mrf.mxu0
      %v4181 = vadd.f32 0.0, %v4180
      %v4182 = vpop.f32.mrf.mxu0
      %4183 = vmatprep.mubr.bf16.mxu0 0
      %4184 = vmatmul.mubr.bf16.gmra.mxu0 %v4064
      %v4185 = vpop.f32.mrf.mxu0
      %v4186 = vadd.f32 0.0, %v4185
      %v4187 = vpop.f32.mrf.mxu0
      %v4188 = vpop.f32.mrf.mxu0
      %v4189 = vadd.f32 0.0, %v4188
      %v4190 = vpop.f32.mrf.mxu0
      %4191 = vmatprep.mubr.bf16.mxu0 0
      %4192 = vmatmul.mubr.bf16.gmra.mxu0 %v4065
      %v4193 = vpop.f32.mrf.mxu0
      %v4194 = vadd.f32 0.0, %v4193
      %v4195 = vpop.f32.mrf.mxu0
      %v4196 = vpop.f32.mrf.mxu0
      %v4197 = vadd.f32 0.0, %v4196
      %v4198 = vpop.f32.mrf.mxu0
      %4199 = vmatprep.mubr.bf16.mxu0 0
      %4200 = vmatmul.mubr.bf16.gmra.mxu0 %v4066
      %v4201 = vpop.f32.mrf.mxu0
      %v4202 = vadd.f32 0.0, %v4201
      %v4203 = vpop.f32.mrf.mxu0
      %v4204 = vpop.f32.mrf.mxu0
      %v4205 = vadd.f32 0.0, %v4204
      %v4206 = vpop.f32.mrf.mxu0
      %4207 = vmatprep.mubr.bf16.mxu0 0
      %4208 = vmatmul.mubr.bf16.gmra.mxu0 %v4067
      %v4209 = vpop.f32.mrf.mxu0
      %v4210 = vadd.f32 0.0, %v4209
      %v4211 = vpop.f32.mrf.mxu0
      %v4212 = vpop.f32.mrf.mxu0
      %v4213 = vadd.f32 0.0, %v4212
      %v4214 = vpop.f32.mrf.mxu0
      %4215 = vmatprep.mubr.bf16.mxu0 0
      %4216 = vmatmul.mubr.bf16.gmra.mxu0 %v4068
      %v4217 = vpop.f32.mrf.mxu0
      %v4218 = vadd.f32 0.0, %v4217
      %v4219 = vpop.f32.mrf.mxu0
      %v4220 = vpop.f32.mrf.mxu0
      %v4221 = vadd.f32 0.0, %v4220
      %v4222 = vpop.f32.mrf.mxu0
      %4223 = vmatprep.mubr.bf16.mxu0 0
      %4224 = vmatmul.mubr.bf16.gmra.mxu0 %v4069
      %v4225 = vpop.f32.mrf.mxu0
      %v4226 = vadd.f32 0.0, %v4225
      %v4227 = vpop.f32.mrf.mxu0
      %v4228 = vpop.f32.mrf.mxu0
      %v4229 = vadd.f32 0.0, %v4228
      %v4230 = vpop.f32.mrf.mxu0
      %4231 = vmatprep.mubr.bf16.mxu0 0
      %4232 = vmatmul.mubr.bf16.gmra.mxu0 %v4070
      %v4233 = vpop.f32.mrf.mxu0
      %v4234 = vadd.f32 0.0, %v4233
      %v4235 = vpop.f32.mrf.mxu0
      %v4236 = vpop.f32.mrf.mxu0
      %v4237 = vadd.f32 0.0, %v4236
      %v4238 = vpop.f32.mrf.mxu0
      %4239 = vmatprep.mubr.bf16.mxu0 0
      %4240 = vmatmul.mubr.bf16.gmra.mxu0 %v4071
      %v4241 = vpop.f32.mrf.mxu0
      %v4242 = vadd.f32 0.0, %v4241
      %v4243 = vpop.f32.mrf.mxu0
      %v4244 = vpop.f32.mrf.mxu0
      %v4245 = vadd.f32 0.0, %v4244
      %v4246 = vpop.f32.mrf.mxu0
      %4247 = vmatprep.mubr.bf16.mxu0 0
      %4248 = vmatmul.mubr.bf16.gmra.mxu0 %v4072
      %v4249 = vpop.f32.mrf.mxu0
      %v4250 = vadd.f32 0.0, %v4249
      %v4251 = vpop.f32.mrf.mxu0
      %v4252 = vpop.f32.mrf.mxu0
      %v4253 = vadd.f32 0.0, %v4252
      %v4254 = vpop.f32.mrf.mxu0
      %4255 = vmatprep.mubr.bf16.mxu0 0
      %4256 = vmatmul.mubr.bf16.gmra.mxu0 %v4073
      %v4257 = vpop.f32.mrf.mxu0
      %v4258 = vadd.f32 0.0, %v4257
      %v4259 = vpop.f32.mrf.mxu0
      %v4260 = vpop.f32.mrf.mxu0
      %v4261 = vadd.f32 0.0, %v4260
      %v4262 = vpop.f32.mrf.mxu0
      %4263 = vmatprep.mubr.bf16.mxu0 0
      %4264 = vmatmul.mubr.bf16.gmra.mxu0 %v4074
      %v4265 = vpop.f32.mrf.mxu0
      %v4266 = vadd.f32 0.0, %v4265
      %v4267 = vpop.f32.mrf.mxu0
      %v4268 = vpop.f32.mrf.mxu0
      %v4269 = vadd.f32 0.0, %v4268
      %v4270 = vpop.f32.mrf.mxu0
      %4271 = vmatprep.mubr.bf16.mxu0 0
      %4272 = vmatmul.mubr.bf16.gmra.mxu0 %v4075
      %v4273 = vpop.f32.mrf.mxu0
      %v4274 = vadd.f32 0.0, %v4273
      %v4275 = vpop.f32.mrf.mxu0
      %v4276 = vpop.f32.mrf.mxu0
      %v4277 = vadd.f32 0.0, %v4276
      %v4278 = vpop.f32.mrf.mxu0
      %4279 = vmatprep.mubr.bf16.mxu0 0
      %4280 = vmatmul.mubr.bf16.gmra.mxu0 %v4076
      %v4281 = vpop.f32.mrf.mxu0
      %v4282 = vadd.f32 0.0, %v4281
      %v4283 = vpop.f32.mrf.mxu0
      %v4284 = vpop.f32.mrf.mxu0
      %v4285 = vadd.f32 0.0, %v4284
      %v4286 = vpop.f32.mrf.mxu0
      %4287 = vmatprep.mubr.bf16.mxu0 0
      %4288 = vmatmul.mubr.bf16.gmra.mxu0 %v4077
      %v4289 = vpop.f32.mrf.mxu0
      %v4290 = vadd.f32 0.0, %v4289
      %v4291 = vpop.f32.mrf.mxu0
      %v4292 = vpop.f32.mrf.mxu0
      %v4293 = vadd.f32 0.0, %v4292
      %v4294 = vpop.f32.mrf.mxu0
      %4295 = vmatprep.mubr.bf16.mxu0 0
      %4296 = vmatmul.mubr.bf16.gmra.mxu0 %v4078
      %v4297 = vpop.f32.mrf.mxu0
      %v4298 = vadd.f32 0.0, %v4297
      %v4299 = vpop.f32.mrf.mxu0
      %v4300 = vpop.f32.mrf.mxu0
      %v4301 = vadd.f32 0.0, %v4300
      %v4302 = vpop.f32.mrf.mxu0
      %4303 = vdwg.mxu0
      %v4304 = vadd.f32 %v3917, %v4178
      %v4305 = vadd.f32 %v3918, %v4181
      %v4306 = vadd.f32 %v3919, %v4186
      %v4307 = vadd.f32 %v3920, %v4189
      %v4308 = vadd.f32 %v3921, %v4194
      %v4309 = vadd.f32 %v3922, %v4197
      %v4310 = vadd.f32 %v3923, %v4202
      %v4311 = vadd.f32 %v3924, %v4205
      %v4312 = vadd.f32 %v3925, %v4210
      %v4313 = vadd.f32 %v3926, %v4213
      %v4314 = vadd.f32 %v3927, %v4218
      %v4315 = vadd.f32 %v3928, %v4221
      %v4316 = vadd.f32 %v3929, %v4226
      %v4317 = vadd.f32 %v3930, %v4229
      %v4318 = vadd.f32 %v3931, %v4234
      %v4319 = vadd.f32 %v3932, %v4237
      %v4320 = vadd.f32 %v3933, %v4242
      %v4321 = vadd.f32 %v3934, %v4245
      %v4322 = vadd.f32 %v3935, %v4250
      %v4323 = vadd.f32 %v3936, %v4253
      %v4324 = vadd.f32 %v3937, %v4258
      %v4325 = vadd.f32 %v3938, %v4261
      %v4326 = vadd.f32 %v3939, %v4266
      %v4327 = vadd.f32 %v3940, %v4269
      %v4328 = vadd.f32 %v3941, %v4274
      %v4329 = vadd.f32 %v3942, %v4277
      %v4330 = vadd.f32 %v3943, %v4282
      %v4331 = vadd.f32 %v3944, %v4285
      %v4332 = vadd.f32 %v3945, %v4290
      %v4333 = vadd.f32 %v3946, %v4293
      %v4334 = vadd.f32 %v3947, %v4298
      %v4335 = vadd.f32 %v3948, %v4301
      %v4336 = vld [vmem:[%s3949] sm:$0xf]
      %v4337 = vld [vmem:[%s3949 + $0x4] sm:$0xf]
      %v4338 = vld [vmem:[%s3949 + $0x8] sm:$0x1]
      %v4339 = vld [vmem:[%s3949 + $0xc] sm:$0xf]
      %v4340 = vld [vmem:[%s3949 + $0x10] sm:$0xf]
      %v4341 = vld [vmem:[%s3949 + $0x14] sm:$0x1]
      %v4342 = vld [vmem:[%s3949 + $0x18] sm:$0xf]
      %v4343 = vld [vmem:[%s3949 + $0x1c] sm:$0xf]
      %v4344 = vld [vmem:[%s3949 + $0x20] sm:$0x1]
      %v4345 = vld [vmem:[%s3949 + $0x24] sm:$0xf]
      %v4346 = vld [vmem:[%s3949 + $0x28] sm:$0xf]
      %v4347 = vld [vmem:[%s3949 + $0x2c] sm:$0x1]
      %v4348 = vld [vmem:[%s3949 + $0x30] sm:$0xf]
      %v4349 = vld [vmem:[%s3949 + $0x34] sm:$0xf]
      %v4350 = vld [vmem:[%s3949 + $0x38] sm:$0x1]
      %v4351 = vld [vmem:[%s3949 + $0x3c] sm:$0xf]
      %v4352 = vld [vmem:[%s3949 + $0x40] sm:$0xf]
      %v4353 = vld [vmem:[%s3949 + $0x44] sm:$0x1]
      %v4354 = vld [vmem:[%s3949 + $0x48] sm:$0xf]
      %v4355 = vld [vmem:[%s3949 + $0x4c] sm:$0xf]
      %v4356 = vld [vmem:[%s3949 + $0x50] sm:$0x1]
      %v4357 = vld [vmem:[%s3949 + $0x54] sm:$0xf]
      %v4358 = vld [vmem:[%s3949 + $0x58] sm:$0xf]
      %v4359 = vld [vmem:[%s3949 + $0x5c] sm:$0x1]
      %v4360 = vld [vmem:[%s3949 + $0x60] sm:$0xf]
      %v4361 = vld [vmem:[%s3949 + $0x64] sm:$0xf]
      %v4362 = vld [vmem:[%s3949 + $0x68] sm:$0x1]
      %v4363 = vld [vmem:[%s3949 + $0x6c] sm:$0xf]
      %v4364 = vld [vmem:[%s3949 + $0x70] sm:$0xf]
      %v4365 = vld [vmem:[%s3949 + $0x74] sm:$0x1]
      %v4366 = vld [vmem:[%s3949 + $0x78] sm:$0xf]
      %v4367 = vld [vmem:[%s3949 + $0x7c] sm:$0xf]
      %v4368 = vld [vmem:[%s3949 + $0x80] sm:$0x1]
      %v4369 = vld [vmem:[%s3949 + $0x84] sm:$0xf]
      %v4370 = vld [vmem:[%s3949 + $0x88] sm:$0xf]
      %v4371 = vld [vmem:[%s3949 + $0x8c] sm:$0x1]
      %v4372 = vld [vmem:[%s3949 + $0x90] sm:$0xf]
      %v4373 = vld [vmem:[%s3949 + $0x94] sm:$0xf]
      %v4374 = vld [vmem:[%s3949 + $0x98] sm:$0x1]
      %v4375 = vld [vmem:[%s3949 + $0x9c] sm:$0xf]
      %v4376 = vld [vmem:[%s3949 + $0xa0] sm:$0xf]
      %v4377 = vld [vmem:[%s3949 + $0xa4] sm:$0x1]
      %v4378 = vld [vmem:[%s3949 + $0xa8] sm:$0xf]
      %v4379 = vld [vmem:[%s3949 + $0xac] sm:$0xf]
      %v4380 = vld [vmem:[%s3949 + $0xb0] sm:$0x1]
      %v4381 = vld [vmem:[%s3949 + $0xb4] sm:$0xf]
      %v4382 = vld [vmem:[%s3949 + $0xb8] sm:$0xf]
      %v4383 = vld [vmem:[%s3949 + $0xbc] sm:$0x1]
      %v4385 = vshrl.u32 %v4336, 16
      %v4387 = vrot.slane %v4385, 4
      %v4388 = vshll.u32 %v4336, 16
      %v4390 = vrot.slane %v4388, 5
      %v4391 = vor.u32 %v4387, %v4390
      %v4392 = vrot.slane %v4391, 4
      %v4394 = vshll.u32 %v4337, 16
      %v4396 = vrot.slane %v4394, 5
      %v4397 = vsel %vm846, %v4392, %v4396
      %v4398 = vshrl.u32 %v4337, 16
      %v4400 = vrot.slane %v4398, 4
      %v4401 = vor.u32 %v4400, %v4396
      %v4402 = vrot.slane %v4401, 4
      %v4404 = vshll.u32 %v4338, 16
      %v4406 = vrot.slane %v4404, 5
      %v4407 = vsel %vm846, %v4402, %v4406
      %v4409 = vshrl.u32 %v4339, 16
      %v4411 = vrot.slane %v4409, 4
      %v4412 = vshll.u32 %v4339, 16
      %v4414 = vrot.slane %v4412, 5
      %v4415 = vor.u32 %v4411, %v4414
      %v4416 = vrot.slane %v4415, 4
      %v4418 = vshll.u32 %v4340, 16
      %v4420 = vrot.slane %v4418, 5
      %v4421 = vsel %vm846, %v4416, %v4420
      %v4422 = vshrl.u32 %v4340, 16
      %v4424 = vrot.slane %v4422, 4
      %v4425 = vor.u32 %v4424, %v4420
      %v4426 = vrot.slane %v4425, 4
      %v4428 = vshll.u32 %v4341, 16
      %v4430 = vrot.slane %v4428, 5
      %v4431 = vsel %vm846, %v4426, %v4430
      %v4433 = vshrl.u32 %v4342, 16
      %v4435 = vrot.slane %v4433, 4
      %v4436 = vshll.u32 %v4342, 16
      %v4438 = vrot.slane %v4436, 5
      %v4439 = vor.u32 %v4435, %v4438
      %v4440 = vrot.slane %v4439, 4
      %v4442 = vshll.u32 %v4343, 16
      %v4444 = vrot.slane %v4442, 5
      %v4445 = vsel %vm846, %v4440, %v4444
      %v4446 = vshrl.u32 %v4343, 16
      %v4448 = vrot.slane %v4446, 4
      %v4449 = vor.u32 %v4448, %v4444
      %v4450 = vrot.slane %v4449, 4
      %v4452 = vshll.u32 %v4344, 16
      %v4454 = vrot.slane %v4452, 5
      %v4455 = vsel %vm846, %v4450, %v4454
      %v4457 = vshrl.u32 %v4345, 16
      %v4459 = vrot.slane %v4457, 4
      %v4460 = vshll.u32 %v4345, 16
      %v4462 = vrot.slane %v4460, 5
      %v4463 = vor.u32 %v4459, %v4462
      %v4464 = vrot.slane %v4463, 4
      %v4466 = vshll.u32 %v4346, 16
      %v4468 = vrot.slane %v4466, 5
      %v4469 = vsel %vm846, %v4464, %v4468
      %v4470 = vshrl.u32 %v4346, 16
      %v4472 = vrot.slane %v4470, 4
      %v4473 = vor.u32 %v4472, %v4468
      %v4474 = vrot.slane %v4473, 4
      %v4476 = vshll.u32 %v4347, 16
      %v4478 = vrot.slane %v4476, 5
      %v4479 = vsel %vm846, %v4474, %v4478
      %v4481 = vshrl.u32 %v4348, 16
      %v4483 = vrot.slane %v4481, 4
      %v4484 = vshll.u32 %v4348, 16
      %v4486 = vrot.slane %v4484, 5
      %v4487 = vor.u32 %v4483, %v4486
      %v4488 = vrot.slane %v4487, 4
      %v4490 = vshll.u32 %v4349, 16
      %v4492 = vrot.slane %v4490, 5
      %v4493 = vsel %vm846, %v4488, %v4492
      %v4494 = vshrl.u32 %v4349, 16
      %v4496 = vrot.slane %v4494, 4
      %v4497 = vor.u32 %v4496, %v4492
      %v4498 = vrot.slane %v4497, 4
      %v4500 = vshll.u32 %v4350, 16
      %v4502 = vrot.slane %v4500, 5
      %v4503 = vsel %vm846, %v4498, %v4502
      %v4505 = vshrl.u32 %v4351, 16
      %v4507 = vrot.slane %v4505, 4
      %v4508 = vshll.u32 %v4351, 16
      %v4510 = vrot.slane %v4508, 5
      %v4511 = vor.u32 %v4507, %v4510
      %v4512 = vrot.slane %v4511, 4
      %v4514 = vshll.u32 %v4352, 16
      %v4516 = vrot.slane %v4514, 5
      %v4517 = vsel %vm846, %v4512, %v4516
      %v4518 = vshrl.u32 %v4352, 16
      %v4520 = vrot.slane %v4518, 4
      %v4521 = vor.u32 %v4520, %v4516
      %v4522 = vrot.slane %v4521, 4
      %v4524 = vshll.u32 %v4353, 16
      %v4526 = vrot.slane %v4524, 5
      %v4527 = vsel %vm846, %v4522, %v4526
      %v4529 = vshrl.u32 %v4354, 16
      %v4531 = vrot.slane %v4529, 4
      %v4532 = vshll.u32 %v4354, 16
      %v4534 = vrot.slane %v4532, 5
      %v4535 = vor.u32 %v4531, %v4534
      %v4536 = vrot.slane %v4535, 4
      %v4538 = vshll.u32 %v4355, 16
      %v4540 = vrot.slane %v4538, 5
      %v4541 = vsel %vm846, %v4536, %v4540
      %v4542 = vshrl.u32 %v4355, 16
      %v4544 = vrot.slane %v4542, 4
      %v4545 = vor.u32 %v4544, %v4540
      %v4546 = vrot.slane %v4545, 4
      %v4548 = vshll.u32 %v4356, 16
      %v4550 = vrot.slane %v4548, 5
      %v4551 = vsel %vm846, %v4546, %v4550
      %v4553 = vshrl.u32 %v4357, 16
      %v4555 = vrot.slane %v4553, 4
      %v4556 = vshll.u32 %v4357, 16
      %v4558 = vrot.slane %v4556, 5
      %v4559 = vor.u32 %v4555, %v4558
      %v4560 = vrot.slane %v4559, 4
      %v4562 = vshll.u32 %v4358, 16
      %v4564 = vrot.slane %v4562, 5
      %v4565 = vsel %vm846, %v4560, %v4564
      %v4566 = vshrl.u32 %v4358, 16
      %v4568 = vrot.slane %v4566, 4
      %v4569 = vor.u32 %v4568, %v4564
      %v4570 = vrot.slane %v4569, 4
      %v4572 = vshll.u32 %v4359, 16
      %v4574 = vrot.slane %v4572, 5
      %v4575 = vsel %vm846, %v4570, %v4574
      %v4577 = vshrl.u32 %v4360, 16
      %v4579 = vrot.slane %v4577, 4
      %v4580 = vshll.u32 %v4360, 16
      %v4582 = vrot.slane %v4580, 5
      %v4583 = vor.u32 %v4579, %v4582
      %v4584 = vrot.slane %v4583, 4
      %v4586 = vshll.u32 %v4361, 16
      %v4588 = vrot.slane %v4586, 5
      %v4589 = vsel %vm846, %v4584, %v4588
      %v4590 = vshrl.u32 %v4361, 16
      %v4592 = vrot.slane %v4590, 4
      %v4593 = vor.u32 %v4592, %v4588
      %v4594 = vrot.slane %v4593, 4
      %v4596 = vshll.u32 %v4362, 16
      %v4598 = vrot.slane %v4596, 5
      %v4599 = vsel %vm846, %v4594, %v4598
      %v4601 = vshrl.u32 %v4363, 16
      %v4603 = vrot.slane %v4601, 4
      %v4604 = vshll.u32 %v4363, 16
      %v4606 = vrot.slane %v4604, 5
      %v4607 = vor.u32 %v4603, %v4606
      %v4608 = vrot.slane %v4607, 4
      %v4610 = vshll.u32 %v4364, 16
      %v4612 = vrot.slane %v4610, 5
      %v4613 = vsel %vm846, %v4608, %v4612
      %v4614 = vshrl.u32 %v4364, 16
      %v4616 = vrot.slane %v4614, 4
      %v4617 = vor.u32 %v4616, %v4612
      %v4618 = vrot.slane %v4617, 4
      %v4620 = vshll.u32 %v4365, 16
      %v4622 = vrot.slane %v4620, 5
      %v4623 = vsel %vm846, %v4618, %v4622
      %v4625 = vshrl.u32 %v4366, 16
      %v4627 = vrot.slane %v4625, 4
      %v4628 = vshll.u32 %v4366, 16
      %v4630 = vrot.slane %v4628, 5
      %v4631 = vor.u32 %v4627, %v4630
      %v4632 = vrot.slane %v4631, 4
      %v4634 = vshll.u32 %v4367, 16
      %v4636 = vrot.slane %v4634, 5
      %v4637 = vsel %vm846, %v4632, %v4636
      %v4638 = vshrl.u32 %v4367, 16
      %v4640 = vrot.slane %v4638, 4
      %v4641 = vor.u32 %v4640, %v4636
      %v4642 = vrot.slane %v4641, 4
      %v4644 = vshll.u32 %v4368, 16
      %v4646 = vrot.slane %v4644, 5
      %v4647 = vsel %vm846, %v4642, %v4646
      %v4649 = vshrl.u32 %v4369, 16
      %v4651 = vrot.slane %v4649, 4
      %v4652 = vshll.u32 %v4369, 16
      %v4654 = vrot.slane %v4652, 5
      %v4655 = vor.u32 %v4651, %v4654
      %v4656 = vrot.slane %v4655, 4
      %v4658 = vshll.u32 %v4370, 16
      %v4660 = vrot.slane %v4658, 5
      %v4661 = vsel %vm846, %v4656, %v4660
      %v4662 = vshrl.u32 %v4370, 16
      %v4664 = vrot.slane %v4662, 4
      %v4665 = vor.u32 %v4664, %v4660
      %v4666 = vrot.slane %v4665, 4
      %v4668 = vshll.u32 %v4371, 16
      %v4670 = vrot.slane %v4668, 5
      %v4671 = vsel %vm846, %v4666, %v4670
      %v4673 = vshrl.u32 %v4372, 16
      %v4675 = vrot.slane %v4673, 4
      %v4676 = vshll.u32 %v4372, 16
      %v4678 = vrot.slane %v4676, 5
      %v4679 = vor.u32 %v4675, %v4678
      %v4680 = vrot.slane %v4679, 4
      %v4682 = vshll.u32 %v4373, 16
      %v4684 = vrot.slane %v4682, 5
      %v4685 = vsel %vm846, %v4680, %v4684
      %v4686 = vshrl.u32 %v4373, 16
      %v4688 = vrot.slane %v4686, 4
      %v4689 = vor.u32 %v4688, %v4684
      %v4690 = vrot.slane %v4689, 4
      %v4692 = vshll.u32 %v4374, 16
      %v4694 = vrot.slane %v4692, 5
      %v4695 = vsel %vm846, %v4690, %v4694
      %v4697 = vshrl.u32 %v4375, 16
      %v4699 = vrot.slane %v4697, 4
      %v4700 = vshll.u32 %v4375, 16
      %v4702 = vrot.slane %v4700, 5
      %v4703 = vor.u32 %v4699, %v4702
      %v4704 = vrot.slane %v4703, 4
      %v4706 = vshll.u32 %v4376, 16
      %v4708 = vrot.slane %v4706, 5
      %v4709 = vsel %vm846, %v4704, %v4708
      %v4710 = vshrl.u32 %v4376, 16
      %v4712 = vrot.slane %v4710, 4
      %v4713 = vor.u32 %v4712, %v4708
      %v4714 = vrot.slane %v4713, 4
      %v4716 = vshll.u32 %v4377, 16
      %v4718 = vrot.slane %v4716, 5
      %v4719 = vsel %vm846, %v4714, %v4718
      %v4721 = vshrl.u32 %v4378, 16
      %v4723 = vrot.slane %v4721, 4
      %v4724 = vshll.u32 %v4378, 16
      %v4726 = vrot.slane %v4724, 5
      %v4727 = vor.u32 %v4723, %v4726
      %v4728 = vrot.slane %v4727, 4
      %v4730 = vshll.u32 %v4379, 16
      %v4732 = vrot.slane %v4730, 5
      %v4733 = vsel %vm846, %v4728, %v4732
      %v4734 = vshrl.u32 %v4379, 16
      %v4736 = vrot.slane %v4734, 4
      %v4737 = vor.u32 %v4736, %v4732
      %v4738 = vrot.slane %v4737, 4
      %v4740 = vshll.u32 %v4380, 16
      %v4742 = vrot.slane %v4740, 5
      %v4743 = vsel %vm846, %v4738, %v4742
      %v4745 = vshrl.u32 %v4381, 16
      %v4747 = vrot.slane %v4745, 4
      %v4748 = vshll.u32 %v4381, 16
      %v4750 = vrot.slane %v4748, 5
      %v4751 = vor.u32 %v4747, %v4750
      %v4752 = vrot.slane %v4751, 4
      %v4754 = vshll.u32 %v4382, 16
      %v4756 = vrot.slane %v4754, 5
      %v4757 = vsel %vm846, %v4752, %v4756
      %v4758 = vshrl.u32 %v4382, 16
      %v4760 = vrot.slane %v4758, 4
      %v4761 = vor.u32 %v4760, %v4756
      %v4762 = vrot.slane %v4761, 4
      %v4764 = vshll.u32 %v4383, 16
      %v4766 = vrot.slane %v4764, 5
      %v4767 = vsel %vm846, %v4762, %v4766
      %s4768 = scalar_lea.vmem %s1, 448
      %v4769 = vld [vmem:[%s4768] sm:$0xf]
      %v4770 = vld [vmem:[%s4768 + $0x4] sm:$0xf]
      %v4771 = vld [vmem:[%s4768 + $0x8] sm:$0xf]
      %v4772 = vld [vmem:[%s4768 + $0xc] sm:$0xf]
      %v4773 = vld [vmem:[%s4768 + $0x10] sm:$0xf]
      %v4774 = vld [vmem:[%s4768 + $0x14] sm:$0xf]
      %v4775 = vld [vmem:[%s4768 + $0x18] sm:$0xf]
      %v4776 = vld [vmem:[%s4768 + $0x1c] sm:$0xf]
      %v4777 = vld [vmem:[%s4768 + $0x20] sm:$0xf]
      %v4778 = vld [vmem:[%s4768 + $0x24] sm:$0xf]
      %v4779 = vld [vmem:[%s4768 + $0x28] sm:$0xf]
      %v4780 = vld [vmem:[%s4768 + $0x2c] sm:$0xf]
      %v4781 = vld [vmem:[%s4768 + $0x30] sm:$0xf]
      %v4782 = vld [vmem:[%s4768 + $0x34] sm:$0xf]
      %v4783 = vld [vmem:[%s4768 + $0x38] sm:$0xf]
      %v4784 = vld [vmem:[%s4768 + $0x3c] sm:$0xf]
      %v4785 = vunpack.c.l.b16 %v4397
      %v4786 = vunpack.c.l.b16 %v4407
      %v4787 = vunpack.c.l.b16 %v4421
      %v4788 = vunpack.c.l.b16 %v4431
      %v4789 = vunpack.c.l.b16 %v4445
      %v4790 = vunpack.c.l.b16 %v4455
      %v4791 = vunpack.c.l.b16 %v4469
      %v4792 = vunpack.c.l.b16 %v4479
      %v4793 = vunpack.c.l.b16 %v4493
      %v4794 = vunpack.c.l.b16 %v4503
      %v4795 = vunpack.c.l.b16 %v4517
      %v4796 = vunpack.c.l.b16 %v4527
      %v4797 = vunpack.c.l.b16 %v4541
      %v4798 = vunpack.c.l.b16 %v4551
      %v4799 = vunpack.c.l.b16 %v4565
      %v4800 = vunpack.c.l.b16 %v4575
      %v4801 = vunpack.c.l.b16 %v4589
      %v4802 = vunpack.c.l.b16 %v4599
      %v4803 = vunpack.c.l.b16 %v4613
      %v4804 = vunpack.c.l.b16 %v4623
      %v4805 = vunpack.c.l.b16 %v4637
      %v4806 = vunpack.c.l.b16 %v4647
      %v4807 = vunpack.c.l.b16 %v4661
      %v4808 = vunpack.c.l.b16 %v4671
      %v4809 = vunpack.c.l.b16 %v4685
      %v4810 = vunpack.c.l.b16 %v4695
      %v4811 = vunpack.c.l.b16 %v4709
      %v4812 = vunpack.c.l.b16 %v4719
      %v4813 = vunpack.c.l.b16 %v4733
      %v4814 = vunpack.c.l.b16 %v4743
      %v4815 = vunpack.c.l.b16 %v4757
      %v4816 = vunpack.c.l.b16 %v4767
      %v4817 = vpack.c.b16 %v4786, %v4785
      %v4818 = vpack.c.b16 %v4788, %v4787
      %v4819 = vpack.c.b16 %v4790, %v4789
      %v4820 = vpack.c.b16 %v4792, %v4791
      %v4821 = vpack.c.b16 %v4794, %v4793
      %v4822 = vpack.c.b16 %v4796, %v4795
      %v4823 = vpack.c.b16 %v4798, %v4797
      %v4824 = vpack.c.b16 %v4800, %v4799
      %v4825 = vpack.c.b16 %v4802, %v4801
      %v4826 = vpack.c.b16 %v4804, %v4803
      %v4827 = vpack.c.b16 %v4806, %v4805
      %v4828 = vpack.c.b16 %v4808, %v4807
      %v4829 = vpack.c.b16 %v4810, %v4809
      %v4830 = vpack.c.b16 %v4812, %v4811
      %v4831 = vpack.c.b16 %v4814, %v4813
      %v4832 = vpack.c.b16 %v4816, %v4815
      %v4865 = vunpack.c.l.b16 %v4769
      %v4866 = vunpack.c.l.b16 %v4770
      %v4867 = vunpack.c.l.b16 %v4771
      %v4868 = vunpack.c.l.b16 %v4772
      %v4869 = vunpack.c.l.b16 %v4773
      %v4870 = vunpack.c.l.b16 %v4774
      %v4871 = vunpack.c.l.b16 %v4775
      %v4872 = vunpack.c.l.b16 %v4776
      %v4873 = vunpack.c.l.b16 %v4777
      %v4874 = vunpack.c.l.b16 %v4778
      %v4875 = vunpack.c.l.b16 %v4779
      %v4876 = vunpack.c.l.b16 %v4780
      %v4877 = vunpack.c.l.b16 %v4781
      %v4878 = vunpack.c.l.b16 %v4782
      %v4879 = vunpack.c.l.b16 %v4783
      %v4880 = vunpack.c.l.b16 %v4784
      %v4881 = vpack.c.b16 %v4866, %v4865
      %v4882 = vpack.c.b16 %v4868, %v4867
      %v4883 = vpack.c.b16 %v4870, %v4869
      %v4884 = vpack.c.b16 %v4872, %v4871
      %v4885 = vpack.c.b16 %v4874, %v4873
      %v4886 = vpack.c.b16 %v4876, %v4875
      %v4887 = vpack.c.b16 %v4878, %v4877
      %v4888 = vpack.c.b16 %v4880, %v4879
      %4897 = vmatprep.subr.bf16.mxu0 0
      %4898 = vmatpush1.bf16.msra.mxu0 %v4888
      %4899 = vmatprep.subr.bf16.mxu0 0
      %4900 = vmatpush1.bf16.msra.mxu0 %v4887
      %4901 = vmatprep.subr.bf16.mxu0 0
      %4902 = vmatpush1.bf16.msra.mxu0 %v4886
      %4903 = vmatprep.subr.bf16.mxu0 0
      %4904 = vmatpush1.bf16.msra.mxu0 %v4885
      %4905 = vmatprep.subr.bf16.mxu0 0
      %4906 = vmatpush1.bf16.msra.mxu0 %v4884
      %4907 = vmatprep.subr.bf16.mxu0 0
      %4908 = vmatpush1.bf16.msra.mxu0 %v4883
      %4909 = vmatprep.subr.bf16.mxu0 0
      %4910 = vmatpush1.bf16.msra.mxu0 %v4882
      %4911 = vmatprep.subr.bf16.mxu0 0
      %4912 = vmatpush1.bf16.msra.mxu0 %v4881
      %4913 = vmatprep.subr.bf16.mxu0 0
      %4914 = vmatpush2.bf16.msra.mxu0 0
      %4915 = vmatprep.subr.bf16.mxu0 0
      %4916 = vmatpush2.bf16.msra.mxu0 0
      %4917 = vmatprep.subr.bf16.mxu0 0
      %4918 = vmatpush2.bf16.msra.mxu0 0
      %4919 = vmatprep.subr.bf16.mxu0 0
      %4920 = vmatpush2.bf16.msra.mxu0 0
      %4921 = vmatprep.subr.bf16.mxu0 0
      %4922 = vmatpush2.bf16.msra.mxu0 0
      %4923 = vmatprep.subr.bf16.mxu0 0
      %4924 = vmatpush2.bf16.msra.mxu0 0
      %4925 = vmatprep.subr.bf16.mxu0 0
      %4926 = vmatpush2.bf16.msra.mxu0 0
      %4927 = vmatprep.subr.bf16.mxu0 0
      %4928 = vmatpush2.bf16.msra.mxu0 0
      %4929 = vmatprep.mubr.bf16.mxu0 0
      %4930 = vmatmul.mubr.bf16.gmra.mxu0 %v4817
      %v4931 = vpop.f32.mrf.mxu0
      %v4932 = vadd.f32 0.0, %v4931
      %v4933 = vpop.f32.mrf.mxu0
      %v4934 = vpop.f32.mrf.mxu0
      %v4935 = vadd.f32 0.0, %v4934
      %v4936 = vpop.f32.mrf.mxu0
      %4937 = vmatprep.mubr.bf16.mxu0 0
      %4938 = vmatmul.mubr.bf16.gmra.mxu0 %v4818
      %v4939 = vpop.f32.mrf.mxu0
      %v4940 = vadd.f32 0.0, %v4939
      %v4941 = vpop.f32.mrf.mxu0
      %v4942 = vpop.f32.mrf.mxu0
      %v4943 = vadd.f32 0.0, %v4942
      %v4944 = vpop.f32.mrf.mxu0
      %4945 = vmatprep.mubr.bf16.mxu0 0
      %4946 = vmatmul.mubr.bf16.gmra.mxu0 %v4819
      %v4947 = vpop.f32.mrf.mxu0
      %v4948 = vadd.f32 0.0, %v4947
      %v4949 = vpop.f32.mrf.mxu0
      %v4950 = vpop.f32.mrf.mxu0
      %v4951 = vadd.f32 0.0, %v4950
      %v4952 = vpop.f32.mrf.mxu0
      %4953 = vmatprep.mubr.bf16.mxu0 0
      %4954 = vmatmul.mubr.bf16.gmra.mxu0 %v4820
      %v4955 = vpop.f32.mrf.mxu0
      %v4956 = vadd.f32 0.0, %v4955
      %v4957 = vpop.f32.mrf.mxu0
      %v4958 = vpop.f32.mrf.mxu0
      %v4959 = vadd.f32 0.0, %v4958
      %v4960 = vpop.f32.mrf.mxu0
      %4961 = vmatprep.mubr.bf16.mxu0 0
      %4962 = vmatmul.mubr.bf16.gmra.mxu0 %v4821
      %v4963 = vpop.f32.mrf.mxu0
      %v4964 = vadd.f32 0.0, %v4963
      %v4965 = vpop.f32.mrf.mxu0
      %v4966 = vpop.f32.mrf.mxu0
      %v4967 = vadd.f32 0.0, %v4966
      %v4968 = vpop.f32.mrf.mxu0
      %4969 = vmatprep.mubr.bf16.mxu0 0
      %4970 = vmatmul.mubr.bf16.gmra.mxu0 %v4822
      %v4971 = vpop.f32.mrf.mxu0
      %v4972 = vadd.f32 0.0, %v4971
      %v4973 = vpop.f32.mrf.mxu0
      %v4974 = vpop.f32.mrf.mxu0
      %v4975 = vadd.f32 0.0, %v4974
      %v4976 = vpop.f32.mrf.mxu0
      %4977 = vmatprep.mubr.bf16.mxu0 0
      %4978 = vmatmul.mubr.bf16.gmra.mxu0 %v4823
      %v4979 = vpop.f32.mrf.mxu0
      %v4980 = vadd.f32 0.0, %v4979
      %v4981 = vpop.f32.mrf.mxu0
      %v4982 = vpop.f32.mrf.mxu0
      %v4983 = vadd.f32 0.0, %v4982
      %v4984 = vpop.f32.mrf.mxu0
      %4985 = vmatprep.mubr.bf16.mxu0 0
      %4986 = vmatmul.mubr.bf16.gmra.mxu0 %v4824
      %v4987 = vpop.f32.mrf.mxu0
      %v4988 = vadd.f32 0.0, %v4987
      %v4989 = vpop.f32.mrf.mxu0
      %v4990 = vpop.f32.mrf.mxu0
      %v4991 = vadd.f32 0.0, %v4990
      %v4992 = vpop.f32.mrf.mxu0
      %4993 = vmatprep.mubr.bf16.mxu0 0
      %4994 = vmatmul.mubr.bf16.gmra.mxu0 %v4825
      %v4995 = vpop.f32.mrf.mxu0
      %v4996 = vadd.f32 0.0, %v4995
      %v4997 = vpop.f32.mrf.mxu0
      %v4998 = vpop.f32.mrf.mxu0
      %v4999 = vadd.f32 0.0, %v4998
      %v5000 = vpop.f32.mrf.mxu0
      %5001 = vmatprep.mubr.bf16.mxu0 0
      %5002 = vmatmul.mubr.bf16.gmra.mxu0 %v4826
      %v5003 = vpop.f32.mrf.mxu0
      %v5004 = vadd.f32 0.0, %v5003
      %v5005 = vpop.f32.mrf.mxu0
      %v5006 = vpop.f32.mrf.mxu0
      %v5007 = vadd.f32 0.0, %v5006
      %v5008 = vpop.f32.mrf.mxu0
      %5009 = vmatprep.mubr.bf16.mxu0 0
      %5010 = vmatmul.mubr.bf16.gmra.mxu0 %v4827
      %v5011 = vpop.f32.mrf.mxu0
      %v5012 = vadd.f32 0.0, %v5011
      %v5013 = vpop.f32.mrf.mxu0
      %v5014 = vpop.f32.mrf.mxu0
      %v5015 = vadd.f32 0.0, %v5014
      %v5016 = vpop.f32.mrf.mxu0
      %5017 = vmatprep.mubr.bf16.mxu0 0
      %5018 = vmatmul.mubr.bf16.gmra.mxu0 %v4828
      %v5019 = vpop.f32.mrf.mxu0
      %v5020 = vadd.f32 0.0, %v5019
      %v5021 = vpop.f32.mrf.mxu0
      %v5022 = vpop.f32.mrf.mxu0
      %v5023 = vadd.f32 0.0, %v5022
      %v5024 = vpop.f32.mrf.mxu0
      %5025 = vmatprep.mubr.bf16.mxu0 0
      %5026 = vmatmul.mubr.bf16.gmra.mxu0 %v4829
      %v5027 = vpop.f32.mrf.mxu0
      %v5028 = vadd.f32 0.0, %v5027
      %v5029 = vpop.f32.mrf.mxu0
      %v5030 = vpop.f32.mrf.mxu0
      %v5031 = vadd.f32 0.0, %v5030
      %v5032 = vpop.f32.mrf.mxu0
      %5033 = vmatprep.mubr.bf16.mxu0 0
      %5034 = vmatmul.mubr.bf16.gmra.mxu0 %v4830
      %v5035 = vpop.f32.mrf.mxu0
      %v5036 = vadd.f32 0.0, %v5035
      %v5037 = vpop.f32.mrf.mxu0
      %v5038 = vpop.f32.mrf.mxu0
      %v5039 = vadd.f32 0.0, %v5038
      %v5040 = vpop.f32.mrf.mxu0
      %5041 = vmatprep.mubr.bf16.mxu0 0
      %5042 = vmatmul.mubr.bf16.gmra.mxu0 %v4831
      %v5043 = vpop.f32.mrf.mxu0
      %v5044 = vadd.f32 0.0, %v5043
      %v5045 = vpop.f32.mrf.mxu0
      %v5046 = vpop.f32.mrf.mxu0
      %v5047 = vadd.f32 0.0, %v5046
      %v5048 = vpop.f32.mrf.mxu0
      %5049 = vmatprep.mubr.bf16.mxu0 0
      %5050 = vmatmul.mubr.bf16.gmra.mxu0 %v4832
      %v5051 = vpop.f32.mrf.mxu0
      %v5052 = vadd.f32 0.0, %v5051
      %v5053 = vpop.f32.mrf.mxu0
      %v5054 = vpop.f32.mrf.mxu0
      %v5055 = vadd.f32 0.0, %v5054
      %v5056 = vpop.f32.mrf.mxu0
      %5057 = vdwg.mxu0
      %v5058 = vadd.f32 %v4304, %v4932
      %v5059 = vadd.f32 %v4305, %v4935
      %v5060 = vadd.f32 %v4306, %v4940
      %v5061 = vadd.f32 %v4307, %v4943
      %v5062 = vadd.f32 %v4308, %v4948
      %v5063 = vadd.f32 %v4309, %v4951
      %v5064 = vadd.f32 %v4310, %v4956
      %v5065 = vadd.f32 %v4311, %v4959
      %v5066 = vadd.f32 %v4312, %v4964
      %v5067 = vadd.f32 %v4313, %v4967
      %v5068 = vadd.f32 %v4314, %v4972
      %v5069 = vadd.f32 %v4315, %v4975
      %v5070 = vadd.f32 %v4316, %v4980
      %v5071 = vadd.f32 %v4317, %v4983
      %v5072 = vadd.f32 %v4318, %v4988
      %v5073 = vadd.f32 %v4319, %v4991
      %v5074 = vadd.f32 %v4320, %v4996
      %v5075 = vadd.f32 %v4321, %v4999
      %v5076 = vadd.f32 %v4322, %v5004
      %v5077 = vadd.f32 %v4323, %v5007
      %v5078 = vadd.f32 %v4324, %v5012
      %v5079 = vadd.f32 %v4325, %v5015
      %v5080 = vadd.f32 %v4326, %v5020
      %v5081 = vadd.f32 %v4327, %v5023
      %v5082 = vadd.f32 %v4328, %v5028
      %v5083 = vadd.f32 %v4329, %v5031
      %v5084 = vadd.f32 %v4330, %v5036
      %v5085 = vadd.f32 %v4331, %v5039
      %v5086 = vadd.f32 %v4332, %v5044
      %v5087 = vadd.f32 %v4333, %v5047
      %v5088 = vadd.f32 %v4334, %v5052
      %v5089 = vadd.f32 %v4335, %v5055
      %v5090 = vld [vmem:[%s3949] sm:$0xe]
      %v5091 = vld [vmem:[%s3949 + $0xc] sm:$0xe]
      %v5092 = vld [vmem:[%s3949 + $0x18] sm:$0xe]
      %v5093 = vld [vmem:[%s3949 + $0x24] sm:$0xe]
      %v5094 = vld [vmem:[%s3949 + $0x30] sm:$0xe]
      %v5095 = vld [vmem:[%s3949 + $0x3c] sm:$0xe]
      %v5096 = vld [vmem:[%s3949 + $0x48] sm:$0xe]
      %v5097 = vld [vmem:[%s3949 + $0x54] sm:$0xe]
      %v5098 = vld [vmem:[%s3949 + $0x60] sm:$0xe]
      %v5099 = vld [vmem:[%s3949 + $0x6c] sm:$0xe]
      %v5100 = vld [vmem:[%s3949 + $0x78] sm:$0xe]
      %v5101 = vld [vmem:[%s3949 + $0x84] sm:$0xe]
      %v5102 = vld [vmem:[%s3949 + $0x90] sm:$0xe]
      %v5103 = vld [vmem:[%s3949 + $0x9c] sm:$0xe]
      %v5104 = vld [vmem:[%s3949 + $0xa8] sm:$0xe]
      %v5105 = vld [vmem:[%s3949 + $0xb4] sm:$0xe]
      %v5154 = vrot.slane %v5090, 5
      %v5155 = vrot.slane %v5154, 4
      %v5156 = vrot.slane %v4337, 5
      %v5157 = vsel %vm1876, %v5155, %v5156
      %v5158 = vrot.slane %v5156, 4
      %v5159 = vrot.slane %v4338, 5
      %v5160 = vsel %vm1876, %v5158, %v5159
      %v5161 = vrot.slane %v5091, 5
      %v5162 = vrot.slane %v5161, 4
      %v5163 = vrot.slane %v4340, 5
      %v5164 = vsel %vm1876, %v5162, %v5163
      %v5165 = vrot.slane %v5163, 4
      %v5166 = vrot.slane %v4341, 5
      %v5167 = vsel %vm1876, %v5165, %v5166
      %v5168 = vrot.slane %v5092, 5
      %v5169 = vrot.slane %v5168, 4
      %v5170 = vrot.slane %v4343, 5
      %v5171 = vsel %vm1876, %v5169, %v5170
      %v5172 = vrot.slane %v5170, 4
      %v5173 = vrot.slane %v4344, 5
      %v5174 = vsel %vm1876, %v5172, %v5173
      %v5175 = vrot.slane %v5093, 5
      %v5176 = vrot.slane %v5175, 4
      %v5177 = vrot.slane %v4346, 5
      %v5178 = vsel %vm1876, %v5176, %v5177
      %v5179 = vrot.slane %v5177, 4
      %v5180 = vrot.slane %v4347, 5
      %v5181 = vsel %vm1876, %v5179, %v5180
      %v5182 = vrot.slane %v5094, 5
      %v5183 = vrot.slane %v5182, 4
      %v5184 = vrot.slane %v4349, 5
      %v5185 = vsel %vm1876, %v5183, %v5184
      %v5186 = vrot.slane %v5184, 4
      %v5187 = vrot.slane %v4350, 5
      %v5188 = vsel %vm1876, %v5186, %v5187
      %v5189 = vrot.slane %v5095, 5
      %v5190 = vrot.slane %v5189, 4
      %v5191 = vrot.slane %v4352, 5
      %v5192 = vsel %vm1876, %v5190, %v5191
      %v5193 = vrot.slane %v5191, 4
      %v5194 = vrot.slane %v4353, 5
      %v5195 = vsel %vm1876, %v5193, %v5194
      %v5196 = vrot.slane %v5096, 5
      %v5197 = vrot.slane %v5196, 4
      %v5198 = vrot.slane %v4355, 5
      %v5199 = vsel %vm1876, %v5197, %v5198
      %v5200 = vrot.slane %v5198, 4
      %v5201 = vrot.slane %v4356, 5
      %v5202 = vsel %vm1876, %v5200, %v5201
      %v5203 = vrot.slane %v5097, 5
      %v5204 = vrot.slane %v5203, 4
      %v5205 = vrot.slane %v4358, 5
      %v5206 = vsel %vm1876, %v5204, %v5205
      %v5207 = vrot.slane %v5205, 4
      %v5208 = vrot.slane %v4359, 5
      %v5209 = vsel %vm1876, %v5207, %v5208
      %v5210 = vrot.slane %v5098, 5
      %v5211 = vrot.slane %v5210, 4
      %v5212 = vrot.slane %v4361, 5
      %v5213 = vsel %vm1876, %v5211, %v5212
      %v5214 = vrot.slane %v5212, 4
      %v5215 = vrot.slane %v4362, 5
      %v5216 = vsel %vm1876, %v5214, %v5215
      %v5217 = vrot.slane %v5099, 5
      %v5218 = vrot.slane %v5217, 4
      %v5219 = vrot.slane %v4364, 5
      %v5220 = vsel %vm1876, %v5218, %v5219
      %v5221 = vrot.slane %v5219, 4
      %v5222 = vrot.slane %v4365, 5
      %v5223 = vsel %vm1876, %v5221, %v5222
      %v5224 = vrot.slane %v5100, 5
      %v5225 = vrot.slane %v5224, 4
      %v5226 = vrot.slane %v4367, 5
      %v5227 = vsel %vm1876, %v5225, %v5226
      %v5228 = vrot.slane %v5226, 4
      %v5229 = vrot.slane %v4368, 5
      %v5230 = vsel %vm1876, %v5228, %v5229
      %v5231 = vrot.slane %v5101, 5
      %v5232 = vrot.slane %v5231, 4
      %v5233 = vrot.slane %v4370, 5
      %v5234 = vsel %vm1876, %v5232, %v5233
      %v5235 = vrot.slane %v5233, 4
      %v5236 = vrot.slane %v4371, 5
      %v5237 = vsel %vm1876, %v5235, %v5236
      %v5238 = vrot.slane %v5102, 5
      %v5239 = vrot.slane %v5238, 4
      %v5240 = vrot.slane %v4373, 5
      %v5241 = vsel %vm1876, %v5239, %v5240
      %v5242 = vrot.slane %v5240, 4
      %v5243 = vrot.slane %v4374, 5
      %v5244 = vsel %vm1876, %v5242, %v5243
      %v5245 = vrot.slane %v5103, 5
      %v5246 = vrot.slane %v5245, 4
      %v5247 = vrot.slane %v4376, 5
      %v5248 = vsel %vm1876, %v5246, %v5247
      %v5249 = vrot.slane %v5247, 4
      %v5250 = vrot.slane %v4377, 5
      %v5251 = vsel %vm1876, %v5249, %v5250
      %v5252 = vrot.slane %v5104, 5
      %v5253 = vrot.slane %v5252, 4
      %v5254 = vrot.slane %v4379, 5
      %v5255 = vsel %vm1876, %v5253, %v5254
      %v5256 = vrot.slane %v5254, 4
      %v5257 = vrot.slane %v4380, 5
      %v5258 = vsel %vm1876, %v5256, %v5257
      %v5259 = vrot.slane %v5105, 5
      %v5260 = vrot.slane %v5259, 4
      %v5261 = vrot.slane %v4382, 5
      %v5262 = vsel %vm1876, %v5260, %v5261
      %v5263 = vrot.slane %v5261, 4
      %v5264 = vrot.slane %v4383, 5
      %v5265 = vsel %vm1876, %v5263, %v5264
      %s5266 = scalar_lea.vmem %s1, 512
      %v5267 = vld [vmem:[%s5266] sm:$0xf]
      %v5268 = vld [vmem:[%s5266 + $0x4] sm:$0xf]
      %v5269 = vld [vmem:[%s5266 + $0x8] sm:$0xf]
      %v5270 = vld [vmem:[%s5266 + $0xc] sm:$0xf]
      %v5271 = vld [vmem:[%s5266 + $0x10] sm:$0xf]
      %v5272 = vld [vmem:[%s5266 + $0x14] sm:$0xf]
      %v5273 = vld [vmem:[%s5266 + $0x18] sm:$0xf]
      %v5274 = vld [vmem:[%s5266 + $0x1c] sm:$0xf]
      %v5275 = vld [vmem:[%s5266 + $0x20] sm:$0xf]
      %v5276 = vld [vmem:[%s5266 + $0x24] sm:$0xf]
      %v5277 = vld [vmem:[%s5266 + $0x28] sm:$0xf]
      %v5278 = vld [vmem:[%s5266 + $0x2c] sm:$0xf]
      %v5279 = vld [vmem:[%s5266 + $0x30] sm:$0xf]
      %v5280 = vld [vmem:[%s5266 + $0x34] sm:$0xf]
      %v5281 = vld [vmem:[%s5266 + $0x38] sm:$0xf]
      %v5282 = vld [vmem:[%s5266 + $0x3c] sm:$0xf]
      %v5283 = vunpack.c.l.b16 %v5157
      %v5284 = vunpack.c.l.b16 %v5160
      %v5285 = vunpack.c.l.b16 %v5164
      %v5286 = vunpack.c.l.b16 %v5167
      %v5287 = vunpack.c.l.b16 %v5171
      %v5288 = vunpack.c.l.b16 %v5174
      %v5289 = vunpack.c.l.b16 %v5178
      %v5290 = vunpack.c.l.b16 %v5181
      %v5291 = vunpack.c.l.b16 %v5185
      %v5292 = vunpack.c.l.b16 %v5188
      %v5293 = vunpack.c.l.b16 %v5192
      %v5294 = vunpack.c.l.b16 %v5195
      %v5295 = vunpack.c.l.b16 %v5199
      %v5296 = vunpack.c.l.b16 %v5202
      %v5297 = vunpack.c.l.b16 %v5206
      %v5298 = vunpack.c.l.b16 %v5209
      %v5299 = vunpack.c.l.b16 %v5213
      %v5300 = vunpack.c.l.b16 %v5216
      %v5301 = vunpack.c.l.b16 %v5220
      %v5302 = vunpack.c.l.b16 %v5223
      %v5303 = vunpack.c.l.b16 %v5227
      %v5304 = vunpack.c.l.b16 %v5230
      %v5305 = vunpack.c.l.b16 %v5234
      %v5306 = vunpack.c.l.b16 %v5237
      %v5307 = vunpack.c.l.b16 %v5241
      %v5308 = vunpack.c.l.b16 %v5244
      %v5309 = vunpack.c.l.b16 %v5248
      %v5310 = vunpack.c.l.b16 %v5251
      %v5311 = vunpack.c.l.b16 %v5255
      %v5312 = vunpack.c.l.b16 %v5258
      %v5313 = vunpack.c.l.b16 %v5262
      %v5314 = vunpack.c.l.b16 %v5265
      %v5315 = vpack.c.b16 %v5284, %v5283
      %v5316 = vpack.c.b16 %v5286, %v5285
      %v5317 = vpack.c.b16 %v5288, %v5287
      %v5318 = vpack.c.b16 %v5290, %v5289
      %v5319 = vpack.c.b16 %v5292, %v5291
      %v5320 = vpack.c.b16 %v5294, %v5293
      %v5321 = vpack.c.b16 %v5296, %v5295
      %v5322 = vpack.c.b16 %v5298, %v5297
      %v5323 = vpack.c.b16 %v5300, %v5299
      %v5324 = vpack.c.b16 %v5302, %v5301
      %v5325 = vpack.c.b16 %v5304, %v5303
      %v5326 = vpack.c.b16 %v5306, %v5305
      %v5327 = vpack.c.b16 %v5308, %v5307
      %v5328 = vpack.c.b16 %v5310, %v5309
      %v5329 = vpack.c.b16 %v5312, %v5311
      %v5330 = vpack.c.b16 %v5314, %v5313
      %v5363 = vunpack.c.l.b16 %v5267
      %v5364 = vunpack.c.l.b16 %v5268
      %v5365 = vunpack.c.l.b16 %v5269
      %v5366 = vunpack.c.l.b16 %v5270
      %v5367 = vunpack.c.l.b16 %v5271
      %v5368 = vunpack.c.l.b16 %v5272
      %v5369 = vunpack.c.l.b16 %v5273
      %v5370 = vunpack.c.l.b16 %v5274
      %v5371 = vunpack.c.l.b16 %v5275
      %v5372 = vunpack.c.l.b16 %v5276
      %v5373 = vunpack.c.l.b16 %v5277
      %v5374 = vunpack.c.l.b16 %v5278
      %v5375 = vunpack.c.l.b16 %v5279
      %v5376 = vunpack.c.l.b16 %v5280
      %v5377 = vunpack.c.l.b16 %v5281
      %v5378 = vunpack.c.l.b16 %v5282
      %v5379 = vpack.c.b16 %v5364, %v5363
      %v5380 = vpack.c.b16 %v5366, %v5365
      %v5381 = vpack.c.b16 %v5368, %v5367
      %v5382 = vpack.c.b16 %v5370, %v5369
      %v5383 = vpack.c.b16 %v5372, %v5371
      %v5384 = vpack.c.b16 %v5374, %v5373
      %v5385 = vpack.c.b16 %v5376, %v5375
      %v5386 = vpack.c.b16 %v5378, %v5377
      %5395 = vmatprep.subr.bf16.mxu0 0
      %5396 = vmatpush1.bf16.msra.mxu0 %v5386
      %5397 = vmatprep.subr.bf16.mxu0 0
      %5398 = vmatpush1.bf16.msra.mxu0 %v5385
      %5399 = vmatprep.subr.bf16.mxu0 0
      %5400 = vmatpush1.bf16.msra.mxu0 %v5384
      %5401 = vmatprep.subr.bf16.mxu0 0
      %5402 = vmatpush1.bf16.msra.mxu0 %v5383
      %5403 = vmatprep.subr.bf16.mxu0 0
      %5404 = vmatpush1.bf16.msra.mxu0 %v5382
      %5405 = vmatprep.subr.bf16.mxu0 0
      %5406 = vmatpush1.bf16.msra.mxu0 %v5381
      %5407 = vmatprep.subr.bf16.mxu0 0
      %5408 = vmatpush1.bf16.msra.mxu0 %v5380
      %5409 = vmatprep.subr.bf16.mxu0 0
      %5410 = vmatpush1.bf16.msra.mxu0 %v5379
      %5411 = vmatprep.subr.bf16.mxu0 0
      %5412 = vmatpush2.bf16.msra.mxu0 0
      %5413 = vmatprep.subr.bf16.mxu0 0
      %5414 = vmatpush2.bf16.msra.mxu0 0
      %5415 = vmatprep.subr.bf16.mxu0 0
      %5416 = vmatpush2.bf16.msra.mxu0 0
      %5417 = vmatprep.subr.bf16.mxu0 0
      %5418 = vmatpush2.bf16.msra.mxu0 0
      %5419 = vmatprep.subr.bf16.mxu0 0
      %5420 = vmatpush2.bf16.msra.mxu0 0
      %5421 = vmatprep.subr.bf16.mxu0 0
      %5422 = vmatpush2.bf16.msra.mxu0 0
      %5423 = vmatprep.subr.bf16.mxu0 0
      %5424 = vmatpush2.bf16.msra.mxu0 0
      %5425 = vmatprep.subr.bf16.mxu0 0
      %5426 = vmatpush2.bf16.msra.mxu0 0
      %5427 = vmatprep.mubr.bf16.mxu0 0
      %5428 = vmatmul.mubr.bf16.gmra.mxu0 %v5315
      %v5429 = vpop.f32.mrf.mxu0
      %v5430 = vadd.f32 0.0, %v5429
      %v5431 = vpop.f32.mrf.mxu0
      %v5432 = vpop.f32.mrf.mxu0
      %v5433 = vadd.f32 0.0, %v5432
      %v5434 = vpop.f32.mrf.mxu0
      %5435 = vmatprep.mubr.bf16.mxu0 0
      %5436 = vmatmul.mubr.bf16.gmra.mxu0 %v5316
      %v5437 = vpop.f32.mrf.mxu0
      %v5438 = vadd.f32 0.0, %v5437
      %v5439 = vpop.f32.mrf.mxu0
      %v5440 = vpop.f32.mrf.mxu0
      %v5441 = vadd.f32 0.0, %v5440
      %v5442 = vpop.f32.mrf.mxu0
      %5443 = vmatprep.mubr.bf16.mxu0 0
      %5444 = vmatmul.mubr.bf16.gmra.mxu0 %v5317
      %v5445 = vpop.f32.mrf.mxu0
      %v5446 = vadd.f32 0.0, %v5445
      %v5447 = vpop.f32.mrf.mxu0
      %v5448 = vpop.f32.mrf.mxu0
      %v5449 = vadd.f32 0.0, %v5448
      %v5450 = vpop.f32.mrf.mxu0
      %5451 = vmatprep.mubr.bf16.mxu0 0
      %5452 = vmatmul.mubr.bf16.gmra.mxu0 %v5318
      %v5453 = vpop.f32.mrf.mxu0
      %v5454 = vadd.f32 0.0, %v5453
      %v5455 = vpop.f32.mrf.mxu0
      %v5456 = vpop.f32.mrf.mxu0
      %v5457 = vadd.f32 0.0, %v5456
      %v5458 = vpop.f32.mrf.mxu0
      %5459 = vmatprep.mubr.bf16.mxu0 0
      %5460 = vmatmul.mubr.bf16.gmra.mxu0 %v5319
      %v5461 = vpop.f32.mrf.mxu0
      %v5462 = vadd.f32 0.0, %v5461
      %v5463 = vpop.f32.mrf.mxu0
      %v5464 = vpop.f32.mrf.mxu0
      %v5465 = vadd.f32 0.0, %v5464
      %v5466 = vpop.f32.mrf.mxu0
      %5467 = vmatprep.mubr.bf16.mxu0 0
      %5468 = vmatmul.mubr.bf16.gmra.mxu0 %v5320
      %v5469 = vpop.f32.mrf.mxu0
      %v5470 = vadd.f32 0.0, %v5469
      %v5471 = vpop.f32.mrf.mxu0
      %v5472 = vpop.f32.mrf.mxu0
      %v5473 = vadd.f32 0.0, %v5472
      %v5474 = vpop.f32.mrf.mxu0
      %5475 = vmatprep.mubr.bf16.mxu0 0
      %5476 = vmatmul.mubr.bf16.gmra.mxu0 %v5321
      %v5477 = vpop.f32.mrf.mxu0
      %v5478 = vadd.f32 0.0, %v5477
      %v5479 = vpop.f32.mrf.mxu0
      %v5480 = vpop.f32.mrf.mxu0
      %v5481 = vadd.f32 0.0, %v5480
      %v5482 = vpop.f32.mrf.mxu0
      %5483 = vmatprep.mubr.bf16.mxu0 0
      %5484 = vmatmul.mubr.bf16.gmra.mxu0 %v5322
      %v5485 = vpop.f32.mrf.mxu0
      %v5486 = vadd.f32 0.0, %v5485
      %v5487 = vpop.f32.mrf.mxu0
      %v5488 = vpop.f32.mrf.mxu0
      %v5489 = vadd.f32 0.0, %v5488
      %v5490 = vpop.f32.mrf.mxu0
      %5491 = vmatprep.mubr.bf16.mxu0 0
      %5492 = vmatmul.mubr.bf16.gmra.mxu0 %v5323
      %v5493 = vpop.f32.mrf.mxu0
      %v5494 = vadd.f32 0.0, %v5493
      %v5495 = vpop.f32.mrf.mxu0
      %v5496 = vpop.f32.mrf.mxu0
      %v5497 = vadd.f32 0.0, %v5496
      %v5498 = vpop.f32.mrf.mxu0
      %5499 = vmatprep.mubr.bf16.mxu0 0
      %5500 = vmatmul.mubr.bf16.gmra.mxu0 %v5324
      %v5501 = vpop.f32.mrf.mxu0
      %v5502 = vadd.f32 0.0, %v5501
      %v5503 = vpop.f32.mrf.mxu0
      %v5504 = vpop.f32.mrf.mxu0
      %v5505 = vadd.f32 0.0, %v5504
      %v5506 = vpop.f32.mrf.mxu0
      %5507 = vmatprep.mubr.bf16.mxu0 0
      %5508 = vmatmul.mubr.bf16.gmra.mxu0 %v5325
      %v5509 = vpop.f32.mrf.mxu0
      %v5510 = vadd.f32 0.0, %v5509
      %v5511 = vpop.f32.mrf.mxu0
      %v5512 = vpop.f32.mrf.mxu0
      %v5513 = vadd.f32 0.0, %v5512
      %v5514 = vpop.f32.mrf.mxu0
      %5515 = vmatprep.mubr.bf16.mxu0 0
      %5516 = vmatmul.mubr.bf16.gmra.mxu0 %v5326
      %v5517 = vpop.f32.mrf.mxu0
      %v5518 = vadd.f32 0.0, %v5517
      %v5519 = vpop.f32.mrf.mxu0
      %v5520 = vpop.f32.mrf.mxu0
      %v5521 = vadd.f32 0.0, %v5520
      %v5522 = vpop.f32.mrf.mxu0
      %5523 = vmatprep.mubr.bf16.mxu0 0
      %5524 = vmatmul.mubr.bf16.gmra.mxu0 %v5327
      %v5525 = vpop.f32.mrf.mxu0
      %v5526 = vadd.f32 0.0, %v5525
      %v5527 = vpop.f32.mrf.mxu0
      %v5528 = vpop.f32.mrf.mxu0
      %v5529 = vadd.f32 0.0, %v5528
      %v5530 = vpop.f32.mrf.mxu0
      %5531 = vmatprep.mubr.bf16.mxu0 0
      %5532 = vmatmul.mubr.bf16.gmra.mxu0 %v5328
      %v5533 = vpop.f32.mrf.mxu0
      %v5534 = vadd.f32 0.0, %v5533
      %v5535 = vpop.f32.mrf.mxu0
      %v5536 = vpop.f32.mrf.mxu0
      %v5537 = vadd.f32 0.0, %v5536
      %v5538 = vpop.f32.mrf.mxu0
      %5539 = vmatprep.mubr.bf16.mxu0 0
      %5540 = vmatmul.mubr.bf16.gmra.mxu0 %v5329
      %v5541 = vpop.f32.mrf.mxu0
      %v5542 = vadd.f32 0.0, %v5541
      %v5543 = vpop.f32.mrf.mxu0
      %v5544 = vpop.f32.mrf.mxu0
      %v5545 = vadd.f32 0.0, %v5544
      %v5546 = vpop.f32.mrf.mxu0
      %5547 = vmatprep.mubr.bf16.mxu0 0
      %5548 = vmatmul.mubr.bf16.gmra.mxu0 %v5330
      %v5549 = vpop.f32.mrf.mxu0
      %v5550 = vadd.f32 0.0, %v5549
      %v5551 = vpop.f32.mrf.mxu0
      %v5552 = vpop.f32.mrf.mxu0
      %v5553 = vadd.f32 0.0, %v5552
      %v5554 = vpop.f32.mrf.mxu0
      %5555 = vdwg.mxu0
      %v5556 = vadd.f32 %v5058, %v5430
      %v5557 = vadd.f32 %v5059, %v5433
      %v5558 = vadd.f32 %v5060, %v5438
      %v5559 = vadd.f32 %v5061, %v5441
      %v5560 = vadd.f32 %v5062, %v5446
      %v5561 = vadd.f32 %v5063, %v5449
      %v5562 = vadd.f32 %v5064, %v5454
      %v5563 = vadd.f32 %v5065, %v5457
      %v5564 = vadd.f32 %v5066, %v5462
      %v5565 = vadd.f32 %v5067, %v5465
      %v5566 = vadd.f32 %v5068, %v5470
      %v5567 = vadd.f32 %v5069, %v5473
      %v5568 = vadd.f32 %v5070, %v5478
      %v5569 = vadd.f32 %v5071, %v5481
      %v5570 = vadd.f32 %v5072, %v5486
      %v5571 = vadd.f32 %v5073, %v5489
      %v5572 = vadd.f32 %v5074, %v5494
      %v5573 = vadd.f32 %v5075, %v5497
      %v5574 = vadd.f32 %v5076, %v5502
      %v5575 = vadd.f32 %v5077, %v5505
      %v5576 = vadd.f32 %v5078, %v5510
      %v5577 = vadd.f32 %v5079, %v5513
      %v5578 = vadd.f32 %v5080, %v5518
      %v5579 = vadd.f32 %v5081, %v5521
      %v5580 = vadd.f32 %v5082, %v5526
      %v5581 = vadd.f32 %v5083, %v5529
      %v5582 = vadd.f32 %v5084, %v5534
      %v5583 = vadd.f32 %v5085, %v5537
      %v5584 = vadd.f32 %v5086, %v5542
      %v5585 = vadd.f32 %v5087, %v5545
      %v5586 = vadd.f32 %v5088, %v5550
      %v5587 = vadd.f32 %v5089, %v5553
      %v5588 = vld [vmem:[%s3] sm:$0x1]
      %v5589 = vlaneseq
      %v5590 = vshrl.u32 %v5589, 7
      %v5591 = vsub.s32 0, %v5590
      %v5592 = vrot.slane %v5588, %v5591
      %v5593 = vadd.f32 %v5556, %v5592
      %v5594 = vadd.f32 %v5557, %v5592
      %v5595 = vadd.f32 %v5558, %v5592
      %v5596 = vadd.f32 %v5559, %v5592
      %v5597 = vadd.f32 %v5560, %v5592
      %v5598 = vadd.f32 %v5561, %v5592
      %v5599 = vadd.f32 %v5562, %v5592
      %v5600 = vadd.f32 %v5563, %v5592
      %v5601 = vadd.f32 %v5564, %v5592
      %v5602 = vadd.f32 %v5565, %v5592
      %v5603 = vadd.f32 %v5566, %v5592
      %v5604 = vadd.f32 %v5567, %v5592
      %v5605 = vadd.f32 %v5568, %v5592
      %v5606 = vadd.f32 %v5569, %v5592
      %v5607 = vadd.f32 %v5570, %v5592
      %v5608 = vadd.f32 %v5571, %v5592
      %v5609 = vadd.f32 %v5572, %v5592
      %v5610 = vadd.f32 %v5573, %v5592
      %v5611 = vadd.f32 %v5574, %v5592
      %v5612 = vadd.f32 %v5575, %v5592
      %v5613 = vadd.f32 %v5576, %v5592
      %v5614 = vadd.f32 %v5577, %v5592
      %v5615 = vadd.f32 %v5578, %v5592
      %v5616 = vadd.f32 %v5579, %v5592
      %v5617 = vadd.f32 %v5580, %v5592
      %v5618 = vadd.f32 %v5581, %v5592
      %v5619 = vadd.f32 %v5582, %v5592
      %v5620 = vadd.f32 %v5583, %v5592
      %v5621 = vadd.f32 %v5584, %v5592
      %v5622 = vadd.f32 %v5585, %v5592
      %v5623 = vadd.f32 %v5586, %v5592
      %v5624 = vadd.f32 %v5587, %v5592
      %v5625 = vmax.f32 %v5593, 0.0
      %v5626 = vmax.f32 %v5594, 0.0
      %v5627 = vmax.f32 %v5595, 0.0
      %v5628 = vmax.f32 %v5596, 0.0
      %v5629 = vmax.f32 %v5597, 0.0
      %v5630 = vmax.f32 %v5598, 0.0
      %v5631 = vmax.f32 %v5599, 0.0
      %v5632 = vmax.f32 %v5600, 0.0
      %v5633 = vmax.f32 %v5601, 0.0
      %v5634 = vmax.f32 %v5602, 0.0
      %v5635 = vmax.f32 %v5603, 0.0
      %v5636 = vmax.f32 %v5604, 0.0
      %v5637 = vmax.f32 %v5605, 0.0
      %v5638 = vmax.f32 %v5606, 0.0
      %v5639 = vmax.f32 %v5607, 0.0
      %v5640 = vmax.f32 %v5608, 0.0
      %v5641 = vmax.f32 %v5609, 0.0
      %v5642 = vmax.f32 %v5610, 0.0
      %v5643 = vmax.f32 %v5611, 0.0
      %v5644 = vmax.f32 %v5612, 0.0
      %v5645 = vmax.f32 %v5613, 0.0
      %v5646 = vmax.f32 %v5614, 0.0
      %v5647 = vmax.f32 %v5615, 0.0
      %v5648 = vmax.f32 %v5616, 0.0
      %v5649 = vmax.f32 %v5617, 0.0
      %v5650 = vmax.f32 %v5618, 0.0
      %v5651 = vmax.f32 %v5619, 0.0
      %v5652 = vmax.f32 %v5620, 0.0
      %v5653 = vmax.f32 %v5621, 0.0
      %v5654 = vmax.f32 %v5622, 0.0
      %v5655 = vmax.f32 %v5623, 0.0
      %v5656 = vmax.f32 %v5624, 0.0
      %v5657 = vpack.c.bf16 %v5626, %v5625
      %v5658 = vpack.c.bf16 %v5628, %v5627
      %v5659 = vpack.c.bf16 %v5630, %v5629
      %v5660 = vpack.c.bf16 %v5632, %v5631
      %v5661 = vpack.c.bf16 %v5634, %v5633
      %v5662 = vpack.c.bf16 %v5636, %v5635
      %v5663 = vpack.c.bf16 %v5638, %v5637
      %v5664 = vpack.c.bf16 %v5640, %v5639
      %v5665 = vpack.c.bf16 %v5642, %v5641
      %v5666 = vpack.c.bf16 %v5644, %v5643
      %v5667 = vpack.c.bf16 %v5646, %v5645
      %v5668 = vpack.c.bf16 %v5648, %v5647
      %v5669 = vpack.c.bf16 %v5650, %v5649
      %v5670 = vpack.c.bf16 %v5652, %v5651
      %v5671 = vpack.c.bf16 %v5654, %v5653
      %v5672 = vpack.c.bf16 %v5656, %v5655
      %v5689 = vunpack.c.l.b16 %v5657
      %v5690 = vunpack.c.h.b16 %v5657
      %v5691 = vunpack.c.l.b16 %v5658
      %v5692 = vunpack.c.h.b16 %v5658
      %v5693 = vunpack.c.l.b16 %v5659
      %v5694 = vunpack.c.h.b16 %v5659
      %v5695 = vunpack.c.l.b16 %v5660
      %v5696 = vunpack.c.h.b16 %v5660
      %v5697 = vunpack.c.l.b16 %v5661
      %v5698 = vunpack.c.h.b16 %v5661
      %v5699 = vunpack.c.l.b16 %v5662
      %v5700 = vunpack.c.h.b16 %v5662
      %v5701 = vunpack.c.l.b16 %v5663
      %v5702 = vunpack.c.h.b16 %v5663
      %v5703 = vunpack.c.l.b16 %v5664
      %v5704 = vunpack.c.h.b16 %v5664
      %v5705 = vunpack.c.l.b16 %v5665
      %v5706 = vunpack.c.h.b16 %v5665
      %v5707 = vunpack.c.l.b16 %v5666
      %v5708 = vunpack.c.h.b16 %v5666
      %v5709 = vunpack.c.l.b16 %v5667
      %v5710 = vunpack.c.h.b16 %v5667
      %v5711 = vunpack.c.l.b16 %v5668
      %v5712 = vunpack.c.h.b16 %v5668
      %v5713 = vunpack.c.l.b16 %v5669
      %v5714 = vunpack.c.h.b16 %v5669
      %v5715 = vunpack.c.l.b16 %v5670
      %v5716 = vunpack.c.h.b16 %v5670
      %v5717 = vunpack.c.l.b16 %v5671
      %v5718 = vunpack.c.h.b16 %v5671
      %v5719 = vunpack.c.l.b16 %v5672
      %v5720 = vunpack.c.h.b16 %v5672
      %v5721 = vpack.c.b16 %v5689, %v5689
      %v5722 = vpack.c.b16 %v5690, %v5690
      %v5723 = vpack.c.b16 %v5691, %v5691
      %v5724 = vpack.c.b16 %v5692, %v5692
      %v5725 = vpack.c.b16 %v5693, %v5693
      %v5726 = vpack.c.b16 %v5694, %v5694
      %v5727 = vpack.c.b16 %v5695, %v5695
      %v5728 = vpack.c.b16 %v5696, %v5696
      %v5729 = vpack.c.b16 %v5697, %v5697
      %v5730 = vpack.c.b16 %v5698, %v5698
      %v5731 = vpack.c.b16 %v5699, %v5699
      %v5732 = vpack.c.b16 %v5700, %v5700
      %v5733 = vpack.c.b16 %v5701, %v5701
      %v5734 = vpack.c.b16 %v5702, %v5702
      %v5735 = vpack.c.b16 %v5703, %v5703
      %v5736 = vpack.c.b16 %v5704, %v5704
      %v5737 = vpack.c.b16 %v5705, %v5705
      %v5738 = vpack.c.b16 %v5706, %v5706
      %v5739 = vpack.c.b16 %v5707, %v5707
      %v5740 = vpack.c.b16 %v5708, %v5708
      %v5741 = vpack.c.b16 %v5709, %v5709
      %v5742 = vpack.c.b16 %v5710, %v5710
      %v5743 = vpack.c.b16 %v5711, %v5711
      %v5744 = vpack.c.b16 %v5712, %v5712
      %v5745 = vpack.c.b16 %v5713, %v5713
      %v5746 = vpack.c.b16 %v5714, %v5714
      %v5747 = vpack.c.b16 %v5715, %v5715
      %v5748 = vpack.c.b16 %v5716, %v5716
      %v5749 = vpack.c.b16 %v5717, %v5717
      %v5750 = vpack.c.b16 %v5718, %v5718
      %v5751 = vpack.c.b16 %v5719, %v5719
      %v5752 = vpack.c.b16 %v5720, %v5720
      %v5754 = vshrl.u32 %v5721, 16
      %v5756 = vrot.slane %v5754, 7
      %v5757 = vshll.u32 %v5721, 16
      %v5759 = vor.u32 %v5756, %v5757
      %v5760 = vrot.slane %v5756, 4
      %v5762 = vshrl.u32 %v5722, 16
      %v5764 = vrot.slane %v5762, 7
      %v5765 = vshll.u32 %v5722, 16
      %v5767 = vor.u32 %v5764, %v5765
      %v5768 = vsel %vm341, %v5760, %v5767
      %v5769 = vrot.slane %v5764, 4
      %v5771 = vshrl.u32 %v5723, 16
      %v5773 = vrot.slane %v5771, 7
      %v5774 = vshll.u32 %v5723, 16
      %v5776 = vor.u32 %v5773, %v5774
      %v5777 = vrot.slane %v5773, 4
      %v5779 = vshrl.u32 %v5724, 16
      %v5781 = vrot.slane %v5779, 7
      %v5782 = vshll.u32 %v5724, 16
      %v5784 = vor.u32 %v5781, %v5782
      %v5785 = vsel %vm341, %v5777, %v5784
      %v5786 = vrot.slane %v5781, 4
      %v5788 = vshrl.u32 %v5725, 16
      %v5790 = vrot.slane %v5788, 7
      %v5791 = vshll.u32 %v5725, 16
      %v5793 = vor.u32 %v5790, %v5791
      %v5794 = vrot.slane %v5790, 4
      %v5796 = vshrl.u32 %v5726, 16
      %v5798 = vrot.slane %v5796, 7
      %v5799 = vshll.u32 %v5726, 16
      %v5801 = vor.u32 %v5798, %v5799
      %v5802 = vsel %vm341, %v5794, %v5801
      %v5803 = vrot.slane %v5798, 4
      %v5805 = vshrl.u32 %v5727, 16
      %v5807 = vrot.slane %v5805, 7
      %v5808 = vshll.u32 %v5727, 16
      %v5810 = vor.u32 %v5807, %v5808
      %v5811 = vrot.slane %v5807, 4
      %v5813 = vshrl.u32 %v5728, 16
      %v5815 = vrot.slane %v5813, 7
      %v5816 = vshll.u32 %v5728, 16
      %v5818 = vor.u32 %v5815, %v5816
      %v5819 = vsel %vm341, %v5811, %v5818
      %v5820 = vrot.slane %v5815, 4
      %v5822 = vshrl.u32 %v5729, 16
      %v5824 = vrot.slane %v5822, 7
      %v5825 = vshll.u32 %v5729, 16
      %v5827 = vor.u32 %v5824, %v5825
      %v5828 = vrot.slane %v5824, 4
      %v5830 = vshrl.u32 %v5730, 16
      %v5832 = vrot.slane %v5830, 7
      %v5833 = vshll.u32 %v5730, 16
      %v5835 = vor.u32 %v5832, %v5833
      %v5836 = vsel %vm341, %v5828, %v5835
      %v5837 = vrot.slane %v5832, 4
      %v5839 = vshrl.u32 %v5731, 16
      %v5841 = vrot.slane %v5839, 7
      %v5842 = vshll.u32 %v5731, 16
      %v5844 = vor.u32 %v5841, %v5842
      %v5845 = vrot.slane %v5841, 4
      %v5847 = vshrl.u32 %v5732, 16
      %v5849 = vrot.slane %v5847, 7
      %v5850 = vshll.u32 %v5732, 16
      %v5852 = vor.u32 %v5849, %v5850
      %v5853 = vsel %vm341, %v5845, %v5852
      %v5854 = vrot.slane %v5849, 4
      %v5856 = vshrl.u32 %v5733, 16
      %v5858 = vrot.slane %v5856, 7
      %v5859 = vshll.u32 %v5733, 16
      %v5861 = vor.u32 %v5858, %v5859
      %v5862 = vrot.slane %v5858, 4
      %v5864 = vshrl.u32 %v5734, 16
      %v5866 = vrot.slane %v5864, 7
      %v5867 = vshll.u32 %v5734, 16
      %v5869 = vor.u32 %v5866, %v5867
      %v5870 = vsel %vm341, %v5862, %v5869
      %v5871 = vrot.slane %v5866, 4
      %v5873 = vshrl.u32 %v5735, 16
      %v5875 = vrot.slane %v5873, 7
      %v5876 = vshll.u32 %v5735, 16
      %v5878 = vor.u32 %v5875, %v5876
      %v5879 = vrot.slane %v5875, 4
      %v5881 = vshrl.u32 %v5736, 16
      %v5883 = vrot.slane %v5881, 7
      %v5884 = vshll.u32 %v5736, 16
      %v5886 = vor.u32 %v5883, %v5884
      %v5887 = vsel %vm341, %v5879, %v5886
      %v5888 = vrot.slane %v5883, 4
      %v5890 = vshrl.u32 %v5737, 16
      %v5892 = vrot.slane %v5890, 7
      %v5893 = vshll.u32 %v5737, 16
      %v5895 = vor.u32 %v5892, %v5893
      %v5896 = vrot.slane %v5892, 4
      %v5898 = vshrl.u32 %v5738, 16
      %v5900 = vrot.slane %v5898, 7
      %v5901 = vshll.u32 %v5738, 16
      %v5903 = vor.u32 %v5900, %v5901
      %v5904 = vsel %vm341, %v5896, %v5903
      %v5905 = vrot.slane %v5900, 4
      %v5907 = vshrl.u32 %v5739, 16
      %v5909 = vrot.slane %v5907, 7
      %v5910 = vshll.u32 %v5739, 16
      %v5912 = vor.u32 %v5909, %v5910
      %v5913 = vrot.slane %v5909, 4
      %v5915 = vshrl.u32 %v5740, 16
      %v5917 = vrot.slane %v5915, 7
      %v5918 = vshll.u32 %v5740, 16
      %v5920 = vor.u32 %v5917, %v5918
      %v5921 = vsel %vm341, %v5913, %v5920
      %v5922 = vrot.slane %v5917, 4
      %v5924 = vshrl.u32 %v5741, 16
      %v5926 = vrot.slane %v5924, 7
      %v5927 = vshll.u32 %v5741, 16
      %v5929 = vor.u32 %v5926, %v5927
      %v5930 = vrot.slane %v5926, 4
      %v5932 = vshrl.u32 %v5742, 16
      %v5934 = vrot.slane %v5932, 7
      %v5935 = vshll.u32 %v5742, 16
      %v5937 = vor.u32 %v5934, %v5935
      %v5938 = vsel %vm341, %v5930, %v5937
      %v5939 = vrot.slane %v5934, 4
      %v5941 = vshrl.u32 %v5743, 16
      %v5943 = vrot.slane %v5941, 7
      %v5944 = vshll.u32 %v5743, 16
      %v5946 = vor.u32 %v5943, %v5944
      %v5947 = vrot.slane %v5943, 4
      %v5949 = vshrl.u32 %v5744, 16
      %v5951 = vrot.slane %v5949, 7
      %v5952 = vshll.u32 %v5744, 16
      %v5954 = vor.u32 %v5951, %v5952
      %v5955 = vsel %vm341, %v5947, %v5954
      %v5956 = vrot.slane %v5951, 4
      %v5958 = vshrl.u32 %v5745, 16
      %v5960 = vrot.slane %v5958, 7
      %v5961 = vshll.u32 %v5745, 16
      %v5963 = vor.u32 %v5960, %v5961
      %v5964 = vrot.slane %v5960, 4
      %v5966 = vshrl.u32 %v5746, 16
      %v5968 = vrot.slane %v5966, 7
      %v5969 = vshll.u32 %v5746, 16
      %v5971 = vor.u32 %v5968, %v5969
      %v5972 = vsel %vm341, %v5964, %v5971
      %v5973 = vrot.slane %v5968, 4
      %v5975 = vshrl.u32 %v5747, 16
      %v5977 = vrot.slane %v5975, 7
      %v5978 = vshll.u32 %v5747, 16
      %v5980 = vor.u32 %v5977, %v5978
      %v5981 = vrot.slane %v5977, 4
      %v5983 = vshrl.u32 %v5748, 16
      %v5985 = vrot.slane %v5983, 7
      %v5986 = vshll.u32 %v5748, 16
      %v5988 = vor.u32 %v5985, %v5986
      %v5989 = vsel %vm341, %v5981, %v5988
      %v5990 = vrot.slane %v5985, 4
      %v5992 = vshrl.u32 %v5749, 16
      %v5994 = vrot.slane %v5992, 7
      %v5995 = vshll.u32 %v5749, 16
      %v5997 = vor.u32 %v5994, %v5995
      %v5998 = vrot.slane %v5994, 4
      %v6000 = vshrl.u32 %v5750, 16
      %v6002 = vrot.slane %v6000, 7
      %v6003 = vshll.u32 %v5750, 16
      %v6005 = vor.u32 %v6002, %v6003
      %v6006 = vsel %vm341, %v5998, %v6005
      %v6007 = vrot.slane %v6002, 4
      %v6009 = vshrl.u32 %v5751, 16
      %v6011 = vrot.slane %v6009, 7
      %v6012 = vshll.u32 %v5751, 16
      %v6014 = vor.u32 %v6011, %v6012
      %v6015 = vrot.slane %v6011, 4
      %v6017 = vshrl.u32 %v5752, 16
      %v6019 = vrot.slane %v6017, 7
      %v6020 = vshll.u32 %v5752, 16
      %v6022 = vor.u32 %v6019, %v6020
      %v6023 = vsel %vm341, %v6015, %v6022
      %v6024 = vrot.slane %v6019, 4
      %s6073 = scalar_lea.vmem [#allocation3], 12
      %v6074 = vld [vmem:[%s6073] sm:$0xf]
      %v6075 = vsel %vm665, %v5759, %v6074
      %6076 = vst [vmem:[%s6073] sm:$0xf] %v6075
      %6077 = vst [vmem:[%s6073 + $0x4] sm:$0xf] %v5768
      %v6078 = vld [vmem:[%s6073 + $0x8] sm:$0x1]
      %v6079 = vsel %vm671, %v5769, %v6078
      %6080 = vst [vmem:[%s6073 + $0x8] sm:$0x1] %v6079
      %v6081 = vld [vmem:[%s6073 + $0xc] sm:$0xf]
      %v6082 = vsel %vm665, %v5776, %v6081
      %6083 = vst [vmem:[%s6073 + $0xc] sm:$0xf] %v6082
      %6084 = vst [vmem:[%s6073 + $0x10] sm:$0xf] %v5785
      %v6085 = vld [vmem:[%s6073 + $0x14] sm:$0x1]
      %v6086 = vsel %vm671, %v5786, %v6085
      %6087 = vst [vmem:[%s6073 + $0x14] sm:$0x1] %v6086
      %v6088 = vld [vmem:[%s6073 + $0x18] sm:$0xf]
      %v6089 = vsel %vm665, %v5793, %v6088
      %6090 = vst [vmem:[%s6073 + $0x18] sm:$0xf] %v6089
      %6091 = vst [vmem:[%s6073 + $0x1c] sm:$0xf] %v5802
      %v6092 = vld [vmem:[%s6073 + $0x20] sm:$0x1]
      %v6093 = vsel %vm671, %v5803, %v6092
      %6094 = vst [vmem:[%s6073 + $0x20] sm:$0x1] %v6093
      %v6095 = vld [vmem:[%s6073 + $0x24] sm:$0xf]
      %v6096 = vsel %vm665, %v5810, %v6095
      %6097 = vst [vmem:[%s6073 + $0x24] sm:$0xf] %v6096
      %6098 = vst [vmem:[%s6073 + $0x28] sm:$0xf] %v5819
      %v6099 = vld [vmem:[%s6073 + $0x2c] sm:$0x1]
      %v6100 = vsel %vm671, %v5820, %v6099
      %6101 = vst [vmem:[%s6073 + $0x2c] sm:$0x1] %v6100
      %v6102 = vld [vmem:[%s6073 + $0x30] sm:$0xf]
      %v6103 = vsel %vm665, %v5827, %v6102
      %6104 = vst [vmem:[%s6073 + $0x30] sm:$0xf] %v6103
      %6105 = vst [vmem:[%s6073 + $0x34] sm:$0xf] %v5836
      %v6106 = vld [vmem:[%s6073 + $0x38] sm:$0x1]
      %v6107 = vsel %vm671, %v5837, %v6106
      %6108 = vst [vmem:[%s6073 + $0x38] sm:$0x1] %v6107
      %v6109 = vld [vmem:[%s6073 + $0x3c] sm:$0xf]
      %v6110 = vsel %vm665, %v5844, %v6109
      %6111 = vst [vmem:[%s6073 + $0x3c] sm:$0xf] %v6110
      %6112 = vst [vmem:[%s6073 + $0x40] sm:$0xf] %v5853
      %v6113 = vld [vmem:[%s6073 + $0x44] sm:$0x1]
      %v6114 = vsel %vm671, %v5854, %v6113
      %6115 = vst [vmem:[%s6073 + $0x44] sm:$0x1] %v6114
      %v6116 = vld [vmem:[%s6073 + $0x48] sm:$0xf]
      %v6117 = vsel %vm665, %v5861, %v6116
      %6118 = vst [vmem:[%s6073 + $0x48] sm:$0xf] %v6117
      %6119 = vst [vmem:[%s6073 + $0x4c] sm:$0xf] %v5870
      %v6120 = vld [vmem:[%s6073 + $0x50] sm:$0x1]
      %v6121 = vsel %vm671, %v5871, %v6120
      %6122 = vst [vmem:[%s6073 + $0x50] sm:$0x1] %v6121
      %v6123 = vld [vmem:[%s6073 + $0x54] sm:$0xf]
      %v6124 = vsel %vm665, %v5878, %v6123
      %6125 = vst [vmem:[%s6073 + $0x54] sm:$0xf] %v6124
      %6126 = vst [vmem:[%s6073 + $0x58] sm:$0xf] %v5887
      %v6127 = vld [vmem:[%s6073 + $0x5c] sm:$0x1]
      %v6128 = vsel %vm671, %v5888, %v6127
      %6129 = vst [vmem:[%s6073 + $0x5c] sm:$0x1] %v6128
      %v6130 = vld [vmem:[%s6073 + $0x60] sm:$0xf]
      %v6131 = vsel %vm665, %v5895, %v6130
      %6132 = vst [vmem:[%s6073 + $0x60] sm:$0xf] %v6131
      %6133 = vst [vmem:[%s6073 + $0x64] sm:$0xf] %v5904
      %v6134 = vld [vmem:[%s6073 + $0x68] sm:$0x1]
      %v6135 = vsel %vm671, %v5905, %v6134
      %6136 = vst [vmem:[%s6073 + $0x68] sm:$0x1] %v6135
      %v6137 = vld [vmem:[%s6073 + $0x6c] sm:$0xf]
      %v6138 = vsel %vm665, %v5912, %v6137
      %6139 = vst [vmem:[%s6073 + $0x6c] sm:$0xf] %v6138
      %6140 = vst [vmem:[%s6073 + $0x70] sm:$0xf] %v5921
      %v6141 = vld [vmem:[%s6073 + $0x74] sm:$0x1]
      %v6142 = vsel %vm671, %v5922, %v6141
      %6143 = vst [vmem:[%s6073 + $0x74] sm:$0x1] %v6142
      %v6144 = vld [vmem:[%s6073 + $0x78] sm:$0xf]
      %v6145 = vsel %vm665, %v5929, %v6144
      %6146 = vst [vmem:[%s6073 + $0x78] sm:$0xf] %v6145
      %6147 = vst [vmem:[%s6073 + $0x7c] sm:$0xf] %v5938
      %v6148 = vld [vmem:[%s6073 + $0x80] sm:$0x1]
      %v6149 = vsel %vm671, %v5939, %v6148
      %6150 = vst [vmem:[%s6073 + $0x80] sm:$0x1] %v6149
      %v6151 = vld [vmem:[%s6073 + $0x84] sm:$0xf]
      %v6152 = vsel %vm665, %v5946, %v6151
      %6153 = vst [vmem:[%s6073 + $0x84] sm:$0xf] %v6152
      %6154 = vst [vmem:[%s6073 + $0x88] sm:$0xf] %v5955
      %v6155 = vld [vmem:[%s6073 + $0x8c] sm:$0x1]
      %v6156 = vsel %vm671, %v5956, %v6155
      %6157 = vst [vmem:[%s6073 + $0x8c] sm:$0x1] %v6156
      %v6158 = vld [vmem:[%s6073 + $0x90] sm:$0xf]
      %v6159 = vsel %vm665, %v5963, %v6158
      %6160 = vst [vmem:[%s6073 + $0x90] sm:$0xf] %v6159
      %6161 = vst [vmem:[%s6073 + $0x94] sm:$0xf] %v5972
      %v6162 = vld [vmem:[%s6073 + $0x98] sm:$0x1]
      %v6163 = vsel %vm671, %v5973, %v6162
      %6164 = vst [vmem:[%s6073 + $0x98] sm:$0x1] %v6163
      %v6165 = vld [vmem:[%s6073 + $0x9c] sm:$0xf]
      %v6166 = vsel %vm665, %v5980, %v6165
      %6167 = vst [vmem:[%s6073 + $0x9c] sm:$0xf] %v6166
      %6168 = vst [vmem:[%s6073 + $0xa0] sm:$0xf] %v5989
      %v6169 = vld [vmem:[%s6073 + $0xa4] sm:$0x1]
      %v6170 = vsel %vm671, %v5990, %v6169
      %6171 = vst [vmem:[%s6073 + $0xa4] sm:$0x1] %v6170
      %v6172 = vld [vmem:[%s6073 + $0xa8] sm:$0xf]
      %v6173 = vsel %vm665, %v5997, %v6172
      %6174 = vst [vmem:[%s6073 + $0xa8] sm:$0xf] %v6173
      %6175 = vst [vmem:[%s6073 + $0xac] sm:$0xf] %v6006
      %v6176 = vld [vmem:[%s6073 + $0xb0] sm:$0x1]
      %v6177 = vsel %vm671, %v6007, %v6176
      %6178 = vst [vmem:[%s6073 + $0xb0] sm:$0x1] %v6177
      %v6179 = vld [vmem:[%s6073 + $0xb4] sm:$0xf]
      %v6180 = vsel %vm665, %v6014, %v6179
      %6181 = vst [vmem:[%s6073 + $0xb4] sm:$0xf] %v6180
      %6182 = vst [vmem:[%s6073 + $0xb8] sm:$0xf] %v6023
      %v6183 = vld [vmem:[%s6073 + $0xbc] sm:$0x1]
      %v6184 = vsel %vm671, %v6024, %v6183
      %6185 = vst [vmem:[%s6073 + $0xbc] sm:$0x1] %v6184
      %v6186 = vld [vmem:[#allocation3] sm:$0xf]
      %v6187 = vld [vmem:[#allocation3 + $0x4] sm:$0xf]
      %v6188 = vld [vmem:[#allocation3 + $0xc] sm:$0xf]
      %v6189 = vld [vmem:[#allocation3 + $0x10] sm:$0xf]
      %v6190 = vld [vmem:[#allocation3 + $0x18] sm:$0xf]
      %v6191 = vld [vmem:[#allocation3 + $0x1c] sm:$0xf]
      %v6192 = vld [vmem:[#allocation3 + $0x24] sm:$0xf]
      %v6193 = vld [vmem:[#allocation3 + $0x28] sm:$0xf]
      %v6194 = vld [vmem:[#allocation3 + $0x30] sm:$0xf]
      %v6195 = vld [vmem:[#allocation3 + $0x34] sm:$0xf]
      %v6196 = vld [vmem:[#allocation3 + $0x3c] sm:$0xf]
      %v6197 = vld [vmem:[#allocation3 + $0x40] sm:$0xf]
      %v6198 = vld [vmem:[#allocation3 + $0x48] sm:$0xf]
      %v6199 = vld [vmem:[#allocation3 + $0x4c] sm:$0xf]
      %v6200 = vld [vmem:[#allocation3 + $0x54] sm:$0xf]
      %v6201 = vld [vmem:[#allocation3 + $0x58] sm:$0xf]
      %v6202 = vld [vmem:[#allocation3 + $0x60] sm:$0xf]
      %v6203 = vld [vmem:[#allocation3 + $0x64] sm:$0xf]
      %v6204 = vld [vmem:[#allocation3 + $0x6c] sm:$0xf]
      %v6205 = vld [vmem:[#allocation3 + $0x70] sm:$0xf]
      %v6206 = vld [vmem:[#allocation3 + $0x78] sm:$0xf]
      %v6207 = vld [vmem:[#allocation3 + $0x7c] sm:$0xf]
      %v6208 = vld [vmem:[#allocation3 + $0x84] sm:$0xf]
      %v6209 = vld [vmem:[#allocation3 + $0x88] sm:$0xf]
      %v6210 = vld [vmem:[#allocation3 + $0x90] sm:$0xf]
      %v6211 = vld [vmem:[#allocation3 + $0x94] sm:$0xf]
      %v6212 = vld [vmem:[#allocation3 + $0x9c] sm:$0xf]
      %v6213 = vld [vmem:[#allocation3 + $0xa0] sm:$0xf]
      %v6214 = vld [vmem:[#allocation3 + $0xa8] sm:$0xf]
      %v6215 = vld [vmem:[#allocation3 + $0xac] sm:$0xf]
      %v6216 = vld [vmem:[#allocation3 + $0xb4] sm:$0xf]
      %v6217 = vld [vmem:[#allocation3 + $0xb8] sm:$0xf]
      %v6218 = vld [vmem:[%s2] sm:$0xf]
      %v6219 = vld [vmem:[%s2 + $0x4] sm:$0xf]
      %v6220 = vld [vmem:[%s2 + $0x8] sm:$0xf]
      %v6221 = vld [vmem:[%s2 + $0xc] sm:$0xf]
      %v6222 = vld [vmem:[%s2 + $0x10] sm:$0xf]
      %v6223 = vld [vmem:[%s2 + $0x14] sm:$0xf]
      %v6224 = vld [vmem:[%s2 + $0x18] sm:$0xf]
      %v6225 = vld [vmem:[%s2 + $0x1c] sm:$0xf]
      %v6226 = vld [vmem:[%s2 + $0x20] sm:$0xf]
      %v6227 = vld [vmem:[%s2 + $0x24] sm:$0xf]
      %v6228 = vld [vmem:[%s2 + $0x28] sm:$0xf]
      %v6229 = vld [vmem:[%s2 + $0x2c] sm:$0xf]
      %v6230 = vld [vmem:[%s2 + $0x30] sm:$0xf]
      %v6231 = vld [vmem:[%s2 + $0x34] sm:$0xf]
      %v6232 = vld [vmem:[%s2 + $0x38] sm:$0xf]
      %v6233 = vld [vmem:[%s2 + $0x3c] sm:$0xf]
      %v6234 = vld [vmem:[#allocation3 + $0x8] sm:$0x1]
      %v6235 = vld [vmem:[#allocation3 + $0x14] sm:$0x1]
      %v6236 = vld [vmem:[#allocation3 + $0x20] sm:$0x1]
      %v6237 = vld [vmem:[#allocation3 + $0x2c] sm:$0x1]
      %v6238 = vld [vmem:[#allocation3 + $0x38] sm:$0x1]
      %v6239 = vld [vmem:[#allocation3 + $0x44] sm:$0x1]
      %v6240 = vld [vmem:[#allocation3 + $0x50] sm:$0x1]
      %v6241 = vld [vmem:[#allocation3 + $0x5c] sm:$0x1]
      %v6242 = vld [vmem:[#allocation3 + $0x68] sm:$0x1]
      %v6243 = vld [vmem:[#allocation3 + $0x74] sm:$0x1]
      %v6244 = vld [vmem:[#allocation3 + $0x80] sm:$0x1]
      %v6245 = vld [vmem:[#allocation3 + $0x8c] sm:$0x1]
      %v6246 = vld [vmem:[#allocation3 + $0x98] sm:$0x1]
      %v6247 = vld [vmem:[#allocation3 + $0xa4] sm:$0x1]
      %v6248 = vld [vmem:[#allocation3 + $0xb0] sm:$0x1]
      %v6249 = vld [vmem:[#allocation3 + $0xbc] sm:$0x1]
      %v6251 = vshrl.u32 %v6186, 16
      %v6253 = vrot.slane %v6251, 4
      %v6254 = vshll.u32 %v6186, 16
      %v6256 = vrot.slane %v6254, 5
      %v6257 = vor.u32 %v6253, %v6256
      %v6258 = vrot.slane %v6257, 4
      %v6260 = vshll.u32 %v6187, 16
      %v6262 = vrot.slane %v6260, 5
      %v6263 = vsel %vm846, %v6258, %v6262
      %v6264 = vshrl.u32 %v6187, 16
      %v6266 = vrot.slane %v6264, 4
      %v6267 = vor.u32 %v6266, %v6262
      %v6268 = vrot.slane %v6267, 4
      %v6270 = vshll.u32 %v6234, 16
      %v6272 = vrot.slane %v6270, 5
      %v6273 = vsel %vm846, %v6268, %v6272
      %v6275 = vshrl.u32 %v6188, 16
      %v6277 = vrot.slane %v6275, 4
      %v6278 = vshll.u32 %v6188, 16
      %v6280 = vrot.slane %v6278, 5
      %v6281 = vor.u32 %v6277, %v6280
      %v6282 = vrot.slane %v6281, 4
      %v6284 = vshll.u32 %v6189, 16
      %v6286 = vrot.slane %v6284, 5
      %v6287 = vsel %vm846, %v6282, %v6286
      %v6288 = vshrl.u32 %v6189, 16
      %v6290 = vrot.slane %v6288, 4
      %v6291 = vor.u32 %v6290, %v6286
      %v6292 = vrot.slane %v6291, 4
      %v6294 = vshll.u32 %v6235, 16
      %v6296 = vrot.slane %v6294, 5
      %v6297 = vsel %vm846, %v6292, %v6296
      %v6299 = vshrl.u32 %v6190, 16
      %v6301 = vrot.slane %v6299, 4
      %v6302 = vshll.u32 %v6190, 16
      %v6304 = vrot.slane %v6302, 5
      %v6305 = vor.u32 %v6301, %v6304
      %v6306 = vrot.slane %v6305, 4
      %v6308 = vshll.u32 %v6191, 16
      %v6310 = vrot.slane %v6308, 5
      %v6311 = vsel %vm846, %v6306, %v6310
      %v6312 = vshrl.u32 %v6191, 16
      %v6314 = vrot.slane %v6312, 4
      %v6315 = vor.u32 %v6314, %v6310
      %v6316 = vrot.slane %v6315, 4
      %v6318 = vshll.u32 %v6236, 16
      %v6320 = vrot.slane %v6318, 5
      %v6321 = vsel %vm846, %v6316, %v6320
      %v6323 = vshrl.u32 %v6192, 16
      %v6325 = vrot.slane %v6323, 4
      %v6326 = vshll.u32 %v6192, 16
      %v6328 = vrot.slane %v6326, 5
      %v6329 = vor.u32 %v6325, %v6328
      %v6330 = vrot.slane %v6329, 4
      %v6332 = vshll.u32 %v6193, 16
      %v6334 = vrot.slane %v6332, 5
      %v6335 = vsel %vm846, %v6330, %v6334
      %v6336 = vshrl.u32 %v6193, 16
      %v6338 = vrot.slane %v6336, 4
      %v6339 = vor.u32 %v6338, %v6334
      %v6340 = vrot.slane %v6339, 4
      %v6342 = vshll.u32 %v6237, 16
      %v6344 = vrot.slane %v6342, 5
      %v6345 = vsel %vm846, %v6340, %v6344
      %v6347 = vshrl.u32 %v6194, 16
      %v6349 = vrot.slane %v6347, 4
      %v6350 = vshll.u32 %v6194, 16
      %v6352 = vrot.slane %v6350, 5
      %v6353 = vor.u32 %v6349, %v6352
      %v6354 = vrot.slane %v6353, 4
      %v6356 = vshll.u32 %v6195, 16
      %v6358 = vrot.slane %v6356, 5
      %v6359 = vsel %vm846, %v6354, %v6358
      %v6360 = vshrl.u32 %v6195, 16
      %v6362 = vrot.slane %v6360, 4
      %v6363 = vor.u32 %v6362, %v6358
      %v6364 = vrot.slane %v6363, 4
      %v6366 = vshll.u32 %v6238, 16
      %v6368 = vrot.slane %v6366, 5
      %v6369 = vsel %vm846, %v6364, %v6368
      %v6371 = vshrl.u32 %v6196, 16
      %v6373 = vrot.slane %v6371, 4
      %v6374 = vshll.u32 %v6196, 16
      %v6376 = vrot.slane %v6374, 5
      %v6377 = vor.u32 %v6373, %v6376
      %v6378 = vrot.slane %v6377, 4
      %v6380 = vshll.u32 %v6197, 16
      %v6382 = vrot.slane %v6380, 5
      %v6383 = vsel %vm846, %v6378, %v6382
      %v6384 = vshrl.u32 %v6197, 16
      %v6386 = vrot.slane %v6384, 4
      %v6387 = vor.u32 %v6386, %v6382
      %v6388 = vrot.slane %v6387, 4
      %v6390 = vshll.u32 %v6239, 16
      %v6392 = vrot.slane %v6390, 5
      %v6393 = vsel %vm846, %v6388, %v6392
      %v6395 = vshrl.u32 %v6198, 16
      %v6397 = vrot.slane %v6395, 4
      %v6398 = vshll.u32 %v6198, 16
      %v6400 = vrot.slane %v6398, 5
      %v6401 = vor.u32 %v6397, %v6400
      %v6402 = vrot.slane %v6401, 4
      %v6404 = vshll.u32 %v6199, 16
      %v6406 = vrot.slane %v6404, 5
      %v6407 = vsel %vm846, %v6402, %v6406
      %v6408 = vshrl.u32 %v6199, 16
      %v6410 = vrot.slane %v6408, 4
      %v6411 = vor.u32 %v6410, %v6406
      %v6412 = vrot.slane %v6411, 4
      %v6414 = vshll.u32 %v6240, 16
      %v6416 = vrot.slane %v6414, 5
      %v6417 = vsel %vm846, %v6412, %v6416
      %v6419 = vshrl.u32 %v6200, 16
      %v6421 = vrot.slane %v6419, 4
      %v6422 = vshll.u32 %v6200, 16
      %v6424 = vrot.slane %v6422, 5
      %v6425 = vor.u32 %v6421, %v6424
      %v6426 = vrot.slane %v6425, 4
      %v6428 = vshll.u32 %v6201, 16
      %v6430 = vrot.slane %v6428, 5
      %v6431 = vsel %vm846, %v6426, %v6430
      %v6432 = vshrl.u32 %v6201, 16
      %v6434 = vrot.slane %v6432, 4
      %v6435 = vor.u32 %v6434, %v6430
      %v6436 = vrot.slane %v6435, 4
      %v6438 = vshll.u32 %v6241, 16
      %v6440 = vrot.slane %v6438, 5
      %v6441 = vsel %vm846, %v6436, %v6440
      %v6443 = vshrl.u32 %v6202, 16
      %v6445 = vrot.slane %v6443, 4
      %v6446 = vshll.u32 %v6202, 16
      %v6448 = vrot.slane %v6446, 5
      %v6449 = vor.u32 %v6445, %v6448
      %v6450 = vrot.slane %v6449, 4
      %v6452 = vshll.u32 %v6203, 16
      %v6454 = vrot.slane %v6452, 5
      %v6455 = vsel %vm846, %v6450, %v6454
      %v6456 = vshrl.u32 %v6203, 16
      %v6458 = vrot.slane %v6456, 4
      %v6459 = vor.u32 %v6458, %v6454
      %v6460 = vrot.slane %v6459, 4
      %v6462 = vshll.u32 %v6242, 16
      %v6464 = vrot.slane %v6462, 5
      %v6465 = vsel %vm846, %v6460, %v6464
      %v6467 = vshrl.u32 %v6204, 16
      %v6469 = vrot.slane %v6467, 4
      %v6470 = vshll.u32 %v6204, 16
      %v6472 = vrot.slane %v6470, 5
      %v6473 = vor.u32 %v6469, %v6472
      %v6474 = vrot.slane %v6473, 4
      %v6476 = vshll.u32 %v6205, 16
      %v6478 = vrot.slane %v6476, 5
      %v6479 = vsel %vm846, %v6474, %v6478
      %v6480 = vshrl.u32 %v6205, 16
      %v6482 = vrot.slane %v6480, 4
      %v6483 = vor.u32 %v6482, %v6478
      %v6484 = vrot.slane %v6483, 4
      %v6486 = vshll.u32 %v6243, 16
      %v6488 = vrot.slane %v6486, 5
      %v6489 = vsel %vm846, %v6484, %v6488
      %v6491 = vshrl.u32 %v6206, 16
      %v6493 = vrot.slane %v6491, 4
      %v6494 = vshll.u32 %v6206, 16
      %v6496 = vrot.slane %v6494, 5
      %v6497 = vor.u32 %v6493, %v6496
      %v6498 = vrot.slane %v6497, 4
      %v6500 = vshll.u32 %v6207, 16
      %v6502 = vrot.slane %v6500, 5
      %v6503 = vsel %vm846, %v6498, %v6502
      %v6504 = vshrl.u32 %v6207, 16
      %v6506 = vrot.slane %v6504, 4
      %v6507 = vor.u32 %v6506, %v6502
      %v6508 = vrot.slane %v6507, 4
      %v6510 = vshll.u32 %v6244, 16
      %v6512 = vrot.slane %v6510, 5
      %v6513 = vsel %vm846, %v6508, %v6512
      %v6515 = vshrl.u32 %v6208, 16
      %v6517 = vrot.slane %v6515, 4
      %v6518 = vshll.u32 %v6208, 16
      %v6520 = vrot.slane %v6518, 5
      %v6521 = vor.u32 %v6517, %v6520
      %v6522 = vrot.slane %v6521, 4
      %v6524 = vshll.u32 %v6209, 16
      %v6526 = vrot.slane %v6524, 5
      %v6527 = vsel %vm846, %v6522, %v6526
      %v6528 = vshrl.u32 %v6209, 16
      %v6530 = vrot.slane %v6528, 4
      %v6531 = vor.u32 %v6530, %v6526
      %v6532 = vrot.slane %v6531, 4
      %v6534 = vshll.u32 %v6245, 16
      %v6536 = vrot.slane %v6534, 5
      %v6537 = vsel %vm846, %v6532, %v6536
      %v6539 = vshrl.u32 %v6210, 16
      %v6541 = vrot.slane %v6539, 4
      %v6542 = vshll.u32 %v6210, 16
      %v6544 = vrot.slane %v6542, 5
      %v6545 = vor.u32 %v6541, %v6544
      %v6546 = vrot.slane %v6545, 4
      %v6548 = vshll.u32 %v6211, 16
      %v6550 = vrot.slane %v6548, 5
      %v6551 = vsel %vm846, %v6546, %v6550
      %v6552 = vshrl.u32 %v6211, 16
      %v6554 = vrot.slane %v6552, 4
      %v6555 = vor.u32 %v6554, %v6550
      %v6556 = vrot.slane %v6555, 4
      %v6558 = vshll.u32 %v6246, 16
      %v6560 = vrot.slane %v6558, 5
      %v6561 = vsel %vm846, %v6556, %v6560
      %v6563 = vshrl.u32 %v6212, 16
      %v6565 = vrot.slane %v6563, 4
      %v6566 = vshll.u32 %v6212, 16
      %v6568 = vrot.slane %v6566, 5
      %v6569 = vor.u32 %v6565, %v6568
      %v6570 = vrot.slane %v6569, 4
      %v6572 = vshll.u32 %v6213, 16
      %v6574 = vrot.slane %v6572, 5
      %v6575 = vsel %vm846, %v6570, %v6574
      %v6576 = vshrl.u32 %v6213, 16
      %v6578 = vrot.slane %v6576, 4
      %v6579 = vor.u32 %v6578, %v6574
      %v6580 = vrot.slane %v6579, 4
      %v6582 = vshll.u32 %v6247, 16
      %v6584 = vrot.slane %v6582, 5
      %v6585 = vsel %vm846, %v6580, %v6584
      %v6587 = vshrl.u32 %v6214, 16
      %v6589 = vrot.slane %v6587, 4
      %v6590 = vshll.u32 %v6214, 16
      %v6592 = vrot.slane %v6590, 5
      %v6593 = vor.u32 %v6589, %v6592
      %v6594 = vrot.slane %v6593, 4
      %v6596 = vshll.u32 %v6215, 16
      %v6598 = vrot.slane %v6596, 5
      %v6599 = vsel %vm846, %v6594, %v6598
      %v6600 = vshrl.u32 %v6215, 16
      %v6602 = vrot.slane %v6600, 4
      %v6603 = vor.u32 %v6602, %v6598
      %v6604 = vrot.slane %v6603, 4
      %v6606 = vshll.u32 %v6248, 16
      %v6608 = vrot.slane %v6606, 5
      %v6609 = vsel %vm846, %v6604, %v6608
      %v6611 = vshrl.u32 %v6216, 16
      %v6613 = vrot.slane %v6611, 4
      %v6614 = vshll.u32 %v6216, 16
      %v6616 = vrot.slane %v6614, 5
      %v6617 = vor.u32 %v6613, %v6616
      %v6618 = vrot.slane %v6617, 4
      %v6620 = vshll.u32 %v6217, 16
      %v6622 = vrot.slane %v6620, 5
      %v6623 = vsel %vm846, %v6618, %v6622
      %v6624 = vshrl.u32 %v6217, 16
      %v6626 = vrot.slane %v6624, 4
      %v6627 = vor.u32 %v6626, %v6622
      %v6628 = vrot.slane %v6627, 4
      %v6630 = vshll.u32 %v6249, 16
      %v6632 = vrot.slane %v6630, 5
      %v6633 = vsel %vm846, %v6628, %v6632
      %s6634 = scalar_lea.vmem %s2, 64
      %v6635 = vld [vmem:[%s6634] sm:$0xf]
      %v6636 = vld [vmem:[%s6634 + $0x4] sm:$0xf]
      %v6637 = vld [vmem:[%s6634 + $0x8] sm:$0xf]
      %v6638 = vld [vmem:[%s6634 + $0xc] sm:$0xf]
      %v6639 = vld [vmem:[%s6634 + $0x10] sm:$0xf]
      %v6640 = vld [vmem:[%s6634 + $0x14] sm:$0xf]
      %v6641 = vld [vmem:[%s6634 + $0x18] sm:$0xf]
      %v6642 = vld [vmem:[%s6634 + $0x1c] sm:$0xf]
      %v6643 = vld [vmem:[%s6634 + $0x20] sm:$0xf]
      %v6644 = vld [vmem:[%s6634 + $0x24] sm:$0xf]
      %v6645 = vld [vmem:[%s6634 + $0x28] sm:$0xf]
      %v6646 = vld [vmem:[%s6634 + $0x2c] sm:$0xf]
      %v6647 = vld [vmem:[%s6634 + $0x30] sm:$0xf]
      %v6648 = vld [vmem:[%s6634 + $0x34] sm:$0xf]
      %v6649 = vld [vmem:[%s6634 + $0x38] sm:$0xf]
      %v6650 = vld [vmem:[%s6634 + $0x3c] sm:$0xf]
      %v6651 = vunpack.c.l.b16 %v6263
      %v6652 = vunpack.c.l.b16 %v6273
      %v6653 = vunpack.c.l.b16 %v6287
      %v6654 = vunpack.c.l.b16 %v6297
      %v6655 = vunpack.c.l.b16 %v6311
      %v6656 = vunpack.c.l.b16 %v6321
      %v6657 = vunpack.c.l.b16 %v6335
      %v6658 = vunpack.c.l.b16 %v6345
      %v6659 = vunpack.c.l.b16 %v6359
      %v6660 = vunpack.c.l.b16 %v6369
      %v6661 = vunpack.c.l.b16 %v6383
      %v6662 = vunpack.c.l.b16 %v6393
      %v6663 = vunpack.c.l.b16 %v6407
      %v6664 = vunpack.c.l.b16 %v6417
      %v6665 = vunpack.c.l.b16 %v6431
      %v6666 = vunpack.c.l.b16 %v6441
      %v6667 = vunpack.c.l.b16 %v6455
      %v6668 = vunpack.c.l.b16 %v6465
      %v6669 = vunpack.c.l.b16 %v6479
      %v6670 = vunpack.c.l.b16 %v6489
      %v6671 = vunpack.c.l.b16 %v6503
      %v6672 = vunpack.c.l.b16 %v6513
      %v6673 = vunpack.c.l.b16 %v6527
      %v6674 = vunpack.c.l.b16 %v6537
      %v6675 = vunpack.c.l.b16 %v6551
      %v6676 = vunpack.c.l.b16 %v6561
      %v6677 = vunpack.c.l.b16 %v6575
      %v6678 = vunpack.c.l.b16 %v6585
      %v6679 = vunpack.c.l.b16 %v6599
      %v6680 = vunpack.c.l.b16 %v6609
      %v6681 = vunpack.c.l.b16 %v6623
      %v6682 = vunpack.c.l.b16 %v6633
      %v6683 = vpack.c.b16 %v6652, %v6651
      %v6684 = vpack.c.b16 %v6654, %v6653
      %v6685 = vpack.c.b16 %v6656, %v6655
      %v6686 = vpack.c.b16 %v6658, %v6657
      %v6687 = vpack.c.b16 %v6660, %v6659
      %v6688 = vpack.c.b16 %v6662, %v6661
      %v6689 = vpack.c.b16 %v6664, %v6663
      %v6690 = vpack.c.b16 %v6666, %v6665
      %v6691 = vpack.c.b16 %v6668, %v6667
      %v6692 = vpack.c.b16 %v6670, %v6669
      %v6693 = vpack.c.b16 %v6672, %v6671
      %v6694 = vpack.c.b16 %v6674, %v6673
      %v6695 = vpack.c.b16 %v6676, %v6675
      %v6696 = vpack.c.b16 %v6678, %v6677
      %v6697 = vpack.c.b16 %v6680, %v6679
      %v6698 = vpack.c.b16 %v6682, %v6681
      %v6731 = vunpack.c.l.b16 %v6635
      %v6732 = vunpack.c.l.b16 %v6636
      %v6733 = vunpack.c.l.b16 %v6637
      %v6734 = vunpack.c.l.b16 %v6638
      %v6735 = vunpack.c.l.b16 %v6639
      %v6736 = vunpack.c.l.b16 %v6640
      %v6737 = vunpack.c.l.b16 %v6641
      %v6738 = vunpack.c.l.b16 %v6642
      %v6739 = vunpack.c.l.b16 %v6643
      %v6740 = vunpack.c.l.b16 %v6644
      %v6741 = vunpack.c.l.b16 %v6645
      %v6742 = vunpack.c.l.b16 %v6646
      %v6743 = vunpack.c.l.b16 %v6647
      %v6744 = vunpack.c.l.b16 %v6648
      %v6745 = vunpack.c.l.b16 %v6649
      %v6746 = vunpack.c.l.b16 %v6650
      %v6747 = vpack.c.b16 %v6732, %v6731
      %v6748 = vpack.c.b16 %v6734, %v6733
      %v6749 = vpack.c.b16 %v6736, %v6735
      %v6750 = vpack.c.b16 %v6738, %v6737
      %v6751 = vpack.c.b16 %v6740, %v6739
      %v6752 = vpack.c.b16 %v6742, %v6741
      %v6753 = vpack.c.b16 %v6744, %v6743
      %v6754 = vpack.c.b16 %v6746, %v6745
      %6763 = vmatprep.subr.bf16.mxu0 0
      %6764 = vmatpush1.bf16.msra.mxu0 %v6754
      %6765 = vmatprep.subr.bf16.mxu0 0
      %6766 = vmatpush1.bf16.msra.mxu0 %v6753
      %6767 = vmatprep.subr.bf16.mxu0 0
      %6768 = vmatpush1.bf16.msra.mxu0 %v6752
      %6769 = vmatprep.subr.bf16.mxu0 0
      %6770 = vmatpush1.bf16.msra.mxu0 %v6751
      %6771 = vmatprep.subr.bf16.mxu0 0
      %6772 = vmatpush1.bf16.msra.mxu0 %v6750
      %6773 = vmatprep.subr.bf16.mxu0 0
      %6774 = vmatpush1.bf16.msra.mxu0 %v6749
      %6775 = vmatprep.subr.bf16.mxu0 0
      %6776 = vmatpush1.bf16.msra.mxu0 %v6748
      %6777 = vmatprep.subr.bf16.mxu0 0
      %6778 = vmatpush1.bf16.msra.mxu0 %v6747
      %6779 = vmatprep.subr.bf16.mxu0 0
      %6780 = vmatpush2.bf16.msra.mxu0 0
      %6781 = vmatprep.subr.bf16.mxu0 0
      %6782 = vmatpush2.bf16.msra.mxu0 0
      %6783 = vmatprep.subr.bf16.mxu0 0
      %6784 = vmatpush2.bf16.msra.mxu0 0
      %6785 = vmatprep.subr.bf16.mxu0 0
      %6786 = vmatpush2.bf16.msra.mxu0 0
      %6787 = vmatprep.subr.bf16.mxu0 0
      %6788 = vmatpush2.bf16.msra.mxu0 0
      %6789 = vmatprep.subr.bf16.mxu0 0
      %6790 = vmatpush2.bf16.msra.mxu0 0
      %6791 = vmatprep.subr.bf16.mxu0 0
      %6792 = vmatpush2.bf16.msra.mxu0 0
      %6793 = vmatprep.subr.bf16.mxu0 0
      %6794 = vmatpush2.bf16.msra.mxu0 0
      %6795 = vmatprep.mubr.bf16.mxu0 0
      %6796 = vmatmul.mubr.bf16.gmra.mxu0 %v6683
      %v6797 = vpop.f32.mrf.mxu0
      %v6798 = vadd.f32 0.0, %v6797
      %v6799 = vpop.f32.mrf.mxu0
      %v6800 = vpop.f32.mrf.mxu0
      %v6801 = vadd.f32 0.0, %v6800
      %v6802 = vpop.f32.mrf.mxu0
      %6803 = vmatprep.mubr.bf16.mxu0 0
      %6804 = vmatmul.mubr.bf16.gmra.mxu0 %v6684
      %v6805 = vpop.f32.mrf.mxu0
      %v6806 = vadd.f32 0.0, %v6805
      %v6807 = vpop.f32.mrf.mxu0
      %v6808 = vpop.f32.mrf.mxu0
      %v6809 = vadd.f32 0.0, %v6808
      %v6810 = vpop.f32.mrf.mxu0
      %6811 = vmatprep.mubr.bf16.mxu0 0
      %6812 = vmatmul.mubr.bf16.gmra.mxu0 %v6685
      %v6813 = vpop.f32.mrf.mxu0
      %v6814 = vadd.f32 0.0, %v6813
      %v6815 = vpop.f32.mrf.mxu0
      %v6816 = vpop.f32.mrf.mxu0
      %v6817 = vadd.f32 0.0, %v6816
      %v6818 = vpop.f32.mrf.mxu0
      %6819 = vmatprep.mubr.bf16.mxu0 0
      %6820 = vmatmul.mubr.bf16.gmra.mxu0 %v6686
      %v6821 = vpop.f32.mrf.mxu0
      %v6822 = vadd.f32 0.0, %v6821
      %v6823 = vpop.f32.mrf.mxu0
      %v6824 = vpop.f32.mrf.mxu0
      %v6825 = vadd.f32 0.0, %v6824
      %v6826 = vpop.f32.mrf.mxu0
      %6827 = vmatprep.mubr.bf16.mxu0 0
      %6828 = vmatmul.mubr.bf16.gmra.mxu0 %v6687
      %v6829 = vpop.f32.mrf.mxu0
      %v6830 = vadd.f32 0.0, %v6829
      %v6831 = vpop.f32.mrf.mxu0
      %v6832 = vpop.f32.mrf.mxu0
      %v6833 = vadd.f32 0.0, %v6832
      %v6834 = vpop.f32.mrf.mxu0
      %6835 = vmatprep.mubr.bf16.mxu0 0
      %6836 = vmatmul.mubr.bf16.gmra.mxu0 %v6688
      %v6837 = vpop.f32.mrf.mxu0
      %v6838 = vadd.f32 0.0, %v6837
      %v6839 = vpop.f32.mrf.mxu0
      %v6840 = vpop.f32.mrf.mxu0
      %v6841 = vadd.f32 0.0, %v6840
      %v6842 = vpop.f32.mrf.mxu0
      %6843 = vmatprep.mubr.bf16.mxu0 0
      %6844 = vmatmul.mubr.bf16.gmra.mxu0 %v6689
      %v6845 = vpop.f32.mrf.mxu0
      %v6846 = vadd.f32 0.0, %v6845
      %v6847 = vpop.f32.mrf.mxu0
      %v6848 = vpop.f32.mrf.mxu0
      %v6849 = vadd.f32 0.0, %v6848
      %v6850 = vpop.f32.mrf.mxu0
      %6851 = vmatprep.mubr.bf16.mxu0 0
      %6852 = vmatmul.mubr.bf16.gmra.mxu0 %v6690
      %v6853 = vpop.f32.mrf.mxu0
      %v6854 = vadd.f32 0.0, %v6853
      %v6855 = vpop.f32.mrf.mxu0
      %v6856 = vpop.f32.mrf.mxu0
      %v6857 = vadd.f32 0.0, %v6856
      %v6858 = vpop.f32.mrf.mxu0
      %6859 = vmatprep.mubr.bf16.mxu0 0
      %6860 = vmatmul.mubr.bf16.gmra.mxu0 %v6691
      %v6861 = vpop.f32.mrf.mxu0
      %v6862 = vadd.f32 0.0, %v6861
      %v6863 = vpop.f32.mrf.mxu0
      %v6864 = vpop.f32.mrf.mxu0
      %v6865 = vadd.f32 0.0, %v6864
      %v6866 = vpop.f32.mrf.mxu0
      %6867 = vmatprep.mubr.bf16.mxu0 0
      %6868 = vmatmul.mubr.bf16.gmra.mxu0 %v6692
      %v6869 = vpop.f32.mrf.mxu0
      %v6870 = vadd.f32 0.0, %v6869
      %v6871 = vpop.f32.mrf.mxu0
      %v6872 = vpop.f32.mrf.mxu0
      %v6873 = vadd.f32 0.0, %v6872
      %v6874 = vpop.f32.mrf.mxu0
      %6875 = vmatprep.mubr.bf16.mxu0 0
      %6876 = vmatmul.mubr.bf16.gmra.mxu0 %v6693
      %v6877 = vpop.f32.mrf.mxu0
      %v6878 = vadd.f32 0.0, %v6877
      %v6879 = vpop.f32.mrf.mxu0
      %v6880 = vpop.f32.mrf.mxu0
      %v6881 = vadd.f32 0.0, %v6880
      %v6882 = vpop.f32.mrf.mxu0
      %6883 = vmatprep.mubr.bf16.mxu0 0
      %6884 = vmatmul.mubr.bf16.gmra.mxu0 %v6694
      %v6885 = vpop.f32.mrf.mxu0
      %v6886 = vadd.f32 0.0, %v6885
      %v6887 = vpop.f32.mrf.mxu0
      %v6888 = vpop.f32.mrf.mxu0
      %v6889 = vadd.f32 0.0, %v6888
      %v6890 = vpop.f32.mrf.mxu0
      %6891 = vmatprep.mubr.bf16.mxu0 0
      %6892 = vmatmul.mubr.bf16.gmra.mxu0 %v6695
      %v6893 = vpop.f32.mrf.mxu0
      %v6894 = vadd.f32 0.0, %v6893
      %v6895 = vpop.f32.mrf.mxu0
      %v6896 = vpop.f32.mrf.mxu0
      %v6897 = vadd.f32 0.0, %v6896
      %v6898 = vpop.f32.mrf.mxu0
      %6899 = vmatprep.mubr.bf16.mxu0 0
      %6900 = vmatmul.mubr.bf16.gmra.mxu0 %v6696
      %v6901 = vpop.f32.mrf.mxu0
      %v6902 = vadd.f32 0.0, %v6901
      %v6903 = vpop.f32.mrf.mxu0
      %v6904 = vpop.f32.mrf.mxu0
      %v6905 = vadd.f32 0.0, %v6904
      %v6906 = vpop.f32.mrf.mxu0
      %6907 = vmatprep.mubr.bf16.mxu0 0
      %6908 = vmatmul.mubr.bf16.gmra.mxu0 %v6697
      %v6909 = vpop.f32.mrf.mxu0
      %v6910 = vadd.f32 0.0, %v6909
      %v6911 = vpop.f32.mrf.mxu0
      %v6912 = vpop.f32.mrf.mxu0
      %v6913 = vadd.f32 0.0, %v6912
      %v6914 = vpop.f32.mrf.mxu0
      %6915 = vmatprep.mubr.bf16.mxu0 0
      %6916 = vmatmul.mubr.bf16.gmra.mxu0 %v6698
      %v6917 = vpop.f32.mrf.mxu0
      %v6918 = vadd.f32 0.0, %v6917
      %v6919 = vpop.f32.mrf.mxu0
      %v6920 = vpop.f32.mrf.mxu0
      %v6921 = vadd.f32 0.0, %v6920
      %v6922 = vpop.f32.mrf.mxu0
      %6923 = vdwg.mxu0
      %v6956 = vunpack.c.l.b16 %v6186
      %v6957 = vunpack.c.l.b16 %v6187
      %v6958 = vunpack.c.l.b16 %v6188
      %v6959 = vunpack.c.l.b16 %v6189
      %v6960 = vunpack.c.l.b16 %v6190
      %v6961 = vunpack.c.l.b16 %v6191
      %v6962 = vunpack.c.l.b16 %v6192
      %v6963 = vunpack.c.l.b16 %v6193
      %v6964 = vunpack.c.l.b16 %v6194
      %v6965 = vunpack.c.l.b16 %v6195
      %v6966 = vunpack.c.l.b16 %v6196
      %v6967 = vunpack.c.l.b16 %v6197
      %v6968 = vunpack.c.l.b16 %v6198
      %v6969 = vunpack.c.l.b16 %v6199
      %v6970 = vunpack.c.l.b16 %v6200
      %v6971 = vunpack.c.l.b16 %v6201
      %v6972 = vunpack.c.l.b16 %v6202
      %v6973 = vunpack.c.l.b16 %v6203
      %v6974 = vunpack.c.l.b16 %v6204
      %v6975 = vunpack.c.l.b16 %v6205
      %v6976 = vunpack.c.l.b16 %v6206
      %v6977 = vunpack.c.l.b16 %v6207
      %v6978 = vunpack.c.l.b16 %v6208
      %v6979 = vunpack.c.l.b16 %v6209
      %v6980 = vunpack.c.l.b16 %v6210
      %v6981 = vunpack.c.l.b16 %v6211
      %v6982 = vunpack.c.l.b16 %v6212
      %v6983 = vunpack.c.l.b16 %v6213
      %v6984 = vunpack.c.l.b16 %v6214
      %v6985 = vunpack.c.l.b16 %v6215
      %v6986 = vunpack.c.l.b16 %v6216
      %v6987 = vunpack.c.l.b16 %v6217
      %v6988 = vpack.c.b16 %v6957, %v6956
      %v6989 = vpack.c.b16 %v6959, %v6958
      %v6990 = vpack.c.b16 %v6961, %v6960
      %v6991 = vpack.c.b16 %v6963, %v6962
      %v6992 = vpack.c.b16 %v6965, %v6964
      %v6993 = vpack.c.b16 %v6967, %v6966
      %v6994 = vpack.c.b16 %v6969, %v6968
      %v6995 = vpack.c.b16 %v6971, %v6970
      %v6996 = vpack.c.b16 %v6973, %v6972
      %v6997 = vpack.c.b16 %v6975, %v6974
      %v6998 = vpack.c.b16 %v6977, %v6976
      %v6999 = vpack.c.b16 %v6979, %v6978
      %v7000 = vpack.c.b16 %v6981, %v6980
      %v7001 = vpack.c.b16 %v6983, %v6982
      %v7002 = vpack.c.b16 %v6985, %v6984
      %v7003 = vpack.c.b16 %v6987, %v6986
      %v7036 = vunpack.c.l.b16 %v6218
      %v7037 = vunpack.c.l.b16 %v6219
      %v7038 = vunpack.c.l.b16 %v6220
      %v7039 = vunpack.c.l.b16 %v6221
      %v7040 = vunpack.c.l.b16 %v6222
      %v7041 = vunpack.c.l.b16 %v6223
      %v7042 = vunpack.c.l.b16 %v6224
      %v7043 = vunpack.c.l.b16 %v6225
      %v7044 = vunpack.c.l.b16 %v6226
      %v7045 = vunpack.c.l.b16 %v6227
      %v7046 = vunpack.c.l.b16 %v6228
      %v7047 = vunpack.c.l.b16 %v6229
      %v7048 = vunpack.c.l.b16 %v6230
      %v7049 = vunpack.c.l.b16 %v6231
      %v7050 = vunpack.c.l.b16 %v6232
      %v7051 = vunpack.c.l.b16 %v6233
      %v7052 = vpack.c.b16 %v7037, %v7036
      %v7053 = vpack.c.b16 %v7039, %v7038
      %v7054 = vpack.c.b16 %v7041, %v7040
      %v7055 = vpack.c.b16 %v7043, %v7042
      %v7056 = vpack.c.b16 %v7045, %v7044
      %v7057 = vpack.c.b16 %v7047, %v7046
      %v7058 = vpack.c.b16 %v7049, %v7048
      %v7059 = vpack.c.b16 %v7051, %v7050
      %7068 = vmatprep.subr.bf16.mxu0 0
      %7069 = vmatpush1.bf16.msra.mxu0 %v7059
      %7070 = vmatprep.subr.bf16.mxu0 0
      %7071 = vmatpush1.bf16.msra.mxu0 %v7058
      %7072 = vmatprep.subr.bf16.mxu0 0
      %7073 = vmatpush1.bf16.msra.mxu0 %v7057
      %7074 = vmatprep.subr.bf16.mxu0 0
      %7075 = vmatpush1.bf16.msra.mxu0 %v7056
      %7076 = vmatprep.subr.bf16.mxu0 0
      %7077 = vmatpush1.bf16.msra.mxu0 %v7055
      %7078 = vmatprep.subr.bf16.mxu0 0
      %7079 = vmatpush1.bf16.msra.mxu0 %v7054
      %7080 = vmatprep.subr.bf16.mxu0 0
      %7081 = vmatpush1.bf16.msra.mxu0 %v7053
      %7082 = vmatprep.subr.bf16.mxu0 0
      %7083 = vmatpush1.bf16.msra.mxu0 %v7052
      %7084 = vmatprep.subr.bf16.mxu0 0
      %7085 = vmatpush2.bf16.msra.mxu0 0
      %7086 = vmatprep.subr.bf16.mxu0 0
      %7087 = vmatpush2.bf16.msra.mxu0 0
      %7088 = vmatprep.subr.bf16.mxu0 0
      %7089 = vmatpush2.bf16.msra.mxu0 0
      %7090 = vmatprep.subr.bf16.mxu0 0
      %7091 = vmatpush2.bf16.msra.mxu0 0
      %7092 = vmatprep.subr.bf16.mxu0 0
      %7093 = vmatpush2.bf16.msra.mxu0 0
      %7094 = vmatprep.subr.bf16.mxu0 0
      %7095 = vmatpush2.bf16.msra.mxu0 0
      %7096 = vmatprep.subr.bf16.mxu0 0
      %7097 = vmatpush2.bf16.msra.mxu0 0
      %7098 = vmatprep.subr.bf16.mxu0 0
      %7099 = vmatpush2.bf16.msra.mxu0 0
      %7100 = vmatprep.mubr.bf16.mxu0 0
      %7101 = vmatmul.mubr.bf16.gmra.mxu0 %v6988
      %v7102 = vpop.f32.mrf.mxu0
      %v7103 = vadd.f32 %v6798, %v7102
      %v7104 = vpop.f32.mrf.mxu0
      %v7105 = vpop.f32.mrf.mxu0
      %v7106 = vadd.f32 %v6801, %v7105
      %v7107 = vpop.f32.mrf.mxu0
      %7108 = vmatprep.mubr.bf16.mxu0 0
      %7109 = vmatmul.mubr.bf16.gmra.mxu0 %v6989
      %v7110 = vpop.f32.mrf.mxu0
      %v7111 = vadd.f32 %v6806, %v7110
      %v7112 = vpop.f32.mrf.mxu0
      %v7113 = vpop.f32.mrf.mxu0
      %v7114 = vadd.f32 %v6809, %v7113
      %v7115 = vpop.f32.mrf.mxu0
      %7116 = vmatprep.mubr.bf16.mxu0 0
      %7117 = vmatmul.mubr.bf16.gmra.mxu0 %v6990
      %v7118 = vpop.f32.mrf.mxu0
      %v7119 = vadd.f32 %v6814, %v7118
      %v7120 = vpop.f32.mrf.mxu0
      %v7121 = vpop.f32.mrf.mxu0
      %v7122 = vadd.f32 %v6817, %v7121
      %v7123 = vpop.f32.mrf.mxu0
      %7124 = vmatprep.mubr.bf16.mxu0 0
      %7125 = vmatmul.mubr.bf16.gmra.mxu0 %v6991
      %v7126 = vpop.f32.mrf.mxu0
      %v7127 = vadd.f32 %v6822, %v7126
      %v7128 = vpop.f32.mrf.mxu0
      %v7129 = vpop.f32.mrf.mxu0
      %v7130 = vadd.f32 %v6825, %v7129
      %v7131 = vpop.f32.mrf.mxu0
      %7132 = vmatprep.mubr.bf16.mxu0 0
      %7133 = vmatmul.mubr.bf16.gmra.mxu0 %v6992
      %v7134 = vpop.f32.mrf.mxu0
      %v7135 = vadd.f32 %v6830, %v7134
      %v7136 = vpop.f32.mrf.mxu0
      %v7137 = vpop.f32.mrf.mxu0
      %v7138 = vadd.f32 %v6833, %v7137
      %v7139 = vpop.f32.mrf.mxu0
      %7140 = vmatprep.mubr.bf16.mxu0 0
      %7141 = vmatmul.mubr.bf16.gmra.mxu0 %v6993
      %v7142 = vpop.f32.mrf.mxu0
      %v7143 = vadd.f32 %v6838, %v7142
      %v7144 = vpop.f32.mrf.mxu0
      %v7145 = vpop.f32.mrf.mxu0
      %v7146 = vadd.f32 %v6841, %v7145
      %v7147 = vpop.f32.mrf.mxu0
      %7148 = vmatprep.mubr.bf16.mxu0 0
      %7149 = vmatmul.mubr.bf16.gmra.mxu0 %v6994
      %v7150 = vpop.f32.mrf.mxu0
      %v7151 = vadd.f32 %v6846, %v7150
      %v7152 = vpop.f32.mrf.mxu0
      %v7153 = vpop.f32.mrf.mxu0
      %v7154 = vadd.f32 %v6849, %v7153
      %v7155 = vpop.f32.mrf.mxu0
      %7156 = vmatprep.mubr.bf16.mxu0 0
      %7157 = vmatmul.mubr.bf16.gmra.mxu0 %v6995
      %v7158 = vpop.f32.mrf.mxu0
      %v7159 = vadd.f32 %v6854, %v7158
      %v7160 = vpop.f32.mrf.mxu0
      %v7161 = vpop.f32.mrf.mxu0
      %v7162 = vadd.f32 %v6857, %v7161
      %v7163 = vpop.f32.mrf.mxu0
      %7164 = vmatprep.mubr.bf16.mxu0 0
      %7165 = vmatmul.mubr.bf16.gmra.mxu0 %v6996
      %v7166 = vpop.f32.mrf.mxu0
      %v7167 = vadd.f32 %v6862, %v7166
      %v7168 = vpop.f32.mrf.mxu0
      %v7169 = vpop.f32.mrf.mxu0
      %v7170 = vadd.f32 %v6865, %v7169
      %v7171 = vpop.f32.mrf.mxu0
      %7172 = vmatprep.mubr.bf16.mxu0 0
      %7173 = vmatmul.mubr.bf16.gmra.mxu0 %v6997
      %v7174 = vpop.f32.mrf.mxu0
      %v7175 = vadd.f32 %v6870, %v7174
      %v7176 = vpop.f32.mrf.mxu0
      %v7177 = vpop.f32.mrf.mxu0
      %v7178 = vadd.f32 %v6873, %v7177
      %v7179 = vpop.f32.mrf.mxu0
      %7180 = vmatprep.mubr.bf16.mxu0 0
      %7181 = vmatmul.mubr.bf16.gmra.mxu0 %v6998
      %v7182 = vpop.f32.mrf.mxu0
      %v7183 = vadd.f32 %v6878, %v7182
      %v7184 = vpop.f32.mrf.mxu0
      %v7185 = vpop.f32.mrf.mxu0
      %v7186 = vadd.f32 %v6881, %v7185
      %v7187 = vpop.f32.mrf.mxu0
      %7188 = vmatprep.mubr.bf16.mxu0 0
      %7189 = vmatmul.mubr.bf16.gmra.mxu0 %v6999
      %v7190 = vpop.f32.mrf.mxu0
      %v7191 = vadd.f32 %v6886, %v7190
      %v7192 = vpop.f32.mrf.mxu0
      %v7193 = vpop.f32.mrf.mxu0
      %v7194 = vadd.f32 %v6889, %v7193
      %v7195 = vpop.f32.mrf.mxu0
      %7196 = vmatprep.mubr.bf16.mxu0 0
      %7197 = vmatmul.mubr.bf16.gmra.mxu0 %v7000
      %v7198 = vpop.f32.mrf.mxu0
      %v7199 = vadd.f32 %v6894, %v7198
      %v7200 = vpop.f32.mrf.mxu0
      %v7201 = vpop.f32.mrf.mxu0
      %v7202 = vadd.f32 %v6897, %v7201
      %v7203 = vpop.f32.mrf.mxu0
      %7204 = vmatprep.mubr.bf16.mxu0 0
      %7205 = vmatmul.mubr.bf16.gmra.mxu0 %v7001
      %v7206 = vpop.f32.mrf.mxu0
      %v7207 = vadd.f32 %v6902, %v7206
      %v7208 = vpop.f32.mrf.mxu0
      %v7209 = vpop.f32.mrf.mxu0
      %v7210 = vadd.f32 %v6905, %v7209
      %v7211 = vpop.f32.mrf.mxu0
      %7212 = vmatprep.mubr.bf16.mxu0 0
      %7213 = vmatmul.mubr.bf16.gmra.mxu0 %v7002
      %v7214 = vpop.f32.mrf.mxu0
      %v7215 = vadd.f32 %v6910, %v7214
      %v7216 = vpop.f32.mrf.mxu0
      %v7217 = vpop.f32.mrf.mxu0
      %v7218 = vadd.f32 %v6913, %v7217
      %v7219 = vpop.f32.mrf.mxu0
      %7220 = vmatprep.mubr.bf16.mxu0 0
      %7221 = vmatmul.mubr.bf16.gmra.mxu0 %v7003
      %v7222 = vpop.f32.mrf.mxu0
      %v7223 = vadd.f32 %v6918, %v7222
      %v7224 = vpop.f32.mrf.mxu0
      %v7225 = vpop.f32.mrf.mxu0
      %v7226 = vadd.f32 %v6921, %v7225
      %v7227 = vpop.f32.mrf.mxu0
      %7228 = vdwg.mxu0
      %v7229 = vld [vmem:[#allocation3] sm:$0xe]
      %v7230 = vld [vmem:[#allocation3 + $0xc] sm:$0xe]
      %v7231 = vld [vmem:[#allocation3 + $0x18] sm:$0xe]
      %v7232 = vld [vmem:[#allocation3 + $0x24] sm:$0xe]
      %v7233 = vld [vmem:[#allocation3 + $0x30] sm:$0xe]
      %v7234 = vld [vmem:[#allocation3 + $0x3c] sm:$0xe]
      %v7235 = vld [vmem:[#allocation3 + $0x48] sm:$0xe]
      %v7236 = vld [vmem:[#allocation3 + $0x54] sm:$0xe]
      %v7237 = vld [vmem:[#allocation3 + $0x60] sm:$0xe]
      %v7238 = vld [vmem:[#allocation3 + $0x6c] sm:$0xe]
      %v7239 = vld [vmem:[#allocation3 + $0x78] sm:$0xe]
      %v7240 = vld [vmem:[#allocation3 + $0x84] sm:$0xe]
      %v7241 = vld [vmem:[#allocation3 + $0x90] sm:$0xe]
      %v7242 = vld [vmem:[#allocation3 + $0x9c] sm:$0xe]
      %v7243 = vld [vmem:[#allocation3 + $0xa8] sm:$0xe]
      %v7244 = vld [vmem:[#allocation3 + $0xb4] sm:$0xe]
      %v7277 = vrot.slane %v7229, 5
      %v7278 = vrot.slane %v7277, 4
      %v7279 = vrot.slane %v6187, 5
      %v7280 = vsel %vm1876, %v7278, %v7279
      %v7281 = vrot.slane %v7279, 4
      %v7282 = vrot.slane %v6234, 5
      %v7283 = vsel %vm1876, %v7281, %v7282
      %v7284 = vrot.slane %v7230, 5
      %v7285 = vrot.slane %v7284, 4
      %v7286 = vrot.slane %v6189, 5
      %v7287 = vsel %vm1876, %v7285, %v7286
      %v7288 = vrot.slane %v7286, 4
      %v7289 = vrot.slane %v6235, 5
      %v7290 = vsel %vm1876, %v7288, %v7289
      %v7291 = vrot.slane %v7231, 5
      %v7292 = vrot.slane %v7291, 4
      %v7293 = vrot.slane %v6191, 5
      %v7294 = vsel %vm1876, %v7292, %v7293
      %v7295 = vrot.slane %v7293, 4
      %v7296 = vrot.slane %v6236, 5
      %v7297 = vsel %vm1876, %v7295, %v7296
      %v7298 = vrot.slane %v7232, 5
      %v7299 = vrot.slane %v7298, 4
      %v7300 = vrot.slane %v6193, 5
      %v7301 = vsel %vm1876, %v7299, %v7300
      %v7302 = vrot.slane %v7300, 4
      %v7303 = vrot.slane %v6237, 5
      %v7304 = vsel %vm1876, %v7302, %v7303
      %v7305 = vrot.slane %v7233, 5
      %v7306 = vrot.slane %v7305, 4
      %v7307 = vrot.slane %v6195, 5
      %v7308 = vsel %vm1876, %v7306, %v7307
      %v7309 = vrot.slane %v7307, 4
      %v7310 = vrot.slane %v6238, 5
      %v7311 = vsel %vm1876, %v7309, %v7310
      %v7312 = vrot.slane %v7234, 5
      %v7313 = vrot.slane %v7312, 4
      %v7314 = vrot.slane %v6197, 5
      %v7315 = vsel %vm1876, %v7313, %v7314
      %v7316 = vrot.slane %v7314, 4
      %v7317 = vrot.slane %v6239, 5
      %v7318 = vsel %vm1876, %v7316, %v7317
      %v7319 = vrot.slane %v7235, 5
      %v7320 = vrot.slane %v7319, 4
      %v7321 = vrot.slane %v6199, 5
      %v7322 = vsel %vm1876, %v7320, %v7321
      %v7323 = vrot.slane %v7321, 4
      %v7324 = vrot.slane %v6240, 5
      %v7325 = vsel %vm1876, %v7323, %v7324
      %v7326 = vrot.slane %v7236, 5
      %v7327 = vrot.slane %v7326, 4
      %v7328 = vrot.slane %v6201, 5
      %v7329 = vsel %vm1876, %v7327, %v7328
      %v7330 = vrot.slane %v7328, 4
      %v7331 = vrot.slane %v6241, 5
      %v7332 = vsel %vm1876, %v7330, %v7331
      %v7333 = vrot.slane %v7237, 5
      %v7334 = vrot.slane %v7333, 4
      %v7335 = vrot.slane %v6203, 5
      %v7336 = vsel %vm1876, %v7334, %v7335
      %v7337 = vrot.slane %v7335, 4
      %v7338 = vrot.slane %v6242, 5
      %v7339 = vsel %vm1876, %v7337, %v7338
      %v7340 = vrot.slane %v7238, 5
      %v7341 = vrot.slane %v7340, 4
      %v7342 = vrot.slane %v6205, 5
      %v7343 = vsel %vm1876, %v7341, %v7342
      %v7344 = vrot.slane %v7342, 4
      %v7345 = vrot.slane %v6243, 5
      %v7346 = vsel %vm1876, %v7344, %v7345
      %v7347 = vrot.slane %v7239, 5
      %v7348 = vrot.slane %v7347, 4
      %v7349 = vrot.slane %v6207, 5
      %v7350 = vsel %vm1876, %v7348, %v7349
      %v7351 = vrot.slane %v7349, 4
      %v7352 = vrot.slane %v6244, 5
      %v7353 = vsel %vm1876, %v7351, %v7352
      %v7354 = vrot.slane %v7240, 5
      %v7355 = vrot.slane %v7354, 4
      %v7356 = vrot.slane %v6209, 5
      %v7357 = vsel %vm1876, %v7355, %v7356
      %v7358 = vrot.slane %v7356, 4
      %v7359 = vrot.slane %v6245, 5
      %v7360 = vsel %vm1876, %v7358, %v7359
      %v7361 = vrot.slane %v7241, 5
      %v7362 = vrot.slane %v7361, 4
      %v7363 = vrot.slane %v6211, 5
      %v7364 = vsel %vm1876, %v7362, %v7363
      %v7365 = vrot.slane %v7363, 4
      %v7366 = vrot.slane %v6246, 5
      %v7367 = vsel %vm1876, %v7365, %v7366
      %v7368 = vrot.slane %v7242, 5
      %v7369 = vrot.slane %v7368, 4
      %v7370 = vrot.slane %v6213, 5
      %v7371 = vsel %vm1876, %v7369, %v7370
      %v7372 = vrot.slane %v7370, 4
      %v7373 = vrot.slane %v6247, 5
      %v7374 = vsel %vm1876, %v7372, %v7373
      %v7375 = vrot.slane %v7243, 5
      %v7376 = vrot.slane %v7375, 4
      %v7377 = vrot.slane %v6215, 5
      %v7378 = vsel %vm1876, %v7376, %v7377
      %v7379 = vrot.slane %v7377, 4
      %v7380 = vrot.slane %v6248, 5
      %v7381 = vsel %vm1876, %v7379, %v7380
      %v7382 = vrot.slane %v7244, 5
      %v7383 = vrot.slane %v7382, 4
      %v7384 = vrot.slane %v6217, 5
      %v7385 = vsel %vm1876, %v7383, %v7384
      %v7386 = vrot.slane %v7384, 4
      %v7387 = vrot.slane %v6249, 5
      %v7388 = vsel %vm1876, %v7386, %v7387
      %s7389 = scalar_lea.vmem %s2, 128
      %v7390 = vld [vmem:[%s7389] sm:$0xf]
      %v7391 = vld [vmem:[%s7389 + $0x4] sm:$0xf]
      %v7392 = vld [vmem:[%s7389 + $0x8] sm:$0xf]
      %v7393 = vld [vmem:[%s7389 + $0xc] sm:$0xf]
      %v7394 = vld [vmem:[%s7389 + $0x10] sm:$0xf]
      %v7395 = vld [vmem:[%s7389 + $0x14] sm:$0xf]
      %v7396 = vld [vmem:[%s7389 + $0x18] sm:$0xf]
      %v7397 = vld [vmem:[%s7389 + $0x1c] sm:$0xf]
      %v7398 = vld [vmem:[%s7389 + $0x20] sm:$0xf]
      %v7399 = vld [vmem:[%s7389 + $0x24] sm:$0xf]
      %v7400 = vld [vmem:[%s7389 + $0x28] sm:$0xf]
      %v7401 = vld [vmem:[%s7389 + $0x2c] sm:$0xf]
      %v7402 = vld [vmem:[%s7389 + $0x30] sm:$0xf]
      %v7403 = vld [vmem:[%s7389 + $0x34] sm:$0xf]
      %v7404 = vld [vmem:[%s7389 + $0x38] sm:$0xf]
      %v7405 = vld [vmem:[%s7389 + $0x3c] sm:$0xf]
      %v7406 = vunpack.c.l.b16 %v7280
      %v7407 = vunpack.c.l.b16 %v7283
      %v7408 = vunpack.c.l.b16 %v7287
      %v7409 = vunpack.c.l.b16 %v7290
      %v7410 = vunpack.c.l.b16 %v7294
      %v7411 = vunpack.c.l.b16 %v7297
      %v7412 = vunpack.c.l.b16 %v7301
      %v7413 = vunpack.c.l.b16 %v7304
      %v7414 = vunpack.c.l.b16 %v7308
      %v7415 = vunpack.c.l.b16 %v7311
      %v7416 = vunpack.c.l.b16 %v7315
      %v7417 = vunpack.c.l.b16 %v7318
      %v7418 = vunpack.c.l.b16 %v7322
      %v7419 = vunpack.c.l.b16 %v7325
      %v7420 = vunpack.c.l.b16 %v7329
      %v7421 = vunpack.c.l.b16 %v7332
      %v7422 = vunpack.c.l.b16 %v7336
      %v7423 = vunpack.c.l.b16 %v7339
      %v7424 = vunpack.c.l.b16 %v7343
      %v7425 = vunpack.c.l.b16 %v7346
      %v7426 = vunpack.c.l.b16 %v7350
      %v7427 = vunpack.c.l.b16 %v7353
      %v7428 = vunpack.c.l.b16 %v7357
      %v7429 = vunpack.c.l.b16 %v7360
      %v7430 = vunpack.c.l.b16 %v7364
      %v7431 = vunpack.c.l.b16 %v7367
      %v7432 = vunpack.c.l.b16 %v7371
      %v7433 = vunpack.c.l.b16 %v7374
      %v7434 = vunpack.c.l.b16 %v7378
      %v7435 = vunpack.c.l.b16 %v7381
      %v7436 = vunpack.c.l.b16 %v7385
      %v7437 = vunpack.c.l.b16 %v7388
      %v7438 = vpack.c.b16 %v7407, %v7406
      %v7439 = vpack.c.b16 %v7409, %v7408
      %v7440 = vpack.c.b16 %v7411, %v7410
      %v7441 = vpack.c.b16 %v7413, %v7412
      %v7442 = vpack.c.b16 %v7415, %v7414
      %v7443 = vpack.c.b16 %v7417, %v7416
      %v7444 = vpack.c.b16 %v7419, %v7418
      %v7445 = vpack.c.b16 %v7421, %v7420
      %v7446 = vpack.c.b16 %v7423, %v7422
      %v7447 = vpack.c.b16 %v7425, %v7424
      %v7448 = vpack.c.b16 %v7427, %v7426
      %v7449 = vpack.c.b16 %v7429, %v7428
      %v7450 = vpack.c.b16 %v7431, %v7430
      %v7451 = vpack.c.b16 %v7433, %v7432
      %v7452 = vpack.c.b16 %v7435, %v7434
      %v7453 = vpack.c.b16 %v7437, %v7436
      %v7486 = vunpack.c.l.b16 %v7390
      %v7487 = vunpack.c.l.b16 %v7391
      %v7488 = vunpack.c.l.b16 %v7392
      %v7489 = vunpack.c.l.b16 %v7393
      %v7490 = vunpack.c.l.b16 %v7394
      %v7491 = vunpack.c.l.b16 %v7395
      %v7492 = vunpack.c.l.b16 %v7396
      %v7493 = vunpack.c.l.b16 %v7397
      %v7494 = vunpack.c.l.b16 %v7398
      %v7495 = vunpack.c.l.b16 %v7399
      %v7496 = vunpack.c.l.b16 %v7400
      %v7497 = vunpack.c.l.b16 %v7401
      %v7498 = vunpack.c.l.b16 %v7402
      %v7499 = vunpack.c.l.b16 %v7403
      %v7500 = vunpack.c.l.b16 %v7404
      %v7501 = vunpack.c.l.b16 %v7405
      %v7502 = vpack.c.b16 %v7487, %v7486
      %v7503 = vpack.c.b16 %v7489, %v7488
      %v7504 = vpack.c.b16 %v7491, %v7490
      %v7505 = vpack.c.b16 %v7493, %v7492
      %v7506 = vpack.c.b16 %v7495, %v7494
      %v7507 = vpack.c.b16 %v7497, %v7496
      %v7508 = vpack.c.b16 %v7499, %v7498
      %v7509 = vpack.c.b16 %v7501, %v7500
      %7518 = vmatprep.subr.bf16.mxu0 0
      %7519 = vmatpush1.bf16.msra.mxu0 %v7509
      %7520 = vmatprep.subr.bf16.mxu0 0
      %7521 = vmatpush1.bf16.msra.mxu0 %v7508
      %7522 = vmatprep.subr.bf16.mxu0 0
      %7523 = vmatpush1.bf16.msra.mxu0 %v7507
      %7524 = vmatprep.subr.bf16.mxu0 0
      %7525 = vmatpush1.bf16.msra.mxu0 %v7506
      %7526 = vmatprep.subr.bf16.mxu0 0
      %7527 = vmatpush1.bf16.msra.mxu0 %v7505
      %7528 = vmatprep.subr.bf16.mxu0 0
      %7529 = vmatpush1.bf16.msra.mxu0 %v7504
      %7530 = vmatprep.subr.bf16.mxu0 0
      %7531 = vmatpush1.bf16.msra.mxu0 %v7503
      %7532 = vmatprep.subr.bf16.mxu0 0
      %7533 = vmatpush1.bf16.msra.mxu0 %v7502
      %7534 = vmatprep.subr.bf16.mxu0 0
      %7535 = vmatpush2.bf16.msra.mxu0 0
      %7536 = vmatprep.subr.bf16.mxu0 0
      %7537 = vmatpush2.bf16.msra.mxu0 0
      %7538 = vmatprep.subr.bf16.mxu0 0
      %7539 = vmatpush2.bf16.msra.mxu0 0
      %7540 = vmatprep.subr.bf16.mxu0 0
      %7541 = vmatpush2.bf16.msra.mxu0 0
      %7542 = vmatprep.subr.bf16.mxu0 0
      %7543 = vmatpush2.bf16.msra.mxu0 0
      %7544 = vmatprep.subr.bf16.mxu0 0
      %7545 = vmatpush2.bf16.msra.mxu0 0
      %7546 = vmatprep.subr.bf16.mxu0 0
      %7547 = vmatpush2.bf16.msra.mxu0 0
      %7548 = vmatprep.subr.bf16.mxu0 0
      %7549 = vmatpush2.bf16.msra.mxu0 0
      %7550 = vmatprep.mubr.bf16.mxu0 0
      %7551 = vmatmul.mubr.bf16.gmra.mxu0 %v7438
      %v7552 = vpop.f32.mrf.mxu0
      %v7553 = vadd.f32 0.0, %v7552
      %v7554 = vpop.f32.mrf.mxu0
      %v7555 = vpop.f32.mrf.mxu0
      %v7556 = vadd.f32 0.0, %v7555
      %v7557 = vpop.f32.mrf.mxu0
      %7558 = vmatprep.mubr.bf16.mxu0 0
      %7559 = vmatmul.mubr.bf16.gmra.mxu0 %v7439
      %v7560 = vpop.f32.mrf.mxu0
      %v7561 = vadd.f32 0.0, %v7560
      %v7562 = vpop.f32.mrf.mxu0
      %v7563 = vpop.f32.mrf.mxu0
      %v7564 = vadd.f32 0.0, %v7563
      %v7565 = vpop.f32.mrf.mxu0
      %7566 = vmatprep.mubr.bf16.mxu0 0
      %7567 = vmatmul.mubr.bf16.gmra.mxu0 %v7440
      %v7568 = vpop.f32.mrf.mxu0
      %v7569 = vadd.f32 0.0, %v7568
      %v7570 = vpop.f32.mrf.mxu0
      %v7571 = vpop.f32.mrf.mxu0
      %v7572 = vadd.f32 0.0, %v7571
      %v7573 = vpop.f32.mrf.mxu0
      %7574 = vmatprep.mubr.bf16.mxu0 0
      %7575 = vmatmul.mubr.bf16.gmra.mxu0 %v7441
      %v7576 = vpop.f32.mrf.mxu0
      %v7577 = vadd.f32 0.0, %v7576
      %v7578 = vpop.f32.mrf.mxu0
      %v7579 = vpop.f32.mrf.mxu0
      %v7580 = vadd.f32 0.0, %v7579
      %v7581 = vpop.f32.mrf.mxu0
      %7582 = vmatprep.mubr.bf16.mxu0 0
      %7583 = vmatmul.mubr.bf16.gmra.mxu0 %v7442
      %v7584 = vpop.f32.mrf.mxu0
      %v7585 = vadd.f32 0.0, %v7584
      %v7586 = vpop.f32.mrf.mxu0
      %v7587 = vpop.f32.mrf.mxu0
      %v7588 = vadd.f32 0.0, %v7587
      %v7589 = vpop.f32.mrf.mxu0
      %7590 = vmatprep.mubr.bf16.mxu0 0
      %7591 = vmatmul.mubr.bf16.gmra.mxu0 %v7443
      %v7592 = vpop.f32.mrf.mxu0
      %v7593 = vadd.f32 0.0, %v7592
      %v7594 = vpop.f32.mrf.mxu0
      %v7595 = vpop.f32.mrf.mxu0
      %v7596 = vadd.f32 0.0, %v7595
      %v7597 = vpop.f32.mrf.mxu0
      %7598 = vmatprep.mubr.bf16.mxu0 0
      %7599 = vmatmul.mubr.bf16.gmra.mxu0 %v7444
      %v7600 = vpop.f32.mrf.mxu0
      %v7601 = vadd.f32 0.0, %v7600
      %v7602 = vpop.f32.mrf.mxu0
      %v7603 = vpop.f32.mrf.mxu0
      %v7604 = vadd.f32 0.0, %v7603
      %v7605 = vpop.f32.mrf.mxu0
      %7606 = vmatprep.mubr.bf16.mxu0 0
      %7607 = vmatmul.mubr.bf16.gmra.mxu0 %v7445
      %v7608 = vpop.f32.mrf.mxu0
      %v7609 = vadd.f32 0.0, %v7608
      %v7610 = vpop.f32.mrf.mxu0
      %v7611 = vpop.f32.mrf.mxu0
      %v7612 = vadd.f32 0.0, %v7611
      %v7613 = vpop.f32.mrf.mxu0
      %7614 = vmatprep.mubr.bf16.mxu0 0
      %7615 = vmatmul.mubr.bf16.gmra.mxu0 %v7446
      %v7616 = vpop.f32.mrf.mxu0
      %v7617 = vadd.f32 0.0, %v7616
      %v7618 = vpop.f32.mrf.mxu0
      %v7619 = vpop.f32.mrf.mxu0
      %v7620 = vadd.f32 0.0, %v7619
      %v7621 = vpop.f32.mrf.mxu0
      %7622 = vmatprep.mubr.bf16.mxu0 0
      %7623 = vmatmul.mubr.bf16.gmra.mxu0 %v7447
      %v7624 = vpop.f32.mrf.mxu0
      %v7625 = vadd.f32 0.0, %v7624
      %v7626 = vpop.f32.mrf.mxu0
      %v7627 = vpop.f32.mrf.mxu0
      %v7628 = vadd.f32 0.0, %v7627
      %v7629 = vpop.f32.mrf.mxu0
      %7630 = vmatprep.mubr.bf16.mxu0 0
      %7631 = vmatmul.mubr.bf16.gmra.mxu0 %v7448
      %v7632 = vpop.f32.mrf.mxu0
      %v7633 = vadd.f32 0.0, %v7632
      %v7634 = vpop.f32.mrf.mxu0
      %v7635 = vpop.f32.mrf.mxu0
      %v7636 = vadd.f32 0.0, %v7635
      %v7637 = vpop.f32.mrf.mxu0
      %7638 = vmatprep.mubr.bf16.mxu0 0
      %7639 = vmatmul.mubr.bf16.gmra.mxu0 %v7449
      %v7640 = vpop.f32.mrf.mxu0
      %v7641 = vadd.f32 0.0, %v7640
      %v7642 = vpop.f32.mrf.mxu0
      %v7643 = vpop.f32.mrf.mxu0
      %v7644 = vadd.f32 0.0, %v7643
      %v7645 = vpop.f32.mrf.mxu0
      %7646 = vmatprep.mubr.bf16.mxu0 0
      %7647 = vmatmul.mubr.bf16.gmra.mxu0 %v7450
      %v7648 = vpop.f32.mrf.mxu0
      %v7649 = vadd.f32 0.0, %v7648
      %v7650 = vpop.f32.mrf.mxu0
      %v7651 = vpop.f32.mrf.mxu0
      %v7652 = vadd.f32 0.0, %v7651
      %v7653 = vpop.f32.mrf.mxu0
      %7654 = vmatprep.mubr.bf16.mxu0 0
      %7655 = vmatmul.mubr.bf16.gmra.mxu0 %v7451
      %v7656 = vpop.f32.mrf.mxu0
      %v7657 = vadd.f32 0.0, %v7656
      %v7658 = vpop.f32.mrf.mxu0
      %v7659 = vpop.f32.mrf.mxu0
      %v7660 = vadd.f32 0.0, %v7659
      %v7661 = vpop.f32.mrf.mxu0
      %7662 = vmatprep.mubr.bf16.mxu0 0
      %7663 = vmatmul.mubr.bf16.gmra.mxu0 %v7452
      %v7664 = vpop.f32.mrf.mxu0
      %v7665 = vadd.f32 0.0, %v7664
      %v7666 = vpop.f32.mrf.mxu0
      %v7667 = vpop.f32.mrf.mxu0
      %v7668 = vadd.f32 0.0, %v7667
      %v7669 = vpop.f32.mrf.mxu0
      %7670 = vmatprep.mubr.bf16.mxu0 0
      %7671 = vmatmul.mubr.bf16.gmra.mxu0 %v7453
      %v7672 = vpop.f32.mrf.mxu0
      %v7673 = vadd.f32 0.0, %v7672
      %v7674 = vpop.f32.mrf.mxu0
      %v7675 = vpop.f32.mrf.mxu0
      %v7676 = vadd.f32 0.0, %v7675
      %v7677 = vpop.f32.mrf.mxu0
      %7678 = vdwg.mxu0
      %v7679 = vadd.f32 %v7103, %v7553
      %v7680 = vadd.f32 %v7106, %v7556
      %v7681 = vadd.f32 %v7111, %v7561
      %v7682 = vadd.f32 %v7114, %v7564
      %v7683 = vadd.f32 %v7119, %v7569
      %v7684 = vadd.f32 %v7122, %v7572
      %v7685 = vadd.f32 %v7127, %v7577
      %v7686 = vadd.f32 %v7130, %v7580
      %v7687 = vadd.f32 %v7135, %v7585
      %v7688 = vadd.f32 %v7138, %v7588
      %v7689 = vadd.f32 %v7143, %v7593
      %v7690 = vadd.f32 %v7146, %v7596
      %v7691 = vadd.f32 %v7151, %v7601
      %v7692 = vadd.f32 %v7154, %v7604
      %v7693 = vadd.f32 %v7159, %v7609
      %v7694 = vadd.f32 %v7162, %v7612
      %v7695 = vadd.f32 %v7167, %v7617
      %v7696 = vadd.f32 %v7170, %v7620
      %v7697 = vadd.f32 %v7175, %v7625
      %v7698 = vadd.f32 %v7178, %v7628
      %v7699 = vadd.f32 %v7183, %v7633
      %v7700 = vadd.f32 %v7186, %v7636
      %v7701 = vadd.f32 %v7191, %v7641
      %v7702 = vadd.f32 %v7194, %v7644
      %v7703 = vadd.f32 %v7199, %v7649
      %v7704 = vadd.f32 %v7202, %v7652
      %v7705 = vadd.f32 %v7207, %v7657
      %v7706 = vadd.f32 %v7210, %v7660
      %v7707 = vadd.f32 %v7215, %v7665
      %v7708 = vadd.f32 %v7218, %v7668
      %v7709 = vadd.f32 %v7223, %v7673
      %v7710 = vadd.f32 %v7226, %v7676
      %v7711 = vld [vmem:[%s6073] sm:$0xf]
      %v7712 = vld [vmem:[%s6073 + $0x4] sm:$0xf]
      %v7713 = vld [vmem:[%s6073 + $0xc] sm:$0xf]
      %v7714 = vld [vmem:[%s6073 + $0x10] sm:$0xf]
      %v7715 = vld [vmem:[%s6073 + $0x18] sm:$0xf]
      %v7716 = vld [vmem:[%s6073 + $0x1c] sm:$0xf]
      %v7717 = vld [vmem:[%s6073 + $0x24] sm:$0xf]
      %v7718 = vld [vmem:[%s6073 + $0x28] sm:$0xf]
      %v7719 = vld [vmem:[%s6073 + $0x30] sm:$0xf]
      %v7720 = vld [vmem:[%s6073 + $0x34] sm:$0xf]
      %v7721 = vld [vmem:[%s6073 + $0x3c] sm:$0xf]
      %v7722 = vld [vmem:[%s6073 + $0x40] sm:$0xf]
      %v7723 = vld [vmem:[%s6073 + $0x48] sm:$0xf]
      %v7724 = vld [vmem:[%s6073 + $0x4c] sm:$0xf]
      %v7725 = vld [vmem:[%s6073 + $0x54] sm:$0xf]
      %v7726 = vld [vmem:[%s6073 + $0x58] sm:$0xf]
      %v7727 = vld [vmem:[%s6073 + $0x60] sm:$0xf]
      %v7728 = vld [vmem:[%s6073 + $0x64] sm:$0xf]
      %v7729 = vld [vmem:[%s6073 + $0x6c] sm:$0xf]
      %v7730 = vld [vmem:[%s6073 + $0x70] sm:$0xf]
      %v7731 = vld [vmem:[%s6073 + $0x78] sm:$0xf]
      %v7732 = vld [vmem:[%s6073 + $0x7c] sm:$0xf]
      %v7733 = vld [vmem:[%s6073 + $0x84] sm:$0xf]
      %v7734 = vld [vmem:[%s6073 + $0x88] sm:$0xf]
      %v7735 = vld [vmem:[%s6073 + $0x90] sm:$0xf]
      %v7736 = vld [vmem:[%s6073 + $0x94] sm:$0xf]
      %v7737 = vld [vmem:[%s6073 + $0x9c] sm:$0xf]
      %v7738 = vld [vmem:[%s6073 + $0xa0] sm:$0xf]
      %v7739 = vld [vmem:[%s6073 + $0xa8] sm:$0xf]
      %v7740 = vld [vmem:[%s6073 + $0xac] sm:$0xf]
      %v7741 = vld [vmem:[%s6073 + $0xb4] sm:$0xf]
      %v7742 = vld [vmem:[%s6073 + $0xb8] sm:$0xf]
      %s7743 = scalar_lea.vmem %s2, 192
      %v7744 = vld [vmem:[%s7743] sm:$0xf]
      %v7745 = vld [vmem:[%s7743 + $0x4] sm:$0xf]
      %v7746 = vld [vmem:[%s7743 + $0x8] sm:$0xf]
      %v7747 = vld [vmem:[%s7743 + $0xc] sm:$0xf]
      %v7748 = vld [vmem:[%s7743 + $0x10] sm:$0xf]
      %v7749 = vld [vmem:[%s7743 + $0x14] sm:$0xf]
      %v7750 = vld [vmem:[%s7743 + $0x18] sm:$0xf]
      %v7751 = vld [vmem:[%s7743 + $0x1c] sm:$0xf]
      %v7752 = vld [vmem:[%s7743 + $0x20] sm:$0xf]
      %v7753 = vld [vmem:[%s7743 + $0x24] sm:$0xf]
      %v7754 = vld [vmem:[%s7743 + $0x28] sm:$0xf]
      %v7755 = vld [vmem:[%s7743 + $0x2c] sm:$0xf]
      %v7756 = vld [vmem:[%s7743 + $0x30] sm:$0xf]
      %v7757 = vld [vmem:[%s7743 + $0x34] sm:$0xf]
      %v7758 = vld [vmem:[%s7743 + $0x38] sm:$0xf]
      %v7759 = vld [vmem:[%s7743 + $0x3c] sm:$0xf]
      %v7792 = vunpack.c.l.b16 %v7711
      %v7793 = vunpack.c.l.b16 %v7712
      %v7794 = vunpack.c.l.b16 %v7713
      %v7795 = vunpack.c.l.b16 %v7714
      %v7796 = vunpack.c.l.b16 %v7715
      %v7797 = vunpack.c.l.b16 %v7716
      %v7798 = vunpack.c.l.b16 %v7717
      %v7799 = vunpack.c.l.b16 %v7718
      %v7800 = vunpack.c.l.b16 %v7719
      %v7801 = vunpack.c.l.b16 %v7720
      %v7802 = vunpack.c.l.b16 %v7721
      %v7803 = vunpack.c.l.b16 %v7722
      %v7804 = vunpack.c.l.b16 %v7723
      %v7805 = vunpack.c.l.b16 %v7724
      %v7806 = vunpack.c.l.b16 %v7725
      %v7807 = vunpack.c.l.b16 %v7726
      %v7808 = vunpack.c.l.b16 %v7727
      %v7809 = vunpack.c.l.b16 %v7728
      %v7810 = vunpack.c.l.b16 %v7729
      %v7811 = vunpack.c.l.b16 %v7730
      %v7812 = vunpack.c.l.b16 %v7731
      %v7813 = vunpack.c.l.b16 %v7732
      %v7814 = vunpack.c.l.b16 %v7733
      %v7815 = vunpack.c.l.b16 %v7734
      %v7816 = vunpack.c.l.b16 %v7735
      %v7817 = vunpack.c.l.b16 %v7736
      %v7818 = vunpack.c.l.b16 %v7737
      %v7819 = vunpack.c.l.b16 %v7738
      %v7820 = vunpack.c.l.b16 %v7739
      %v7821 = vunpack.c.l.b16 %v7740
      %v7822 = vunpack.c.l.b16 %v7741
      %v7823 = vunpack.c.l.b16 %v7742
      %v7824 = vpack.c.b16 %v7793, %v7792
      %v7825 = vpack.c.b16 %v7795, %v7794
      %v7826 = vpack.c.b16 %v7797, %v7796
      %v7827 = vpack.c.b16 %v7799, %v7798
      %v7828 = vpack.c.b16 %v7801, %v7800
      %v7829 = vpack.c.b16 %v7803, %v7802
      %v7830 = vpack.c.b16 %v7805, %v7804
      %v7831 = vpack.c.b16 %v7807, %v7806
      %v7832 = vpack.c.b16 %v7809, %v7808
      %v7833 = vpack.c.b16 %v7811, %v7810
      %v7834 = vpack.c.b16 %v7813, %v7812
      %v7835 = vpack.c.b16 %v7815, %v7814
      %v7836 = vpack.c.b16 %v7817, %v7816
      %v7837 = vpack.c.b16 %v7819, %v7818
      %v7838 = vpack.c.b16 %v7821, %v7820
      %v7839 = vpack.c.b16 %v7823, %v7822
      %v7872 = vunpack.c.l.b16 %v7744
      %v7873 = vunpack.c.l.b16 %v7745
      %v7874 = vunpack.c.l.b16 %v7746
      %v7875 = vunpack.c.l.b16 %v7747
      %v7876 = vunpack.c.l.b16 %v7748
      %v7877 = vunpack.c.l.b16 %v7749
      %v7878 = vunpack.c.l.b16 %v7750
      %v7879 = vunpack.c.l.b16 %v7751
      %v7880 = vunpack.c.l.b16 %v7752
      %v7881 = vunpack.c.l.b16 %v7753
      %v7882 = vunpack.c.l.b16 %v7754
      %v7883 = vunpack.c.l.b16 %v7755
      %v7884 = vunpack.c.l.b16 %v7756
      %v7885 = vunpack.c.l.b16 %v7757
      %v7886 = vunpack.c.l.b16 %v7758
      %v7887 = vunpack.c.l.b16 %v7759
      %v7888 = vpack.c.b16 %v7873, %v7872
      %v7889 = vpack.c.b16 %v7875, %v7874
      %v7890 = vpack.c.b16 %v7877, %v7876
      %v7891 = vpack.c.b16 %v7879, %v7878
      %v7892 = vpack.c.b16 %v7881, %v7880
      %v7893 = vpack.c.b16 %v7883, %v7882
      %v7894 = vpack.c.b16 %v7885, %v7884
      %v7895 = vpack.c.b16 %v7887, %v7886
      %7904 = vmatprep.subr.bf16.mxu0 0
      %7905 = vmatpush1.bf16.msra.mxu0 %v7895
      %7906 = vmatprep.subr.bf16.mxu0 0
      %7907 = vmatpush1.bf16.msra.mxu0 %v7894
      %7908 = vmatprep.subr.bf16.mxu0 0
      %7909 = vmatpush1.bf16.msra.mxu0 %v7893
      %7910 = vmatprep.subr.bf16.mxu0 0
      %7911 = vmatpush1.bf16.msra.mxu0 %v7892
      %7912 = vmatprep.subr.bf16.mxu0 0
      %7913 = vmatpush1.bf16.msra.mxu0 %v7891
      %7914 = vmatprep.subr.bf16.mxu0 0
      %7915 = vmatpush1.bf16.msra.mxu0 %v7890
      %7916 = vmatprep.subr.bf16.mxu0 0
      %7917 = vmatpush1.bf16.msra.mxu0 %v7889
      %7918 = vmatprep.subr.bf16.mxu0 0
      %7919 = vmatpush1.bf16.msra.mxu0 %v7888
      %7920 = vmatprep.subr.bf16.mxu0 0
      %7921 = vmatpush2.bf16.msra.mxu0 0
      %7922 = vmatprep.subr.bf16.mxu0 0
      %7923 = vmatpush2.bf16.msra.mxu0 0
      %7924 = vmatprep.subr.bf16.mxu0 0
      %7925 = vmatpush2.bf16.msra.mxu0 0
      %7926 = vmatprep.subr.bf16.mxu0 0
      %7927 = vmatpush2.bf16.msra.mxu0 0
      %7928 = vmatprep.subr.bf16.mxu0 0
      %7929 = vmatpush2.bf16.msra.mxu0 0
      %7930 = vmatprep.subr.bf16.mxu0 0
      %7931 = vmatpush2.bf16.msra.mxu0 0
      %7932 = vmatprep.subr.bf16.mxu0 0
      %7933 = vmatpush2.bf16.msra.mxu0 0
      %7934 = vmatprep.subr.bf16.mxu0 0
      %7935 = vmatpush2.bf16.msra.mxu0 0
      %7936 = vmatprep.mubr.bf16.mxu0 0
      %7937 = vmatmul.mubr.bf16.gmra.mxu0 %v7824
      %v7938 = vpop.f32.mrf.mxu0
      %v7939 = vadd.f32 0.0, %v7938
      %v7940 = vpop.f32.mrf.mxu0
      %v7941 = vpop.f32.mrf.mxu0
      %v7942 = vadd.f32 0.0, %v7941
      %v7943 = vpop.f32.mrf.mxu0
      %7944 = vmatprep.mubr.bf16.mxu0 0
      %7945 = vmatmul.mubr.bf16.gmra.mxu0 %v7825
      %v7946 = vpop.f32.mrf.mxu0
      %v7947 = vadd.f32 0.0, %v7946
      %v7948 = vpop.f32.mrf.mxu0
      %v7949 = vpop.f32.mrf.mxu0
      %v7950 = vadd.f32 0.0, %v7949
      %v7951 = vpop.f32.mrf.mxu0
      %7952 = vmatprep.mubr.bf16.mxu0 0
      %7953 = vmatmul.mubr.bf16.gmra.mxu0 %v7826
      %v7954 = vpop.f32.mrf.mxu0
      %v7955 = vadd.f32 0.0, %v7954
      %v7956 = vpop.f32.mrf.mxu0
      %v7957 = vpop.f32.mrf.mxu0
      %v7958 = vadd.f32 0.0, %v7957
      %v7959 = vpop.f32.mrf.mxu0
      %7960 = vmatprep.mubr.bf16.mxu0 0
      %7961 = vmatmul.mubr.bf16.gmra.mxu0 %v7827
      %v7962 = vpop.f32.mrf.mxu0
      %v7963 = vadd.f32 0.0, %v7962
      %v7964 = vpop.f32.mrf.mxu0
      %v7965 = vpop.f32.mrf.mxu0
      %v7966 = vadd.f32 0.0, %v7965
      %v7967 = vpop.f32.mrf.mxu0
      %7968 = vmatprep.mubr.bf16.mxu0 0
      %7969 = vmatmul.mubr.bf16.gmra.mxu0 %v7828
      %v7970 = vpop.f32.mrf.mxu0
      %v7971 = vadd.f32 0.0, %v7970
      %v7972 = vpop.f32.mrf.mxu0
      %v7973 = vpop.f32.mrf.mxu0
      %v7974 = vadd.f32 0.0, %v7973
      %v7975 = vpop.f32.mrf.mxu0
      %7976 = vmatprep.mubr.bf16.mxu0 0
      %7977 = vmatmul.mubr.bf16.gmra.mxu0 %v7829
      %v7978 = vpop.f32.mrf.mxu0
      %v7979 = vadd.f32 0.0, %v7978
      %v7980 = vpop.f32.mrf.mxu0
      %v7981 = vpop.f32.mrf.mxu0
      %v7982 = vadd.f32 0.0, %v7981
      %v7983 = vpop.f32.mrf.mxu0
      %7984 = vmatprep.mubr.bf16.mxu0 0
      %7985 = vmatmul.mubr.bf16.gmra.mxu0 %v7830
      %v7986 = vpop.f32.mrf.mxu0
      %v7987 = vadd.f32 0.0, %v7986
      %v7988 = vpop.f32.mrf.mxu0
      %v7989 = vpop.f32.mrf.mxu0
      %v7990 = vadd.f32 0.0, %v7989
      %v7991 = vpop.f32.mrf.mxu0
      %7992 = vmatprep.mubr.bf16.mxu0 0
      %7993 = vmatmul.mubr.bf16.gmra.mxu0 %v7831
      %v7994 = vpop.f32.mrf.mxu0
      %v7995 = vadd.f32 0.0, %v7994
      %v7996 = vpop.f32.mrf.mxu0
      %v7997 = vpop.f32.mrf.mxu0
      %v7998 = vadd.f32 0.0, %v7997
      %v7999 = vpop.f32.mrf.mxu0
      %8000 = vmatprep.mubr.bf16.mxu0 0
      %8001 = vmatmul.mubr.bf16.gmra.mxu0 %v7832
      %v8002 = vpop.f32.mrf.mxu0
      %v8003 = vadd.f32 0.0, %v8002
      %v8004 = vpop.f32.mrf.mxu0
      %v8005 = vpop.f32.mrf.mxu0
      %v8006 = vadd.f32 0.0, %v8005
      %v8007 = vpop.f32.mrf.mxu0
      %8008 = vmatprep.mubr.bf16.mxu0 0
      %8009 = vmatmul.mubr.bf16.gmra.mxu0 %v7833
      %v8010 = vpop.f32.mrf.mxu0
      %v8011 = vadd.f32 0.0, %v8010
      %v8012 = vpop.f32.mrf.mxu0
      %v8013 = vpop.f32.mrf.mxu0
      %v8014 = vadd.f32 0.0, %v8013
      %v8015 = vpop.f32.mrf.mxu0
      %8016 = vmatprep.mubr.bf16.mxu0 0
      %8017 = vmatmul.mubr.bf16.gmra.mxu0 %v7834
      %v8018 = vpop.f32.mrf.mxu0
      %v8019 = vadd.f32 0.0, %v8018
      %v8020 = vpop.f32.mrf.mxu0
      %v8021 = vpop.f32.mrf.mxu0
      %v8022 = vadd.f32 0.0, %v8021
      %v8023 = vpop.f32.mrf.mxu0
      %8024 = vmatprep.mubr.bf16.mxu0 0
      %8025 = vmatmul.mubr.bf16.gmra.mxu0 %v7835
      %v8026 = vpop.f32.mrf.mxu0
      %v8027 = vadd.f32 0.0, %v8026
      %v8028 = vpop.f32.mrf.mxu0
      %v8029 = vpop.f32.mrf.mxu0
      %v8030 = vadd.f32 0.0, %v8029
      %v8031 = vpop.f32.mrf.mxu0
      %8032 = vmatprep.mubr.bf16.mxu0 0
      %8033 = vmatmul.mubr.bf16.gmra.mxu0 %v7836
      %v8034 = vpop.f32.mrf.mxu0
      %v8035 = vadd.f32 0.0, %v8034
      %v8036 = vpop.f32.mrf.mxu0
      %v8037 = vpop.f32.mrf.mxu0
      %v8038 = vadd.f32 0.0, %v8037
      %v8039 = vpop.f32.mrf.mxu0
      %8040 = vmatprep.mubr.bf16.mxu0 0
      %8041 = vmatmul.mubr.bf16.gmra.mxu0 %v7837
      %v8042 = vpop.f32.mrf.mxu0
      %v8043 = vadd.f32 0.0, %v8042
      %v8044 = vpop.f32.mrf.mxu0
      %v8045 = vpop.f32.mrf.mxu0
      %v8046 = vadd.f32 0.0, %v8045
      %v8047 = vpop.f32.mrf.mxu0
      %8048 = vmatprep.mubr.bf16.mxu0 0
      %8049 = vmatmul.mubr.bf16.gmra.mxu0 %v7838
      %v8050 = vpop.f32.mrf.mxu0
      %v8051 = vadd.f32 0.0, %v8050
      %v8052 = vpop.f32.mrf.mxu0
      %v8053 = vpop.f32.mrf.mxu0
      %v8054 = vadd.f32 0.0, %v8053
      %v8055 = vpop.f32.mrf.mxu0
      %8056 = vmatprep.mubr.bf16.mxu0 0
      %8057 = vmatmul.mubr.bf16.gmra.mxu0 %v7839
      %v8058 = vpop.f32.mrf.mxu0
      %v8059 = vadd.f32 0.0, %v8058
      %v8060 = vpop.f32.mrf.mxu0
      %v8061 = vpop.f32.mrf.mxu0
      %v8062 = vadd.f32 0.0, %v8061
      %v8063 = vpop.f32.mrf.mxu0
      %8064 = vdwg.mxu0
      %v8065 = vadd.f32 %v7679, %v7939
      %v8066 = vadd.f32 %v7680, %v7942
      %v8067 = vadd.f32 %v7681, %v7947
      %v8068 = vadd.f32 %v7682, %v7950
      %v8069 = vadd.f32 %v7683, %v7955
      %v8070 = vadd.f32 %v7684, %v7958
      %v8071 = vadd.f32 %v7685, %v7963
      %v8072 = vadd.f32 %v7686, %v7966
      %v8073 = vadd.f32 %v7687, %v7971
      %v8074 = vadd.f32 %v7688, %v7974
      %v8075 = vadd.f32 %v7689, %v7979
      %v8076 = vadd.f32 %v7690, %v7982
      %v8077 = vadd.f32 %v7691, %v7987
      %v8078 = vadd.f32 %v7692, %v7990
      %v8079 = vadd.f32 %v7693, %v7995
      %v8080 = vadd.f32 %v7694, %v7998
      %v8081 = vadd.f32 %v7695, %v8003
      %v8082 = vadd.f32 %v7696, %v8006
      %v8083 = vadd.f32 %v7697, %v8011
      %v8084 = vadd.f32 %v7698, %v8014
      %v8085 = vadd.f32 %v7699, %v8019
      %v8086 = vadd.f32 %v7700, %v8022
      %v8087 = vadd.f32 %v7701, %v8027
      %v8088 = vadd.f32 %v7702, %v8030
      %v8089 = vadd.f32 %v7703, %v8035
      %v8090 = vadd.f32 %v7704, %v8038
      %v8091 = vadd.f32 %v7705, %v8043
      %v8092 = vadd.f32 %v7706, %v8046
      %v8093 = vadd.f32 %v7707, %v8051
      %v8094 = vadd.f32 %v7708, %v8054
      %v8095 = vadd.f32 %v7709, %v8059
      %v8096 = vadd.f32 %v7710, %v8062
      %v8097 = vld [vmem:[%s6073] sm:$0xf]
      %v8098 = vld [vmem:[%s6073 + $0x4] sm:$0xf]
      %v8099 = vld [vmem:[%s6073 + $0x8] sm:$0x1]
      %v8100 = vld [vmem:[%s6073 + $0xc] sm:$0xf]
      %v8101 = vld [vmem:[%s6073 + $0x10] sm:$0xf]
      %v8102 = vld [vmem:[%s6073 + $0x14] sm:$0x1]
      %v8103 = vld [vmem:[%s6073 + $0x18] sm:$0xf]
      %v8104 = vld [vmem:[%s6073 + $0x1c] sm:$0xf]
      %v8105 = vld [vmem:[%s6073 + $0x20] sm:$0x1]
      %v8106 = vld [vmem:[%s6073 + $0x24] sm:$0xf]
      %v8107 = vld [vmem:[%s6073 + $0x28] sm:$0xf]
      %v8108 = vld [vmem:[%s6073 + $0x2c] sm:$0x1]
      %v8109 = vld [vmem:[%s6073 + $0x30] sm:$0xf]
      %v8110 = vld [vmem:[%s6073 + $0x34] sm:$0xf]
      %v8111 = vld [vmem:[%s6073 + $0x38] sm:$0x1]
      %v8112 = vld [vmem:[%s6073 + $0x3c] sm:$0xf]
      %v8113 = vld [vmem:[%s6073 + $0x40] sm:$0xf]
      %v8114 = vld [vmem:[%s6073 + $0x44] sm:$0x1]
      %v8115 = vld [vmem:[%s6073 + $0x48] sm:$0xf]
      %v8116 = vld [vmem:[%s6073 + $0x4c] sm:$0xf]
      %v8117 = vld [vmem:[%s6073 + $0x50] sm:$0x1]
      %v8118 = vld [vmem:[%s6073 + $0x54] sm:$0xf]
      %v8119 = vld [vmem:[%s6073 + $0x58] sm:$0xf]
      %v8120 = vld [vmem:[%s6073 + $0x5c] sm:$0x1]
      %v8121 = vld [vmem:[%s6073 + $0x60] sm:$0xf]
      %v8122 = vld [vmem:[%s6073 + $0x64] sm:$0xf]
      %v8123 = vld [vmem:[%s6073 + $0x68] sm:$0x1]
      %v8124 = vld [vmem:[%s6073 + $0x6c] sm:$0xf]
      %v8125 = vld [vmem:[%s6073 + $0x70] sm:$0xf]
      %v8126 = vld [vmem:[%s6073 + $0x74] sm:$0x1]
      %v8127 = vld [vmem:[%s6073 + $0x78] sm:$0xf]
      %v8128 = vld [vmem:[%s6073 + $0x7c] sm:$0xf]
      %v8129 = vld [vmem:[%s6073 + $0x80] sm:$0x1]
      %v8130 = vld [vmem:[%s6073 + $0x84] sm:$0xf]
      %v8131 = vld [vmem:[%s6073 + $0x88] sm:$0xf]
      %v8132 = vld [vmem:[%s6073 + $0x8c] sm:$0x1]
      %v8133 = vld [vmem:[%s6073 + $0x90] sm:$0xf]
      %v8134 = vld [vmem:[%s6073 + $0x94] sm:$0xf]
      %v8135 = vld [vmem:[%s6073 + $0x98] sm:$0x1]
      %v8136 = vld [vmem:[%s6073 + $0x9c] sm:$0xf]
      %v8137 = vld [vmem:[%s6073 + $0xa0] sm:$0xf]
      %v8138 = vld [vmem:[%s6073 + $0xa4] sm:$0x1]
      %v8139 = vld [vmem:[%s6073 + $0xa8] sm:$0xf]
      %v8140 = vld [vmem:[%s6073 + $0xac] sm:$0xf]
      %v8141 = vld [vmem:[%s6073 + $0xb0] sm:$0x1]
      %v8142 = vld [vmem:[%s6073 + $0xb4] sm:$0xf]
      %v8143 = vld [vmem:[%s6073 + $0xb8] sm:$0xf]
      %v8144 = vld [vmem:[%s6073 + $0xbc] sm:$0x1]
      %v8146 = vshrl.u32 %v8097, 16
      %v8148 = vrot.slane %v8146, 4
      %v8149 = vshll.u32 %v8097, 16
      %v8151 = vrot.slane %v8149, 5
      %v8152 = vor.u32 %v8148, %v8151
      %v8153 = vrot.slane %v8152, 4
      %v8155 = vshll.u32 %v8098, 16
      %v8157 = vrot.slane %v8155, 5
      %v8158 = vsel %vm846, %v8153, %v8157
      %v8159 = vshrl.u32 %v8098, 16
      %v8161 = vrot.slane %v8159, 4
      %v8162 = vor.u32 %v8161, %v8157
      %v8163 = vrot.slane %v8162, 4
      %v8165 = vshll.u32 %v8099, 16
      %v8167 = vrot.slane %v8165, 5
      %v8168 = vsel %vm846, %v8163, %v8167
      %v8170 = vshrl.u32 %v8100, 16
      %v8172 = vrot.slane %v8170, 4
      %v8173 = vshll.u32 %v8100, 16
      %v8175 = vrot.slane %v8173, 5
      %v8176 = vor.u32 %v8172, %v8175
      %v8177 = vrot.slane %v8176, 4
      %v8179 = vshll.u32 %v8101, 16
      %v8181 = vrot.slane %v8179, 5
      %v8182 = vsel %vm846, %v8177, %v8181
      %v8183 = vshrl.u32 %v8101, 16
      %v8185 = vrot.slane %v8183, 4
      %v8186 = vor.u32 %v8185, %v8181
      %v8187 = vrot.slane %v8186, 4
      %v8189 = vshll.u32 %v8102, 16
      %v8191 = vrot.slane %v8189, 5
      %v8192 = vsel %vm846, %v8187, %v8191
      %v8194 = vshrl.u32 %v8103, 16
      %v8196 = vrot.slane %v8194, 4
      %v8197 = vshll.u32 %v8103, 16
      %v8199 = vrot.slane %v8197, 5
      %v8200 = vor.u32 %v8196, %v8199
      %v8201 = vrot.slane %v8200, 4
      %v8203 = vshll.u32 %v8104, 16
      %v8205 = vrot.slane %v8203, 5
      %v8206 = vsel %vm846, %v8201, %v8205
      %v8207 = vshrl.u32 %v8104, 16
      %v8209 = vrot.slane %v8207, 4
      %v8210 = vor.u32 %v8209, %v8205
      %v8211 = vrot.slane %v8210, 4
      %v8213 = vshll.u32 %v8105, 16
      %v8215 = vrot.slane %v8213, 5
      %v8216 = vsel %vm846, %v8211, %v8215
      %v8218 = vshrl.u32 %v8106, 16
      %v8220 = vrot.slane %v8218, 4
      %v8221 = vshll.u32 %v8106, 16
      %v8223 = vrot.slane %v8221, 5
      %v8224 = vor.u32 %v8220, %v8223
      %v8225 = vrot.slane %v8224, 4
      %v8227 = vshll.u32 %v8107, 16
      %v8229 = vrot.slane %v8227, 5
      %v8230 = vsel %vm846, %v8225, %v8229
      %v8231 = vshrl.u32 %v8107, 16
      %v8233 = vrot.slane %v8231, 4
      %v8234 = vor.u32 %v8233, %v8229
      %v8235 = vrot.slane %v8234, 4
      %v8237 = vshll.u32 %v8108, 16
      %v8239 = vrot.slane %v8237, 5
      %v8240 = vsel %vm846, %v8235, %v8239
      %v8242 = vshrl.u32 %v8109, 16
      %v8244 = vrot.slane %v8242, 4
      %v8245 = vshll.u32 %v8109, 16
      %v8247 = vrot.slane %v8245, 5
      %v8248 = vor.u32 %v8244, %v8247
      %v8249 = vrot.slane %v8248, 4
      %v8251 = vshll.u32 %v8110, 16
      %v8253 = vrot.slane %v8251, 5
      %v8254 = vsel %vm846, %v8249, %v8253
      %v8255 = vshrl.u32 %v8110, 16
      %v8257 = vrot.slane %v8255, 4
      %v8258 = vor.u32 %v8257, %v8253
      %v8259 = vrot.slane %v8258, 4
      %v8261 = vshll.u32 %v8111, 16
      %v8263 = vrot.slane %v8261, 5
      %v8264 = vsel %vm846, %v8259, %v8263
      %v8266 = vshrl.u32 %v8112, 16
      %v8268 = vrot.slane %v8266, 4
      %v8269 = vshll.u32 %v8112, 16
      %v8271 = vrot.slane %v8269, 5
      %v8272 = vor.u32 %v8268, %v8271
      %v8273 = vrot.slane %v8272, 4
      %v8275 = vshll.u32 %v8113, 16
      %v8277 = vrot.slane %v8275, 5
      %v8278 = vsel %vm846, %v8273, %v8277
      %v8279 = vshrl.u32 %v8113, 16
      %v8281 = vrot.slane %v8279, 4
      %v8282 = vor.u32 %v8281, %v8277
      %v8283 = vrot.slane %v8282, 4
      %v8285 = vshll.u32 %v8114, 16
      %v8287 = vrot.slane %v8285, 5
      %v8288 = vsel %vm846, %v8283, %v8287
      %v8290 = vshrl.u32 %v8115, 16
      %v8292 = vrot.slane %v8290, 4
      %v8293 = vshll.u32 %v8115, 16
      %v8295 = vrot.slane %v8293, 5
      %v8296 = vor.u32 %v8292, %v8295
      %v8297 = vrot.slane %v8296, 4
      %v8299 = vshll.u32 %v8116, 16
      %v8301 = vrot.slane %v8299, 5
      %v8302 = vsel %vm846, %v8297, %v8301
      %v8303 = vshrl.u32 %v8116, 16
      %v8305 = vrot.slane %v8303, 4
      %v8306 = vor.u32 %v8305, %v8301
      %v8307 = vrot.slane %v8306, 4
      %v8309 = vshll.u32 %v8117, 16
      %v8311 = vrot.slane %v8309, 5
      %v8312 = vsel %vm846, %v8307, %v8311
      %v8314 = vshrl.u32 %v8118, 16
      %v8316 = vrot.slane %v8314, 4
      %v8317 = vshll.u32 %v8118, 16
      %v8319 = vrot.slane %v8317, 5
      %v8320 = vor.u32 %v8316, %v8319
      %v8321 = vrot.slane %v8320, 4
      %v8323 = vshll.u32 %v8119, 16
      %v8325 = vrot.slane %v8323, 5
      %v8326 = vsel %vm846, %v8321, %v8325
      %v8327 = vshrl.u32 %v8119, 16
      %v8329 = vrot.slane %v8327, 4
      %v8330 = vor.u32 %v8329, %v8325
      %v8331 = vrot.slane %v8330, 4
      %v8333 = vshll.u32 %v8120, 16
      %v8335 = vrot.slane %v8333, 5
      %v8336 = vsel %vm846, %v8331, %v8335
      %v8338 = vshrl.u32 %v8121, 16
      %v8340 = vrot.slane %v8338, 4
      %v8341 = vshll.u32 %v8121, 16
      %v8343 = vrot.slane %v8341, 5
      %v8344 = vor.u32 %v8340, %v8343
      %v8345 = vrot.slane %v8344, 4
      %v8347 = vshll.u32 %v8122, 16
      %v8349 = vrot.slane %v8347, 5
      %v8350 = vsel %vm846, %v8345, %v8349
      %v8351 = vshrl.u32 %v8122, 16
      %v8353 = vrot.slane %v8351, 4
      %v8354 = vor.u32 %v8353, %v8349
      %v8355 = vrot.slane %v8354, 4
      %v8357 = vshll.u32 %v8123, 16
      %v8359 = vrot.slane %v8357, 5
      %v8360 = vsel %vm846, %v8355, %v8359
      %v8362 = vshrl.u32 %v8124, 16
      %v8364 = vrot.slane %v8362, 4
      %v8365 = vshll.u32 %v8124, 16
      %v8367 = vrot.slane %v8365, 5
      %v8368 = vor.u32 %v8364, %v8367
      %v8369 = vrot.slane %v8368, 4
      %v8371 = vshll.u32 %v8125, 16
      %v8373 = vrot.slane %v8371, 5
      %v8374 = vsel %vm846, %v8369, %v8373
      %v8375 = vshrl.u32 %v8125, 16
      %v8377 = vrot.slane %v8375, 4
      %v8378 = vor.u32 %v8377, %v8373
      %v8379 = vrot.slane %v8378, 4
      %v8381 = vshll.u32 %v8126, 16
      %v8383 = vrot.slane %v8381, 5
      %v8384 = vsel %vm846, %v8379, %v8383
      %v8386 = vshrl.u32 %v8127, 16
      %v8388 = vrot.slane %v8386, 4
      %v8389 = vshll.u32 %v8127, 16
      %v8391 = vrot.slane %v8389, 5
      %v8392 = vor.u32 %v8388, %v8391
      %v8393 = vrot.slane %v8392, 4
      %v8395 = vshll.u32 %v8128, 16
      %v8397 = vrot.slane %v8395, 5
      %v8398 = vsel %vm846, %v8393, %v8397
      %v8399 = vshrl.u32 %v8128, 16
      %v8401 = vrot.slane %v8399, 4
      %v8402 = vor.u32 %v8401, %v8397
      %v8403 = vrot.slane %v8402, 4
      %v8405 = vshll.u32 %v8129, 16
      %v8407 = vrot.slane %v8405, 5
      %v8408 = vsel %vm846, %v8403, %v8407
      %v8410 = vshrl.u32 %v8130, 16
      %v8412 = vrot.slane %v8410, 4
      %v8413 = vshll.u32 %v8130, 16
      %v8415 = vrot.slane %v8413, 5
      %v8416 = vor.u32 %v8412, %v8415
      %v8417 = vrot.slane %v8416, 4
      %v8419 = vshll.u32 %v8131, 16
      %v8421 = vrot.slane %v8419, 5
      %v8422 = vsel %vm846, %v8417, %v8421
      %v8423 = vshrl.u32 %v8131, 16
      %v8425 = vrot.slane %v8423, 4
      %v8426 = vor.u32 %v8425, %v8421
      %v8427 = vrot.slane %v8426, 4
      %v8429 = vshll.u32 %v8132, 16
      %v8431 = vrot.slane %v8429, 5
      %v8432 = vsel %vm846, %v8427, %v8431
      %v8434 = vshrl.u32 %v8133, 16
      %v8436 = vrot.slane %v8434, 4
      %v8437 = vshll.u32 %v8133, 16
      %v8439 = vrot.slane %v8437, 5
      %v8440 = vor.u32 %v8436, %v8439
      %v8441 = vrot.slane %v8440, 4
      %v8443 = vshll.u32 %v8134, 16
      %v8445 = vrot.slane %v8443, 5
      %v8446 = vsel %vm846, %v8441, %v8445
      %v8447 = vshrl.u32 %v8134, 16
      %v8449 = vrot.slane %v8447, 4
      %v8450 = vor.u32 %v8449, %v8445
      %v8451 = vrot.slane %v8450, 4
      %v8453 = vshll.u32 %v8135, 16
      %v8455 = vrot.slane %v8453, 5
      %v8456 = vsel %vm846, %v8451, %v8455
      %v8458 = vshrl.u32 %v8136, 16
      %v8460 = vrot.slane %v8458, 4
      %v8461 = vshll.u32 %v8136, 16
      %v8463 = vrot.slane %v8461, 5
      %v8464 = vor.u32 %v8460, %v8463
      %v8465 = vrot.slane %v8464, 4
      %v8467 = vshll.u32 %v8137, 16
      %v8469 = vrot.slane %v8467, 5
      %v8470 = vsel %vm846, %v8465, %v8469
      %v8471 = vshrl.u32 %v8137, 16
      %v8473 = vrot.slane %v8471, 4
      %v8474 = vor.u32 %v8473, %v8469
      %v8475 = vrot.slane %v8474, 4
      %v8477 = vshll.u32 %v8138, 16
      %v8479 = vrot.slane %v8477, 5
      %v8480 = vsel %vm846, %v8475, %v8479
      %v8482 = vshrl.u32 %v8139, 16
      %v8484 = vrot.slane %v8482, 4
      %v8485 = vshll.u32 %v8139, 16
      %v8487 = vrot.slane %v8485, 5
      %v8488 = vor.u32 %v8484, %v8487
      %v8489 = vrot.slane %v8488, 4
      %v8491 = vshll.u32 %v8140, 16
      %v8493 = vrot.slane %v8491, 5
      %v8494 = vsel %vm846, %v8489, %v8493
      %v8495 = vshrl.u32 %v8140, 16
      %v8497 = vrot.slane %v8495, 4
      %v8498 = vor.u32 %v8497, %v8493
      %v8499 = vrot.slane %v8498, 4
      %v8501 = vshll.u32 %v8141, 16
      %v8503 = vrot.slane %v8501, 5
      %v8504 = vsel %vm846, %v8499, %v8503
      %v8506 = vshrl.u32 %v8142, 16
      %v8508 = vrot.slane %v8506, 4
      %v8509 = vshll.u32 %v8142, 16
      %v8511 = vrot.slane %v8509, 5
      %v8512 = vor.u32 %v8508, %v8511
      %v8513 = vrot.slane %v8512, 4
      %v8515 = vshll.u32 %v8143, 16
      %v8517 = vrot.slane %v8515, 5
      %v8518 = vsel %vm846, %v8513, %v8517
      %v8519 = vshrl.u32 %v8143, 16
      %v8521 = vrot.slane %v8519, 4
      %v8522 = vor.u32 %v8521, %v8517
      %v8523 = vrot.slane %v8522, 4
      %v8525 = vshll.u32 %v8144, 16
      %v8527 = vrot.slane %v8525, 5
      %v8528 = vsel %vm846, %v8523, %v8527
      %s8529 = scalar_lea.vmem %s2, 256
      %v8530 = vld [vmem:[%s8529] sm:$0xf]
      %v8531 = vld [vmem:[%s8529 + $0x4] sm:$0xf]
      %v8532 = vld [vmem:[%s8529 + $0x8] sm:$0xf]
      %v8533 = vld [vmem:[%s8529 + $0xc] sm:$0xf]
      %v8534 = vld [vmem:[%s8529 + $0x10] sm:$0xf]
      %v8535 = vld [vmem:[%s8529 + $0x14] sm:$0xf]
      %v8536 = vld [vmem:[%s8529 + $0x18] sm:$0xf]
      %v8537 = vld [vmem:[%s8529 + $0x1c] sm:$0xf]
      %v8538 = vld [vmem:[%s8529 + $0x20] sm:$0xf]
      %v8539 = vld [vmem:[%s8529 + $0x24] sm:$0xf]
      %v8540 = vld [vmem:[%s8529 + $0x28] sm:$0xf]
      %v8541 = vld [vmem:[%s8529 + $0x2c] sm:$0xf]
      %v8542 = vld [vmem:[%s8529 + $0x30] sm:$0xf]
      %v8543 = vld [vmem:[%s8529 + $0x34] sm:$0xf]
      %v8544 = vld [vmem:[%s8529 + $0x38] sm:$0xf]
      %v8545 = vld [vmem:[%s8529 + $0x3c] sm:$0xf]
      %v8546 = vunpack.c.l.b16 %v8158
      %v8547 = vunpack.c.l.b16 %v8168
      %v8548 = vunpack.c.l.b16 %v8182
      %v8549 = vunpack.c.l.b16 %v8192
      %v8550 = vunpack.c.l.b16 %v8206
      %v8551 = vunpack.c.l.b16 %v8216
      %v8552 = vunpack.c.l.b16 %v8230
      %v8553 = vunpack.c.l.b16 %v8240
      %v8554 = vunpack.c.l.b16 %v8254
      %v8555 = vunpack.c.l.b16 %v8264
      %v8556 = vunpack.c.l.b16 %v8278
      %v8557 = vunpack.c.l.b16 %v8288
      %v8558 = vunpack.c.l.b16 %v8302
      %v8559 = vunpack.c.l.b16 %v8312
      %v8560 = vunpack.c.l.b16 %v8326
      %v8561 = vunpack.c.l.b16 %v8336
      %v8562 = vunpack.c.l.b16 %v8350
      %v8563 = vunpack.c.l.b16 %v8360
      %v8564 = vunpack.c.l.b16 %v8374
      %v8565 = vunpack.c.l.b16 %v8384
      %v8566 = vunpack.c.l.b16 %v8398
      %v8567 = vunpack.c.l.b16 %v8408
      %v8568 = vunpack.c.l.b16 %v8422
      %v8569 = vunpack.c.l.b16 %v8432
      %v8570 = vunpack.c.l.b16 %v8446
      %v8571 = vunpack.c.l.b16 %v8456
      %v8572 = vunpack.c.l.b16 %v8470
      %v8573 = vunpack.c.l.b16 %v8480
      %v8574 = vunpack.c.l.b16 %v8494
      %v8575 = vunpack.c.l.b16 %v8504
      %v8576 = vunpack.c.l.b16 %v8518
      %v8577 = vunpack.c.l.b16 %v8528
      %v8578 = vpack.c.b16 %v8547, %v8546
      %v8579 = vpack.c.b16 %v8549, %v8548
      %v8580 = vpack.c.b16 %v8551, %v8550
      %v8581 = vpack.c.b16 %v8553, %v8552
      %v8582 = vpack.c.b16 %v8555, %v8554
      %v8583 = vpack.c.b16 %v8557, %v8556
      %v8584 = vpack.c.b16 %v8559, %v8558
      %v8585 = vpack.c.b16 %v8561, %v8560
      %v8586 = vpack.c.b16 %v8563, %v8562
      %v8587 = vpack.c.b16 %v8565, %v8564
      %v8588 = vpack.c.b16 %v8567, %v8566
      %v8589 = vpack.c.b16 %v8569, %v8568
      %v8590 = vpack.c.b16 %v8571, %v8570
      %v8591 = vpack.c.b16 %v8573, %v8572
      %v8592 = vpack.c.b16 %v8575, %v8574
      %v8593 = vpack.c.b16 %v8577, %v8576
      %v8626 = vunpack.c.l.b16 %v8530
      %v8627 = vunpack.c.l.b16 %v8531
      %v8628 = vunpack.c.l.b16 %v8532
      %v8629 = vunpack.c.l.b16 %v8533
      %v8630 = vunpack.c.l.b16 %v8534
      %v8631 = vunpack.c.l.b16 %v8535
      %v8632 = vunpack.c.l.b16 %v8536
      %v8633 = vunpack.c.l.b16 %v8537
      %v8634 = vunpack.c.l.b16 %v8538
      %v8635 = vunpack.c.l.b16 %v8539
      %v8636 = vunpack.c.l.b16 %v8540
      %v8637 = vunpack.c.l.b16 %v8541
      %v8638 = vunpack.c.l.b16 %v8542
      %v8639 = vunpack.c.l.b16 %v8543
      %v8640 = vunpack.c.l.b16 %v8544
      %v8641 = vunpack.c.l.b16 %v8545
      %v8642 = vpack.c.b16 %v8627, %v8626
      %v8643 = vpack.c.b16 %v8629, %v8628
      %v8644 = vpack.c.b16 %v8631, %v8630
      %v8645 = vpack.c.b16 %v8633, %v8632
      %v8646 = vpack.c.b16 %v8635, %v8634
      %v8647 = vpack.c.b16 %v8637, %v8636
      %v8648 = vpack.c.b16 %v8639, %v8638
      %v8649 = vpack.c.b16 %v8641, %v8640
      %8658 = vmatprep.subr.bf16.mxu0 0
      %8659 = vmatpush1.bf16.msra.mxu0 %v8649
      %8660 = vmatprep.subr.bf16.mxu0 0
      %8661 = vmatpush1.bf16.msra.mxu0 %v8648
      %8662 = vmatprep.subr.bf16.mxu0 0
      %8663 = vmatpush1.bf16.msra.mxu0 %v8647
      %8664 = vmatprep.subr.bf16.mxu0 0
      %8665 = vmatpush1.bf16.msra.mxu0 %v8646
      %8666 = vmatprep.subr.bf16.mxu0 0
      %8667 = vmatpush1.bf16.msra.mxu0 %v8645
      %8668 = vmatprep.subr.bf16.mxu0 0
      %8669 = vmatpush1.bf16.msra.mxu0 %v8644
      %8670 = vmatprep.subr.bf16.mxu0 0
      %8671 = vmatpush1.bf16.msra.mxu0 %v8643
      %8672 = vmatprep.subr.bf16.mxu0 0
      %8673 = vmatpush1.bf16.msra.mxu0 %v8642
      %8674 = vmatprep.subr.bf16.mxu0 0
      %8675 = vmatpush2.bf16.msra.mxu0 0
      %8676 = vmatprep.subr.bf16.mxu0 0
      %8677 = vmatpush2.bf16.msra.mxu0 0
      %8678 = vmatprep.subr.bf16.mxu0 0
      %8679 = vmatpush2.bf16.msra.mxu0 0
      %8680 = vmatprep.subr.bf16.mxu0 0
      %8681 = vmatpush2.bf16.msra.mxu0 0
      %8682 = vmatprep.subr.bf16.mxu0 0
      %8683 = vmatpush2.bf16.msra.mxu0 0
      %8684 = vmatprep.subr.bf16.mxu0 0
      %8685 = vmatpush2.bf16.msra.mxu0 0
      %8686 = vmatprep.subr.bf16.mxu0 0
      %8687 = vmatpush2.bf16.msra.mxu0 0
      %8688 = vmatprep.subr.bf16.mxu0 0
      %8689 = vmatpush2.bf16.msra.mxu0 0
      %8690 = vmatprep.mubr.bf16.mxu0 0
      %8691 = vmatmul.mubr.bf16.gmra.mxu0 %v8578
      %v8692 = vpop.f32.mrf.mxu0
      %v8693 = vadd.f32 0.0, %v8692
      %v8694 = vpop.f32.mrf.mxu0
      %v8695 = vpop.f32.mrf.mxu0
      %v8696 = vadd.f32 0.0, %v8695
      %v8697 = vpop.f32.mrf.mxu0
      %8698 = vmatprep.mubr.bf16.mxu0 0
      %8699 = vmatmul.mubr.bf16.gmra.mxu0 %v8579
      %v8700 = vpop.f32.mrf.mxu0
      %v8701 = vadd.f32 0.0, %v8700
      %v8702 = vpop.f32.mrf.mxu0
      %v8703 = vpop.f32.mrf.mxu0
      %v8704 = vadd.f32 0.0, %v8703
      %v8705 = vpop.f32.mrf.mxu0
      %8706 = vmatprep.mubr.bf16.mxu0 0
      %8707 = vmatmul.mubr.bf16.gmra.mxu0 %v8580
      %v8708 = vpop.f32.mrf.mxu0
      %v8709 = vadd.f32 0.0, %v8708
      %v8710 = vpop.f32.mrf.mxu0
      %v8711 = vpop.f32.mrf.mxu0
      %v8712 = vadd.f32 0.0, %v8711
      %v8713 = vpop.f32.mrf.mxu0
      %8714 = vmatprep.mubr.bf16.mxu0 0
      %8715 = vmatmul.mubr.bf16.gmra.mxu0 %v8581
      %v8716 = vpop.f32.mrf.mxu0
      %v8717 = vadd.f32 0.0, %v8716
      %v8718 = vpop.f32.mrf.mxu0
      %v8719 = vpop.f32.mrf.mxu0
      %v8720 = vadd.f32 0.0, %v8719
      %v8721 = vpop.f32.mrf.mxu0
      %8722 = vmatprep.mubr.bf16.mxu0 0
      %8723 = vmatmul.mubr.bf16.gmra.mxu0 %v8582
      %v8724 = vpop.f32.mrf.mxu0
      %v8725 = vadd.f32 0.0, %v8724
      %v8726 = vpop.f32.mrf.mxu0
      %v8727 = vpop.f32.mrf.mxu0
      %v8728 = vadd.f32 0.0, %v8727
      %v8729 = vpop.f32.mrf.mxu0
      %8730 = vmatprep.mubr.bf16.mxu0 0
      %8731 = vmatmul.mubr.bf16.gmra.mxu0 %v8583
      %v8732 = vpop.f32.mrf.mxu0
      %v8733 = vadd.f32 0.0, %v8732
      %v8734 = vpop.f32.mrf.mxu0
      %v8735 = vpop.f32.mrf.mxu0
      %v8736 = vadd.f32 0.0, %v8735
      %v8737 = vpop.f32.mrf.mxu0
      %8738 = vmatprep.mubr.bf16.mxu0 0
      %8739 = vmatmul.mubr.bf16.gmra.mxu0 %v8584
      %v8740 = vpop.f32.mrf.mxu0
      %v8741 = vadd.f32 0.0, %v8740
      %v8742 = vpop.f32.mrf.mxu0
      %v8743 = vpop.f32.mrf.mxu0
      %v8744 = vadd.f32 0.0, %v8743
      %v8745 = vpop.f32.mrf.mxu0
      %8746 = vmatprep.mubr.bf16.mxu0 0
      %8747 = vmatmul.mubr.bf16.gmra.mxu0 %v8585
      %v8748 = vpop.f32.mrf.mxu0
      %v8749 = vadd.f32 0.0, %v8748
      %v8750 = vpop.f32.mrf.mxu0
      %v8751 = vpop.f32.mrf.mxu0
      %v8752 = vadd.f32 0.0, %v8751
      %v8753 = vpop.f32.mrf.mxu0
      %8754 = vmatprep.mubr.bf16.mxu0 0
      %8755 = vmatmul.mubr.bf16.gmra.mxu0 %v8586
      %v8756 = vpop.f32.mrf.mxu0
      %v8757 = vadd.f32 0.0, %v8756
      %v8758 = vpop.f32.mrf.mxu0
      %v8759 = vpop.f32.mrf.mxu0
      %v8760 = vadd.f32 0.0, %v8759
      %v8761 = vpop.f32.mrf.mxu0
      %8762 = vmatprep.mubr.bf16.mxu0 0
      %8763 = vmatmul.mubr.bf16.gmra.mxu0 %v8587
      %v8764 = vpop.f32.mrf.mxu0
      %v8765 = vadd.f32 0.0, %v8764
      %v8766 = vpop.f32.mrf.mxu0
      %v8767 = vpop.f32.mrf.mxu0
      %v8768 = vadd.f32 0.0, %v8767
      %v8769 = vpop.f32.mrf.mxu0
      %8770 = vmatprep.mubr.bf16.mxu0 0
      %8771 = vmatmul.mubr.bf16.gmra.mxu0 %v8588
      %v8772 = vpop.f32.mrf.mxu0
      %v8773 = vadd.f32 0.0, %v8772
      %v8774 = vpop.f32.mrf.mxu0
      %v8775 = vpop.f32.mrf.mxu0
      %v8776 = vadd.f32 0.0, %v8775
      %v8777 = vpop.f32.mrf.mxu0
      %8778 = vmatprep.mubr.bf16.mxu0 0
      %8779 = vmatmul.mubr.bf16.gmra.mxu0 %v8589
      %v8780 = vpop.f32.mrf.mxu0
      %v8781 = vadd.f32 0.0, %v8780
      %v8782 = vpop.f32.mrf.mxu0
      %v8783 = vpop.f32.mrf.mxu0
      %v8784 = vadd.f32 0.0, %v8783
      %v8785 = vpop.f32.mrf.mxu0
      %8786 = vmatprep.mubr.bf16.mxu0 0
      %8787 = vmatmul.mubr.bf16.gmra.mxu0 %v8590
      %v8788 = vpop.f32.mrf.mxu0
      %v8789 = vadd.f32 0.0, %v8788
      %v8790 = vpop.f32.mrf.mxu0
      %v8791 = vpop.f32.mrf.mxu0
      %v8792 = vadd.f32 0.0, %v8791
      %v8793 = vpop.f32.mrf.mxu0
      %8794 = vmatprep.mubr.bf16.mxu0 0
      %8795 = vmatmul.mubr.bf16.gmra.mxu0 %v8591
      %v8796 = vpop.f32.mrf.mxu0
      %v8797 = vadd.f32 0.0, %v8796
      %v8798 = vpop.f32.mrf.mxu0
      %v8799 = vpop.f32.mrf.mxu0
      %v8800 = vadd.f32 0.0, %v8799
      %v8801 = vpop.f32.mrf.mxu0
      %8802 = vmatprep.mubr.bf16.mxu0 0
      %8803 = vmatmul.mubr.bf16.gmra.mxu0 %v8592
      %v8804 = vpop.f32.mrf.mxu0
      %v8805 = vadd.f32 0.0, %v8804
      %v8806 = vpop.f32.mrf.mxu0
      %v8807 = vpop.f32.mrf.mxu0
      %v8808 = vadd.f32 0.0, %v8807
      %v8809 = vpop.f32.mrf.mxu0
      %8810 = vmatprep.mubr.bf16.mxu0 0
      %8811 = vmatmul.mubr.bf16.gmra.mxu0 %v8593
      %v8812 = vpop.f32.mrf.mxu0
      %v8813 = vadd.f32 0.0, %v8812
      %v8814 = vpop.f32.mrf.mxu0
      %v8815 = vpop.f32.mrf.mxu0
      %v8816 = vadd.f32 0.0, %v8815
      %v8817 = vpop.f32.mrf.mxu0
      %8818 = vdwg.mxu0
      %v8819 = vadd.f32 %v8065, %v8693
      %v8820 = vadd.f32 %v8066, %v8696
      %v8821 = vadd.f32 %v8067, %v8701
      %v8822 = vadd.f32 %v8068, %v8704
      %v8823 = vadd.f32 %v8069, %v8709
      %v8824 = vadd.f32 %v8070, %v8712
      %v8825 = vadd.f32 %v8071, %v8717
      %v8826 = vadd.f32 %v8072, %v8720
      %v8827 = vadd.f32 %v8073, %v8725
      %v8828 = vadd.f32 %v8074, %v8728
      %v8829 = vadd.f32 %v8075, %v8733
      %v8830 = vadd.f32 %v8076, %v8736
      %v8831 = vadd.f32 %v8077, %v8741
      %v8832 = vadd.f32 %v8078, %v8744
      %v8833 = vadd.f32 %v8079, %v8749
      %v8834 = vadd.f32 %v8080, %v8752
      %v8835 = vadd.f32 %v8081, %v8757
      %v8836 = vadd.f32 %v8082, %v8760
      %v8837 = vadd.f32 %v8083, %v8765
      %v8838 = vadd.f32 %v8084, %v8768
      %v8839 = vadd.f32 %v8085, %v8773
      %v8840 = vadd.f32 %v8086, %v8776
      %v8841 = vadd.f32 %v8087, %v8781
      %v8842 = vadd.f32 %v8088, %v8784
      %v8843 = vadd.f32 %v8089, %v8789
      %v8844 = vadd.f32 %v8090, %v8792
      %v8845 = vadd.f32 %v8091, %v8797
      %v8846 = vadd.f32 %v8092, %v8800
      %v8847 = vadd.f32 %v8093, %v8805
      %v8848 = vadd.f32 %v8094, %v8808
      %v8849 = vadd.f32 %v8095, %v8813
      %v8850 = vadd.f32 %v8096, %v8816
      %v8851 = vld [vmem:[%s6073] sm:$0xe]
      %v8852 = vld [vmem:[%s6073 + $0xc] sm:$0xe]
      %v8853 = vld [vmem:[%s6073 + $0x18] sm:$0xe]
      %v8854 = vld [vmem:[%s6073 + $0x24] sm:$0xe]
      %v8855 = vld [vmem:[%s6073 + $0x30] sm:$0xe]
      %v8856 = vld [vmem:[%s6073 + $0x3c] sm:$0xe]
      %v8857 = vld [vmem:[%s6073 + $0x48] sm:$0xe]
      %v8858 = vld [vmem:[%s6073 + $0x54] sm:$0xe]
      %v8859 = vld [vmem:[%s6073 + $0x60] sm:$0xe]
      %v8860 = vld [vmem:[%s6073 + $0x6c] sm:$0xe]
      %v8861 = vld [vmem:[%s6073 + $0x78] sm:$0xe]
      %v8862 = vld [vmem:[%s6073 + $0x84] sm:$0xe]
      %v8863 = vld [vmem:[%s6073 + $0x90] sm:$0xe]
      %v8864 = vld [vmem:[%s6073 + $0x9c] sm:$0xe]
      %v8865 = vld [vmem:[%s6073 + $0xa8] sm:$0xe]
      %v8866 = vld [vmem:[%s6073 + $0xb4] sm:$0xe]
      %v8915 = vrot.slane %v8851, 5
      %v8916 = vrot.slane %v8915, 4
      %v8917 = vrot.slane %v8098, 5
      %v8918 = vsel %vm1876, %v8916, %v8917
      %v8919 = vrot.slane %v8917, 4
      %v8920 = vrot.slane %v8099, 5
      %v8921 = vsel %vm1876, %v8919, %v8920
      %v8922 = vrot.slane %v8852, 5
      %v8923 = vrot.slane %v8922, 4
      %v8924 = vrot.slane %v8101, 5
      %v8925 = vsel %vm1876, %v8923, %v8924
      %v8926 = vrot.slane %v8924, 4
      %v8927 = vrot.slane %v8102, 5
      %v8928 = vsel %vm1876, %v8926, %v8927
      %v8929 = vrot.slane %v8853, 5
      %v8930 = vrot.slane %v8929, 4
      %v8931 = vrot.slane %v8104, 5
      %v8932 = vsel %vm1876, %v8930, %v8931
      %v8933 = vrot.slane %v8931, 4
      %v8934 = vrot.slane %v8105, 5
      %v8935 = vsel %vm1876, %v8933, %v8934
      %v8936 = vrot.slane %v8854, 5
      %v8937 = vrot.slane %v8936, 4
      %v8938 = vrot.slane %v8107, 5
      %v8939 = vsel %vm1876, %v8937, %v8938
      %v8940 = vrot.slane %v8938, 4
      %v8941 = vrot.slane %v8108, 5
      %v8942 = vsel %vm1876, %v8940, %v8941
      %v8943 = vrot.slane %v8855, 5
      %v8944 = vrot.slane %v8943, 4
      %v8945 = vrot.slane %v8110, 5
      %v8946 = vsel %vm1876, %v8944, %v8945
      %v8947 = vrot.slane %v8945, 4
      %v8948 = vrot.slane %v8111, 5
      %v8949 = vsel %vm1876, %v8947, %v8948
      %v8950 = vrot.slane %v8856, 5
      %v8951 = vrot.slane %v8950, 4
      %v8952 = vrot.slane %v8113, 5
      %v8953 = vsel %vm1876, %v8951, %v8952
      %v8954 = vrot.slane %v8952, 4
      %v8955 = vrot.slane %v8114, 5
      %v8956 = vsel %vm1876, %v8954, %v8955
      %v8957 = vrot.slane %v8857, 5
      %v8958 = vrot.slane %v8957, 4
      %v8959 = vrot.slane %v8116, 5
      %v8960 = vsel %vm1876, %v8958, %v8959
      %v8961 = vrot.slane %v8959, 4
      %v8962 = vrot.slane %v8117, 5
      %v8963 = vsel %vm1876, %v8961, %v8962
      %v8964 = vrot.slane %v8858, 5
      %v8965 = vrot.slane %v8964, 4
      %v8966 = vrot.slane %v8119, 5
      %v8967 = vsel %vm1876, %v8965, %v8966
      %v8968 = vrot.slane %v8966, 4
      %v8969 = vrot.slane %v8120, 5
      %v8970 = vsel %vm1876, %v8968, %v8969
      %v8971 = vrot.slane %v8859, 5
      %v8972 = vrot.slane %v8971, 4
      %v8973 = vrot.slane %v8122, 5
      %v8974 = vsel %vm1876, %v8972, %v8973
      %v8975 = vrot.slane %v8973, 4
      %v8976 = vrot.slane %v8123, 5
      %v8977 = vsel %vm1876, %v8975, %v8976
      %v8978 = vrot.slane %v8860, 5
      %v8979 = vrot.slane %v8978, 4
      %v8980 = vrot.slane %v8125, 5
      %v8981 = vsel %vm1876, %v8979, %v8980
      %v8982 = vrot.slane %v8980, 4
      %v8983 = vrot.slane %v8126, 5
      %v8984 = vsel %vm1876, %v8982, %v8983
      %v8985 = vrot.slane %v8861, 5
      %v8986 = vrot.slane %v8985, 4
      %v8987 = vrot.slane %v8128, 5
      %v8988 = vsel %vm1876, %v8986, %v8987
      %v8989 = vrot.slane %v8987, 4
      %v8990 = vrot.slane %v8129, 5
      %v8991 = vsel %vm1876, %v8989, %v8990
      %v8992 = vrot.slane %v8862, 5
      %v8993 = vrot.slane %v8992, 4
      %v8994 = vrot.slane %v8131, 5
      %v8995 = vsel %vm1876, %v8993, %v8994
      %v8996 = vrot.slane %v8994, 4
      %v8997 = vrot.slane %v8132, 5
      %v8998 = vsel %vm1876, %v8996, %v8997
      %v8999 = vrot.slane %v8863, 5
      %v9000 = vrot.slane %v8999, 4
      %v9001 = vrot.slane %v8134, 5
      %v9002 = vsel %vm1876, %v9000, %v9001
      %v9003 = vrot.slane %v9001, 4
      %v9004 = vrot.slane %v8135, 5
      %v9005 = vsel %vm1876, %v9003, %v9004
      %v9006 = vrot.slane %v8864, 5
      %v9007 = vrot.slane %v9006, 4
      %v9008 = vrot.slane %v8137, 5
      %v9009 = vsel %vm1876, %v9007, %v9008
      %v9010 = vrot.slane %v9008, 4
      %v9011 = vrot.slane %v8138, 5
      %v9012 = vsel %vm1876, %v9010, %v9011
      %v9013 = vrot.slane %v8865, 5
      %v9014 = vrot.slane %v9013, 4
      %v9015 = vrot.slane %v8140, 5
      %v9016 = vsel %vm1876, %v9014, %v9015
      %v9017 = vrot.slane %v9015, 4
      %v9018 = vrot.slane %v8141, 5
      %v9019 = vsel %vm1876, %v9017, %v9018
      %v9020 = vrot.slane %v8866, 5
      %v9021 = vrot.slane %v9020, 4
      %v9022 = vrot.slane %v8143, 5
      %v9023 = vsel %vm1876, %v9021, %v9022
      %v9024 = vrot.slane %v9022, 4
      %v9025 = vrot.slane %v8144, 5
      %v9026 = vsel %vm1876, %v9024, %v9025
      %s9027 = scalar_lea.vmem %s2, 320
      %v9028 = vld [vmem:[%s9027] sm:$0xf]
      %v9029 = vld [vmem:[%s9027 + $0x4] sm:$0xf]
      %v9030 = vld [vmem:[%s9027 + $0x8] sm:$0xf]
      %v9031 = vld [vmem:[%s9027 + $0xc] sm:$0xf]
      %v9032 = vld [vmem:[%s9027 + $0x10] sm:$0xf]
      %v9033 = vld [vmem:[%s9027 + $0x14] sm:$0xf]
      %v9034 = vld [vmem:[%s9027 + $0x18] sm:$0xf]
      %v9035 = vld [vmem:[%s9027 + $0x1c] sm:$0xf]
      %v9036 = vld [vmem:[%s9027 + $0x20] sm:$0xf]
      %v9037 = vld [vmem:[%s9027 + $0x24] sm:$0xf]
      %v9038 = vld [vmem:[%s9027 + $0x28] sm:$0xf]
      %v9039 = vld [vmem:[%s9027 + $0x2c] sm:$0xf]
      %v9040 = vld [vmem:[%s9027 + $0x30] sm:$0xf]
      %v9041 = vld [vmem:[%s9027 + $0x34] sm:$0xf]
      %v9042 = vld [vmem:[%s9027 + $0x38] sm:$0xf]
      %v9043 = vld [vmem:[%s9027 + $0x3c] sm:$0xf]
      %v9044 = vunpack.c.l.b16 %v8918
      %v9045 = vunpack.c.l.b16 %v8921
      %v9046 = vunpack.c.l.b16 %v8925
      %v9047 = vunpack.c.l.b16 %v8928
      %v9048 = vunpack.c.l.b16 %v8932
      %v9049 = vunpack.c.l.b16 %v8935
      %v9050 = vunpack.c.l.b16 %v8939
      %v9051 = vunpack.c.l.b16 %v8942
      %v9052 = vunpack.c.l.b16 %v8946
      %v9053 = vunpack.c.l.b16 %v8949
      %v9054 = vunpack.c.l.b16 %v8953
      %v9055 = vunpack.c.l.b16 %v8956
      %v9056 = vunpack.c.l.b16 %v8960
      %v9057 = vunpack.c.l.b16 %v8963
      %v9058 = vunpack.c.l.b16 %v8967
      %v9059 = vunpack.c.l.b16 %v8970
      %v9060 = vunpack.c.l.b16 %v8974
      %v9061 = vunpack.c.l.b16 %v8977
      %v9062 = vunpack.c.l.b16 %v8981
      %v9063 = vunpack.c.l.b16 %v8984
      %v9064 = vunpack.c.l.b16 %v8988
      %v9065 = vunpack.c.l.b16 %v8991
      %v9066 = vunpack.c.l.b16 %v8995
      %v9067 = vunpack.c.l.b16 %v8998
      %v9068 = vunpack.c.l.b16 %v9002
      %v9069 = vunpack.c.l.b16 %v9005
      %v9070 = vunpack.c.l.b16 %v9009
      %v9071 = vunpack.c.l.b16 %v9012
      %v9072 = vunpack.c.l.b16 %v9016
      %v9073 = vunpack.c.l.b16 %v9019
      %v9074 = vunpack.c.l.b16 %v9023
      %v9075 = vunpack.c.l.b16 %v9026
      %v9076 = vpack.c.b16 %v9045, %v9044
      %v9077 = vpack.c.b16 %v9047, %v9046
      %v9078 = vpack.c.b16 %v9049, %v9048
      %v9079 = vpack.c.b16 %v9051, %v9050
      %v9080 = vpack.c.b16 %v9053, %v9052
      %v9081 = vpack.c.b16 %v9055, %v9054
      %v9082 = vpack.c.b16 %v9057, %v9056
      %v9083 = vpack.c.b16 %v9059, %v9058
      %v9084 = vpack.c.b16 %v9061, %v9060
      %v9085 = vpack.c.b16 %v9063, %v9062
      %v9086 = vpack.c.b16 %v9065, %v9064
      %v9087 = vpack.c.b16 %v9067, %v9066
      %v9088 = vpack.c.b16 %v9069, %v9068
      %v9089 = vpack.c.b16 %v9071, %v9070
      %v9090 = vpack.c.b16 %v9073, %v9072
      %v9091 = vpack.c.b16 %v9075, %v9074
      %v9124 = vunpack.c.l.b16 %v9028
      %v9125 = vunpack.c.l.b16 %v9029
      %v9126 = vunpack.c.l.b16 %v9030
      %v9127 = vunpack.c.l.b16 %v9031
      %v9128 = vunpack.c.l.b16 %v9032
      %v9129 = vunpack.c.l.b16 %v9033
      %v9130 = vunpack.c.l.b16 %v9034
      %v9131 = vunpack.c.l.b16 %v9035
      %v9132 = vunpack.c.l.b16 %v9036
      %v9133 = vunpack.c.l.b16 %v9037
      %v9134 = vunpack.c.l.b16 %v9038
      %v9135 = vunpack.c.l.b16 %v9039
      %v9136 = vunpack.c.l.b16 %v9040
      %v9137 = vunpack.c.l.b16 %v9041
      %v9138 = vunpack.c.l.b16 %v9042
      %v9139 = vunpack.c.l.b16 %v9043
      %v9140 = vpack.c.b16 %v9125, %v9124
      %v9141 = vpack.c.b16 %v9127, %v9126
      %v9142 = vpack.c.b16 %v9129, %v9128
      %v9143 = vpack.c.b16 %v9131, %v9130
      %v9144 = vpack.c.b16 %v9133, %v9132
      %v9145 = vpack.c.b16 %v9135, %v9134
      %v9146 = vpack.c.b16 %v9137, %v9136
      %v9147 = vpack.c.b16 %v9139, %v9138
      %9156 = vmatprep.subr.bf16.mxu0 0
      %9157 = vmatpush1.bf16.msra.mxu0 %v9147
      %9158 = vmatprep.subr.bf16.mxu0 0
      %9159 = vmatpush1.bf16.msra.mxu0 %v9146
      %9160 = vmatprep.subr.bf16.mxu0 0
      %9161 = vmatpush1.bf16.msra.mxu0 %v9145
      %9162 = vmatprep.subr.bf16.mxu0 0
      %9163 = vmatpush1.bf16.msra.mxu0 %v9144
      %9164 = vmatprep.subr.bf16.mxu0 0
      %9165 = vmatpush1.bf16.msra.mxu0 %v9143
      %9166 = vmatprep.subr.bf16.mxu0 0
      %9167 = vmatpush1.bf16.msra.mxu0 %v9142
      %9168 = vmatprep.subr.bf16.mxu0 0
      %9169 = vmatpush1.bf16.msra.mxu0 %v9141
      %9170 = vmatprep.subr.bf16.mxu0 0
      %9171 = vmatpush1.bf16.msra.mxu0 %v9140
      %9172 = vmatprep.subr.bf16.mxu0 0
      %9173 = vmatpush2.bf16.msra.mxu0 0
      %9174 = vmatprep.subr.bf16.mxu0 0
      %9175 = vmatpush2.bf16.msra.mxu0 0
      %9176 = vmatprep.subr.bf16.mxu0 0
      %9177 = vmatpush2.bf16.msra.mxu0 0
      %9178 = vmatprep.subr.bf16.mxu0 0
      %9179 = vmatpush2.bf16.msra.mxu0 0
      %9180 = vmatprep.subr.bf16.mxu0 0
      %9181 = vmatpush2.bf16.msra.mxu0 0
      %9182 = vmatprep.subr.bf16.mxu0 0
      %9183 = vmatpush2.bf16.msra.mxu0 0
      %9184 = vmatprep.subr.bf16.mxu0 0
      %9185 = vmatpush2.bf16.msra.mxu0 0
      %9186 = vmatprep.subr.bf16.mxu0 0
      %9187 = vmatpush2.bf16.msra.mxu0 0
      %9188 = vmatprep.mubr.bf16.mxu0 0
      %9189 = vmatmul.mubr.bf16.gmra.mxu0 %v9076
      %v9190 = vpop.f32.mrf.mxu0
      %v9191 = vadd.f32 0.0, %v9190
      %v9192 = vpop.f32.mrf.mxu0
      %v9193 = vpop.f32.mrf.mxu0
      %v9194 = vadd.f32 0.0, %v9193
      %v9195 = vpop.f32.mrf.mxu0
      %9196 = vmatprep.mubr.bf16.mxu0 0
      %9197 = vmatmul.mubr.bf16.gmra.mxu0 %v9077
      %v9198 = vpop.f32.mrf.mxu0
      %v9199 = vadd.f32 0.0, %v9198
      %v9200 = vpop.f32.mrf.mxu0
      %v9201 = vpop.f32.mrf.mxu0
      %v9202 = vadd.f32 0.0, %v9201
      %v9203 = vpop.f32.mrf.mxu0
      %9204 = vmatprep.mubr.bf16.mxu0 0
      %9205 = vmatmul.mubr.bf16.gmra.mxu0 %v9078
      %v9206 = vpop.f32.mrf.mxu0
      %v9207 = vadd.f32 0.0, %v9206
      %v9208 = vpop.f32.mrf.mxu0
      %v9209 = vpop.f32.mrf.mxu0
      %v9210 = vadd.f32 0.0, %v9209
      %v9211 = vpop.f32.mrf.mxu0
      %9212 = vmatprep.mubr.bf16.mxu0 0
      %9213 = vmatmul.mubr.bf16.gmra.mxu0 %v9079
      %v9214 = vpop.f32.mrf.mxu0
      %v9215 = vadd.f32 0.0, %v9214
      %v9216 = vpop.f32.mrf.mxu0
      %v9217 = vpop.f32.mrf.mxu0
      %v9218 = vadd.f32 0.0, %v9217
      %v9219 = vpop.f32.mrf.mxu0
      %9220 = vmatprep.mubr.bf16.mxu0 0
      %9221 = vmatmul.mubr.bf16.gmra.mxu0 %v9080
      %v9222 = vpop.f32.mrf.mxu0
      %v9223 = vadd.f32 0.0, %v9222
      %v9224 = vpop.f32.mrf.mxu0
      %v9225 = vpop.f32.mrf.mxu0
      %v9226 = vadd.f32 0.0, %v9225
      %v9227 = vpop.f32.mrf.mxu0
      %9228 = vmatprep.mubr.bf16.mxu0 0
      %9229 = vmatmul.mubr.bf16.gmra.mxu0 %v9081
      %v9230 = vpop.f32.mrf.mxu0
      %v9231 = vadd.f32 0.0, %v9230
      %v9232 = vpop.f32.mrf.mxu0
      %v9233 = vpop.f32.mrf.mxu0
      %v9234 = vadd.f32 0.0, %v9233
      %v9235 = vpop.f32.mrf.mxu0
      %9236 = vmatprep.mubr.bf16.mxu0 0
      %9237 = vmatmul.mubr.bf16.gmra.mxu0 %v9082
      %v9238 = vpop.f32.mrf.mxu0
      %v9239 = vadd.f32 0.0, %v9238
      %v9240 = vpop.f32.mrf.mxu0
      %v9241 = vpop.f32.mrf.mxu0
      %v9242 = vadd.f32 0.0, %v9241
      %v9243 = vpop.f32.mrf.mxu0
      %9244 = vmatprep.mubr.bf16.mxu0 0
      %9245 = vmatmul.mubr.bf16.gmra.mxu0 %v9083
      %v9246 = vpop.f32.mrf.mxu0
      %v9247 = vadd.f32 0.0, %v9246
      %v9248 = vpop.f32.mrf.mxu0
      %v9249 = vpop.f32.mrf.mxu0
      %v9250 = vadd.f32 0.0, %v9249
      %v9251 = vpop.f32.mrf.mxu0
      %9252 = vmatprep.mubr.bf16.mxu0 0
      %9253 = vmatmul.mubr.bf16.gmra.mxu0 %v9084
      %v9254 = vpop.f32.mrf.mxu0
      %v9255 = vadd.f32 0.0, %v9254
      %v9256 = vpop.f32.mrf.mxu0
      %v9257 = vpop.f32.mrf.mxu0
      %v9258 = vadd.f32 0.0, %v9257
      %v9259 = vpop.f32.mrf.mxu0
      %9260 = vmatprep.mubr.bf16.mxu0 0
      %9261 = vmatmul.mubr.bf16.gmra.mxu0 %v9085
      %v9262 = vpop.f32.mrf.mxu0
      %v9263 = vadd.f32 0.0, %v9262
      %v9264 = vpop.f32.mrf.mxu0
      %v9265 = vpop.f32.mrf.mxu0
      %v9266 = vadd.f32 0.0, %v9265
      %v9267 = vpop.f32.mrf.mxu0
      %9268 = vmatprep.mubr.bf16.mxu0 0
      %9269 = vmatmul.mubr.bf16.gmra.mxu0 %v9086
      %v9270 = vpop.f32.mrf.mxu0
      %v9271 = vadd.f32 0.0, %v9270
      %v9272 = vpop.f32.mrf.mxu0
      %v9273 = vpop.f32.mrf.mxu0
      %v9274 = vadd.f32 0.0, %v9273
      %v9275 = vpop.f32.mrf.mxu0
      %9276 = vmatprep.mubr.bf16.mxu0 0
      %9277 = vmatmul.mubr.bf16.gmra.mxu0 %v9087
      %v9278 = vpop.f32.mrf.mxu0
      %v9279 = vadd.f32 0.0, %v9278
      %v9280 = vpop.f32.mrf.mxu0
      %v9281 = vpop.f32.mrf.mxu0
      %v9282 = vadd.f32 0.0, %v9281
      %v9283 = vpop.f32.mrf.mxu0
      %9284 = vmatprep.mubr.bf16.mxu0 0
      %9285 = vmatmul.mubr.bf16.gmra.mxu0 %v9088
      %v9286 = vpop.f32.mrf.mxu0
      %v9287 = vadd.f32 0.0, %v9286
      %v9288 = vpop.f32.mrf.mxu0
      %v9289 = vpop.f32.mrf.mxu0
      %v9290 = vadd.f32 0.0, %v9289
      %v9291 = vpop.f32.mrf.mxu0
      %9292 = vmatprep.mubr.bf16.mxu0 0
      %9293 = vmatmul.mubr.bf16.gmra.mxu0 %v9089
      %v9294 = vpop.f32.mrf.mxu0
      %v9295 = vadd.f32 0.0, %v9294
      %v9296 = vpop.f32.mrf.mxu0
      %v9297 = vpop.f32.mrf.mxu0
      %v9298 = vadd.f32 0.0, %v9297
      %v9299 = vpop.f32.mrf.mxu0
      %9300 = vmatprep.mubr.bf16.mxu0 0
      %9301 = vmatmul.mubr.bf16.gmra.mxu0 %v9090
      %v9302 = vpop.f32.mrf.mxu0
      %v9303 = vadd.f32 0.0, %v9302
      %v9304 = vpop.f32.mrf.mxu0
      %v9305 = vpop.f32.mrf.mxu0
      %v9306 = vadd.f32 0.0, %v9305
      %v9307 = vpop.f32.mrf.mxu0
      %9308 = vmatprep.mubr.bf16.mxu0 0
      %9309 = vmatmul.mubr.bf16.gmra.mxu0 %v9091
      %v9310 = vpop.f32.mrf.mxu0
      %v9311 = vadd.f32 0.0, %v9310
      %v9312 = vpop.f32.mrf.mxu0
      %v9313 = vpop.f32.mrf.mxu0
      %v9314 = vadd.f32 0.0, %v9313
      %v9315 = vpop.f32.mrf.mxu0
      %9316 = vdwg.mxu0
      %v9317 = vadd.f32 %v8819, %v9191
      %v9318 = vadd.f32 %v8820, %v9194
      %v9319 = vadd.f32 %v8821, %v9199
      %v9320 = vadd.f32 %v8822, %v9202
      %v9321 = vadd.f32 %v8823, %v9207
      %v9322 = vadd.f32 %v8824, %v9210
      %v9323 = vadd.f32 %v8825, %v9215
      %v9324 = vadd.f32 %v8826, %v9218
      %v9325 = vadd.f32 %v8827, %v9223
      %v9326 = vadd.f32 %v8828, %v9226
      %v9327 = vadd.f32 %v8829, %v9231
      %v9328 = vadd.f32 %v8830, %v9234
      %v9329 = vadd.f32 %v8831, %v9239
      %v9330 = vadd.f32 %v8832, %v9242
      %v9331 = vadd.f32 %v8833, %v9247
      %v9332 = vadd.f32 %v8834, %v9250
      %v9333 = vadd.f32 %v8835, %v9255
      %v9334 = vadd.f32 %v8836, %v9258
      %v9335 = vadd.f32 %v8837, %v9263
      %v9336 = vadd.f32 %v8838, %v9266
      %v9337 = vadd.f32 %v8839, %v9271
      %v9338 = vadd.f32 %v8840, %v9274
      %v9339 = vadd.f32 %v8841, %v9279
      %v9340 = vadd.f32 %v8842, %v9282
      %v9341 = vadd.f32 %v8843, %v9287
      %v9342 = vadd.f32 %v8844, %v9290
      %v9343 = vadd.f32 %v8845, %v9295
      %v9344 = vadd.f32 %v8846, %v9298
      %v9345 = vadd.f32 %v8847, %v9303
      %v9346 = vadd.f32 %v8848, %v9306
      %v9347 = vadd.f32 %v8849, %v9311
      %v9348 = vadd.f32 %v8850, %v9314
      %s9349 = scalar_lea.vmem [#allocation3], 24
      %v9350 = vld [vmem:[%s9349] sm:$0xf]
      %v9351 = vld [vmem:[%s9349 + $0x4] sm:$0xf]
      %v9352 = vld [vmem:[%s9349 + $0xc] sm:$0xf]
      %v9353 = vld [vmem:[%s9349 + $0x10] sm:$0xf]
      %v9354 = vld [vmem:[%s9349 + $0x18] sm:$0xf]
      %v9355 = vld [vmem:[%s9349 + $0x1c] sm:$0xf]
      %v9356 = vld [vmem:[%s9349 + $0x24] sm:$0xf]
      %v9357 = vld [vmem:[%s9349 + $0x28] sm:$0xf]
      %v9358 = vld [vmem:[%s9349 + $0x30] sm:$0xf]
      %v9359 = vld [vmem:[%s9349 + $0x34] sm:$0xf]
      %v9360 = vld [vmem:[%s9349 + $0x3c] sm:$0xf]
      %v9361 = vld [vmem:[%s9349 + $0x40] sm:$0xf]
      %v9362 = vld [vmem:[%s9349 + $0x48] sm:$0xf]
      %v9363 = vld [vmem:[%s9349 + $0x4c] sm:$0xf]
      %v9364 = vld [vmem:[%s9349 + $0x54] sm:$0xf]
      %v9365 = vld [vmem:[%s9349 + $0x58] sm:$0xf]
      %v9366 = vld [vmem:[%s9349 + $0x60] sm:$0xf]
      %v9367 = vld [vmem:[%s9349 + $0x64] sm:$0xf]
      %v9368 = vld [vmem:[%s9349 + $0x6c] sm:$0xf]
      %v9369 = vld [vmem:[%s9349 + $0x70] sm:$0xf]
      %v9370 = vld [vmem:[%s9349 + $0x78] sm:$0xf]
      %v9371 = vld [vmem:[%s9349 + $0x7c] sm:$0xf]
      %v9372 = vld [vmem:[%s9349 + $0x84] sm:$0xf]
      %v9373 = vld [vmem:[%s9349 + $0x88] sm:$0xf]
      %v9374 = vld [vmem:[%s9349 + $0x90] sm:$0xf]
      %v9375 = vld [vmem:[%s9349 + $0x94] sm:$0xf]
      %v9376 = vld [vmem:[%s9349 + $0x9c] sm:$0xf]
      %v9377 = vld [vmem:[%s9349 + $0xa0] sm:$0xf]
      %v9378 = vld [vmem:[%s9349 + $0xa8] sm:$0xf]
      %v9379 = vld [vmem:[%s9349 + $0xac] sm:$0xf]
      %v9380 = vld [vmem:[%s9349 + $0xb4] sm:$0xf]
      %v9381 = vld [vmem:[%s9349 + $0xb8] sm:$0xf]
      %s9382 = scalar_lea.vmem %s2, 384
      %v9383 = vld [vmem:[%s9382] sm:$0xf]
      %v9384 = vld [vmem:[%s9382 + $0x4] sm:$0xf]
      %v9385 = vld [vmem:[%s9382 + $0x8] sm:$0xf]
      %v9386 = vld [vmem:[%s9382 + $0xc] sm:$0xf]
      %v9387 = vld [vmem:[%s9382 + $0x10] sm:$0xf]
      %v9388 = vld [vmem:[%s9382 + $0x14] sm:$0xf]
      %v9389 = vld [vmem:[%s9382 + $0x18] sm:$0xf]
      %v9390 = vld [vmem:[%s9382 + $0x1c] sm:$0xf]
      %v9391 = vld [vmem:[%s9382 + $0x20] sm:$0xf]
      %v9392 = vld [vmem:[%s9382 + $0x24] sm:$0xf]
      %v9393 = vld [vmem:[%s9382 + $0x28] sm:$0xf]
      %v9394 = vld [vmem:[%s9382 + $0x2c] sm:$0xf]
      %v9395 = vld [vmem:[%s9382 + $0x30] sm:$0xf]
      %v9396 = vld [vmem:[%s9382 + $0x34] sm:$0xf]
      %v9397 = vld [vmem:[%s9382 + $0x38] sm:$0xf]
      %v9398 = vld [vmem:[%s9382 + $0x3c] sm:$0xf]
      %v9431 = vunpack.c.l.b16 %v9350
      %v9432 = vunpack.c.l.b16 %v9351
      %v9433 = vunpack.c.l.b16 %v9352
      %v9434 = vunpack.c.l.b16 %v9353
      %v9435 = vunpack.c.l.b16 %v9354
      %v9436 = vunpack.c.l.b16 %v9355
      %v9437 = vunpack.c.l.b16 %v9356
      %v9438 = vunpack.c.l.b16 %v9357
      %v9439 = vunpack.c.l.b16 %v9358
      %v9440 = vunpack.c.l.b16 %v9359
      %v9441 = vunpack.c.l.b16 %v9360
      %v9442 = vunpack.c.l.b16 %v9361
      %v9443 = vunpack.c.l.b16 %v9362
      %v9444 = vunpack.c.l.b16 %v9363
      %v9445 = vunpack.c.l.b16 %v9364
      %v9446 = vunpack.c.l.b16 %v9365
      %v9447 = vunpack.c.l.b16 %v9366
      %v9448 = vunpack.c.l.b16 %v9367
      %v9449 = vunpack.c.l.b16 %v9368
      %v9450 = vunpack.c.l.b16 %v9369
      %v9451 = vunpack.c.l.b16 %v9370
      %v9452 = vunpack.c.l.b16 %v9371
      %v9453 = vunpack.c.l.b16 %v9372
      %v9454 = vunpack.c.l.b16 %v9373
      %v9455 = vunpack.c.l.b16 %v9374
      %v9456 = vunpack.c.l.b16 %v9375
      %v9457 = vunpack.c.l.b16 %v9376
      %v9458 = vunpack.c.l.b16 %v9377
      %v9459 = vunpack.c.l.b16 %v9378
      %v9460 = vunpack.c.l.b16 %v9379
      %v9461 = vunpack.c.l.b16 %v9380
      %v9462 = vunpack.c.l.b16 %v9381
      %v9463 = vpack.c.b16 %v9432, %v9431
      %v9464 = vpack.c.b16 %v9434, %v9433
      %v9465 = vpack.c.b16 %v9436, %v9435
      %v9466 = vpack.c.b16 %v9438, %v9437
      %v9467 = vpack.c.b16 %v9440, %v9439
      %v9468 = vpack.c.b16 %v9442, %v9441
      %v9469 = vpack.c.b16 %v9444, %v9443
      %v9470 = vpack.c.b16 %v9446, %v9445
      %v9471 = vpack.c.b16 %v9448, %v9447
      %v9472 = vpack.c.b16 %v9450, %v9449
      %v9473 = vpack.c.b16 %v9452, %v9451
      %v9474 = vpack.c.b16 %v9454, %v9453
      %v9475 = vpack.c.b16 %v9456, %v9455
      %v9476 = vpack.c.b16 %v9458, %v9457
      %v9477 = vpack.c.b16 %v9460, %v9459
      %v9478 = vpack.c.b16 %v9462, %v9461
      %v9511 = vunpack.c.l.b16 %v9383
      %v9512 = vunpack.c.l.b16 %v9384
      %v9513 = vunpack.c.l.b16 %v9385
      %v9514 = vunpack.c.l.b16 %v9386
      %v9515 = vunpack.c.l.b16 %v9387
      %v9516 = vunpack.c.l.b16 %v9388
      %v9517 = vunpack.c.l.b16 %v9389
      %v9518 = vunpack.c.l.b16 %v9390
      %v9519 = vunpack.c.l.b16 %v9391
      %v9520 = vunpack.c.l.b16 %v9392
      %v9521 = vunpack.c.l.b16 %v9393
      %v9522 = vunpack.c.l.b16 %v9394
      %v9523 = vunpack.c.l.b16 %v9395
      %v9524 = vunpack.c.l.b16 %v9396
      %v9525 = vunpack.c.l.b16 %v9397
      %v9526 = vunpack.c.l.b16 %v9398
      %v9527 = vpack.c.b16 %v9512, %v9511
      %v9528 = vpack.c.b16 %v9514, %v9513
      %v9529 = vpack.c.b16 %v9516, %v9515
      %v9530 = vpack.c.b16 %v9518, %v9517
      %v9531 = vpack.c.b16 %v9520, %v9519
      %v9532 = vpack.c.b16 %v9522, %v9521
      %v9533 = vpack.c.b16 %v9524, %v9523
      %v9534 = vpack.c.b16 %v9526, %v9525
      %9543 = vmatprep.subr.bf16.mxu0 0
      %9544 = vmatpush1.bf16.msra.mxu0 %v9534
      %9545 = vmatprep.subr.bf16.mxu0 0
      %9546 = vmatpush1.bf16.msra.mxu0 %v9533
      %9547 = vmatprep.subr.bf16.mxu0 0
      %9548 = vmatpush1.bf16.msra.mxu0 %v9532
      %9549 = vmatprep.subr.bf16.mxu0 0
      %9550 = vmatpush1.bf16.msra.mxu0 %v9531
      %9551 = vmatprep.subr.bf16.mxu0 0
      %9552 = vmatpush1.bf16.msra.mxu0 %v9530
      %9553 = vmatprep.subr.bf16.mxu0 0
      %9554 = vmatpush1.bf16.msra.mxu0 %v9529
      %9555 = vmatprep.subr.bf16.mxu0 0
      %9556 = vmatpush1.bf16.msra.mxu0 %v9528
      %9557 = vmatprep.subr.bf16.mxu0 0
      %9558 = vmatpush1.bf16.msra.mxu0 %v9527
      %9559 = vmatprep.subr.bf16.mxu0 0
      %9560 = vmatpush2.bf16.msra.mxu0 0
      %9561 = vmatprep.subr.bf16.mxu0 0
      %9562 = vmatpush2.bf16.msra.mxu0 0
      %9563 = vmatprep.subr.bf16.mxu0 0
      %9564 = vmatpush2.bf16.msra.mxu0 0
      %9565 = vmatprep.subr.bf16.mxu0 0
      %9566 = vmatpush2.bf16.msra.mxu0 0
      %9567 = vmatprep.subr.bf16.mxu0 0
      %9568 = vmatpush2.bf16.msra.mxu0 0
      %9569 = vmatprep.subr.bf16.mxu0 0
      %9570 = vmatpush2.bf16.msra.mxu0 0
      %9571 = vmatprep.subr.bf16.mxu0 0
      %9572 = vmatpush2.bf16.msra.mxu0 0
      %9573 = vmatprep.subr.bf16.mxu0 0
      %9574 = vmatpush2.bf16.msra.mxu0 0
      %9575 = vmatprep.mubr.bf16.mxu0 0
      %9576 = vmatmul.mubr.bf16.gmra.mxu0 %v9463
      %v9577 = vpop.f32.mrf.mxu0
      %v9578 = vadd.f32 0.0, %v9577
      %v9579 = vpop.f32.mrf.mxu0
      %v9580 = vpop.f32.mrf.mxu0
      %v9581 = vadd.f32 0.0, %v9580
      %v9582 = vpop.f32.mrf.mxu0
      %9583 = vmatprep.mubr.bf16.mxu0 0
      %9584 = vmatmul.mubr.bf16.gmra.mxu0 %v9464
      %v9585 = vpop.f32.mrf.mxu0
      %v9586 = vadd.f32 0.0, %v9585
      %v9587 = vpop.f32.mrf.mxu0
      %v9588 = vpop.f32.mrf.mxu0
      %v9589 = vadd.f32 0.0, %v9588
      %v9590 = vpop.f32.mrf.mxu0
      %9591 = vmatprep.mubr.bf16.mxu0 0
      %9592 = vmatmul.mubr.bf16.gmra.mxu0 %v9465
      %v9593 = vpop.f32.mrf.mxu0
      %v9594 = vadd.f32 0.0, %v9593
      %v9595 = vpop.f32.mrf.mxu0
      %v9596 = vpop.f32.mrf.mxu0
      %v9597 = vadd.f32 0.0, %v9596
      %v9598 = vpop.f32.mrf.mxu0
      %9599 = vmatprep.mubr.bf16.mxu0 0
      %9600 = vmatmul.mubr.bf16.gmra.mxu0 %v9466
      %v9601 = vpop.f32.mrf.mxu0
      %v9602 = vadd.f32 0.0, %v9601
      %v9603 = vpop.f32.mrf.mxu0
      %v9604 = vpop.f32.mrf.mxu0
      %v9605 = vadd.f32 0.0, %v9604
      %v9606 = vpop.f32.mrf.mxu0
      %9607 = vmatprep.mubr.bf16.mxu0 0
      %9608 = vmatmul.mubr.bf16.gmra.mxu0 %v9467
      %v9609 = vpop.f32.mrf.mxu0
      %v9610 = vadd.f32 0.0, %v9609
      %v9611 = vpop.f32.mrf.mxu0
      %v9612 = vpop.f32.mrf.mxu0
      %v9613 = vadd.f32 0.0, %v9612
      %v9614 = vpop.f32.mrf.mxu0
      %9615 = vmatprep.mubr.bf16.mxu0 0
      %9616 = vmatmul.mubr.bf16.gmra.mxu0 %v9468
      %v9617 = vpop.f32.mrf.mxu0
      %v9618 = vadd.f32 0.0, %v9617
      %v9619 = vpop.f32.mrf.mxu0
      %v9620 = vpop.f32.mrf.mxu0
      %v9621 = vadd.f32 0.0, %v9620
      %v9622 = vpop.f32.mrf.mxu0
      %9623 = vmatprep.mubr.bf16.mxu0 0
      %9624 = vmatmul.mubr.bf16.gmra.mxu0 %v9469
      %v9625 = vpop.f32.mrf.mxu0
      %v9626 = vadd.f32 0.0, %v9625
      %v9627 = vpop.f32.mrf.mxu0
      %v9628 = vpop.f32.mrf.mxu0
      %v9629 = vadd.f32 0.0, %v9628
      %v9630 = vpop.f32.mrf.mxu0
      %9631 = vmatprep.mubr.bf16.mxu0 0
      %9632 = vmatmul.mubr.bf16.gmra.mxu0 %v9470
      %v9633 = vpop.f32.mrf.mxu0
      %v9634 = vadd.f32 0.0, %v9633
      %v9635 = vpop.f32.mrf.mxu0
      %v9636 = vpop.f32.mrf.mxu0
      %v9637 = vadd.f32 0.0, %v9636
      %v9638 = vpop.f32.mrf.mxu0
      %9639 = vmatprep.mubr.bf16.mxu0 0
      %9640 = vmatmul.mubr.bf16.gmra.mxu0 %v9471
      %v9641 = vpop.f32.mrf.mxu0
      %v9642 = vadd.f32 0.0, %v9641
      %v9643 = vpop.f32.mrf.mxu0
      %v9644 = vpop.f32.mrf.mxu0
      %v9645 = vadd.f32 0.0, %v9644
      %v9646 = vpop.f32.mrf.mxu0
      %9647 = vmatprep.mubr.bf16.mxu0 0
      %9648 = vmatmul.mubr.bf16.gmra.mxu0 %v9472
      %v9649 = vpop.f32.mrf.mxu0
      %v9650 = vadd.f32 0.0, %v9649
      %v9651 = vpop.f32.mrf.mxu0
      %v9652 = vpop.f32.mrf.mxu0
      %v9653 = vadd.f32 0.0, %v9652
      %v9654 = vpop.f32.mrf.mxu0
      %9655 = vmatprep.mubr.bf16.mxu0 0
      %9656 = vmatmul.mubr.bf16.gmra.mxu0 %v9473
      %v9657 = vpop.f32.mrf.mxu0
      %v9658 = vadd.f32 0.0, %v9657
      %v9659 = vpop.f32.mrf.mxu0
      %v9660 = vpop.f32.mrf.mxu0
      %v9661 = vadd.f32 0.0, %v9660
      %v9662 = vpop.f32.mrf.mxu0
      %9663 = vmatprep.mubr.bf16.mxu0 0
      %9664 = vmatmul.mubr.bf16.gmra.mxu0 %v9474
      %v9665 = vpop.f32.mrf.mxu0
      %v9666 = vadd.f32 0.0, %v9665
      %v9667 = vpop.f32.mrf.mxu0
      %v9668 = vpop.f32.mrf.mxu0
      %v9669 = vadd.f32 0.0, %v9668
      %v9670 = vpop.f32.mrf.mxu0
      %9671 = vmatprep.mubr.bf16.mxu0 0
      %9672 = vmatmul.mubr.bf16.gmra.mxu0 %v9475
      %v9673 = vpop.f32.mrf.mxu0
      %v9674 = vadd.f32 0.0, %v9673
      %v9675 = vpop.f32.mrf.mxu0
      %v9676 = vpop.f32.mrf.mxu0
      %v9677 = vadd.f32 0.0, %v9676
      %v9678 = vpop.f32.mrf.mxu0
      %9679 = vmatprep.mubr.bf16.mxu0 0
      %9680 = vmatmul.mubr.bf16.gmra.mxu0 %v9476
      %v9681 = vpop.f32.mrf.mxu0
      %v9682 = vadd.f32 0.0, %v9681
      %v9683 = vpop.f32.mrf.mxu0
      %v9684 = vpop.f32.mrf.mxu0
      %v9685 = vadd.f32 0.0, %v9684
      %v9686 = vpop.f32.mrf.mxu0
      %9687 = vmatprep.mubr.bf16.mxu0 0
      %9688 = vmatmul.mubr.bf16.gmra.mxu0 %v9477
      %v9689 = vpop.f32.mrf.mxu0
      %v9690 = vadd.f32 0.0, %v9689
      %v9691 = vpop.f32.mrf.mxu0
      %v9692 = vpop.f32.mrf.mxu0
      %v9693 = vadd.f32 0.0, %v9692
      %v9694 = vpop.f32.mrf.mxu0
      %9695 = vmatprep.mubr.bf16.mxu0 0
      %9696 = vmatmul.mubr.bf16.gmra.mxu0 %v9478
      %v9697 = vpop.f32.mrf.mxu0
      %v9698 = vadd.f32 0.0, %v9697
      %v9699 = vpop.f32.mrf.mxu0
      %v9700 = vpop.f32.mrf.mxu0
      %v9701 = vadd.f32 0.0, %v9700
      %v9702 = vpop.f32.mrf.mxu0
      %9703 = vdwg.mxu0
      %v9704 = vadd.f32 %v9317, %v9578
      %v9705 = vadd.f32 %v9318, %v9581
      %v9706 = vadd.f32 %v9319, %v9586
      %v9707 = vadd.f32 %v9320, %v9589
      %v9708 = vadd.f32 %v9321, %v9594
      %v9709 = vadd.f32 %v9322, %v9597
      %v9710 = vadd.f32 %v9323, %v9602
      %v9711 = vadd.f32 %v9324, %v9605
      %v9712 = vadd.f32 %v9325, %v9610
      %v9713 = vadd.f32 %v9326, %v9613
      %v9714 = vadd.f32 %v9327, %v9618
      %v9715 = vadd.f32 %v9328, %v9621
      %v9716 = vadd.f32 %v9329, %v9626
      %v9717 = vadd.f32 %v9330, %v9629
      %v9718 = vadd.f32 %v9331, %v9634
      %v9719 = vadd.f32 %v9332, %v9637
      %v9720 = vadd.f32 %v9333, %v9642
      %v9721 = vadd.f32 %v9334, %v9645
      %v9722 = vadd.f32 %v9335, %v9650
      %v9723 = vadd.f32 %v9336, %v9653
      %v9724 = vadd.f32 %v9337, %v9658
      %v9725 = vadd.f32 %v9338, %v9661
      %v9726 = vadd.f32 %v9339, %v9666
      %v9727 = vadd.f32 %v9340, %v9669
      %v9728 = vadd.f32 %v9341, %v9674
      %v9729 = vadd.f32 %v9342, %v9677
      %v9730 = vadd.f32 %v9343, %v9682
      %v9731 = vadd.f32 %v9344, %v9685
      %v9732 = vadd.f32 %v9345, %v9690
      %v9733 = vadd.f32 %v9346, %v9693
      %v9734 = vadd.f32 %v9347, %v9698
      %v9735 = vadd.f32 %v9348, %v9701
      %v9736 = vld [vmem:[%s9349] sm:$0xf]
      %v9737 = vld [vmem:[%s9349 + $0x4] sm:$0xf]
      %v9738 = vld [vmem:[%s9349 + $0x8] sm:$0x1]
      %v9739 = vld [vmem:[%s9349 + $0xc] sm:$0xf]
      %v9740 = vld [vmem:[%s9349 + $0x10] sm:$0xf]
      %v9741 = vld [vmem:[%s9349 + $0x14] sm:$0x1]
      %v9742 = vld [vmem:[%s9349 + $0x18] sm:$0xf]
      %v9743 = vld [vmem:[%s9349 + $0x1c] sm:$0xf]
      %v9744 = vld [vmem:[%s9349 + $0x20] sm:$0x1]
      %v9745 = vld [vmem:[%s9349 + $0x24] sm:$0xf]
      %v9746 = vld [vmem:[%s9349 + $0x28] sm:$0xf]
      %v9747 = vld [vmem:[%s9349 + $0x2c] sm:$0x1]
      %v9748 = vld [vmem:[%s9349 + $0x30] sm:$0xf]
      %v9749 = vld [vmem:[%s9349 + $0x34] sm:$0xf]
      %v9750 = vld [vmem:[%s9349 + $0x38] sm:$0x1]
      %v9751 = vld [vmem:[%s9349 + $0x3c] sm:$0xf]
      %v9752 = vld [vmem:[%s9349 + $0x40] sm:$0xf]
      %v9753 = vld [vmem:[%s9349 + $0x44] sm:$0x1]
      %v9754 = vld [vmem:[%s9349 + $0x48] sm:$0xf]
      %v9755 = vld [vmem:[%s9349 + $0x4c] sm:$0xf]
      %v9756 = vld [vmem:[%s9349 + $0x50] sm:$0x1]
      %v9757 = vld [vmem:[%s9349 + $0x54] sm:$0xf]
      %v9758 = vld [vmem:[%s9349 + $0x58] sm:$0xf]
      %v9759 = vld [vmem:[%s9349 + $0x5c] sm:$0x1]
      %v9760 = vld [vmem:[%s9349 + $0x60] sm:$0xf]
      %v9761 = vld [vmem:[%s9349 + $0x64] sm:$0xf]
      %v9762 = vld [vmem:[%s9349 + $0x68] sm:$0x1]
      %v9763 = vld [vmem:[%s9349 + $0x6c] sm:$0xf]
      %v9764 = vld [vmem:[%s9349 + $0x70] sm:$0xf]
      %v9765 = vld [vmem:[%s9349 + $0x74] sm:$0x1]
      %v9766 = vld [vmem:[%s9349 + $0x78] sm:$0xf]
      %v9767 = vld [vmem:[%s9349 + $0x7c] sm:$0xf]
      %v9768 = vld [vmem:[%s9349 + $0x80] sm:$0x1]
      %v9769 = vld [vmem:[%s9349 + $0x84] sm:$0xf]
      %v9770 = vld [vmem:[%s9349 + $0x88] sm:$0xf]
      %v9771 = vld [vmem:[%s9349 + $0x8c] sm:$0x1]
      %v9772 = vld [vmem:[%s9349 + $0x90] sm:$0xf]
      %v9773 = vld [vmem:[%s9349 + $0x94] sm:$0xf]
      %v9774 = vld [vmem:[%s9349 + $0x98] sm:$0x1]
      %v9775 = vld [vmem:[%s9349 + $0x9c] sm:$0xf]
      %v9776 = vld [vmem:[%s9349 + $0xa0] sm:$0xf]
      %v9777 = vld [vmem:[%s9349 + $0xa4] sm:$0x1]
      %v9778 = vld [vmem:[%s9349 + $0xa8] sm:$0xf]
      %v9779 = vld [vmem:[%s9349 + $0xac] sm:$0xf]
      %v9780 = vld [vmem:[%s9349 + $0xb0] sm:$0x1]
      %v9781 = vld [vmem:[%s9349 + $0xb4] sm:$0xf]
      %v9782 = vld [vmem:[%s9349 + $0xb8] sm:$0xf]
      %v9783 = vld [vmem:[%s9349 + $0xbc] sm:$0x1]
      %v9785 = vshrl.u32 %v9736, 16
      %v9787 = vrot.slane %v9785, 4
      %v9788 = vshll.u32 %v9736, 16
      %v9790 = vrot.slane %v9788, 5
      %v9791 = vor.u32 %v9787, %v9790
      %v9792 = vrot.slane %v9791, 4
      %v9794 = vshll.u32 %v9737, 16
      %v9796 = vrot.slane %v9794, 5
      %v9797 = vsel %vm846, %v9792, %v9796
      %v9798 = vshrl.u32 %v9737, 16
      %v9800 = vrot.slane %v9798, 4
      %v9801 = vor.u32 %v9800, %v9796
      %v9802 = vrot.slane %v9801, 4
      %v9804 = vshll.u32 %v9738, 16
      %v9806 = vrot.slane %v9804, 5
      %v9807 = vsel %vm846, %v9802, %v9806
      %v9809 = vshrl.u32 %v9739, 16
      %v9811 = vrot.slane %v9809, 4
      %v9812 = vshll.u32 %v9739, 16
      %v9814 = vrot.slane %v9812, 5
      %v9815 = vor.u32 %v9811, %v9814
      %v9816 = vrot.slane %v9815, 4
      %v9818 = vshll.u32 %v9740, 16
      %v9820 = vrot.slane %v9818, 5
      %v9821 = vsel %vm846, %v9816, %v9820
      %v9822 = vshrl.u32 %v9740, 16
      %v9824 = vrot.slane %v9822, 4
      %v9825 = vor.u32 %v9824, %v9820
      %v9826 = vrot.slane %v9825, 4
      %v9828 = vshll.u32 %v9741, 16
      %v9830 = vrot.slane %v9828, 5
      %v9831 = vsel %vm846, %v9826, %v9830
      %v9833 = vshrl.u32 %v9742, 16
      %v9835 = vrot.slane %v9833, 4
      %v9836 = vshll.u32 %v9742, 16
      %v9838 = vrot.slane %v9836, 5
      %v9839 = vor.u32 %v9835, %v9838
      %v9840 = vrot.slane %v9839, 4
      %v9842 = vshll.u32 %v9743, 16
      %v9844 = vrot.slane %v9842, 5
      %v9845 = vsel %vm846, %v9840, %v9844
      %v9846 = vshrl.u32 %v9743, 16
      %v9848 = vrot.slane %v9846, 4
      %v9849 = vor.u32 %v9848, %v9844
      %v9850 = vrot.slane %v9849, 4
      %v9852 = vshll.u32 %v9744, 16
      %v9854 = vrot.slane %v9852, 5
      %v9855 = vsel %vm846, %v9850, %v9854
      %v9857 = vshrl.u32 %v9745, 16
      %v9859 = vrot.slane %v9857, 4
      %v9860 = vshll.u32 %v9745, 16
      %v9862 = vrot.slane %v9860, 5
      %v9863 = vor.u32 %v9859, %v9862
      %v9864 = vrot.slane %v9863, 4
      %v9866 = vshll.u32 %v9746, 16
      %v9868 = vrot.slane %v9866, 5
      %v9869 = vsel %vm846, %v9864, %v9868
      %v9870 = vshrl.u32 %v9746, 16
      %v9872 = vrot.slane %v9870, 4
      %v9873 = vor.u32 %v9872, %v9868
      %v9874 = vrot.slane %v9873, 4
      %v9876 = vshll.u32 %v9747, 16
      %v9878 = vrot.slane %v9876, 5
      %v9879 = vsel %vm846, %v9874, %v9878
      %v9881 = vshrl.u32 %v9748, 16
      %v9883 = vrot.slane %v9881, 4
      %v9884 = vshll.u32 %v9748, 16
      %v9886 = vrot.slane %v9884, 5
      %v9887 = vor.u32 %v9883, %v9886
      %v9888 = vrot.slane %v9887, 4
      %v9890 = vshll.u32 %v9749, 16
      %v9892 = vrot.slane %v9890, 5
      %v9893 = vsel %vm846, %v9888, %v9892
      %v9894 = vshrl.u32 %v9749, 16
      %v9896 = vrot.slane %v9894, 4
      %v9897 = vor.u32 %v9896, %v9892
      %v9898 = vrot.slane %v9897, 4
      %v9900 = vshll.u32 %v9750, 16
      %v9902 = vrot.slane %v9900, 5
      %v9903 = vsel %vm846, %v9898, %v9902
      %v9905 = vshrl.u32 %v9751, 16
      %v9907 = vrot.slane %v9905, 4
      %v9908 = vshll.u32 %v9751, 16
      %v9910 = vrot.slane %v9908, 5
      %v9911 = vor.u32 %v9907, %v9910
      %v9912 = vrot.slane %v9911, 4
      %v9914 = vshll.u32 %v9752, 16
      %v9916 = vrot.slane %v9914, 5
      %v9917 = vsel %vm846, %v9912, %v9916
      %v9918 = vshrl.u32 %v9752, 16
      %v9920 = vrot.slane %v9918, 4
      %v9921 = vor.u32 %v9920, %v9916
      %v9922 = vrot.slane %v9921, 4
      %v9924 = vshll.u32 %v9753, 16
      %v9926 = vrot.slane %v9924, 5
      %v9927 = vsel %vm846, %v9922, %v9926
      %v9929 = vshrl.u32 %v9754, 16
      %v9931 = vrot.slane %v9929, 4
      %v9932 = vshll.u32 %v9754, 16
      %v9934 = vrot.slane %v9932, 5
      %v9935 = vor.u32 %v9931, %v9934
      %v9936 = vrot.slane %v9935, 4
      %v9938 = vshll.u32 %v9755, 16
      %v9940 = vrot.slane %v9938, 5
      %v9941 = vsel %vm846, %v9936, %v9940
      %v9942 = vshrl.u32 %v9755, 16
      %v9944 = vrot.slane %v9942, 4
      %v9945 = vor.u32 %v9944, %v9940
      %v9946 = vrot.slane %v9945, 4
      %v9948 = vshll.u32 %v9756, 16
      %v9950 = vrot.slane %v9948, 5
      %v9951 = vsel %vm846, %v9946, %v9950
      %v9953 = vshrl.u32 %v9757, 16
      %v9955 = vrot.slane %v9953, 4
      %v9956 = vshll.u32 %v9757, 16
      %v9958 = vrot.slane %v9956, 5
      %v9959 = vor.u32 %v9955, %v9958
      %v9960 = vrot.slane %v9959, 4
      %v9962 = vshll.u32 %v9758, 16
      %v9964 = vrot.slane %v9962, 5
      %v9965 = vsel %vm846, %v9960, %v9964
      %v9966 = vshrl.u32 %v9758, 16
      %v9968 = vrot.slane %v9966, 4
      %v9969 = vor.u32 %v9968, %v9964
      %v9970 = vrot.slane %v9969, 4
      %v9972 = vshll.u32 %v9759, 16
      %v9974 = vrot.slane %v9972, 5
      %v9975 = vsel %vm846, %v9970, %v9974
      %v9977 = vshrl.u32 %v9760, 16
      %v9979 = vrot.slane %v9977, 4
      %v9980 = vshll.u32 %v9760, 16
      %v9982 = vrot.slane %v9980, 5
      %v9983 = vor.u32 %v9979, %v9982
      %v9984 = vrot.slane %v9983, 4
      %v9986 = vshll.u32 %v9761, 16
      %v9988 = vrot.slane %v9986, 5
      %v9989 = vsel %vm846, %v9984, %v9988
      %v9990 = vshrl.u32 %v9761, 16
      %v9992 = vrot.slane %v9990, 4
      %v9993 = vor.u32 %v9992, %v9988
      %v9994 = vrot.slane %v9993, 4
      %v9996 = vshll.u32 %v9762, 16
      %v9998 = vrot.slane %v9996, 5
      %v9999 = vsel %vm846, %v9994, %v9998
      %v10001 = vshrl.u32 %v9763, 16
      %v10003 = vrot.slane %v10001, 4
      %v10004 = vshll.u32 %v9763, 16
      %v10006 = vrot.slane %v10004, 5
      %v10007 = vor.u32 %v10003, %v10006
      %v10008 = vrot.slane %v10007, 4
      %v10010 = vshll.u32 %v9764, 16
      %v10012 = vrot.slane %v10010, 5
      %v10013 = vsel %vm846, %v10008, %v10012
      %v10014 = vshrl.u32 %v9764, 16
      %v10016 = vrot.slane %v10014, 4
      %v10017 = vor.u32 %v10016, %v10012
      %v10018 = vrot.slane %v10017, 4
      %v10020 = vshll.u32 %v9765, 16
      %v10022 = vrot.slane %v10020, 5
      %v10023 = vsel %vm846, %v10018, %v10022
      %v10025 = vshrl.u32 %v9766, 16
      %v10027 = vrot.slane %v10025, 4
      %v10028 = vshll.u32 %v9766, 16
      %v10030 = vrot.slane %v10028, 5
      %v10031 = vor.u32 %v10027, %v10030
      %v10032 = vrot.slane %v10031, 4
      %v10034 = vshll.u32 %v9767, 16
      %v10036 = vrot.slane %v10034, 5
      %v10037 = vsel %vm846, %v10032, %v10036
      %v10038 = vshrl.u32 %v9767, 16
      %v10040 = vrot.slane %v10038, 4
      %v10041 = vor.u32 %v10040, %v10036
      %v10042 = vrot.slane %v10041, 4
      %v10044 = vshll.u32 %v9768, 16
      %v10046 = vrot.slane %v10044, 5
      %v10047 = vsel %vm846, %v10042, %v10046
      %v10049 = vshrl.u32 %v9769, 16
      %v10051 = vrot.slane %v10049, 4
      %v10052 = vshll.u32 %v9769, 16
      %v10054 = vrot.slane %v10052, 5
      %v10055 = vor.u32 %v10051, %v10054
      %v10056 = vrot.slane %v10055, 4
      %v10058 = vshll.u32 %v9770, 16
      %v10060 = vrot.slane %v10058, 5
      %v10061 = vsel %vm846, %v10056, %v10060
      %v10062 = vshrl.u32 %v9770, 16
      %v10064 = vrot.slane %v10062, 4
      %v10065 = vor.u32 %v10064, %v10060
      %v10066 = vrot.slane %v10065, 4
      %v10068 = vshll.u32 %v9771, 16
      %v10070 = vrot.slane %v10068, 5
      %v10071 = vsel %vm846, %v10066, %v10070
      %v10073 = vshrl.u32 %v9772, 16
      %v10075 = vrot.slane %v10073, 4
      %v10076 = vshll.u32 %v9772, 16
      %v10078 = vrot.slane %v10076, 5
      %v10079 = vor.u32 %v10075, %v10078
      %v10080 = vrot.slane %v10079, 4
      %v10082 = vshll.u32 %v9773, 16
      %v10084 = vrot.slane %v10082, 5
      %v10085 = vsel %vm846, %v10080, %v10084
      %v10086 = vshrl.u32 %v9773, 16
      %v10088 = vrot.slane %v10086, 4
      %v10089 = vor.u32 %v10088, %v10084
      %v10090 = vrot.slane %v10089, 4
      %v10092 = vshll.u32 %v9774, 16
      %v10094 = vrot.slane %v10092, 5
      %v10095 = vsel %vm846, %v10090, %v10094
      %v10097 = vshrl.u32 %v9775, 16
      %v10099 = vrot.slane %v10097, 4
      %v10100 = vshll.u32 %v9775, 16
      %v10102 = vrot.slane %v10100, 5
      %v10103 = vor.u32 %v10099, %v10102
      %v10104 = vrot.slane %v10103, 4
      %v10106 = vshll.u32 %v9776, 16
      %v10108 = vrot.slane %v10106, 5
      %v10109 = vsel %vm846, %v10104, %v10108
      %v10110 = vshrl.u32 %v9776, 16
      %v10112 = vrot.slane %v10110, 4
      %v10113 = vor.u32 %v10112, %v10108
      %v10114 = vrot.slane %v10113, 4
      %v10116 = vshll.u32 %v9777, 16
      %v10118 = vrot.slane %v10116, 5
      %v10119 = vsel %vm846, %v10114, %v10118
      %v10121 = vshrl.u32 %v9778, 16
      %v10123 = vrot.slane %v10121, 4
      %v10124 = vshll.u32 %v9778, 16
      %v10126 = vrot.slane %v10124, 5
      %v10127 = vor.u32 %v10123, %v10126
      %v10128 = vrot.slane %v10127, 4
      %v10130 = vshll.u32 %v9779, 16
      %v10132 = vrot.slane %v10130, 5
      %v10133 = vsel %vm846, %v10128, %v10132
      %v10134 = vshrl.u32 %v9779, 16
      %v10136 = vrot.slane %v10134, 4
      %v10137 = vor.u32 %v10136, %v10132
      %v10138 = vrot.slane %v10137, 4
      %v10140 = vshll.u32 %v9780, 16
      %v10142 = vrot.slane %v10140, 5
      %v10143 = vsel %vm846, %v10138, %v10142
      %v10145 = vshrl.u32 %v9781, 16
      %v10147 = vrot.slane %v10145, 4
      %v10148 = vshll.u32 %v9781, 16
      %v10150 = vrot.slane %v10148, 5
      %v10151 = vor.u32 %v10147, %v10150
      %v10152 = vrot.slane %v10151, 4
      %v10154 = vshll.u32 %v9782, 16
      %v10156 = vrot.slane %v10154, 5
      %v10157 = vsel %vm846, %v10152, %v10156
      %v10158 = vshrl.u32 %v9782, 16
      %v10160 = vrot.slane %v10158, 4
      %v10161 = vor.u32 %v10160, %v10156
      %v10162 = vrot.slane %v10161, 4
      %v10164 = vshll.u32 %v9783, 16
      %v10166 = vrot.slane %v10164, 5
      %v10167 = vsel %vm846, %v10162, %v10166
      %s10168 = scalar_lea.vmem %s2, 448
      %v10169 = vld [vmem:[%s10168] sm:$0xf]
      %v10170 = vld [vmem:[%s10168 + $0x4] sm:$0xf]
      %v10171 = vld [vmem:[%s10168 + $0x8] sm:$0xf]
      %v10172 = vld [vmem:[%s10168 + $0xc] sm:$0xf]
      %v10173 = vld [vmem:[%s10168 + $0x10] sm:$0xf]
      %v10174 = vld [vmem:[%s10168 + $0x14] sm:$0xf]
      %v10175 = vld [vmem:[%s10168 + $0x18] sm:$0xf]
      %v10176 = vld [vmem:[%s10168 + $0x1c] sm:$0xf]
      %v10177 = vld [vmem:[%s10168 + $0x20] sm:$0xf]
      %v10178 = vld [vmem:[%s10168 + $0x24] sm:$0xf]
      %v10179 = vld [vmem:[%s10168 + $0x28] sm:$0xf]
      %v10180 = vld [vmem:[%s10168 + $0x2c] sm:$0xf]
      %v10181 = vld [vmem:[%s10168 + $0x30] sm:$0xf]
      %v10182 = vld [vmem:[%s10168 + $0x34] sm:$0xf]
      %v10183 = vld [vmem:[%s10168 + $0x38] sm:$0xf]
      %v10184 = vld [vmem:[%s10168 + $0x3c] sm:$0xf]
      %v10185 = vunpack.c.l.b16 %v9797
      %v10186 = vunpack.c.l.b16 %v9807
      %v10187 = vunpack.c.l.b16 %v9821
      %v10188 = vunpack.c.l.b16 %v9831
      %v10189 = vunpack.c.l.b16 %v9845
      %v10190 = vunpack.c.l.b16 %v9855
      %v10191 = vunpack.c.l.b16 %v9869
      %v10192 = vunpack.c.l.b16 %v9879
      %v10193 = vunpack.c.l.b16 %v9893
      %v10194 = vunpack.c.l.b16 %v9903
      %v10195 = vunpack.c.l.b16 %v9917
      %v10196 = vunpack.c.l.b16 %v9927
      %v10197 = vunpack.c.l.b16 %v9941
      %v10198 = vunpack.c.l.b16 %v9951
      %v10199 = vunpack.c.l.b16 %v9965
      %v10200 = vunpack.c.l.b16 %v9975
      %v10201 = vunpack.c.l.b16 %v9989
      %v10202 = vunpack.c.l.b16 %v9999
      %v10203 = vunpack.c.l.b16 %v10013
      %v10204 = vunpack.c.l.b16 %v10023
      %v10205 = vunpack.c.l.b16 %v10037
      %v10206 = vunpack.c.l.b16 %v10047
      %v10207 = vunpack.c.l.b16 %v10061
      %v10208 = vunpack.c.l.b16 %v10071
      %v10209 = vunpack.c.l.b16 %v10085
      %v10210 = vunpack.c.l.b16 %v10095
      %v10211 = vunpack.c.l.b16 %v10109
      %v10212 = vunpack.c.l.b16 %v10119
      %v10213 = vunpack.c.l.b16 %v10133
      %v10214 = vunpack.c.l.b16 %v10143
      %v10215 = vunpack.c.l.b16 %v10157
      %v10216 = vunpack.c.l.b16 %v10167
      %v10217 = vpack.c.b16 %v10186, %v10185
      %v10218 = vpack.c.b16 %v10188, %v10187
      %v10219 = vpack.c.b16 %v10190, %v10189
      %v10220 = vpack.c.b16 %v10192, %v10191
      %v10221 = vpack.c.b16 %v10194, %v10193
      %v10222 = vpack.c.b16 %v10196, %v10195
      %v10223 = vpack.c.b16 %v10198, %v10197
      %v10224 = vpack.c.b16 %v10200, %v10199
      %v10225 = vpack.c.b16 %v10202, %v10201
      %v10226 = vpack.c.b16 %v10204, %v10203
      %v10227 = vpack.c.b16 %v10206, %v10205
      %v10228 = vpack.c.b16 %v10208, %v10207
      %v10229 = vpack.c.b16 %v10210, %v10209
      %v10230 = vpack.c.b16 %v10212, %v10211
      %v10231 = vpack.c.b16 %v10214, %v10213
      %v10232 = vpack.c.b16 %v10216, %v10215
      %v10265 = vunpack.c.l.b16 %v10169
      %v10266 = vunpack.c.l.b16 %v10170
      %v10267 = vunpack.c.l.b16 %v10171
      %v10268 = vunpack.c.l.b16 %v10172
      %v10269 = vunpack.c.l.b16 %v10173
      %v10270 = vunpack.c.l.b16 %v10174
      %v10271 = vunpack.c.l.b16 %v10175
      %v10272 = vunpack.c.l.b16 %v10176
      %v10273 = vunpack.c.l.b16 %v10177
      %v10274 = vunpack.c.l.b16 %v10178
      %v10275 = vunpack.c.l.b16 %v10179
      %v10276 = vunpack.c.l.b16 %v10180
      %v10277 = vunpack.c.l.b16 %v10181
      %v10278 = vunpack.c.l.b16 %v10182
      %v10279 = vunpack.c.l.b16 %v10183
      %v10280 = vunpack.c.l.b16 %v10184
      %v10281 = vpack.c.b16 %v10266, %v10265
      %v10282 = vpack.c.b16 %v10268, %v10267
      %v10283 = vpack.c.b16 %v10270, %v10269
      %v10284 = vpack.c.b16 %v10272, %v10271
      %v10285 = vpack.c.b16 %v10274, %v10273
      %v10286 = vpack.c.b16 %v10276, %v10275
      %v10287 = vpack.c.b16 %v10278, %v10277
      %v10288 = vpack.c.b16 %v10280, %v10279
      %10297 = vmatprep.subr.bf16.mxu0 0
      %10298 = vmatpush1.bf16.msra.mxu0 %v10288
      %10299 = vmatprep.subr.bf16.mxu0 0
      %10300 = vmatpush1.bf16.msra.mxu0 %v10287
      %10301 = vmatprep.subr.bf16.mxu0 0
      %10302 = vmatpush1.bf16.msra.mxu0 %v10286
      %10303 = vmatprep.subr.bf16.mxu0 0
      %10304 = vmatpush1.bf16.msra.mxu0 %v10285
      %10305 = vmatprep.subr.bf16.mxu0 0
      %10306 = vmatpush1.bf16.msra.mxu0 %v10284
      %10307 = vmatprep.subr.bf16.mxu0 0
      %10308 = vmatpush1.bf16.msra.mxu0 %v10283
      %10309 = vmatprep.subr.bf16.mxu0 0
      %10310 = vmatpush1.bf16.msra.mxu0 %v10282
      %10311 = vmatprep.subr.bf16.mxu0 0
      %10312 = vmatpush1.bf16.msra.mxu0 %v10281
      %10313 = vmatprep.subr.bf16.mxu0 0
      %10314 = vmatpush2.bf16.msra.mxu0 0
      %10315 = vmatprep.subr.bf16.mxu0 0
      %10316 = vmatpush2.bf16.msra.mxu0 0
      %10317 = vmatprep.subr.bf16.mxu0 0
      %10318 = vmatpush2.bf16.msra.mxu0 0
      %10319 = vmatprep.subr.bf16.mxu0 0
      %10320 = vmatpush2.bf16.msra.mxu0 0
      %10321 = vmatprep.subr.bf16.mxu0 0
      %10322 = vmatpush2.bf16.msra.mxu0 0
      %10323 = vmatprep.subr.bf16.mxu0 0
      %10324 = vmatpush2.bf16.msra.mxu0 0
      %10325 = vmatprep.subr.bf16.mxu0 0
      %10326 = vmatpush2.bf16.msra.mxu0 0
      %10327 = vmatprep.subr.bf16.mxu0 0
      %10328 = vmatpush2.bf16.msra.mxu0 0
      %10329 = vmatprep.mubr.bf16.mxu0 0
      %10330 = vmatmul.mubr.bf16.gmra.mxu0 %v10217
      %v10331 = vpop.f32.mrf.mxu0
      %v10332 = vadd.f32 0.0, %v10331
      %v10333 = vpop.f32.mrf.mxu0
      %v10334 = vpop.f32.mrf.mxu0
      %v10335 = vadd.f32 0.0, %v10334
      %v10336 = vpop.f32.mrf.mxu0
      %10337 = vmatprep.mubr.bf16.mxu0 0
      %10338 = vmatmul.mubr.bf16.gmra.mxu0 %v10218
      %v10339 = vpop.f32.mrf.mxu0
      %v10340 = vadd.f32 0.0, %v10339
      %v10341 = vpop.f32.mrf.mxu0
      %v10342 = vpop.f32.mrf.mxu0
      %v10343 = vadd.f32 0.0, %v10342
      %v10344 = vpop.f32.mrf.mxu0
      %10345 = vmatprep.mubr.bf16.mxu0 0
      %10346 = vmatmul.mubr.bf16.gmra.mxu0 %v10219
      %v10347 = vpop.f32.mrf.mxu0
      %v10348 = vadd.f32 0.0, %v10347
      %v10349 = vpop.f32.mrf.mxu0
      %v10350 = vpop.f32.mrf.mxu0
      %v10351 = vadd.f32 0.0, %v10350
      %v10352 = vpop.f32.mrf.mxu0
      %10353 = vmatprep.mubr.bf16.mxu0 0
      %10354 = vmatmul.mubr.bf16.gmra.mxu0 %v10220
      %v10355 = vpop.f32.mrf.mxu0
      %v10356 = vadd.f32 0.0, %v10355
      %v10357 = vpop.f32.mrf.mxu0
      %v10358 = vpop.f32.mrf.mxu0
      %v10359 = vadd.f32 0.0, %v10358
      %v10360 = vpop.f32.mrf.mxu0
      %10361 = vmatprep.mubr.bf16.mxu0 0
      %10362 = vmatmul.mubr.bf16.gmra.mxu0 %v10221
      %v10363 = vpop.f32.mrf.mxu0
      %v10364 = vadd.f32 0.0, %v10363
      %v10365 = vpop.f32.mrf.mxu0
      %v10366 = vpop.f32.mrf.mxu0
      %v10367 = vadd.f32 0.0, %v10366
      %v10368 = vpop.f32.mrf.mxu0
      %10369 = vmatprep.mubr.bf16.mxu0 0
      %10370 = vmatmul.mubr.bf16.gmra.mxu0 %v10222
      %v10371 = vpop.f32.mrf.mxu0
      %v10372 = vadd.f32 0.0, %v10371
      %v10373 = vpop.f32.mrf.mxu0
      %v10374 = vpop.f32.mrf.mxu0
      %v10375 = vadd.f32 0.0, %v10374
      %v10376 = vpop.f32.mrf.mxu0
      %10377 = vmatprep.mubr.bf16.mxu0 0
      %10378 = vmatmul.mubr.bf16.gmra.mxu0 %v10223
      %v10379 = vpop.f32.mrf.mxu0
      %v10380 = vadd.f32 0.0, %v10379
      %v10381 = vpop.f32.mrf.mxu0
      %v10382 = vpop.f32.mrf.mxu0
      %v10383 = vadd.f32 0.0, %v10382
      %v10384 = vpop.f32.mrf.mxu0
      %10385 = vmatprep.mubr.bf16.mxu0 0
      %10386 = vmatmul.mubr.bf16.gmra.mxu0 %v10224
      %v10387 = vpop.f32.mrf.mxu0
      %v10388 = vadd.f32 0.0, %v10387
      %v10389 = vpop.f32.mrf.mxu0
      %v10390 = vpop.f32.mrf.mxu0
      %v10391 = vadd.f32 0.0, %v10390
      %v10392 = vpop.f32.mrf.mxu0
      %10393 = vmatprep.mubr.bf16.mxu0 0
      %10394 = vmatmul.mubr.bf16.gmra.mxu0 %v10225
      %v10395 = vpop.f32.mrf.mxu0
      %v10396 = vadd.f32 0.0, %v10395
      %v10397 = vpop.f32.mrf.mxu0
      %v10398 = vpop.f32.mrf.mxu0
      %v10399 = vadd.f32 0.0, %v10398
      %v10400 = vpop.f32.mrf.mxu0
      %10401 = vmatprep.mubr.bf16.mxu0 0
      %10402 = vmatmul.mubr.bf16.gmra.mxu0 %v10226
      %v10403 = vpop.f32.mrf.mxu0
      %v10404 = vadd.f32 0.0, %v10403
      %v10405 = vpop.f32.mrf.mxu0
      %v10406 = vpop.f32.mrf.mxu0
      %v10407 = vadd.f32 0.0, %v10406
      %v10408 = vpop.f32.mrf.mxu0
      %10409 = vmatprep.mubr.bf16.mxu0 0
      %10410 = vmatmul.mubr.bf16.gmra.mxu0 %v10227
      %v10411 = vpop.f32.mrf.mxu0
      %v10412 = vadd.f32 0.0, %v10411
      %v10413 = vpop.f32.mrf.mxu0
      %v10414 = vpop.f32.mrf.mxu0
      %v10415 = vadd.f32 0.0, %v10414
      %v10416 = vpop.f32.mrf.mxu0
      %10417 = vmatprep.mubr.bf16.mxu0 0
      %10418 = vmatmul.mubr.bf16.gmra.mxu0 %v10228
      %v10419 = vpop.f32.mrf.mxu0
      %v10420 = vadd.f32 0.0, %v10419
      %v10421 = vpop.f32.mrf.mxu0
      %v10422 = vpop.f32.mrf.mxu0
      %v10423 = vadd.f32 0.0, %v10422
      %v10424 = vpop.f32.mrf.mxu0
      %10425 = vmatprep.mubr.bf16.mxu0 0
      %10426 = vmatmul.mubr.bf16.gmra.mxu0 %v10229
      %v10427 = vpop.f32.mrf.mxu0
      %v10428 = vadd.f32 0.0, %v10427
      %v10429 = vpop.f32.mrf.mxu0
      %v10430 = vpop.f32.mrf.mxu0
      %v10431 = vadd.f32 0.0, %v10430
      %v10432 = vpop.f32.mrf.mxu0
      %10433 = vmatprep.mubr.bf16.mxu0 0
      %10434 = vmatmul.mubr.bf16.gmra.mxu0 %v10230
      %v10435 = vpop.f32.mrf.mxu0
      %v10436 = vadd.f32 0.0, %v10435
      %v10437 = vpop.f32.mrf.mxu0
      %v10438 = vpop.f32.mrf.mxu0
      %v10439 = vadd.f32 0.0, %v10438
      %v10440 = vpop.f32.mrf.mxu0
      %10441 = vmatprep.mubr.bf16.mxu0 0
      %10442 = vmatmul.mubr.bf16.gmra.mxu0 %v10231
      %v10443 = vpop.f32.mrf.mxu0
      %v10444 = vadd.f32 0.0, %v10443
      %v10445 = vpop.f32.mrf.mxu0
      %v10446 = vpop.f32.mrf.mxu0
      %v10447 = vadd.f32 0.0, %v10446
      %v10448 = vpop.f32.mrf.mxu0
      %10449 = vmatprep.mubr.bf16.mxu0 0
      %10450 = vmatmul.mubr.bf16.gmra.mxu0 %v10232
      %v10451 = vpop.f32.mrf.mxu0
      %v10452 = vadd.f32 0.0, %v10451
      %v10453 = vpop.f32.mrf.mxu0
      %v10454 = vpop.f32.mrf.mxu0
      %v10455 = vadd.f32 0.0, %v10454
      %v10456 = vpop.f32.mrf.mxu0
      %10457 = vdwg.mxu0
      %v10458 = vadd.f32 %v9704, %v10332
      %v10459 = vadd.f32 %v9705, %v10335
      %v10460 = vadd.f32 %v9706, %v10340
      %v10461 = vadd.f32 %v9707, %v10343
      %v10462 = vadd.f32 %v9708, %v10348
      %v10463 = vadd.f32 %v9709, %v10351
      %v10464 = vadd.f32 %v9710, %v10356
      %v10465 = vadd.f32 %v9711, %v10359
      %v10466 = vadd.f32 %v9712, %v10364
      %v10467 = vadd.f32 %v9713, %v10367
      %v10468 = vadd.f32 %v9714, %v10372
      %v10469 = vadd.f32 %v9715, %v10375
      %v10470 = vadd.f32 %v9716, %v10380
      %v10471 = vadd.f32 %v9717, %v10383
      %v10472 = vadd.f32 %v9718, %v10388
      %v10473 = vadd.f32 %v9719, %v10391
      %v10474 = vadd.f32 %v9720, %v10396
      %v10475 = vadd.f32 %v9721, %v10399
      %v10476 = vadd.f32 %v9722, %v10404
      %v10477 = vadd.f32 %v9723, %v10407
      %v10478 = vadd.f32 %v9724, %v10412
      %v10479 = vadd.f32 %v9725, %v10415
      %v10480 = vadd.f32 %v9726, %v10420
      %v10481 = vadd.f32 %v9727, %v10423
      %v10482 = vadd.f32 %v9728, %v10428
      %v10483 = vadd.f32 %v9729, %v10431
      %v10484 = vadd.f32 %v9730, %v10436
      %v10485 = vadd.f32 %v9731, %v10439
      %v10486 = vadd.f32 %v9732, %v10444
      %v10487 = vadd.f32 %v9733, %v10447
      %v10488 = vadd.f32 %v9734, %v10452
      %v10489 = vadd.f32 %v9735, %v10455
      %v10490 = vld [vmem:[%s9349] sm:$0xe]
      %v10491 = vld [vmem:[%s9349 + $0xc] sm:$0xe]
      %v10492 = vld [vmem:[%s9349 + $0x18] sm:$0xe]
      %v10493 = vld [vmem:[%s9349 + $0x24] sm:$0xe]
      %v10494 = vld [vmem:[%s9349 + $0x30] sm:$0xe]
      %v10495 = vld [vmem:[%s9349 + $0x3c] sm:$0xe]
      %v10496 = vld [vmem:[%s9349 + $0x48] sm:$0xe]
      %v10497 = vld [vmem:[%s9349 + $0x54] sm:$0xe]
      %v10498 = vld [vmem:[%s9349 + $0x60] sm:$0xe]
      %v10499 = vld [vmem:[%s9349 + $0x6c] sm:$0xe]
      %v10500 = vld [vmem:[%s9349 + $0x78] sm:$0xe]
      %v10501 = vld [vmem:[%s9349 + $0x84] sm:$0xe]
      %v10502 = vld [vmem:[%s9349 + $0x90] sm:$0xe]
      %v10503 = vld [vmem:[%s9349 + $0x9c] sm:$0xe]
      %v10504 = vld [vmem:[%s9349 + $0xa8] sm:$0xe]
      %v10505 = vld [vmem:[%s9349 + $0xb4] sm:$0xe]
      %v10554 = vrot.slane %v10490, 5
      %v10555 = vrot.slane %v10554, 4
      %v10556 = vrot.slane %v9737, 5
      %v10557 = vsel %vm1876, %v10555, %v10556
      %v10558 = vrot.slane %v10556, 4
      %v10559 = vrot.slane %v9738, 5
      %v10560 = vsel %vm1876, %v10558, %v10559
      %v10561 = vrot.slane %v10491, 5
      %v10562 = vrot.slane %v10561, 4
      %v10563 = vrot.slane %v9740, 5
      %v10564 = vsel %vm1876, %v10562, %v10563
      %v10565 = vrot.slane %v10563, 4
      %v10566 = vrot.slane %v9741, 5
      %v10567 = vsel %vm1876, %v10565, %v10566
      %v10568 = vrot.slane %v10492, 5
      %v10569 = vrot.slane %v10568, 4
      %v10570 = vrot.slane %v9743, 5
      %v10571 = vsel %vm1876, %v10569, %v10570
      %v10572 = vrot.slane %v10570, 4
      %v10573 = vrot.slane %v9744, 5
      %v10574 = vsel %vm1876, %v10572, %v10573
      %v10575 = vrot.slane %v10493, 5
      %v10576 = vrot.slane %v10575, 4
      %v10577 = vrot.slane %v9746, 5
      %v10578 = vsel %vm1876, %v10576, %v10577
      %v10579 = vrot.slane %v10577, 4
      %v10580 = vrot.slane %v9747, 5
      %v10581 = vsel %vm1876, %v10579, %v10580
      %v10582 = vrot.slane %v10494, 5
      %v10583 = vrot.slane %v10582, 4
      %v10584 = vrot.slane %v9749, 5
      %v10585 = vsel %vm1876, %v10583, %v10584
      %v10586 = vrot.slane %v10584, 4
      %v10587 = vrot.slane %v9750, 5
      %v10588 = vsel %vm1876, %v10586, %v10587
      %v10589 = vrot.slane %v10495, 5
      %v10590 = vrot.slane %v10589, 4
      %v10591 = vrot.slane %v9752, 5
      %v10592 = vsel %vm1876, %v10590, %v10591
      %v10593 = vrot.slane %v10591, 4
      %v10594 = vrot.slane %v9753, 5
      %v10595 = vsel %vm1876, %v10593, %v10594
      %v10596 = vrot.slane %v10496, 5
      %v10597 = vrot.slane %v10596, 4
      %v10598 = vrot.slane %v9755, 5
      %v10599 = vsel %vm1876, %v10597, %v10598
      %v10600 = vrot.slane %v10598, 4
      %v10601 = vrot.slane %v9756, 5
      %v10602 = vsel %vm1876, %v10600, %v10601
      %v10603 = vrot.slane %v10497, 5
      %v10604 = vrot.slane %v10603, 4
      %v10605 = vrot.slane %v9758, 5
      %v10606 = vsel %vm1876, %v10604, %v10605
      %v10607 = vrot.slane %v10605, 4
      %v10608 = vrot.slane %v9759, 5
      %v10609 = vsel %vm1876, %v10607, %v10608
      %v10610 = vrot.slane %v10498, 5
      %v10611 = vrot.slane %v10610, 4
      %v10612 = vrot.slane %v9761, 5
      %v10613 = vsel %vm1876, %v10611, %v10612
      %v10614 = vrot.slane %v10612, 4
      %v10615 = vrot.slane %v9762, 5
      %v10616 = vsel %vm1876, %v10614, %v10615
      %v10617 = vrot.slane %v10499, 5
      %v10618 = vrot.slane %v10617, 4
      %v10619 = vrot.slane %v9764, 5
      %v10620 = vsel %vm1876, %v10618, %v10619
      %v10621 = vrot.slane %v10619, 4
      %v10622 = vrot.slane %v9765, 5
      %v10623 = vsel %vm1876, %v10621, %v10622
      %v10624 = vrot.slane %v10500, 5
      %v10625 = vrot.slane %v10624, 4
      %v10626 = vrot.slane %v9767, 5
      %v10627 = vsel %vm1876, %v10625, %v10626
      %v10628 = vrot.slane %v10626, 4
      %v10629 = vrot.slane %v9768, 5
      %v10630 = vsel %vm1876, %v10628, %v10629
      %v10631 = vrot.slane %v10501, 5
      %v10632 = vrot.slane %v10631, 4
      %v10633 = vrot.slane %v9770, 5
      %v10634 = vsel %vm1876, %v10632, %v10633
      %v10635 = vrot.slane %v10633, 4
      %v10636 = vrot.slane %v9771, 5
      %v10637 = vsel %vm1876, %v10635, %v10636
      %v10638 = vrot.slane %v10502, 5
      %v10639 = vrot.slane %v10638, 4
      %v10640 = vrot.slane %v9773, 5
      %v10641 = vsel %vm1876, %v10639, %v10640
      %v10642 = vrot.slane %v10640, 4
      %v10643 = vrot.slane %v9774, 5
      %v10644 = vsel %vm1876, %v10642, %v10643
      %v10645 = vrot.slane %v10503, 5
      %v10646 = vrot.slane %v10645, 4
      %v10647 = vrot.slane %v9776, 5
      %v10648 = vsel %vm1876, %v10646, %v10647
      %v10649 = vrot.slane %v10647, 4
      %v10650 = vrot.slane %v9777, 5
      %v10651 = vsel %vm1876, %v10649, %v10650
      %v10652 = vrot.slane %v10504, 5
      %v10653 = vrot.slane %v10652, 4
      %v10654 = vrot.slane %v9779, 5
      %v10655 = vsel %vm1876, %v10653, %v10654
      %v10656 = vrot.slane %v10654, 4
      %v10657 = vrot.slane %v9780, 5
      %v10658 = vsel %vm1876, %v10656, %v10657
      %v10659 = vrot.slane %v10505, 5
      %v10660 = vrot.slane %v10659, 4
      %v10661 = vrot.slane %v9782, 5
      %v10662 = vsel %vm1876, %v10660, %v10661
      %v10663 = vrot.slane %v10661, 4
      %v10664 = vrot.slane %v9783, 5
      %v10665 = vsel %vm1876, %v10663, %v10664
      %s10666 = scalar_lea.vmem %s2, 512
      %v10667 = vld [vmem:[%s10666] sm:$0xf]
      %v10668 = vld [vmem:[%s10666 + $0x4] sm:$0xf]
      %v10669 = vld [vmem:[%s10666 + $0x8] sm:$0xf]
      %v10670 = vld [vmem:[%s10666 + $0xc] sm:$0xf]
      %v10671 = vld [vmem:[%s10666 + $0x10] sm:$0xf]
      %v10672 = vld [vmem:[%s10666 + $0x14] sm:$0xf]
      %v10673 = vld [vmem:[%s10666 + $0x18] sm:$0xf]
      %v10674 = vld [vmem:[%s10666 + $0x1c] sm:$0xf]
      %v10675 = vld [vmem:[%s10666 + $0x20] sm:$0xf]
      %v10676 = vld [vmem:[%s10666 + $0x24] sm:$0xf]
      %v10677 = vld [vmem:[%s10666 + $0x28] sm:$0xf]
      %v10678 = vld [vmem:[%s10666 + $0x2c] sm:$0xf]
      %v10679 = vld [vmem:[%s10666 + $0x30] sm:$0xf]
      %v10680 = vld [vmem:[%s10666 + $0x34] sm:$0xf]
      %v10681 = vld [vmem:[%s10666 + $0x38] sm:$0xf]
      %v10682 = vld [vmem:[%s10666 + $0x3c] sm:$0xf]
      %v10683 = vunpack.c.l.b16 %v10557
      %v10684 = vunpack.c.l.b16 %v10560
      %v10685 = vunpack.c.l.b16 %v10564
      %v10686 = vunpack.c.l.b16 %v10567
      %v10687 = vunpack.c.l.b16 %v10571
      %v10688 = vunpack.c.l.b16 %v10574
      %v10689 = vunpack.c.l.b16 %v10578
      %v10690 = vunpack.c.l.b16 %v10581
      %v10691 = vunpack.c.l.b16 %v10585
      %v10692 = vunpack.c.l.b16 %v10588
      %v10693 = vunpack.c.l.b16 %v10592
      %v10694 = vunpack.c.l.b16 %v10595
      %v10695 = vunpack.c.l.b16 %v10599
      %v10696 = vunpack.c.l.b16 %v10602
      %v10697 = vunpack.c.l.b16 %v10606
      %v10698 = vunpack.c.l.b16 %v10609
      %v10699 = vunpack.c.l.b16 %v10613
      %v10700 = vunpack.c.l.b16 %v10616
      %v10701 = vunpack.c.l.b16 %v10620
      %v10702 = vunpack.c.l.b16 %v10623
      %v10703 = vunpack.c.l.b16 %v10627
      %v10704 = vunpack.c.l.b16 %v10630
      %v10705 = vunpack.c.l.b16 %v10634
      %v10706 = vunpack.c.l.b16 %v10637
      %v10707 = vunpack.c.l.b16 %v10641
      %v10708 = vunpack.c.l.b16 %v10644
      %v10709 = vunpack.c.l.b16 %v10648
      %v10710 = vunpack.c.l.b16 %v10651
      %v10711 = vunpack.c.l.b16 %v10655
      %v10712 = vunpack.c.l.b16 %v10658
      %v10713 = vunpack.c.l.b16 %v10662
      %v10714 = vunpack.c.l.b16 %v10665
      %v10715 = vpack.c.b16 %v10684, %v10683
      %v10716 = vpack.c.b16 %v10686, %v10685
      %v10717 = vpack.c.b16 %v10688, %v10687
      %v10718 = vpack.c.b16 %v10690, %v10689
      %v10719 = vpack.c.b16 %v10692, %v10691
      %v10720 = vpack.c.b16 %v10694, %v10693
      %v10721 = vpack.c.b16 %v10696, %v10695
      %v10722 = vpack.c.b16 %v10698, %v10697
      %v10723 = vpack.c.b16 %v10700, %v10699
      %v10724 = vpack.c.b16 %v10702, %v10701
      %v10725 = vpack.c.b16 %v10704, %v10703
      %v10726 = vpack.c.b16 %v10706, %v10705
      %v10727 = vpack.c.b16 %v10708, %v10707
      %v10728 = vpack.c.b16 %v10710, %v10709
      %v10729 = vpack.c.b16 %v10712, %v10711
      %v10730 = vpack.c.b16 %v10714, %v10713
      %v10763 = vunpack.c.l.b16 %v10667
      %v10764 = vunpack.c.l.b16 %v10668
      %v10765 = vunpack.c.l.b16 %v10669
      %v10766 = vunpack.c.l.b16 %v10670
      %v10767 = vunpack.c.l.b16 %v10671
      %v10768 = vunpack.c.l.b16 %v10672
      %v10769 = vunpack.c.l.b16 %v10673
      %v10770 = vunpack.c.l.b16 %v10674
      %v10771 = vunpack.c.l.b16 %v10675
      %v10772 = vunpack.c.l.b16 %v10676
      %v10773 = vunpack.c.l.b16 %v10677
      %v10774 = vunpack.c.l.b16 %v10678
      %v10775 = vunpack.c.l.b16 %v10679
      %v10776 = vunpack.c.l.b16 %v10680
      %v10777 = vunpack.c.l.b16 %v10681
      %v10778 = vunpack.c.l.b16 %v10682
      %v10779 = vpack.c.b16 %v10764, %v10763
      %v10780 = vpack.c.b16 %v10766, %v10765
      %v10781 = vpack.c.b16 %v10768, %v10767
      %v10782 = vpack.c.b16 %v10770, %v10769
      %v10783 = vpack.c.b16 %v10772, %v10771
      %v10784 = vpack.c.b16 %v10774, %v10773
      %v10785 = vpack.c.b16 %v10776, %v10775
      %v10786 = vpack.c.b16 %v10778, %v10777
      %10795 = vmatprep.subr.bf16.mxu0 0
      %10796 = vmatpush1.bf16.msra.mxu0 %v10786
      %10797 = vmatprep.subr.bf16.mxu0 0
      %10798 = vmatpush1.bf16.msra.mxu0 %v10785
      %10799 = vmatprep.subr.bf16.mxu0 0
      %10800 = vmatpush1.bf16.msra.mxu0 %v10784
      %10801 = vmatprep.subr.bf16.mxu0 0
      %10802 = vmatpush1.bf16.msra.mxu0 %v10783
      %10803 = vmatprep.subr.bf16.mxu0 0
      %10804 = vmatpush1.bf16.msra.mxu0 %v10782
      %10805 = vmatprep.subr.bf16.mxu0 0
      %10806 = vmatpush1.bf16.msra.mxu0 %v10781
      %10807 = vmatprep.subr.bf16.mxu0 0
      %10808 = vmatpush1.bf16.msra.mxu0 %v10780
      %10809 = vmatprep.subr.bf16.mxu0 0
      %10810 = vmatpush1.bf16.msra.mxu0 %v10779
      %10811 = vmatprep.subr.bf16.mxu0 0
      %10812 = vmatpush2.bf16.msra.mxu0 0
      %10813 = vmatprep.subr.bf16.mxu0 0
      %10814 = vmatpush2.bf16.msra.mxu0 0
      %10815 = vmatprep.subr.bf16.mxu0 0
      %10816 = vmatpush2.bf16.msra.mxu0 0
      %10817 = vmatprep.subr.bf16.mxu0 0
      %10818 = vmatpush2.bf16.msra.mxu0 0
      %10819 = vmatprep.subr.bf16.mxu0 0
      %10820 = vmatpush2.bf16.msra.mxu0 0
      %10821 = vmatprep.subr.bf16.mxu0 0
      %10822 = vmatpush2.bf16.msra.mxu0 0
      %10823 = vmatprep.subr.bf16.mxu0 0
      %10824 = vmatpush2.bf16.msra.mxu0 0
      %10825 = vmatprep.subr.bf16.mxu0 0
      %10826 = vmatpush2.bf16.msra.mxu0 0
      %10827 = vmatprep.mubr.bf16.mxu0 0
      %10828 = vmatmul.mubr.bf16.gmra.mxu0 %v10715
      %v10829 = vpop.f32.mrf.mxu0
      %v10830 = vadd.f32 0.0, %v10829
      %v10831 = vpop.f32.mrf.mxu0
      %v10832 = vpop.f32.mrf.mxu0
      %v10833 = vadd.f32 0.0, %v10832
      %v10834 = vpop.f32.mrf.mxu0
      %10835 = vmatprep.mubr.bf16.mxu0 0
      %10836 = vmatmul.mubr.bf16.gmra.mxu0 %v10716
      %v10837 = vpop.f32.mrf.mxu0
      %v10838 = vadd.f32 0.0, %v10837
      %v10839 = vpop.f32.mrf.mxu0
      %v10840 = vpop.f32.mrf.mxu0
      %v10841 = vadd.f32 0.0, %v10840
      %v10842 = vpop.f32.mrf.mxu0
      %10843 = vmatprep.mubr.bf16.mxu0 0
      %10844 = vmatmul.mubr.bf16.gmra.mxu0 %v10717
      %v10845 = vpop.f32.mrf.mxu0
      %v10846 = vadd.f32 0.0, %v10845
      %v10847 = vpop.f32.mrf.mxu0
      %v10848 = vpop.f32.mrf.mxu0
      %v10849 = vadd.f32 0.0, %v10848
      %v10850 = vpop.f32.mrf.mxu0
      %10851 = vmatprep.mubr.bf16.mxu0 0
      %10852 = vmatmul.mubr.bf16.gmra.mxu0 %v10718
      %v10853 = vpop.f32.mrf.mxu0
      %v10854 = vadd.f32 0.0, %v10853
      %v10855 = vpop.f32.mrf.mxu0
      %v10856 = vpop.f32.mrf.mxu0
      %v10857 = vadd.f32 0.0, %v10856
      %v10858 = vpop.f32.mrf.mxu0
      %10859 = vmatprep.mubr.bf16.mxu0 0
      %10860 = vmatmul.mubr.bf16.gmra.mxu0 %v10719
      %v10861 = vpop.f32.mrf.mxu0
      %v10862 = vadd.f32 0.0, %v10861
      %v10863 = vpop.f32.mrf.mxu0
      %v10864 = vpop.f32.mrf.mxu0
      %v10865 = vadd.f32 0.0, %v10864
      %v10866 = vpop.f32.mrf.mxu0
      %10867 = vmatprep.mubr.bf16.mxu0 0
      %10868 = vmatmul.mubr.bf16.gmra.mxu0 %v10720
      %v10869 = vpop.f32.mrf.mxu0
      %v10870 = vadd.f32 0.0, %v10869
      %v10871 = vpop.f32.mrf.mxu0
      %v10872 = vpop.f32.mrf.mxu0
      %v10873 = vadd.f32 0.0, %v10872
      %v10874 = vpop.f32.mrf.mxu0
      %10875 = vmatprep.mubr.bf16.mxu0 0
      %10876 = vmatmul.mubr.bf16.gmra.mxu0 %v10721
      %v10877 = vpop.f32.mrf.mxu0
      %v10878 = vadd.f32 0.0, %v10877
      %v10879 = vpop.f32.mrf.mxu0
      %v10880 = vpop.f32.mrf.mxu0
      %v10881 = vadd.f32 0.0, %v10880
      %v10882 = vpop.f32.mrf.mxu0
      %10883 = vmatprep.mubr.bf16.mxu0 0
      %10884 = vmatmul.mubr.bf16.gmra.mxu0 %v10722
      %v10885 = vpop.f32.mrf.mxu0
      %v10886 = vadd.f32 0.0, %v10885
      %v10887 = vpop.f32.mrf.mxu0
      %v10888 = vpop.f32.mrf.mxu0
      %v10889 = vadd.f32 0.0, %v10888
      %v10890 = vpop.f32.mrf.mxu0
      %10891 = vmatprep.mubr.bf16.mxu0 0
      %10892 = vmatmul.mubr.bf16.gmra.mxu0 %v10723
      %v10893 = vpop.f32.mrf.mxu0
      %v10894 = vadd.f32 0.0, %v10893
      %v10895 = vpop.f32.mrf.mxu0
      %v10896 = vpop.f32.mrf.mxu0
      %v10897 = vadd.f32 0.0, %v10896
      %v10898 = vpop.f32.mrf.mxu0
      %10899 = vmatprep.mubr.bf16.mxu0 0
      %10900 = vmatmul.mubr.bf16.gmra.mxu0 %v10724
      %v10901 = vpop.f32.mrf.mxu0
      %v10902 = vadd.f32 0.0, %v10901
      %v10903 = vpop.f32.mrf.mxu0
      %v10904 = vpop.f32.mrf.mxu0
      %v10905 = vadd.f32 0.0, %v10904
      %v10906 = vpop.f32.mrf.mxu0
      %10907 = vmatprep.mubr.bf16.mxu0 0
      %10908 = vmatmul.mubr.bf16.gmra.mxu0 %v10725
      %v10909 = vpop.f32.mrf.mxu0
      %v10910 = vadd.f32 0.0, %v10909
      %v10911 = vpop.f32.mrf.mxu0
      %v10912 = vpop.f32.mrf.mxu0
      %v10913 = vadd.f32 0.0, %v10912
      %v10914 = vpop.f32.mrf.mxu0
      %10915 = vmatprep.mubr.bf16.mxu0 0
      %10916 = vmatmul.mubr.bf16.gmra.mxu0 %v10726
      %v10917 = vpop.f32.mrf.mxu0
      %v10918 = vadd.f32 0.0, %v10917
      %v10919 = vpop.f32.mrf.mxu0
      %v10920 = vpop.f32.mrf.mxu0
      %v10921 = vadd.f32 0.0, %v10920
      %v10922 = vpop.f32.mrf.mxu0
      %10923 = vmatprep.mubr.bf16.mxu0 0
      %10924 = vmatmul.mubr.bf16.gmra.mxu0 %v10727
      %v10925 = vpop.f32.mrf.mxu0
      %v10926 = vadd.f32 0.0, %v10925
      %v10927 = vpop.f32.mrf.mxu0
      %v10928 = vpop.f32.mrf.mxu0
      %v10929 = vadd.f32 0.0, %v10928
      %v10930 = vpop.f32.mrf.mxu0
      %10931 = vmatprep.mubr.bf16.mxu0 0
      %10932 = vmatmul.mubr.bf16.gmra.mxu0 %v10728
      %v10933 = vpop.f32.mrf.mxu0
      %v10934 = vadd.f32 0.0, %v10933
      %v10935 = vpop.f32.mrf.mxu0
      %v10936 = vpop.f32.mrf.mxu0
      %v10937 = vadd.f32 0.0, %v10936
      %v10938 = vpop.f32.mrf.mxu0
      %10939 = vmatprep.mubr.bf16.mxu0 0
      %10940 = vmatmul.mubr.bf16.gmra.mxu0 %v10729
      %v10941 = vpop.f32.mrf.mxu0
      %v10942 = vadd.f32 0.0, %v10941
      %v10943 = vpop.f32.mrf.mxu0
      %v10944 = vpop.f32.mrf.mxu0
      %v10945 = vadd.f32 0.0, %v10944
      %v10946 = vpop.f32.mrf.mxu0
      %10947 = vmatprep.mubr.bf16.mxu0 0
      %10948 = vmatmul.mubr.bf16.gmra.mxu0 %v10730
      %v10949 = vpop.f32.mrf.mxu0
      %v10950 = vadd.f32 0.0, %v10949
      %v10951 = vpop.f32.mrf.mxu0
      %v10952 = vpop.f32.mrf.mxu0
      %v10953 = vadd.f32 0.0, %v10952
      %v10954 = vpop.f32.mrf.mxu0
      %10955 = vdwg.mxu0
      %v10956 = vadd.f32 %v10458, %v10830
      %v10957 = vadd.f32 %v10459, %v10833
      %v10958 = vadd.f32 %v10460, %v10838
      %v10959 = vadd.f32 %v10461, %v10841
      %v10960 = vadd.f32 %v10462, %v10846
      %v10961 = vadd.f32 %v10463, %v10849
      %v10962 = vadd.f32 %v10464, %v10854
      %v10963 = vadd.f32 %v10465, %v10857
      %v10964 = vadd.f32 %v10466, %v10862
      %v10965 = vadd.f32 %v10467, %v10865
      %v10966 = vadd.f32 %v10468, %v10870
      %v10967 = vadd.f32 %v10469, %v10873
      %v10968 = vadd.f32 %v10470, %v10878
      %v10969 = vadd.f32 %v10471, %v10881
      %v10970 = vadd.f32 %v10472, %v10886
      %v10971 = vadd.f32 %v10473, %v10889
      %v10972 = vadd.f32 %v10474, %v10894
      %v10973 = vadd.f32 %v10475, %v10897
      %v10974 = vadd.f32 %v10476, %v10902
      %v10975 = vadd.f32 %v10477, %v10905
      %v10976 = vadd.f32 %v10478, %v10910
      %v10977 = vadd.f32 %v10479, %v10913
      %v10978 = vadd.f32 %v10480, %v10918
      %v10979 = vadd.f32 %v10481, %v10921
      %v10980 = vadd.f32 %v10482, %v10926
      %v10981 = vadd.f32 %v10483, %v10929
      %v10982 = vadd.f32 %v10484, %v10934
      %v10983 = vadd.f32 %v10485, %v10937
      %v10984 = vadd.f32 %v10486, %v10942
      %v10985 = vadd.f32 %v10487, %v10945
      %v10986 = vadd.f32 %v10488, %v10950
      %v10987 = vadd.f32 %v10489, %v10953
      %v10988 = vld [vmem:[%s192] sm:$0xf]
      %v10989 = vld [vmem:[%s192 + $0x4] sm:$0xf]
      %v10990 = vld [vmem:[%s192 + $0x8] sm:$0xf]
      %v10991 = vld [vmem:[%s192 + $0xc] sm:$0xf]
      %v10992 = vld [vmem:[%s192 + $0x10] sm:$0xf]
      %v10993 = vld [vmem:[%s192 + $0x14] sm:$0xf]
      %v10994 = vld [vmem:[%s192 + $0x18] sm:$0xf]
      %v10995 = vld [vmem:[%s192 + $0x1c] sm:$0xf]
      %v10996 = vld [vmem:[%s192 + $0x20] sm:$0xf]
      %v10997 = vld [vmem:[%s192 + $0x24] sm:$0xf]
      %v10998 = vld [vmem:[%s192 + $0x28] sm:$0xf]
      %v10999 = vld [vmem:[%s192 + $0x2c] sm:$0xf]
      %v11000 = vld [vmem:[%s192 + $0x30] sm:$0xf]
      %v11001 = vld [vmem:[%s192 + $0x34] sm:$0xf]
      %v11002 = vld [vmem:[%s192 + $0x38] sm:$0xf]
      %v11003 = vld [vmem:[%s192 + $0x3c] sm:$0xf]
      %v11004 = vld [vmem:[%s192 + $0x40] sm:$0xf]
      %v11005 = vld [vmem:[%s192 + $0x44] sm:$0xf]
      %v11006 = vld [vmem:[%s192 + $0x48] sm:$0xf]
      %v11007 = vld [vmem:[%s192 + $0x4c] sm:$0xf]
      %v11008 = vld [vmem:[%s192 + $0x50] sm:$0xf]
      %v11009 = vld [vmem:[%s192 + $0x54] sm:$0xf]
      %v11010 = vld [vmem:[%s192 + $0x58] sm:$0xf]
      %v11011 = vld [vmem:[%s192 + $0x5c] sm:$0xf]
      %v11012 = vld [vmem:[%s192 + $0x60] sm:$0xf]
      %v11013 = vld [vmem:[%s192 + $0x64] sm:$0xf]
      %v11014 = vld [vmem:[%s192 + $0x68] sm:$0xf]
      %v11015 = vld [vmem:[%s192 + $0x6c] sm:$0xf]
      %v11016 = vld [vmem:[%s192 + $0x70] sm:$0xf]
      %v11017 = vld [vmem:[%s192 + $0x74] sm:$0xf]
      %v11018 = vld [vmem:[%s192 + $0x78] sm:$0xf]
      %v11019 = vld [vmem:[%s192 + $0x7c] sm:$0xf]
      %v11020 = vld [vmem:[%s3 + $0x1] sm:$0x1]
      %v11021 = vlaneseq
      %v11022 = vshrl.u32 %v11021, 7
      %v11023 = vsub.s32 0, %v11022
      %v11024 = vrot.slane %v11020, %v11023
      %v11025 = vadd.f32 %v10956, %v11024
      %v11026 = vadd.f32 %v10957, %v11024
      %v11027 = vadd.f32 %v10958, %v11024
      %v11028 = vadd.f32 %v10959, %v11024
      %v11029 = vadd.f32 %v10960, %v11024
      %v11030 = vadd.f32 %v10961, %v11024
      %v11031 = vadd.f32 %v10962, %v11024
      %v11032 = vadd.f32 %v10963, %v11024
      %v11033 = vadd.f32 %v10964, %v11024
      %v11034 = vadd.f32 %v10965, %v11024
      %v11035 = vadd.f32 %v10966, %v11024
      %v11036 = vadd.f32 %v10967, %v11024
      %v11037 = vadd.f32 %v10968, %v11024
      %v11038 = vadd.f32 %v10969, %v11024
      %v11039 = vadd.f32 %v10970, %v11024
      %v11040 = vadd.f32 %v10971, %v11024
      %v11041 = vadd.f32 %v10972, %v11024
      %v11042 = vadd.f32 %v10973, %v11024
      %v11043 = vadd.f32 %v10974, %v11024
      %v11044 = vadd.f32 %v10975, %v11024
      %v11045 = vadd.f32 %v10976, %v11024
      %v11046 = vadd.f32 %v10977, %v11024
      %v11047 = vadd.f32 %v10978, %v11024
      %v11048 = vadd.f32 %v10979, %v11024
      %v11049 = vadd.f32 %v10980, %v11024
      %v11050 = vadd.f32 %v10981, %v11024
      %v11051 = vadd.f32 %v10982, %v11024
      %v11052 = vadd.f32 %v10983, %v11024
      %v11053 = vadd.f32 %v10984, %v11024
      %v11054 = vadd.f32 %v10985, %v11024
      %v11055 = vadd.f32 %v10986, %v11024
      %v11056 = vadd.f32 %v10987, %v11024
      %v11057 = vunpack.c.l.bf16 %v10988
      %v11058 = vunpack.c.l.bf16 %v10989
      %v11059 = vunpack.c.l.bf16 %v10990
      %v11060 = vunpack.c.l.bf16 %v10991
      %v11061 = vunpack.c.l.bf16 %v10992
      %v11062 = vunpack.c.l.bf16 %v10993
      %v11063 = vunpack.c.l.bf16 %v10994
      %v11064 = vunpack.c.l.bf16 %v10995
      %v11065 = vunpack.c.l.bf16 %v10996
      %v11066 = vunpack.c.l.bf16 %v10997
      %v11067 = vunpack.c.l.bf16 %v10998
      %v11068 = vunpack.c.l.bf16 %v10999
      %v11069 = vunpack.c.l.bf16 %v11000
      %v11070 = vunpack.c.l.bf16 %v11001
      %v11071 = vunpack.c.l.bf16 %v11002
      %v11072 = vunpack.c.l.bf16 %v11003
      %v11073 = vunpack.c.l.bf16 %v11004
      %v11074 = vunpack.c.l.bf16 %v11005
      %v11075 = vunpack.c.l.bf16 %v11006
      %v11076 = vunpack.c.l.bf16 %v11007
      %v11077 = vunpack.c.l.bf16 %v11008
      %v11078 = vunpack.c.l.bf16 %v11009
      %v11079 = vunpack.c.l.bf16 %v11010
      %v11080 = vunpack.c.l.bf16 %v11011
      %v11081 = vunpack.c.l.bf16 %v11012
      %v11082 = vunpack.c.l.bf16 %v11013
      %v11083 = vunpack.c.l.bf16 %v11014
      %v11084 = vunpack.c.l.bf16 %v11015
      %v11085 = vunpack.c.l.bf16 %v11016
      %v11086 = vunpack.c.l.bf16 %v11017
      %v11087 = vunpack.c.l.bf16 %v11018
      %v11088 = vunpack.c.l.bf16 %v11019
      %v11089 = vadd.f32 %v11025, %v11057
      %v11090 = vadd.f32 %v11026, %v11058
      %v11091 = vadd.f32 %v11027, %v11059
      %v11092 = vadd.f32 %v11028, %v11060
      %v11093 = vadd.f32 %v11029, %v11061
      %v11094 = vadd.f32 %v11030, %v11062
      %v11095 = vadd.f32 %v11031, %v11063
      %v11096 = vadd.f32 %v11032, %v11064
      %v11097 = vadd.f32 %v11033, %v11065
      %v11098 = vadd.f32 %v11034, %v11066
      %v11099 = vadd.f32 %v11035, %v11067
      %v11100 = vadd.f32 %v11036, %v11068
      %v11101 = vadd.f32 %v11037, %v11069
      %v11102 = vadd.f32 %v11038, %v11070
      %v11103 = vadd.f32 %v11039, %v11071
      %v11104 = vadd.f32 %v11040, %v11072
      %v11105 = vadd.f32 %v11041, %v11073
      %v11106 = vadd.f32 %v11042, %v11074
      %v11107 = vadd.f32 %v11043, %v11075
      %v11108 = vadd.f32 %v11044, %v11076
      %v11109 = vadd.f32 %v11045, %v11077
      %v11110 = vadd.f32 %v11046, %v11078
      %v11111 = vadd.f32 %v11047, %v11079
      %v11112 = vadd.f32 %v11048, %v11080
      %v11113 = vadd.f32 %v11049, %v11081
      %v11114 = vadd.f32 %v11050, %v11082
      %v11115 = vadd.f32 %v11051, %v11083
      %v11116 = vadd.f32 %v11052, %v11084
      %v11117 = vadd.f32 %v11053, %v11085
      %v11118 = vadd.f32 %v11054, %v11086
      %v11119 = vadd.f32 %v11055, %v11087
      %v11120 = vadd.f32 %v11056, %v11088
      %v11121 = vmax.f32 %v11089, 0.0
      %v11122 = vmax.f32 %v11090, 0.0
      %v11123 = vmax.f32 %v11091, 0.0
      %v11124 = vmax.f32 %v11092, 0.0
      %v11125 = vmax.f32 %v11093, 0.0
      %v11126 = vmax.f32 %v11094, 0.0
      %v11127 = vmax.f32 %v11095, 0.0
      %v11128 = vmax.f32 %v11096, 0.0
      %v11129 = vmax.f32 %v11097, 0.0
      %v11130 = vmax.f32 %v11098, 0.0
      %v11131 = vmax.f32 %v11099, 0.0
      %v11132 = vmax.f32 %v11100, 0.0
      %v11133 = vmax.f32 %v11101, 0.0
      %v11134 = vmax.f32 %v11102, 0.0
      %v11135 = vmax.f32 %v11103, 0.0
      %v11136 = vmax.f32 %v11104, 0.0
      %v11137 = vmax.f32 %v11105, 0.0
      %v11138 = vmax.f32 %v11106, 0.0
      %v11139 = vmax.f32 %v11107, 0.0
      %v11140 = vmax.f32 %v11108, 0.0
      %v11141 = vmax.f32 %v11109, 0.0
      %v11142 = vmax.f32 %v11110, 0.0
      %v11143 = vmax.f32 %v11111, 0.0
      %v11144 = vmax.f32 %v11112, 0.0
      %v11145 = vmax.f32 %v11113, 0.0
      %v11146 = vmax.f32 %v11114, 0.0
      %v11147 = vmax.f32 %v11115, 0.0
      %v11148 = vmax.f32 %v11116, 0.0
      %v11149 = vmax.f32 %v11117, 0.0
      %v11150 = vmax.f32 %v11118, 0.0
      %v11151 = vmax.f32 %v11119, 0.0
      %v11152 = vmax.f32 %v11120, 0.0
      %v11153 = vpack.c.bf16 %v11122, %v11121
      %v11154 = vpack.c.bf16 %v11124, %v11123
      %v11155 = vpack.c.bf16 %v11126, %v11125
      %v11156 = vpack.c.bf16 %v11128, %v11127
      %v11157 = vpack.c.bf16 %v11130, %v11129
      %v11158 = vpack.c.bf16 %v11132, %v11131
      %v11159 = vpack.c.bf16 %v11134, %v11133
      %v11160 = vpack.c.bf16 %v11136, %v11135
      %v11161 = vpack.c.bf16 %v11138, %v11137
      %v11162 = vpack.c.bf16 %v11140, %v11139
      %v11163 = vpack.c.bf16 %v11142, %v11141
      %v11164 = vpack.c.bf16 %v11144, %v11143
      %v11165 = vpack.c.bf16 %v11146, %v11145
      %v11166 = vpack.c.bf16 %v11148, %v11147
      %v11167 = vpack.c.bf16 %v11150, %v11149
      %v11168 = vpack.c.bf16 %v11152, %v11151
      %v11185 = vunpack.c.l.b16 %v11153
      %v11186 = vunpack.c.h.b16 %v11153
      %v11187 = vunpack.c.l.b16 %v11154
      %v11188 = vunpack.c.h.b16 %v11154
      %v11189 = vunpack.c.l.b16 %v11155
      %v11190 = vunpack.c.h.b16 %v11155
      %v11191 = vunpack.c.l.b16 %v11156
      %v11192 = vunpack.c.h.b16 %v11156
      %v11193 = vunpack.c.l.b16 %v11157
      %v11194 = vunpack.c.h.b16 %v11157
      %v11195 = vunpack.c.l.b16 %v11158
      %v11196 = vunpack.c.h.b16 %v11158
      %v11197 = vunpack.c.l.b16 %v11159
      %v11198 = vunpack.c.h.b16 %v11159
      %v11199 = vunpack.c.l.b16 %v11160
      %v11200 = vunpack.c.h.b16 %v11160
      %v11201 = vunpack.c.l.b16 %v11161
      %v11202 = vunpack.c.h.b16 %v11161
      %v11203 = vunpack.c.l.b16 %v11162
      %v11204 = vunpack.c.h.b16 %v11162
      %v11205 = vunpack.c.l.b16 %v11163
      %v11206 = vunpack.c.h.b16 %v11163
      %v11207 = vunpack.c.l.b16 %v11164
      %v11208 = vunpack.c.h.b16 %v11164
      %v11209 = vunpack.c.l.b16 %v11165
      %v11210 = vunpack.c.h.b16 %v11165
      %v11211 = vunpack.c.l.b16 %v11166
      %v11212 = vunpack.c.h.b16 %v11166
      %v11213 = vunpack.c.l.b16 %v11167
      %v11214 = vunpack.c.h.b16 %v11167
      %v11215 = vunpack.c.l.b16 %v11168
      %v11216 = vunpack.c.h.b16 %v11168
      %v11217 = vpack.c.b16 %v11185, %v11185
      %v11218 = vpack.c.b16 %v11186, %v11186
      %v11219 = vpack.c.b16 %v11187, %v11187
      %v11220 = vpack.c.b16 %v11188, %v11188
      %v11221 = vpack.c.b16 %v11189, %v11189
      %v11222 = vpack.c.b16 %v11190, %v11190
      %v11223 = vpack.c.b16 %v11191, %v11191
      %v11224 = vpack.c.b16 %v11192, %v11192
      %v11225 = vpack.c.b16 %v11193, %v11193
      %v11226 = vpack.c.b16 %v11194, %v11194
      %v11227 = vpack.c.b16 %v11195, %v11195
      %v11228 = vpack.c.b16 %v11196, %v11196
      %v11229 = vpack.c.b16 %v11197, %v11197
      %v11230 = vpack.c.b16 %v11198, %v11198
      %v11231 = vpack.c.b16 %v11199, %v11199
      %v11232 = vpack.c.b16 %v11200, %v11200
      %v11233 = vpack.c.b16 %v11201, %v11201
      %v11234 = vpack.c.b16 %v11202, %v11202
      %v11235 = vpack.c.b16 %v11203, %v11203
      %v11236 = vpack.c.b16 %v11204, %v11204
      %v11237 = vpack.c.b16 %v11205, %v11205
      %v11238 = vpack.c.b16 %v11206, %v11206
      %v11239 = vpack.c.b16 %v11207, %v11207
      %v11240 = vpack.c.b16 %v11208, %v11208
      %v11241 = vpack.c.b16 %v11209, %v11209
      %v11242 = vpack.c.b16 %v11210, %v11210
      %v11243 = vpack.c.b16 %v11211, %v11211
      %v11244 = vpack.c.b16 %v11212, %v11212
      %v11245 = vpack.c.b16 %v11213, %v11213
      %v11246 = vpack.c.b16 %v11214, %v11214
      %v11247 = vpack.c.b16 %v11215, %v11215
      %v11248 = vpack.c.b16 %v11216, %v11216
      %11281 = vst [vmem:[%s197] sm:$0xf] %v11217
      %11282 = vst [vmem:[%s197 + $0x4] sm:$0xf] %v11218
      %11283 = vst [vmem:[%s197 + $0x8] sm:$0xf] %v11219
      %11284 = vst [vmem:[%s197 + $0xc] sm:$0xf] %v11220
      %11285 = vst [vmem:[%s197 + $0x10] sm:$0xf] %v11221
      %11286 = vst [vmem:[%s197 + $0x14] sm:$0xf] %v11222
      %11287 = vst [vmem:[%s197 + $0x18] sm:$0xf] %v11223
      %11288 = vst [vmem:[%s197 + $0x1c] sm:$0xf] %v11224
      %11289 = vst [vmem:[%s197 + $0x20] sm:$0xf] %v11225
      %11290 = vst [vmem:[%s197 + $0x24] sm:$0xf] %v11226
      %11291 = vst [vmem:[%s197 + $0x28] sm:$0xf] %v11227
      %11292 = vst [vmem:[%s197 + $0x2c] sm:$0xf] %v11228
      %11293 = vst [vmem:[%s197 + $0x30] sm:$0xf] %v11229
      %11294 = vst [vmem:[%s197 + $0x34] sm:$0xf] %v11230
      %11295 = vst [vmem:[%s197 + $0x38] sm:$0xf] %v11231
      %11296 = vst [vmem:[%s197 + $0x3c] sm:$0xf] %v11232
      %11297 = vst [vmem:[%s197 + $0x40] sm:$0xf] %v11233
      %11298 = vst [vmem:[%s197 + $0x44] sm:$0xf] %v11234
      %11299 = vst [vmem:[%s197 + $0x48] sm:$0xf] %v11235
      %11300 = vst [vmem:[%s197 + $0x4c] sm:$0xf] %v11236
      %11301 = vst [vmem:[%s197 + $0x50] sm:$0xf] %v11237
      %11302 = vst [vmem:[%s197 + $0x54] sm:$0xf] %v11238
      %11303 = vst [vmem:[%s197 + $0x58] sm:$0xf] %v11239
      %11304 = vst [vmem:[%s197 + $0x5c] sm:$0xf] %v11240
      %11305 = vst [vmem:[%s197 + $0x60] sm:$0xf] %v11241
      %11306 = vst [vmem:[%s197 + $0x64] sm:$0xf] %v11242
      %11307 = vst [vmem:[%s197 + $0x68] sm:$0xf] %v11243
      %11308 = vst [vmem:[%s197 + $0x6c] sm:$0xf] %v11244
      %11309 = vst [vmem:[%s197 + $0x70] sm:$0xf] %v11245
      %11310 = vst [vmem:[%s197 + $0x74] sm:$0xf] %v11246
      %11311 = vst [vmem:[%s197 + $0x78] sm:$0xf] %v11247
      %11312 = vst [vmem:[%s197 + $0x7c] sm:$0xf] %v11248
      %p11313 = scmp.lt.s32.totalorder %s15, 1
      %s11314 = scalar_select %p11313, %s15, 1
      %s11315 = smul.addr %s11314, 32
      %s11316 = smul.addr %s11315, 4
      %s11317 = scalar_lea.vmem %s4, %s11316
      // Predicated region
      $region37: #{basic_block_forward.1} parent=35 // pred_check
        %p11318 = pneg %p122
      $region38: #{basic_block_forward.1} parent=35 // pred_check_branch
        %11320 = sbr.rel (%p11318) target = $region40
      $region39: #{basic_block_forward.1} parent=35 // pred_region
        _
      $region40: #{basic_block_forward.1} parent=35 // pred_fallthru
        _
    $region36: #{basic_block_forward.1} parent=5 // pred_fallthru
      _
    %p11321 = scmp.le.s32.totalorder 2, %s10
    // Predicated region
    $region41: #{basic_block_forward.1} parent=5 // pred_check
      %p11322 = pneg %p11321
    $region42: #{basic_block_forward.1} parent=5 // pred_check_branch
      %11324 = sbr.rel (%p11322) target = $region44
    $region43: #{basic_block_forward.1} parent=5 // pred_region
      %s11325 = ssub.s32 %s10, 2
      // Predicated region
      $region45: #{basic_block_forward.1} parent=43 // pred_check
        %p11326 = pneg %p128
      $region46: #{basic_block_forward.1} parent=43 // pred_check_branch
        %11328 = sbr.rel (%p11326) target = $region48
      $region47: #{basic_block_forward.1} parent=43 // pred_region
        %p11329 = scmp.lt.s32.totalorder %s16, 1
        %s11330 = scalar_select %p11329, %s16, 1
        %s11331 = smul.addr %s11330, 32
        %s11332 = smul.addr %s11331, 4
        %s11333 = scalar_lea.vmem %s4, %s11332
      $region48: #{basic_block_forward.1} parent=43 // pred_fallthru
        _
    $region44: #{basic_block_forward.1} parent=5 // pred_fallthru
      _
  $region6: #{basic_block_forward.1} parent=0 // loop_footer
    %s14 = sadd.s32 1, %s10
  $region7: #{basic_block_forward.1} parent=0 // loop_footer_branch
    %9 = sbr.rel target = $region3
  $region8: #{basic_block_forward.1} parent=0 // loop_exit
    _

</llo_original>
